<compile_context>
chip_gen: v7x
topology: tpu7x:2x2x1
jax: 0.10.0
libtpu: 0.0.40
codegen_flags: <defaults>
</compile_context>

<pallas_src>
import functools

import jax
import jax.numpy as jnp
from jax import lax
from jax.experimental import pallas as pl
from jax.experimental.pallas import tpu as pltpu

DROPOUT = 0.5            # identity at inference time
EMBEDDING_DIM = 68 * 2   # 136
N_LAYERS_RNN = 3

LANE = 128               # TPU lane width
B_TILE_MIN = 8           # one f32 sublane group
B_TILE_MAX = 256         # keeps the MXU M-dim saturated on v6e/v7x
MATMUL_DTYPE = jnp.bfloat16   # operand dtype for MXU matmuls


def _round_up(x, m):
    return (x + m - 1) // m * m


def _sigmoid(x):
    # == jax.nn.sigmoid; single EUP tanh on the serial r->n->h critical path.
    return 0.5 * (jnp.tanh(0.5 * x) + 1.0)


# ----------------------------------------------------------------------------
# Fused forward kernel
# ----------------------------------------------------------------------------
def _fused_forward_kernel(
    lm_ref, len_ref,
    w0_ref, bih0_ref, whh0_ref, bhh0_ref,
    wih1_ref, bih1_ref, whh1_ref, bhh1_ref,
    wih2_ref, bih2_ref, whh2_ref, bhh2_ref,
    lc1w_ref, lc1b_ref, lc2w_ref, lc2b_ref,
    out_ref,
    gx_scr,      # VMEM (T, B_TILE, 3*Hp) f32 : input gates of the current layer
    hseq_scr,    # VMEM (T, B_TILE, Hp)   f32 : hidden sequence of previous layer
):
    T, Bt, E = lm_ref.shape
    Hp = hseq_scr.shape[-1]
    G = 3 * Hp

    lens = len_ref[...]                                    # (Bt, 1) int32

    def gru_layer(gx3d, bih_ref, whh_ref, bhh_ref, *, write_seq):
        """One GRU layer; recurrence as an in-kernel fori_loop over time."""
        gx_scr[...] = gx3d + bih_ref[...]                  # fold b_ih once
        whh = whh_ref[...]                                 # (Hp, G) bf16, hoisted
        bhh = bhh_ref[...]                                 # (1, G)  f32

        def step(t, h):
            gx_t = gx_scr[t]                               # contiguous leading-axis read
            gh = jnp.dot(h.astype(whh.dtype), whh,
                         preferred_element_type=jnp.float32) + bhh
            # PyTorch gate order r, z, n; each gate owns a full 128-lane block.
            r = _sigmoid(gx_t[:, :Hp] + gh[:, :Hp])
            z = _sigmoid(gx_t[:, Hp:2 * Hp] + gh[:, Hp:2 * Hp])
            n = jnp.tanh(gx_t[:, 2 * Hp:] + r * gh[:, 2 * Hp:])
            h_new = (1.0 - z) * n + z * h
            # pack_padded_sequence: freeze the hidden state once t >= length.
            h_next = jnp.where(t < lens, h_new, h)
            if write_seq:
                hseq_scr[t] = h_next                       # time-major writeback
            return h_next

        h0 = jnp.zeros((Bt, Hp), jnp.float32)
        return lax.fori_loop(0, T, step, h0, unroll=min(T, 8))

    # Layer 0: embed matmul folded into W0 at pack time; input is already
    # time-major bf16, so gx0 rows are ordered (t, b) with no in-kernel shuffle.
    x2d = lm_ref[...].reshape(T * Bt, E)
    gx0 = jnp.dot(x2d, w0_ref[...], preferred_element_type=jnp.float32)
    gru_layer(gx0.reshape(T, Bt, G), bih0_ref, whh0_ref, bhh0_ref, write_seq=True)

    # Layer 1: input is the time-major hidden sequence of layer 0.
    # NOTE: inter-layer GRU dropout is identity in eval mode.
    h_in = hseq_scr[...].reshape(T * Bt, Hp).astype(wih1_ref.dtype)
    gx1 = jnp.dot(h_in, wih1_ref[...], preferred_element_type=jnp.float32)
    gru_layer(gx1.reshape(T, Bt, G), bih1_ref, whh1_ref, bhh1_ref, write_seq=True)

    # Layer 2: only the final hidden state is needed -> no sequence writeback.
    h_in = hseq_scr[...].reshape(T * Bt, Hp).astype(wih2_ref.dtype)
    gx2 = jnp.dot(h_in, wih2_ref[...], preferred_element_type=jnp.float32)
    ht = gru_layer(gx2.reshape(T, Bt, G), bih2_ref, whh2_ref, bhh2_ref,
                   write_seq=False)

    # ---- classifier head: lc2(tanh(lc1(ht))); dropout = identity (eval) ---
    z1 = jnp.tanh(
        jnp.dot(ht, lc1w_ref[...], preferred_element_type=jnp.float32)
        + lc1b_ref[...])
    out_ref[...] = (
        jnp.dot(z1, lc2w_ref[...], preferred_element_type=jnp.float32)
        + lc2b_ref[...]).astype(out_ref.dtype)


# ----------------------------------------------------------------------------
# Parameter construction / packing
# ----------------------------------------------------------------------------
def init_params(key, embedding_dim, hidden_dim, target_size=1):
    """Synthetic params, shapes matching the PyTorch module (stored as W^T)."""
    ks = list(jax.random.split(key, 32))
    pop = lambda: ks.pop()

    def uni(k, shape, bound):
        return jax.random.uniform(k, shape, jnp.float32, -bound, bound)

    params = {}
    bound = 1.0 / (EMBEDDING_DIM ** 0.5)
    params["embed_w"] = uni(pop(), (EMBEDDING_DIM, EMBEDDING_DIM), bound)

    gru = []
    gbound = 1.0 / (hidden_dim ** 0.5)
    for l in range(N_LAYERS_RNN):
        in_dim = embedding_dim if l == 0 else hidden_dim
        gru.append((
            uni(pop(), (in_dim, 3 * hidden_dim), gbound),      # W_ih^T
            uni(pop(), (1, 3 * hidden_dim), gbound),           # b_ih
            uni(pop(), (hidden_dim, 3 * hidden_dim), gbound),  # W_hh^T
            uni(pop(), (1, 3 * hidden_dim), gbound),           # b_hh
        ))
    params["gru"] = gru

    bound = 1.0 / (hidden_dim ** 0.5)
    params["lc1_w"] = uni(pop(), (hidden_dim, EMBEDDING_DIM), bound)
    params["lc1_b"] = uni(pop(), (1, EMBEDDING_DIM), bound)
    bound = 1.0 / (EMBEDDING_DIM ** 0.5)
    params["lc2_w"] = uni(pop(), (EMBEDDING_DIM, target_size), bound)
    params["lc2_b"] = uni(pop(), (1, target_size), bound)
    return params


def pack_params(params, hidden_dim, target_size=1):
    """Pad gate/hidden/output dims to 128-lane multiples, fold the (bias-free)
    embed matmul into layer-0's W_ih, and cast MXU operands to bf16.  Zero
    padding is placed so padded hidden lanes stay exactly 0 through the
    recurrence (padded b_ih/b_hh/W columns are zero -> h_new = 0.5*h = 0)."""
    E = EMBEDDING_DIM
    H = hidden_dim
    Hp = _round_up(H, LANE)
    G = 3 * Hp
    Op = _round_up(target_size, LANE)

    def pad_gates(w):                       # (..., 3H) -> (..., 3Hp)
        out = jnp.zeros(w.shape[:-1] + (G,), w.dtype)
        for g in range(3):
            out = out.at[..., g * Hp:g * Hp + H].set(w[..., g * H:(g + 1) * H])
        return out

    def pad_rows(w, rows):                  # (r, n) -> (rows, n)
        return jnp.zeros((rows, w.shape[1]), w.dtype).at[:w.shape[0]].set(w)

    w_ih0, b_ih0, w_hh0, b_hh0 = params["gru"][0]
    # Fold embed (x @ Ew) into layer-0 input weights: x @ (Ew @ Wih0^T).
    w0 = params["embed_w"] @ pad_gates(w_ih0)              # (E, G) f32
    packed = [
        w0.astype(MATMUL_DTYPE),
        pad_gates(b_ih0).astype(jnp.float32),
        pad_rows(pad_gates(w_hh0), Hp).astype(MATMUL_DTYPE),
        pad_gates(b_hh0).astype(jnp.float32),
    ]
    for l in range(1, N_LAYERS_RNN):
        w_ih_t, b_ih, w_hh_t, b_hh = params["gru"][l]
        packed += [
            pad_rows(pad_gates(w_ih_t), Hp).astype(MATMUL_DTYPE),
            pad_gates(b_ih).astype(jnp.float32),
            pad_rows(pad_gates(w_hh_t), Hp).astype(MATMUL_DTYPE),
            pad_gates(b_hh).astype(jnp.float32),
        ]
    packed += [
        pad_rows(params["lc1_w"], Hp).astype(jnp.float32),   # head stays f32 (tiny)
        params["lc1_b"].astype(jnp.float32),
        jnp.zeros((E, Op), jnp.float32).at[:, :target_size].set(params["lc2_w"]),
        jnp.zeros((1, Op), jnp.float32).at[:, :target_size].set(params["lc2_b"]),
    ]
    return packed


# ----------------------------------------------------------------------------
# Batch-tile sizing (VMEM-budget aware, v7x-safe)
# ----------------------------------------------------------------------------
def _choose_b_tile(B, T, Hp, E):
    G = 3 * Hp
    # per-batch-row VMEM: gx scratch + hseq scratch (f32) + 2x bf16 input tile
    per_row = max(1, T * (G * 4 + Hp * 4 + 2 * E * 2))
    budget = 28 << 20                       # conservative: fits v7x's 32 MiB scoped default
    cap = max(B_TILE_MIN,
              min(B_TILE_MAX, (budget // per_row) // B_TILE_MIN * B_TILE_MIN))
    b_rounded = _round_up(B, B_TILE_MIN)
    if b_rounded <= cap:
        # Batch fits in one tile; if it's big enough, split in two so the
        # "parallel" grid axis can feed both TensorCores on v7x.
        if b_rounded >= 4 * B_TILE_MIN:
            return _round_up((b_rounded + 1) // 2, B_TILE_MIN)
        return b_rounded
    return cap


# ----------------------------------------------------------------------------
# Forward wrapper
# ----------------------------------------------------------------------------
@functools.partial(jax.jit, static_argnames=("hidden_dim", "target_size"))
def embed_gru_classifier_forward(packed_params, landmarks, lengths,
                                 hidden_dim, target_size=1):
    """landmarks: (B, T, EMBEDDING_DIM) f32, lengths: (B,) int -> (B, target)."""
    B, T, E = landmarks.shape
    Hp = _round_up(hidden_dim, LANE)
    G = 3 * Hp
    Op = _round_up(target_size, LANE)

    B_TILE = _choose_b_tile(B, T, Hp, E)
    Bp = _round_up(B, B_TILE)
    n_b = Bp // B_TILE

    # Pad batch, cast to bf16, and go time-major ONCE (cheap XLA transpose) so
    # the kernel reads per-step gates with plain leading-axis indices.
    lm = jnp.zeros((Bp, T, E), MATMUL_DTYPE).at[:B].set(
        landmarks.astype(MATMUL_DTYPE))
    lm = jnp.transpose(lm, (1, 0, 2))                        # (T, Bp, E)
    ln = jnp.zeros((Bp, 1), jnp.int32).at[:B, 0].set(lengths.astype(jnp.int32))

    def rep(shape):               # grid-invariant (weight/bias) operand
        zeros = (0,) * len(shape)
        return pl.BlockSpec(shape, lambda i: zeros)

    in_specs = [
        pl.BlockSpec((T, B_TILE, E), lambda i: (0, i, 0)),    # landmarks tile
        pl.BlockSpec((B_TILE, 1), lambda i: (i, 0)),          # lengths tile
        rep((E, G)),                                          # embed folded into W_ih0
        rep((1, G)), rep((Hp, G)), rep((1, G)),               # layer 0 b_ih, W_hh, b_hh
    ]
    for _ in range(1, N_LAYERS_RNN):
        in_specs += [rep((Hp, G)), rep((1, G)), rep((Hp, G)), rep((1, G))]
    in_specs += [rep((Hp, E)), rep((1, E)), rep((E, Op)), rep((1, Op))]

    # Explicit scoped-VMEM limit sized from the actual footprint (<=48 MiB so
    # it is valid on v7x's 64 MiB physical VMEM as well as v5e/v6e).
    weight_bytes = sum(int(p.size) * p.dtype.itemsize for p in packed_params)
    scratch_bytes = B_TILE * T * (G + Hp) * 4
    io_bytes = 2 * (B_TILE * T * E * 2 + B_TILE * 4 + B_TILE * Op * 4)
    vmem_limit = int(min(max(2 * (scratch_bytes + io_bytes + 2 * weight_bytes),
                             32 << 20), 48 << 20))

    out = pl.pallas_call(
        _fused_forward_kernel,
        out_shape=jax.ShapeDtypeStruct((Bp, Op), jnp.float32),
        grid=(n_b,),
        in_specs=in_specs,
        out_specs=pl.BlockSpec((B_TILE, Op), lambda i: (i, 0)),
        scratch_shapes=[
            pltpu.VMEM((T, B_TILE, G), jnp.float32),     # gx of current layer
            pltpu.VMEM((T, B_TILE, Hp), jnp.float32),    # hidden seq (time-major)
        ],
        compiler_params=pltpu.CompilerParams(
            dimension_semantics=("parallel",),           # batch tiles -> megacore / 2 TCs
            vmem_limit_bytes=vmem_limit),
    )(lm, ln, *packed_params)

    return out[:B, :target_size]


# ----------------------------------------------------------------------------
# Pure-JAX f32 reference (mirrors PyTorch eval-mode forward)
# ----------------------------------------------------------------------------
def reference_forward(params, landmarks, lengths, hidden_dim, target_size=1):
    B, T, _ = landmarks.shape
    H = hidden_dim
    x = landmarks @ params["embed_w"]                       # embed (bias-free)
    layer_in = x                                            # (B, T, in_dim)
    h = None
    for l in range(N_LAYERS_RNN):
        w_ih_t, b_ih, w_hh_t, b_hh = params["gru"][l]
        h = jnp.zeros((B, H), jnp.float32)
        hs = []
        for t in range(T):
            gx = layer_in[:, t, :] @ w_ih_t + b_ih
            gh = h @ w_hh_t + b_hh
            r = jax.nn.sigmoid(gx[:, :H] + gh[:, :H])
            z = jax.nn.sigmoid(gx[:, H:2 * H] + gh[:, H:2 * H])
            n = jnp.tanh(gx[:, 2 * H:] + r * gh[:, 2 * H:])
            h_new = (1.0 - z) * n + z * h
            h = jnp.where((t < lengths)[:, None], h_new, h)
            hs.append(h)
        layer_in = jnp.stack(hs, axis=1)                    # (B, T, H)
    ht = h
    z1 = jnp.tanh(ht @ params["lc1_w"] + params["lc1_b"])
    return z1 @ params["lc2_w"] + params["lc2_b"]


# ----------------------------------------------------------------------------
if __name__ == "__main__":
    B, T = 2, 8
    HIDDEN_DIM = 32
    key = jax.random.PRNGKey(0)
    k_param, k_x = jax.random.split(key)

    params = init_params(k_param, EMBEDDING_DIM, HIDDEN_DIM, target_size=1)
    packed = pack_params(params, HIDDEN_DIM, target_size=1)

    landmarks = jax.random.normal(k_x, (B, T, EMBEDDING_DIM), jnp.float32)
    # pack_padded_sequence expects sorted-descending lengths
    lengths = jnp.array([T, 5], dtype=jnp.int32)

    logit = embed_gru_classifier_forward(packed, landmarks, lengths,
                                         hidden_dim=HIDDEN_DIM, target_size=1)
    logit = jax.block_until_ready(logit)
    assert logit.shape == (B, 1) and logit.dtype == jnp.float32

    # Tolerance-asserted correctness vs. pure-JAX f32 reference
    # (kernel uses bf16 MXU operands -> allow a few % drift).
    ref = reference_forward(params, landmarks, lengths, HIDDEN_DIM, 1)
    err = float(jnp.max(jnp.abs(logit - ref)))
    assert err < 5e-2, f"max abs error {err} vs reference"
    print("KERNEL_OK")
</pallas_src>

<mosaic_0001>
module attributes {stable_mosaic.version = 11 : i64} {
  func.func @_fused_forward_kernel(%arg0: i32, %arg1: memref<8x8x136xbf16, #tpu.memory_space<vmem>>, %arg2: memref<8x1xi32, #tpu.memory_space<vmem>>, %arg3: memref<136x384xbf16, #tpu.memory_space<vmem>>, %arg4: memref<1x384xf32, #tpu.memory_space<vmem>>, %arg5: memref<128x384xbf16, #tpu.memory_space<vmem>>, %arg6: memref<1x384xf32, #tpu.memory_space<vmem>>, %arg7: memref<128x384xbf16, #tpu.memory_space<vmem>>, %arg8: memref<1x384xf32, #tpu.memory_space<vmem>>, %arg9: memref<128x384xbf16, #tpu.memory_space<vmem>>, %arg10: memref<1x384xf32, #tpu.memory_space<vmem>>, %arg11: memref<128x384xbf16, #tpu.memory_space<vmem>>, %arg12: memref<1x384xf32, #tpu.memory_space<vmem>>, %arg13: memref<128x384xbf16, #tpu.memory_space<vmem>>, %arg14: memref<1x384xf32, #tpu.memory_space<vmem>>, %arg15: memref<128x136xf32, #tpu.memory_space<vmem>>, %arg16: memref<1x136xf32, #tpu.memory_space<vmem>>, %arg17: memref<136x128xf32, #tpu.memory_space<vmem>>, %arg18: memref<1x128xf32, #tpu.memory_space<vmem>>, %arg19: memref<8x128xf32, #tpu.memory_space<vmem>>, %arg20: memref<8x8x384xf32, #tpu.memory_space<vmem>>, %arg21: memref<8x8x128xf32, #tpu.memory_space<vmem>>) attributes {dimension_semantics = [#tpu.dimension_semantics<parallel>], iteration_bounds = array<i64: 1>, scalar_prefetch = 0 : i64, scratch_operands = 2 : i64, tpu.core_type = #tpu.core_type<tc>, window_params = [{transform_indices = @transform_0, window_bounds = array<i64: 8, 8, 136>}, {transform_indices = @transform_1, window_bounds = array<i64: 8, 1>}, {pipeline_mode = #tpu.pipeline_mode<synchronous>, transform_indices = @transform_2, window_bounds = array<i64: 136, 384>}, {pipeline_mode = #tpu.pipeline_mode<synchronous>, transform_indices = @transform_3, window_bounds = array<i64: 1, 384>}, {pipeline_mode = #tpu.pipeline_mode<synchronous>, transform_indices = @transform_4, window_bounds = array<i64: 128, 384>}, {pipeline_mode = #tpu.pipeline_mode<synchronous>, transform_indices = @transform_5, window_bounds = array<i64: 1, 384>}, {pipeline_mode = #tpu.pipeline_mode<synchronous>, transform_indices = @transform_6, window_bounds = array<i64: 128, 384>}, {pipeline_mode = #tpu.pipeline_mode<synchronous>, transform_indices = @transform_7, window_bounds = array<i64: 1, 384>}, {pipeline_mode = #tpu.pipeline_mode<synchronous>, transform_indices = @transform_8, window_bounds = array<i64: 128, 384>}, {pipeline_mode = #tpu.pipeline_mode<synchronous>, transform_indices = @transform_9, window_bounds = array<i64: 1, 384>}, {pipeline_mode = #tpu.pipeline_mode<synchronous>, transform_indices = @transform_10, window_bounds = array<i64: 128, 384>}, {pipeline_mode = #tpu.pipeline_mode<synchronous>, transform_indices = @transform_11, window_bounds = array<i64: 1, 384>}, {pipeline_mode = #tpu.pipeline_mode<synchronous>, transform_indices = @transform_12, window_bounds = array<i64: 128, 384>}, {pipeline_mode = #tpu.pipeline_mode<synchronous>, transform_indices = @transform_13, window_bounds = array<i64: 1, 384>}, {pipeline_mode = #tpu.pipeline_mode<synchronous>, transform_indices = @transform_14, window_bounds = array<i64: 128, 136>}, {pipeline_mode = #tpu.pipeline_mode<synchronous>, transform_indices = @transform_15, window_bounds = array<i64: 1, 136>}, {pipeline_mode = #tpu.pipeline_mode<synchronous>, transform_indices = @transform_16, window_bounds = array<i64: 136, 128>}, {pipeline_mode = #tpu.pipeline_mode<synchronous>, transform_indices = @transform_17, window_bounds = array<i64: 1, 128>}, {transform_indices = @transform_18, window_bounds = array<i64: 8, 128>}]} {
    %c0 = arith.constant 0 : index
    %c0_0 = arith.constant 0 : index
    %0 = vector.load %arg2[%c0, %c0_0] : memref<8x1xi32, #tpu.memory_space<vmem>>, vector<8x1xi32>
    %c0_1 = arith.constant 0 : index
    %c0_2 = arith.constant 0 : index
    %c0_3 = arith.constant 0 : index
    %1 = vector.load %arg1[%c0_1, %c0_2, %c0_3] : memref<8x8x136xbf16, #tpu.memory_space<vmem>>, vector<8x8x136xbf16>
    %2 = vector.shape_cast %1 : vector<8x8x136xbf16> to vector<64x136xbf16>
    %c0_4 = arith.constant 0 : index
    %c0_5 = arith.constant 0 : index
    %3 = vector.load %arg3[%c0_4, %c0_5] : memref<136x384xbf16, #tpu.memory_space<vmem>>, vector<136x384xbf16>
    %cst = arith.constant dense<0.000000e+00> : vector<64x384xf32>
    %4 = tpu.matmul %2, %3, %cst {dimension_numbers = #tpu.dot_dimension_numbers<[1], [0], [0], [1], [0, 0, 1, 1], [], []>} : vector<64x136xbf16>, vector<136x384xbf16>, vector<64x384xf32> -> vector<64x384xf32>
    %5 = vector.shape_cast %4 : vector<64x384xf32> to vector<8x8x384xf32>
    %c0_6 = arith.constant 0 : index
    %c0_7 = arith.constant 0 : index
    %6 = vector.load %arg4[%c0_6, %c0_7] : memref<1x384xf32, #tpu.memory_space<vmem>>, vector<1x384xf32>
    %7 = vector.shape_cast %6 : vector<1x384xf32> to vector<1x1x384xf32>
    %8 = vector.broadcast %7 : vector<1x1x384xf32> to vector<8x8x384xf32>
    %9 = arith.addf %5, %8 : vector<8x8x384xf32>
    %c0_8 = arith.constant 0 : index
    %c0_9 = arith.constant 0 : index
    %c0_10 = arith.constant 0 : index
    %10 = vector.load %arg20[%c0_8, %c0_9, %c0_10] : memref<8x8x384xf32, #tpu.memory_space<vmem>>, vector<8x8x384xf32>
    tpu.vector_store %arg20[%c0_8, %c0_9, %c0_10], %9 {strides = array<i32>} : memref<8x8x384xf32, #tpu.memory_space<vmem>>, vector<8x8x384xf32>,
    %c0_11 = arith.constant 0 : index
    %c0_12 = arith.constant 0 : index
    %11 = vector.load %arg5[%c0_11, %c0_12] : memref<128x384xbf16, #tpu.memory_space<vmem>>, vector<128x384xbf16>
    %c0_13 = arith.constant 0 : index
    %c0_14 = arith.constant 0 : index
    %12 = vector.load %arg6[%c0_13, %c0_14] : memref<1x384xf32, #tpu.memory_space<vmem>>, vector<1x384xf32>
    %cst_15 = arith.constant 0.000000e+00 : f32
    %13 = vector.broadcast %cst_15 : f32 to vector<8x128xf32>
    %c0_i32 = arith.constant 0 : i32
    %14 = arith.index_cast %c0_i32 : i32 to index
    %c0_16 = arith.constant 0 : index
    %c0_17 = arith.constant 0 : index
    %15 = vector.load %arg20[%14, %c0_16, %c0_17] : memref<8x8x384xf32, #tpu.memory_space<vmem>>, vector<1x8x384xf32>
    %16 = vector.shape_cast %15 : vector<1x8x384xf32> to vector<8x384xf32>
    %17 = arith.truncf %13 : vector<8x128xf32> to vector<8x128xbf16>
    %cst_18 = arith.constant dense<0.000000e+00> : vector<8x384xf32>
    %18 = tpu.matmul %17, %11, %cst_18 {dimension_numbers = #tpu.dot_dimension_numbers<[1], [0], [0], [1], [0, 0, 1, 1], [], []>} : vector<8x128xbf16>, vector<128x384xbf16>, vector<8x384xf32> -> vector<8x384xf32>
    %19 = vector.broadcast %12 : vector<1x384xf32> to vector<8x384xf32>
    %20 = arith.addf %18, %19 : vector<8x384xf32>
    %21 = vector.extract_strided_slice %16 {offsets = [0, 0], sizes = [8, 128], strides = [1, 1]} : vector<8x384xf32> to vector<8x128xf32>
    %22 = vector.extract_strided_slice %20 {offsets = [0, 0], sizes = [8, 128], strides = [1, 1]} : vector<8x384xf32> to vector<8x128xf32>
    %23 = arith.addf %21, %22 : vector<8x128xf32>
    %cst_19 = arith.constant 5.000000e-01 : f32
    %24 = vector.broadcast %cst_19 : f32 to vector<8x128xf32>
    %25 = arith.mulf %24, %23 : vector<8x128xf32>
    %26 = math.tanh %25 : vector<8x128xf32>
    %cst_20 = arith.constant 1.000000e+00 : f32
    %27 = vector.broadcast %cst_20 : f32 to vector<8x128xf32>
    %28 = arith.addf %26, %27 : vector<8x128xf32>
    %cst_21 = arith.constant 5.000000e-01 : f32
    %29 = vector.broadcast %cst_21 : f32 to vector<8x128xf32>
    %30 = arith.mulf %29, %28 : vector<8x128xf32>
    %31 = vector.extract_strided_slice %16 {offsets = [0, 128], sizes = [8, 128], strides = [1, 1]} : vector<8x384xf32> to vector<8x128xf32>
    %32 = vector.extract_strided_slice %20 {offsets = [0, 128], sizes = [8, 128], strides = [1, 1]} : vector<8x384xf32> to vector<8x128xf32>
    %33 = arith.addf %31, %32 : vector<8x128xf32>
    %cst_22 = arith.constant 5.000000e-01 : f32
    %34 = vector.broadcast %cst_22 : f32 to vector<8x128xf32>
    %35 = arith.mulf %34, %33 : vector<8x128xf32>
    %36 = math.tanh %35 : vector<8x128xf32>
    %cst_23 = arith.constant 1.000000e+00 : f32
    %37 = vector.broadcast %cst_23 : f32 to vector<8x128xf32>
    %38 = arith.addf %36, %37 : vector<8x128xf32>
    %cst_24 = arith.constant 5.000000e-01 : f32
    %39 = vector.broadcast %cst_24 : f32 to vector<8x128xf32>
    %40 = arith.mulf %39, %38 : vector<8x128xf32>
    %41 = vector.extract_strided_slice %16 {offsets = [0, 256], sizes = [8, 128], strides = [1, 1]} : vector<8x384xf32> to vector<8x128xf32>
    %42 = vector.extract_strided_slice %20 {offsets = [0, 256], sizes = [8, 128], strides = [1, 1]} : vector<8x384xf32> to vector<8x128xf32>
    %43 = arith.mulf %30, %42 : vector<8x128xf32>
    %44 = arith.addf %41, %43 : vector<8x128xf32>
    %45 = math.tanh %44 : vector<8x128xf32>
    %cst_25 = arith.constant 1.000000e+00 : f32
    %46 = vector.broadcast %cst_25 : f32 to vector<8x128xf32>
    %47 = arith.subf %46, %40 : vector<8x128xf32>
    %48 = arith.mulf %47, %45 : vector<8x128xf32>
    %49 = arith.mulf %40, %13 : vector<8x128xf32>
    %50 = arith.addf %48, %49 : vector<8x128xf32>
    %51 = vector.broadcast %c0_i32 : i32 to vector<8x1xi32>
    %52 = arith.cmpi slt, %51, %0 : vector<8x1xi32>
    %53 = vector.shape_cast %52 : vector<8x1xi1> to vector<8x1xi1>
    %54 = vector.broadcast %53 : vector<8x1xi1> to vector<8x128xi1>
    %55 = arith.select %54, %50, %13 : vector<8x128xi1>, vector<8x128xf32>
    %56 = arith.index_cast %c0_i32 : i32 to index
    %c0_26 = arith.constant 0 : index
    %c0_27 = arith.constant 0 : index
    %57 = vector.load %arg21[%56, %c0_26, %c0_27] : memref<8x8x128xf32, #tpu.memory_space<vmem>>, vector<1x8x128xf32>
    %58 = vector.shape_cast %57 : vector<1x8x128xf32> to vector<8x128xf32>
    %59 = vector.shape_cast %55 : vector<8x128xf32> to vector<1x8x128xf32>
    tpu.vector_store %arg21[%56, %c0_26, %c0_27], %59 {strides = array<i32>} : memref<8x8x128xf32, #tpu.memory_space<vmem>>, vector<1x8x128xf32>,
    %c1_i32 = arith.constant 1 : i32
    %60 = arith.index_cast %c1_i32 : i32 to index
    %c0_28 = arith.constant 0 : index
    %c0_29 = arith.constant 0 : index
    %61 = vector.load %arg20[%60, %c0_28, %c0_29] : memref<8x8x384xf32, #tpu.memory_space<vmem>>, vector<1x8x384xf32>
    %62 = vector.shape_cast %61 : vector<1x8x384xf32> to vector<8x384xf32>
    %63 = arith.truncf %55 : vector<8x128xf32> to vector<8x128xbf16>
    %cst_30 = arith.constant dense<0.000000e+00> : vector<8x384xf32>
    %64 = tpu.matmul %63, %11, %cst_30 {dimension_numbers = #tpu.dot_dimension_numbers<[1], [0], [0], [1], [0, 0, 1, 1], [], []>} : vector<8x128xbf16>, vector<128x384xbf16>, vector<8x384xf32> -> vector<8x384xf32>
    %65 = vector.broadcast %12 : vector<1x384xf32> to vector<8x384xf32>
    %66 = arith.addf %64, %65 : vector<8x384xf32>
    %67 = vector.extract_strided_slice %62 {offsets = [0, 0], sizes = [8, 128], strides = [1, 1]} : vector<8x384xf32> to vector<8x128xf32>
    %68 = vector.extract_strided_slice %66 {offsets = [0, 0], sizes = [8, 128], strides = [1, 1]} : vector<8x384xf32> to vector<8x128xf32>
    %69 = arith.addf %67, %68 : vector<8x128xf32>
    %cst_31 = arith.constant 5.000000e-01 : f32
    %70 = vector.broadcast %cst_31 : f32 to vector<8x128xf32>
    %71 = arith.mulf %70, %69 : vector<8x128xf32>
    %72 = math.tanh %71 : vector<8x128xf32>
    %cst_32 = arith.constant 1.000000e+00 : f32
    %73 = vector.broadcast %cst_32 : f32 to vector<8x128xf32>
    %74 = arith.addf %72, %73 : vector<8x128xf32>
    %cst_33 = arith.constant 5.000000e-01 : f32
    %75 = vector.broadcast %cst_33 : f32 to vector<8x128xf32>
    %76 = arith.mulf %75, %74 : vector<8x128xf32>
    %77 = vector.extract_strided_slice %62 {offsets = [0, 128], sizes = [8, 128], strides = [1, 1]} : vector<8x384xf32> to vector<8x128xf32>
    %78 = vector.extract_strided_slice %66 {offsets = [0, 128], sizes = [8, 128], strides = [1, 1]} : vector<8x384xf32> to vector<8x128xf32>
    %79 = arith.addf %77, %78 : vector<8x128xf32>
    %cst_34 = arith.constant 5.000000e-01 : f32
    %80 = vector.broadcast %cst_34 : f32 to vector<8x128xf32>
    %81 = arith.mulf %80, %79 : vector<8x128xf32>
    %82 = math.tanh %81 : vector<8x128xf32>
    %cst_35 = arith.constant 1.000000e+00 : f32
    %83 = vector.broadcast %cst_35 : f32 to vector<8x128xf32>
    %84 = arith.addf %82, %83 : vector<8x128xf32>
    %cst_36 = arith.constant 5.000000e-01 : f32
    %85 = vector.broadcast %cst_36 : f32 to vector<8x128xf32>
    %86 = arith.mulf %85, %84 : vector<8x128xf32>
    %87 = vector.extract_strided_slice %62 {offsets = [0, 256], sizes = [8, 128], strides = [1, 1]} : vector<8x384xf32> to vector<8x128xf32>
    %88 = vector.extract_strided_slice %66 {offsets = [0, 256], sizes = [8, 128], strides = [1, 1]} : vector<8x384xf32> to vector<8x128xf32>
    %89 = arith.mulf %76, %88 : vector<8x128xf32>
    %90 = arith.addf %87, %89 : vector<8x128xf32>
    %91 = math.tanh %90 : vector<8x128xf32>
    %cst_37 = arith.constant 1.000000e+00 : f32
    %92 = vector.broadcast %cst_37 : f32 to vector<8x128xf32>
    %93 = arith.subf %92, %86 : vector<8x128xf32>
    %94 = arith.mulf %93, %91 : vector<8x128xf32>
    %95 = arith.mulf %86, %55 : vector<8x128xf32>
    %96 = arith.addf %94, %95 : vector<8x128xf32>
    %97 = vector.broadcast %c1_i32 : i32 to vector<8x1xi32>
    %98 = arith.cmpi slt, %97, %0 : vector<8x1xi32>
    %99 = vector.shape_cast %98 : vector<8x1xi1> to vector<8x1xi1>
    %100 = vector.broadcast %99 : vector<8x1xi1> to vector<8x128xi1>
    %101 = arith.select %100, %96, %55 : vector<8x128xi1>, vector<8x128xf32>
    %102 = arith.index_cast %c1_i32 : i32 to index
    %c0_38 = arith.constant 0 : index
    %c0_39 = arith.constant 0 : index
    %103 = vector.load %arg21[%102, %c0_38, %c0_39] : memref<8x8x128xf32, #tpu.memory_space<vmem>>, vector<1x8x128xf32>
    %104 = vector.shape_cast %103 : vector<1x8x128xf32> to vector<8x128xf32>
    %105 = vector.shape_cast %101 : vector<8x128xf32> to vector<1x8x128xf32>
    tpu.vector_store %arg21[%102, %c0_38, %c0_39], %105 {strides = array<i32>} : memref<8x8x128xf32, #tpu.memory_space<vmem>>, vector<1x8x128xf32>,
    %c2_i32 = arith.constant 2 : i32
    %106 = arith.index_cast %c2_i32 : i32 to index
    %c0_40 = arith.constant 0 : index
    %c0_41 = arith.constant 0 : index
    %107 = vector.load %arg20[%106, %c0_40, %c0_41] : memref<8x8x384xf32, #tpu.memory_space<vmem>>, vector<1x8x384xf32>
    %108 = vector.shape_cast %107 : vector<1x8x384xf32> to vector<8x384xf32>
    %109 = arith.truncf %101 : vector<8x128xf32> to vector<8x128xbf16>
    %cst_42 = arith.constant dense<0.000000e+00> : vector<8x384xf32>
    %110 = tpu.matmul %109, %11, %cst_42 {dimension_numbers = #tpu.dot_dimension_numbers<[1], [0], [0], [1], [0, 0, 1, 1], [], []>} : vector<8x128xbf16>, vector<128x384xbf16>, vector<8x384xf32> -> vector<8x384xf32>
    %111 = vector.broadcast %12 : vector<1x384xf32> to vector<8x384xf32>
    %112 = arith.addf %110, %111 : vector<8x384xf32>
    %113 = vector.extract_strided_slice %108 {offsets = [0, 0], sizes = [8, 128], strides = [1, 1]} : vector<8x384xf32> to vector<8x128xf32>
    %114 = vector.extract_strided_slice %112 {offsets = [0, 0], sizes = [8, 128], strides = [1, 1]} : vector<8x384xf32> to vector<8x128xf32>
    %115 = arith.addf %113, %114 : vector<8x128xf32>
    %cst_43 = arith.constant 5.000000e-01 : f32
    %116 = vector.broadcast %cst_43 : f32 to vector<8x128xf32>
    %117 = arith.mulf %116, %115 : vector<8x128xf32>
    %118 = math.tanh %117 : vector<8x128xf32>
    %cst_44 = arith.constant 1.000000e+00 : f32
    %119 = vector.broadcast %cst_44 : f32 to vector<8x128xf32>
    %120 = arith.addf %118, %119 : vector<8x128xf32>
    %cst_45 = arith.constant 5.000000e-01 : f32
    %121 = vector.broadcast %cst_45 : f32 to vector<8x128xf32>
    %122 = arith.mulf %121, %120 : vector<8x128xf32>
    %123 = vector.extract_strided_slice %108 {offsets = [0, 128], sizes = [8, 128], strides = [1, 1]} : vector<8x384xf32> to vector<8x128xf32>
    %124 = vector.extract_strided_slice %112 {offsets = [0, 128], sizes = [8, 128], strides = [1, 1]} : vector<8x384xf32> to vector<8x128xf32>
    %125 = arith.addf %123, %124 : vector<8x128xf32>
    %cst_46 = arith.constant 5.000000e-01 : f32
    %126 = vector.broadcast %cst_46 : f32 to vector<8x128xf32>
    %127 = arith.mulf %126, %125 : vector<8x128xf32>
    %128 = math.tanh %127 : vector<8x128xf32>
    %cst_47 = arith.constant 1.000000e+00 : f32
    %129 = vector.broadcast %cst_47 : f32 to vector<8x128xf32>
    %130 = arith.addf %128, %129 : vector<8x128xf32>
    %cst_48 = arith.constant 5.000000e-01 : f32
    %131 = vector.broadcast %cst_48 : f32 to vector<8x128xf32>
    %132 = arith.mulf %131, %130 : vector<8x128xf32>
    %133 = vector.extract_strided_slice %108 {offsets = [0, 256], sizes = [8, 128], strides = [1, 1]} : vector<8x384xf32> to vector<8x128xf32>
    %134 = vector.extract_strided_slice %112 {offsets = [0, 256], sizes = [8, 128], strides = [1, 1]} : vector<8x384xf32> to vector<8x128xf32>
    %135 = arith.mulf %122, %134 : vector<8x128xf32>
    %136 = arith.addf %133, %135 : vector<8x128xf32>
    %137 = math.tanh %136 : vector<8x128xf32>
    %cst_49 = arith.constant 1.000000e+00 : f32
    %138 = vector.broadcast %cst_49 : f32 to vector<8x128xf32>
    %139 = arith.subf %138, %132 : vector<8x128xf32>
    %140 = arith.mulf %139, %137 : vector<8x128xf32>
    %141 = arith.mulf %132, %101 : vector<8x128xf32>
    %142 = arith.addf %140, %141 : vector<8x128xf32>
    %143 = vector.broadcast %c2_i32 : i32 to vector<8x1xi32>
    %144 = arith.cmpi slt, %143, %0 : vector<8x1xi32>
    %145 = vector.shape_cast %144 : vector<8x1xi1> to vector<8x1xi1>
    %146 = vector.broadcast %145 : vector<8x1xi1> to vector<8x128xi1>
    %147 = arith.select %146, %142, %101 : vector<8x128xi1>, vector<8x128xf32>
    %148 = arith.index_cast %c2_i32 : i32 to index
    %c0_50 = arith.constant 0 : index
    %c0_51 = arith.constant 0 : index
    %149 = vector.load %arg21[%148, %c0_50, %c0_51] : memref<8x8x128xf32, #tpu.memory_space<vmem>>, vector<1x8x128xf32>
    %150 = vector.shape_cast %149 : vector<1x8x128xf32> to vector<8x128xf32>
    %151 = vector.shape_cast %147 : vector<8x128xf32> to vector<1x8x128xf32>
    tpu.vector_store %arg21[%148, %c0_50, %c0_51], %151 {strides = array<i32>} : memref<8x8x128xf32, #tpu.memory_space<vmem>>, vector<1x8x128xf32>,
    %c3_i32 = arith.constant 3 : i32
    %152 = arith.index_cast %c3_i32 : i32 to index
    %c0_52 = arith.constant 0 : index
    %c0_53 = arith.constant 0 : index
    %153 = vector.load %arg20[%152, %c0_52, %c0_53] : memref<8x8x384xf32, #tpu.memory_space<vmem>>, vector<1x8x384xf32>
    %154 = vector.shape_cast %153 : vector<1x8x384xf32> to vector<8x384xf32>
    %155 = arith.truncf %147 : vector<8x128xf32> to vector<8x128xbf16>
    %cst_54 = arith.constant dense<0.000000e+00> : vector<8x384xf32>
    %156 = tpu.matmul %155, %11, %cst_54 {dimension_numbers = #tpu.dot_dimension_numbers<[1], [0], [0], [1], [0, 0, 1, 1], [], []>} : vector<8x128xbf16>, vector<128x384xbf16>, vector<8x384xf32> -> vector<8x384xf32>
    %157 = vector.broadcast %12 : vector<1x384xf32> to vector<8x384xf32>
    %158 = arith.addf %156, %157 : vector<8x384xf32>
    %159 = vector.extract_strided_slice %154 {offsets = [0, 0], sizes = [8, 128], strides = [1, 1]} : vector<8x384xf32> to vector<8x128xf32>
    %160 = vector.extract_strided_slice %158 {offsets = [0, 0], sizes = [8, 128], strides = [1, 1]} : vector<8x384xf32> to vector<8x128xf32>
    %161 = arith.addf %159, %160 : vector<8x128xf32>
    %cst_55 = arith.constant 5.000000e-01 : f32
    %162 = vector.broadcast %cst_55 : f32 to vector<8x128xf32>
    %163 = arith.mulf %162, %161 : vector<8x128xf32>
    %164 = math.tanh %163 : vector<8x128xf32>
    %cst_56 = arith.constant 1.000000e+00 : f32
    %165 = vector.broadcast %cst_56 : f32 to vector<8x128xf32>
    %166 = arith.addf %164, %165 : vector<8x128xf32>
    %cst_57 = arith.constant 5.000000e-01 : f32
    %167 = vector.broadcast %cst_57 : f32 to vector<8x128xf32>
    %168 = arith.mulf %167, %166 : vector<8x128xf32>
    %169 = vector.extract_strided_slice %154 {offsets = [0, 128], sizes = [8, 128], strides = [1, 1]} : vector<8x384xf32> to vector<8x128xf32>
    %170 = vector.extract_strided_slice %158 {offsets = [0, 128], sizes = [8, 128], strides = [1, 1]} : vector<8x384xf32> to vector<8x128xf32>
    %171 = arith.addf %169, %170 : vector<8x128xf32>
    %cst_58 = arith.constant 5.000000e-01 : f32
    %172 = vector.broadcast %cst_58 : f32 to vector<8x128xf32>
    %173 = arith.mulf %172, %171 : vector<8x128xf32>
    %174 = math.tanh %173 : vector<8x128xf32>
    %cst_59 = arith.constant 1.000000e+00 : f32
    %175 = vector.broadcast %cst_59 : f32 to vector<8x128xf32>
    %176 = arith.addf %174, %175 : vector<8x128xf32>
    %cst_60 = arith.constant 5.000000e-01 : f32
    %177 = vector.broadcast %cst_60 : f32 to vector<8x128xf32>
    %178 = arith.mulf %177, %176 : vector<8x128xf32>
    %179 = vector.extract_strided_slice %154 {offsets = [0, 256], sizes = [8, 128], strides = [1, 1]} : vector<8x384xf32> to vector<8x128xf32>
    %180 = vector.extract_strided_slice %158 {offsets = [0, 256], sizes = [8, 128], strides = [1, 1]} : vector<8x384xf32> to vector<8x128xf32>
    %181 = arith.mulf %168, %180 : vector<8x128xf32>
    %182 = arith.addf %179, %181 : vector<8x128xf32>
    %183 = math.tanh %182 : vector<8x128xf32>
    %cst_61 = arith.constant 1.000000e+00 : f32
    %184 = vector.broadcast %cst_61 : f32 to vector<8x128xf32>
    %185 = arith.subf %184, %178 : vector<8x128xf32>
    %186 = arith.mulf %185, %183 : vector<8x128xf32>
    %187 = arith.mulf %178, %147 : vector<8x128xf32>
    %188 = arith.addf %186, %187 : vector<8x128xf32>
    %189 = vector.broadcast %c3_i32 : i32 to vector<8x1xi32>
    %190 = arith.cmpi slt, %189, %0 : vector<8x1xi32>
    %191 = vector.shape_cast %190 : vector<8x1xi1> to vector<8x1xi1>
    %192 = vector.broadcast %191 : vector<8x1xi1> to vector<8x128xi1>
    %193 = arith.select %192, %188, %147 : vector<8x128xi1>, vector<8x128xf32>
    %194 = arith.index_cast %c3_i32 : i32 to index
    %c0_62 = arith.constant 0 : index
    %c0_63 = arith.constant 0 : index
    %195 = vector.load %arg21[%194, %c0_62, %c0_63] : memref<8x8x128xf32, #tpu.memory_space<vmem>>, vector<1x8x128xf32>
    %196 = vector.shape_cast %195 : vector<1x8x128xf32> to vector<8x128xf32>
    %197 = vector.shape_cast %193 : vector<8x128xf32> to vector<1x8x128xf32>
    tpu.vector_store %arg21[%194, %c0_62, %c0_63], %197 {strides = array<i32>} : memref<8x8x128xf32, #tpu.memory_space<vmem>>, vector<1x8x128xf32>,
    %c4_i32 = arith.constant 4 : i32
    %198 = arith.index_cast %c4_i32 : i32 to index
    %c0_64 = arith.constant 0 : index
    %c0_65 = arith.constant 0 : index
    %199 = vector.load %arg20[%198, %c0_64, %c0_65] : memref<8x8x384xf32, #tpu.memory_space<vmem>>, vector<1x8x384xf32>
    %200 = vector.shape_cast %199 : vector<1x8x384xf32> to vector<8x384xf32>
    %201 = arith.truncf %193 : vector<8x128xf32> to vector<8x128xbf16>
    %cst_66 = arith.constant dense<0.000000e+00> : vector<8x384xf32>
    %202 = tpu.matmul %201, %11, %cst_66 {dimension_numbers = #tpu.dot_dimension_numbers<[1], [0], [0], [1], [0, 0, 1, 1], [], []>} : vector<8x128xbf16>, vector<128x384xbf16>, vector<8x384xf32> -> vector<8x384xf32>
    %203 = vector.broadcast %12 : vector<1x384xf32> to vector<8x384xf32>
    %204 = arith.addf %202, %203 : vector<8x384xf32>
    %205 = vector.extract_strided_slice %200 {offsets = [0, 0], sizes = [8, 128], strides = [1, 1]} : vector<8x384xf32> to vector<8x128xf32>
    %206 = vector.extract_strided_slice %204 {offsets = [0, 0], sizes = [8, 128], strides = [1, 1]} : vector<8x384xf32> to vector<8x128xf32>
    %207 = arith.addf %205, %206 : vector<8x128xf32>
    %cst_67 = arith.constant 5.000000e-01 : f32
    %208 = vector.broadcast %cst_67 : f32 to vector<8x128xf32>
    %209 = arith.mulf %208, %207 : vector<8x128xf32>
    %210 = math.tanh %209 : vector<8x128xf32>
    %cst_68 = arith.constant 1.000000e+00 : f32
    %211 = vector.broadcast %cst_68 : f32 to vector<8x128xf32>
    %212 = arith.addf %210, %211 : vector<8x128xf32>
    %cst_69 = arith.constant 5.000000e-01 : f32
    %213 = vector.broadcast %cst_69 : f32 to vector<8x128xf32>
    %214 = arith.mulf %213, %212 : vector<8x128xf32>
    %215 = vector.extract_strided_slice %200 {offsets = [0, 128], sizes = [8, 128], strides = [1, 1]} : vector<8x384xf32> to vector<8x128xf32>
    %216 = vector.extract_strided_slice %204 {offsets = [0, 128], sizes = [8, 128], strides = [1, 1]} : vector<8x384xf32> to vector<8x128xf32>
    %217 = arith.addf %215, %216 : vector<8x128xf32>
    %cst_70 = arith.constant 5.000000e-01 : f32
    %218 = vector.broadcast %cst_70 : f32 to vector<8x128xf32>
    %219 = arith.mulf %218, %217 : vector<8x128xf32>
    %220 = math.tanh %219 : vector<8x128xf32>
    %cst_71 = arith.constant 1.000000e+00 : f32
    %221 = vector.broadcast %cst_71 : f32 to vector<8x128xf32>
    %222 = arith.addf %220, %221 : vector<8x128xf32>
    %cst_72 = arith.constant 5.000000e-01 : f32
    %223 = vector.broadcast %cst_72 : f32 to vector<8x128xf32>
    %224 = arith.mulf %223, %222 : vector<8x128xf32>
    %225 = vector.extract_strided_slice %200 {offsets = [0, 256], sizes = [8, 128], strides = [1, 1]} : vector<8x384xf32> to vector<8x128xf32>
    %226 = vector.extract_strided_slice %204 {offsets = [0, 256], sizes = [8, 128], strides = [1, 1]} : vector<8x384xf32> to vector<8x128xf32>
    %227 = arith.mulf %214, %226 : vector<8x128xf32>
    %228 = arith.addf %225, %227 : vector<8x128xf32>
    %229 = math.tanh %228 : vector<8x128xf32>
    %cst_73 = arith.constant 1.000000e+00 : f32
    %230 = vector.broadcast %cst_73 : f32 to vector<8x128xf32>
    %231 = arith.subf %230, %224 : vector<8x128xf32>
    %232 = arith.mulf %231, %229 : vector<8x128xf32>
    %233 = arith.mulf %224, %193 : vector<8x128xf32>
    %234 = arith.addf %232, %233 : vector<8x128xf32>
    %235 = vector.broadcast %c4_i32 : i32 to vector<8x1xi32>
    %236 = arith.cmpi slt, %235, %0 : vector<8x1xi32>
    %237 = vector.shape_cast %236 : vector<8x1xi1> to vector<8x1xi1>
    %238 = vector.broadcast %237 : vector<8x1xi1> to vector<8x128xi1>
    %239 = arith.select %238, %234, %193 : vector<8x128xi1>, vector<8x128xf32>
    %240 = arith.index_cast %c4_i32 : i32 to index
    %c0_74 = arith.constant 0 : index
    %c0_75 = arith.constant 0 : index
    %241 = vector.load %arg21[%240, %c0_74, %c0_75] : memref<8x8x128xf32, #tpu.memory_space<vmem>>, vector<1x8x128xf32>
    %242 = vector.shape_cast %241 : vector<1x8x128xf32> to vector<8x128xf32>
    %243 = vector.shape_cast %239 : vector<8x128xf32> to vector<1x8x128xf32>
    tpu.vector_store %arg21[%240, %c0_74, %c0_75], %243 {strides = array<i32>} : memref<8x8x128xf32, #tpu.memory_space<vmem>>, vector<1x8x128xf32>,
    %c5_i32 = arith.constant 5 : i32
    %244 = arith.index_cast %c5_i32 : i32 to index
    %c0_76 = arith.constant 0 : index
    %c0_77 = arith.constant 0 : index
    %245 = vector.load %arg20[%244, %c0_76, %c0_77] : memref<8x8x384xf32, #tpu.memory_space<vmem>>, vector<1x8x384xf32>
    %246 = vector.shape_cast %245 : vector<1x8x384xf32> to vector<8x384xf32>
    %247 = arith.truncf %239 : vector<8x128xf32> to vector<8x128xbf16>
    %cst_78 = arith.constant dense<0.000000e+00> : vector<8x384xf32>
    %248 = tpu.matmul %247, %11, %cst_78 {dimension_numbers = #tpu.dot_dimension_numbers<[1], [0], [0], [1], [0, 0, 1, 1], [], []>} : vector<8x128xbf16>, vector<128x384xbf16>, vector<8x384xf32> -> vector<8x384xf32>
    %249 = vector.broadcast %12 : vector<1x384xf32> to vector<8x384xf32>
    %250 = arith.addf %248, %249 : vector<8x384xf32>
    %251 = vector.extract_strided_slice %246 {offsets = [0, 0], sizes = [8, 128], strides = [1, 1]} : vector<8x384xf32> to vector<8x128xf32>
    %252 = vector.extract_strided_slice %250 {offsets = [0, 0], sizes = [8, 128], strides = [1, 1]} : vector<8x384xf32> to vector<8x128xf32>
    %253 = arith.addf %251, %252 : vector<8x128xf32>
    %cst_79 = arith.constant 5.000000e-01 : f32
    %254 = vector.broadcast %cst_79 : f32 to vector<8x128xf32>
    %255 = arith.mulf %254, %253 : vector<8x128xf32>
    %256 = math.tanh %255 : vector<8x128xf32>
    %cst_80 = arith.constant 1.000000e+00 : f32
    %257 = vector.broadcast %cst_80 : f32 to vector<8x128xf32>
    %258 = arith.addf %256, %257 : vector<8x128xf32>
    %cst_81 = arith.constant 5.000000e-01 : f32
    %259 = vector.broadcast %cst_81 : f32 to vector<8x128xf32>
    %260 = arith.mulf %259, %258 : vector<8x128xf32>
    %261 = vector.extract_strided_slice %246 {offsets = [0, 128], sizes = [8, 128], strides = [1, 1]} : vector<8x384xf32> to vector<8x128xf32>
    %262 = vector.extract_strided_slice %250 {offsets = [0, 128], sizes = [8, 128], strides = [1, 1]} : vector<8x384xf32> to vector<8x128xf32>
    %263 = arith.addf %261, %262 : vector<8x128xf32>
    %cst_82 = arith.constant 5.000000e-01 : f32
    %264 = vector.broadcast %cst_82 : f32 to vector<8x128xf32>
    %265 = arith.mulf %264, %263 : vector<8x128xf32>
    %266 = math.tanh %265 : vector<8x128xf32>
    %cst_83 = arith.constant 1.000000e+00 : f32
    %267 = vector.broadcast %cst_83 : f32 to vector<8x128xf32>
    %268 = arith.addf %266, %267 : vector<8x128xf32>
    %cst_84 = arith.constant 5.000000e-01 : f32
    %269 = vector.broadcast %cst_84 : f32 to vector<8x128xf32>
    %270 = arith.mulf %269, %268 : vector<8x128xf32>
    %271 = vector.extract_strided_slice %246 {offsets = [0, 256], sizes = [8, 128], strides = [1, 1]} : vector<8x384xf32> to vector<8x128xf32>
    %272 = vector.extract_strided_slice %250 {offsets = [0, 256], sizes = [8, 128], strides = [1, 1]} : vector<8x384xf32> to vector<8x128xf32>
    %273 = arith.mulf %260, %272 : vector<8x128xf32>
    %274 = arith.addf %271, %273 : vector<8x128xf32>
    %275 = math.tanh %274 : vector<8x128xf32>
    %cst_85 = arith.constant 1.000000e+00 : f32
    %276 = vector.broadcast %cst_85 : f32 to vector<8x128xf32>
    %277 = arith.subf %276, %270 : vector<8x128xf32>
    %278 = arith.mulf %277, %275 : vector<8x128xf32>
    %279 = arith.mulf %270, %239 : vector<8x128xf32>
    %280 = arith.addf %278, %279 : vector<8x128xf32>
    %281 = vector.broadcast %c5_i32 : i32 to vector<8x1xi32>
    %282 = arith.cmpi slt, %281, %0 : vector<8x1xi32>
    %283 = vector.shape_cast %282 : vector<8x1xi1> to vector<8x1xi1>
    %284 = vector.broadcast %283 : vector<8x1xi1> to vector<8x128xi1>
    %285 = arith.select %284, %280, %239 : vector<8x128xi1>, vector<8x128xf32>
    %286 = arith.index_cast %c5_i32 : i32 to index
    %c0_86 = arith.constant 0 : index
    %c0_87 = arith.constant 0 : index
    %287 = vector.load %arg21[%286, %c0_86, %c0_87] : memref<8x8x128xf32, #tpu.memory_space<vmem>>, vector<1x8x128xf32>
    %288 = vector.shape_cast %287 : vector<1x8x128xf32> to vector<8x128xf32>
    %289 = vector.shape_cast %285 : vector<8x128xf32> to vector<1x8x128xf32>
    tpu.vector_store %arg21[%286, %c0_86, %c0_87], %289 {strides = array<i32>} : memref<8x8x128xf32, #tpu.memory_space<vmem>>, vector<1x8x128xf32>,
    %c6_i32 = arith.constant 6 : i32
    %290 = arith.index_cast %c6_i32 : i32 to index
    %c0_88 = arith.constant 0 : index
    %c0_89 = arith.constant 0 : index
    %291 = vector.load %arg20[%290, %c0_88, %c0_89] : memref<8x8x384xf32, #tpu.memory_space<vmem>>, vector<1x8x384xf32>
    %292 = vector.shape_cast %291 : vector<1x8x384xf32> to vector<8x384xf32>
    %293 = arith.truncf %285 : vector<8x128xf32> to vector<8x128xbf16>
    %cst_90 = arith.constant dense<0.000000e+00> : vector<8x384xf32>
    %294 = tpu.matmul %293, %11, %cst_90 {dimension_numbers = #tpu.dot_dimension_numbers<[1], [0], [0], [1], [0, 0, 1, 1], [], []>} : vector<8x128xbf16>, vector<128x384xbf16>, vector<8x384xf32> -> vector<8x384xf32>
    %295 = vector.broadcast %12 : vector<1x384xf32> to vector<8x384xf32>
    %296 = arith.addf %294, %295 : vector<8x384xf32>
    %297 = vector.extract_strided_slice %292 {offsets = [0, 0], sizes = [8, 128], strides = [1, 1]} : vector<8x384xf32> to vector<8x128xf32>
    %298 = vector.extract_strided_slice %296 {offsets = [0, 0], sizes = [8, 128], strides = [1, 1]} : vector<8x384xf32> to vector<8x128xf32>
    %299 = arith.addf %297, %298 : vector<8x128xf32>
    %cst_91 = arith.constant 5.000000e-01 : f32
    %300 = vector.broadcast %cst_91 : f32 to vector<8x128xf32>
    %301 = arith.mulf %300, %299 : vector<8x128xf32>
    %302 = math.tanh %301 : vector<8x128xf32>
    %cst_92 = arith.constant 1.000000e+00 : f32
    %303 = vector.broadcast %cst_92 : f32 to vector<8x128xf32>
    %304 = arith.addf %302, %303 : vector<8x128xf32>
    %cst_93 = arith.constant 5.000000e-01 : f32
    %305 = vector.broadcast %cst_93 : f32 to vector<8x128xf32>
    %306 = arith.mulf %305, %304 : vector<8x128xf32>
    %307 = vector.extract_strided_slice %292 {offsets = [0, 128], sizes = [8, 128], strides = [1, 1]} : vector<8x384xf32> to vector<8x128xf32>
    %308 = vector.extract_strided_slice %296 {offsets = [0, 128], sizes = [8, 128], strides = [1, 1]} : vector<8x384xf32> to vector<8x128xf32>
    %309 = arith.addf %307, %308 : vector<8x128xf32>
    %cst_94 = arith.constant 5.000000e-01 : f32
    %310 = vector.broadcast %cst_94 : f32 to vector<8x128xf32>
    %311 = arith.mulf %310, %309 : vector<8x128xf32>
    %312 = math.tanh %311 : vector<8x128xf32>
    %cst_95 = arith.constant 1.000000e+00 : f32
    %313 = vector.broadcast %cst_95 : f32 to vector<8x128xf32>
    %314 = arith.addf %312, %313 : vector<8x128xf32>
    %cst_96 = arith.constant 5.000000e-01 : f32
    %315 = vector.broadcast %cst_96 : f32 to vector<8x128xf32>
    %316 = arith.mulf %315, %314 : vector<8x128xf32>
    %317 = vector.extract_strided_slice %292 {offsets = [0, 256], sizes = [8, 128], strides = [1, 1]} : vector<8x384xf32> to vector<8x128xf32>
    %318 = vector.extract_strided_slice %296 {offsets = [0, 256], sizes = [8, 128], strides = [1, 1]} : vector<8x384xf32> to vector<8x128xf32>
    %319 = arith.mulf %306, %318 : vector<8x128xf32>
    %320 = arith.addf %317, %319 : vector<8x128xf32>
    %321 = math.tanh %320 : vector<8x128xf32>
    %cst_97 = arith.constant 1.000000e+00 : f32
    %322 = vector.broadcast %cst_97 : f32 to vector<8x128xf32>
    %323 = arith.subf %322, %316 : vector<8x128xf32>
    %324 = arith.mulf %323, %321 : vector<8x128xf32>
    %325 = arith.mulf %316, %285 : vector<8x128xf32>
    %326 = arith.addf %324, %325 : vector<8x128xf32>
    %327 = vector.broadcast %c6_i32 : i32 to vector<8x1xi32>
    %328 = arith.cmpi slt, %327, %0 : vector<8x1xi32>
    %329 = vector.shape_cast %328 : vector<8x1xi1> to vector<8x1xi1>
    %330 = vector.broadcast %329 : vector<8x1xi1> to vector<8x128xi1>
    %331 = arith.select %330, %326, %285 : vector<8x128xi1>, vector<8x128xf32>
    %332 = arith.index_cast %c6_i32 : i32 to index
    %c0_98 = arith.constant 0 : index
    %c0_99 = arith.constant 0 : index
    %333 = vector.load %arg21[%332, %c0_98, %c0_99] : memref<8x8x128xf32, #tpu.memory_space<vmem>>, vector<1x8x128xf32>
    %334 = vector.shape_cast %333 : vector<1x8x128xf32> to vector<8x128xf32>
    %335 = vector.shape_cast %331 : vector<8x128xf32> to vector<1x8x128xf32>
    tpu.vector_store %arg21[%332, %c0_98, %c0_99], %335 {strides = array<i32>} : memref<8x8x128xf32, #tpu.memory_space<vmem>>, vector<1x8x128xf32>,
    %c7_i32 = arith.constant 7 : i32
    %336 = arith.index_cast %c7_i32 : i32 to index
    %c0_100 = arith.constant 0 : index
    %c0_101 = arith.constant 0 : index
    %337 = vector.load %arg20[%336, %c0_100, %c0_101] : memref<8x8x384xf32, #tpu.memory_space<vmem>>, vector<1x8x384xf32>
    %338 = vector.shape_cast %337 : vector<1x8x384xf32> to vector<8x384xf32>
    %339 = arith.truncf %331 : vector<8x128xf32> to vector<8x128xbf16>
    %cst_102 = arith.constant dense<0.000000e+00> : vector<8x384xf32>
    %340 = tpu.matmul %339, %11, %cst_102 {dimension_numbers = #tpu.dot_dimension_numbers<[1], [0], [0], [1], [0, 0, 1, 1], [], []>} : vector<8x128xbf16>, vector<128x384xbf16>, vector<8x384xf32> -> vector<8x384xf32>
    %341 = vector.broadcast %12 : vector<1x384xf32> to vector<8x384xf32>
    %342 = arith.addf %340, %341 : vector<8x384xf32>
    %343 = vector.extract_strided_slice %338 {offsets = [0, 0], sizes = [8, 128], strides = [1, 1]} : vector<8x384xf32> to vector<8x128xf32>
    %344 = vector.extract_strided_slice %342 {offsets = [0, 0], sizes = [8, 128], strides = [1, 1]} : vector<8x384xf32> to vector<8x128xf32>
    %345 = arith.addf %343, %344 : vector<8x128xf32>
    %cst_103 = arith.constant 5.000000e-01 : f32
    %346 = vector.broadcast %cst_103 : f32 to vector<8x128xf32>
    %347 = arith.mulf %346, %345 : vector<8x128xf32>
    %348 = math.tanh %347 : vector<8x128xf32>
    %cst_104 = arith.constant 1.000000e+00 : f32
    %349 = vector.broadcast %cst_104 : f32 to vector<8x128xf32>
    %350 = arith.addf %348, %349 : vector<8x128xf32>
    %cst_105 = arith.constant 5.000000e-01 : f32
    %351 = vector.broadcast %cst_105 : f32 to vector<8x128xf32>
    %352 = arith.mulf %351, %350 : vector<8x128xf32>
    %353 = vector.extract_strided_slice %338 {offsets = [0, 128], sizes = [8, 128], strides = [1, 1]} : vector<8x384xf32> to vector<8x128xf32>
    %354 = vector.extract_strided_slice %342 {offsets = [0, 128], sizes = [8, 128], strides = [1, 1]} : vector<8x384xf32> to vector<8x128xf32>
    %355 = arith.addf %353, %354 : vector<8x128xf32>
    %cst_106 = arith.constant 5.000000e-01 : f32
    %356 = vector.broadcast %cst_106 : f32 to vector<8x128xf32>
    %357 = arith.mulf %356, %355 : vector<8x128xf32>
    %358 = math.tanh %357 : vector<8x128xf32>
    %cst_107 = arith.constant 1.000000e+00 : f32
    %359 = vector.broadcast %cst_107 : f32 to vector<8x128xf32>
    %360 = arith.addf %358, %359 : vector<8x128xf32>
    %cst_108 = arith.constant 5.000000e-01 : f32
    %361 = vector.broadcast %cst_108 : f32 to vector<8x128xf32>
    %362 = arith.mulf %361, %360 : vector<8x128xf32>
    %363 = vector.extract_strided_slice %338 {offsets = [0, 256], sizes = [8, 128], strides = [1, 1]} : vector<8x384xf32> to vector<8x128xf32>
    %364 = vector.extract_strided_slice %342 {offsets = [0, 256], sizes = [8, 128], strides = [1, 1]} : vector<8x384xf32> to vector<8x128xf32>
    %365 = arith.mulf %352, %364 : vector<8x128xf32>
    %366 = arith.addf %363, %365 : vector<8x128xf32>
    %367 = math.tanh %366 : vector<8x128xf32>
    %cst_109 = arith.constant 1.000000e+00 : f32
    %368 = vector.broadcast %cst_109 : f32 to vector<8x128xf32>
    %369 = arith.subf %368, %362 : vector<8x128xf32>
    %370 = arith.mulf %369, %367 : vector<8x128xf32>
    %371 = arith.mulf %362, %331 : vector<8x128xf32>
    %372 = arith.addf %370, %371 : vector<8x128xf32>
    %373 = vector.broadcast %c7_i32 : i32 to vector<8x1xi32>
    %374 = arith.cmpi slt, %373, %0 : vector<8x1xi32>
    %375 = vector.shape_cast %374 : vector<8x1xi1> to vector<8x1xi1>
    %376 = vector.broadcast %375 : vector<8x1xi1> to vector<8x128xi1>
    %377 = arith.select %376, %372, %331 : vector<8x128xi1>, vector<8x128xf32>
    %378 = arith.index_cast %c7_i32 : i32 to index
    %c0_110 = arith.constant 0 : index
    %c0_111 = arith.constant 0 : index
    %379 = vector.load %arg21[%378, %c0_110, %c0_111] : memref<8x8x128xf32, #tpu.memory_space<vmem>>, vector<1x8x128xf32>
    %380 = vector.shape_cast %379 : vector<1x8x128xf32> to vector<8x128xf32>
    %381 = vector.shape_cast %377 : vector<8x128xf32> to vector<1x8x128xf32>
    tpu.vector_store %arg21[%378, %c0_110, %c0_111], %381 {strides = array<i32>} : memref<8x8x128xf32, #tpu.memory_space<vmem>>, vector<1x8x128xf32>,
    %c8_i32 = arith.constant 8 : i32
    %c0_112 = arith.constant 0 : index
    %c0_113 = arith.constant 0 : index
    %c0_114 = arith.constant 0 : index
    %382 = vector.load %arg21[%c0_112, %c0_113, %c0_114] : memref<8x8x128xf32, #tpu.memory_space<vmem>>, vector<8x8x128xf32>
    %383 = vector.shape_cast %382 : vector<8x8x128xf32> to vector<64x128xf32>
    %384 = arith.truncf %383 : vector<64x128xf32> to vector<64x128xbf16>
    %c0_115 = arith.constant 0 : index
    %c0_116 = arith.constant 0 : index
    %385 = vector.load %arg7[%c0_115, %c0_116] : memref<128x384xbf16, #tpu.memory_space<vmem>>, vector<128x384xbf16>
    %cst_117 = arith.constant dense<0.000000e+00> : vector<64x384xf32>
    %386 = tpu.matmul %384, %385, %cst_117 {dimension_numbers = #tpu.dot_dimension_numbers<[1], [0], [0], [1], [0, 0, 1, 1], [], []>} : vector<64x128xbf16>, vector<128x384xbf16>, vector<64x384xf32> -> vector<64x384xf32>
    %387 = vector.shape_cast %386 : vector<64x384xf32> to vector<8x8x384xf32>
    %c0_118 = arith.constant 0 : index
    %c0_119 = arith.constant 0 : index
    %388 = vector.load %arg8[%c0_118, %c0_119] : memref<1x384xf32, #tpu.memory_space<vmem>>, vector<1x384xf32>
    %389 = vector.shape_cast %388 : vector<1x384xf32> to vector<1x1x384xf32>
    %390 = vector.broadcast %389 : vector<1x1x384xf32> to vector<8x8x384xf32>
    %391 = arith.addf %387, %390 : vector<8x8x384xf32>
    %c0_120 = arith.constant 0 : index
    %c0_121 = arith.constant 0 : index
    %c0_122 = arith.constant 0 : index
    %392 = vector.load %arg20[%c0_120, %c0_121, %c0_122] : memref<8x8x384xf32, #tpu.memory_space<vmem>>, vector<8x8x384xf32>
    tpu.vector_store %arg20[%c0_120, %c0_121, %c0_122], %391 {strides = array<i32>} : memref<8x8x384xf32, #tpu.memory_space<vmem>>, vector<8x8x384xf32>,
    %c0_123 = arith.constant 0 : index
    %c0_124 = arith.constant 0 : index
    %393 = vector.load %arg9[%c0_123, %c0_124] : memref<128x384xbf16, #tpu.memory_space<vmem>>, vector<128x384xbf16>
    %c0_125 = arith.constant 0 : index
    %c0_126 = arith.constant 0 : index
    %394 = vector.load %arg10[%c0_125, %c0_126] : memref<1x384xf32, #tpu.memory_space<vmem>>, vector<1x384xf32>
    %cst_127 = arith.constant 0.000000e+00 : f32
    %395 = vector.broadcast %cst_127 : f32 to vector<8x128xf32>
    %c0_i32_128 = arith.constant 0 : i32
    %396 = arith.index_cast %c0_i32_128 : i32 to index
    %c0_129 = arith.constant 0 : index
    %c0_130 = arith.constant 0 : index
    %397 = vector.load %arg20[%396, %c0_129, %c0_130] : memref<8x8x384xf32, #tpu.memory_space<vmem>>, vector<1x8x384xf32>
    %398 = vector.shape_cast %397 : vector<1x8x384xf32> to vector<8x384xf32>
    %399 = arith.truncf %395 : vector<8x128xf32> to vector<8x128xbf16>
    %cst_131 = arith.constant dense<0.000000e+00> : vector<8x384xf32>
    %400 = tpu.matmul %399, %393, %cst_131 {dimension_numbers = #tpu.dot_dimension_numbers<[1], [0], [0], [1], [0, 0, 1, 1], [], []>} : vector<8x128xbf16>, vector<128x384xbf16>, vector<8x384xf32> -> vector<8x384xf32>
    %401 = vector.broadcast %394 : vector<1x384xf32> to vector<8x384xf32>
    %402 = arith.addf %400, %401 : vector<8x384xf32>
    %403 = vector.extract_strided_slice %398 {offsets = [0, 0], sizes = [8, 128], strides = [1, 1]} : vector<8x384xf32> to vector<8x128xf32>
    %404 = vector.extract_strided_slice %402 {offsets = [0, 0], sizes = [8, 128], strides = [1, 1]} : vector<8x384xf32> to vector<8x128xf32>
    %405 = arith.addf %403, %404 : vector<8x128xf32>
    %cst_132 = arith.constant 5.000000e-01 : f32
    %406 = vector.broadcast %cst_132 : f32 to vector<8x128xf32>
    %407 = arith.mulf %406, %405 : vector<8x128xf32>
    %408 = math.tanh %407 : vector<8x128xf32>
    %cst_133 = arith.constant 1.000000e+00 : f32
    %409 = vector.broadcast %cst_133 : f32 to vector<8x128xf32>
    %410 = arith.addf %408, %409 : vector<8x128xf32>
    %cst_134 = arith.constant 5.000000e-01 : f32
    %411 = vector.broadcast %cst_134 : f32 to vector<8x128xf32>
    %412 = arith.mulf %411, %410 : vector<8x128xf32>
    %413 = vector.extract_strided_slice %398 {offsets = [0, 128], sizes = [8, 128], strides = [1, 1]} : vector<8x384xf32> to vector<8x128xf32>
    %414 = vector.extract_strided_slice %402 {offsets = [0, 128], sizes = [8, 128], strides = [1, 1]} : vector<8x384xf32> to vector<8x128xf32>
    %415 = arith.addf %413, %414 : vector<8x128xf32>
    %cst_135 = arith.constant 5.000000e-01 : f32
    %416 = vector.broadcast %cst_135 : f32 to vector<8x128xf32>
    %417 = arith.mulf %416, %415 : vector<8x128xf32>
    %418 = math.tanh %417 : vector<8x128xf32>
    %cst_136 = arith.constant 1.000000e+00 : f32
    %419 = vector.broadcast %cst_136 : f32 to vector<8x128xf32>
    %420 = arith.addf %418, %419 : vector<8x128xf32>
    %cst_137 = arith.constant 5.000000e-01 : f32
    %421 = vector.broadcast %cst_137 : f32 to vector<8x128xf32>
    %422 = arith.mulf %421, %420 : vector<8x128xf32>
    %423 = vector.extract_strided_slice %398 {offsets = [0, 256], sizes = [8, 128], strides = [1, 1]} : vector<8x384xf32> to vector<8x128xf32>
    %424 = vector.extract_strided_slice %402 {offsets = [0, 256], sizes = [8, 128], strides = [1, 1]} : vector<8x384xf32> to vector<8x128xf32>
    %425 = arith.mulf %412, %424 : vector<8x128xf32>
    %426 = arith.addf %423, %425 : vector<8x128xf32>
    %427 = math.tanh %426 : vector<8x128xf32>
    %cst_138 = arith.constant 1.000000e+00 : f32
    %428 = vector.broadcast %cst_138 : f32 to vector<8x128xf32>
    %429 = arith.subf %428, %422 : vector<8x128xf32>
    %430 = arith.mulf %429, %427 : vector<8x128xf32>
    %431 = arith.mulf %422, %395 : vector<8x128xf32>
    %432 = arith.addf %430, %431 : vector<8x128xf32>
    %433 = vector.broadcast %c0_i32_128 : i32 to vector<8x1xi32>
    %434 = arith.cmpi slt, %433, %0 : vector<8x1xi32>
    %435 = vector.shape_cast %434 : vector<8x1xi1> to vector<8x1xi1>
    %436 = vector.broadcast %435 : vector<8x1xi1> to vector<8x128xi1>
    %437 = arith.select %436, %432, %395 : vector<8x128xi1>, vector<8x128xf32>
    %438 = arith.index_cast %c0_i32_128 : i32 to index
    %c0_139 = arith.constant 0 : index
    %c0_140 = arith.constant 0 : index
    %439 = vector.load %arg21[%438, %c0_139, %c0_140] : memref<8x8x128xf32, #tpu.memory_space<vmem>>, vector<1x8x128xf32>
    %440 = vector.shape_cast %439 : vector<1x8x128xf32> to vector<8x128xf32>
    %441 = vector.shape_cast %437 : vector<8x128xf32> to vector<1x8x128xf32>
    tpu.vector_store %arg21[%438, %c0_139, %c0_140], %441 {strides = array<i32>} : memref<8x8x128xf32, #tpu.memory_space<vmem>>, vector<1x8x128xf32>,
    %c1_i32_141 = arith.constant 1 : i32
    %442 = arith.index_cast %c1_i32_141 : i32 to index
    %c0_142 = arith.constant 0 : index
    %c0_143 = arith.constant 0 : index
    %443 = vector.load %arg20[%442, %c0_142, %c0_143] : memref<8x8x384xf32, #tpu.memory_space<vmem>>, vector<1x8x384xf32>
    %444 = vector.shape_cast %443 : vector<1x8x384xf32> to vector<8x384xf32>
    %445 = arith.truncf %437 : vector<8x128xf32> to vector<8x128xbf16>
    %cst_144 = arith.constant dense<0.000000e+00> : vector<8x384xf32>
    %446 = tpu.matmul %445, %393, %cst_144 {dimension_numbers = #tpu.dot_dimension_numbers<[1], [0], [0], [1], [0, 0, 1, 1], [], []>} : vector<8x128xbf16>, vector<128x384xbf16>, vector<8x384xf32> -> vector<8x384xf32>
    %447 = vector.broadcast %394 : vector<1x384xf32> to vector<8x384xf32>
    %448 = arith.addf %446, %447 : vector<8x384xf32>
    %449 = vector.extract_strided_slice %444 {offsets = [0, 0], sizes = [8, 128], strides = [1, 1]} : vector<8x384xf32> to vector<8x128xf32>
    %450 = vector.extract_strided_slice %448 {offsets = [0, 0], sizes = [8, 128], strides = [1, 1]} : vector<8x384xf32> to vector<8x128xf32>
    %451 = arith.addf %449, %450 : vector<8x128xf32>
    %cst_145 = arith.constant 5.000000e-01 : f32
    %452 = vector.broadcast %cst_145 : f32 to vector<8x128xf32>
    %453 = arith.mulf %452, %451 : vector<8x128xf32>
    %454 = math.tanh %453 : vector<8x128xf32>
    %cst_146 = arith.constant 1.000000e+00 : f32
    %455 = vector.broadcast %cst_146 : f32 to vector<8x128xf32>
    %456 = arith.addf %454, %455 : vector<8x128xf32>
    %cst_147 = arith.constant 5.000000e-01 : f32
    %457 = vector.broadcast %cst_147 : f32 to vector<8x128xf32>
    %458 = arith.mulf %457, %456 : vector<8x128xf32>
    %459 = vector.extract_strided_slice %444 {offsets = [0, 128], sizes = [8, 128], strides = [1, 1]} : vector<8x384xf32> to vector<8x128xf32>
    %460 = vector.extract_strided_slice %448 {offsets = [0, 128], sizes = [8, 128], strides = [1, 1]} : vector<8x384xf32> to vector<8x128xf32>
    %461 = arith.addf %459, %460 : vector<8x128xf32>
    %cst_148 = arith.constant 5.000000e-01 : f32
    %462 = vector.broadcast %cst_148 : f32 to vector<8x128xf32>
    %463 = arith.mulf %462, %461 : vector<8x128xf32>
    %464 = math.tanh %463 : vector<8x128xf32>
    %cst_149 = arith.constant 1.000000e+00 : f32
    %465 = vector.broadcast %cst_149 : f32 to vector<8x128xf32>
    %466 = arith.addf %464, %465 : vector<8x128xf32>
    %cst_150 = arith.constant 5.000000e-01 : f32
    %467 = vector.broadcast %cst_150 : f32 to vector<8x128xf32>
    %468 = arith.mulf %467, %466 : vector<8x128xf32>
    %469 = vector.extract_strided_slice %444 {offsets = [0, 256], sizes = [8, 128], strides = [1, 1]} : vector<8x384xf32> to vector<8x128xf32>
    %470 = vector.extract_strided_slice %448 {offsets = [0, 256], sizes = [8, 128], strides = [1, 1]} : vector<8x384xf32> to vector<8x128xf32>
    %471 = arith.mulf %458, %470 : vector<8x128xf32>
    %472 = arith.addf %469, %471 : vector<8x128xf32>
    %473 = math.tanh %472 : vector<8x128xf32>
    %cst_151 = arith.constant 1.000000e+00 : f32
    %474 = vector.broadcast %cst_151 : f32 to vector<8x128xf32>
    %475 = arith.subf %474, %468 : vector<8x128xf32>
    %476 = arith.mulf %475, %473 : vector<8x128xf32>
    %477 = arith.mulf %468, %437 : vector<8x128xf32>
    %478 = arith.addf %476, %477 : vector<8x128xf32>
    %479 = vector.broadcast %c1_i32_141 : i32 to vector<8x1xi32>
    %480 = arith.cmpi slt, %479, %0 : vector<8x1xi32>
    %481 = vector.shape_cast %480 : vector<8x1xi1> to vector<8x1xi1>
    %482 = vector.broadcast %481 : vector<8x1xi1> to vector<8x128xi1>
    %483 = arith.select %482, %478, %437 : vector<8x128xi1>, vector<8x128xf32>
    %484 = arith.index_cast %c1_i32_141 : i32 to index
    %c0_152 = arith.constant 0 : index
    %c0_153 = arith.constant 0 : index
    %485 = vector.load %arg21[%484, %c0_152, %c0_153] : memref<8x8x128xf32, #tpu.memory_space<vmem>>, vector<1x8x128xf32>
    %486 = vector.shape_cast %485 : vector<1x8x128xf32> to vector<8x128xf32>
    %487 = vector.shape_cast %483 : vector<8x128xf32> to vector<1x8x128xf32>
    tpu.vector_store %arg21[%484, %c0_152, %c0_153], %487 {strides = array<i32>} : memref<8x8x128xf32, #tpu.memory_space<vmem>>, vector<1x8x128xf32>,
    %c2_i32_154 = arith.constant 2 : i32
    %488 = arith.index_cast %c2_i32_154 : i32 to index
    %c0_155 = arith.constant 0 : index
    %c0_156 = arith.constant 0 : index
    %489 = vector.load %arg20[%488, %c0_155, %c0_156] : memref<8x8x384xf32, #tpu.memory_space<vmem>>, vector<1x8x384xf32>
    %490 = vector.shape_cast %489 : vector<1x8x384xf32> to vector<8x384xf32>
    %491 = arith.truncf %483 : vector<8x128xf32> to vector<8x128xbf16>
    %cst_157 = arith.constant dense<0.000000e+00> : vector<8x384xf32>
    %492 = tpu.matmul %491, %393, %cst_157 {dimension_numbers = #tpu.dot_dimension_numbers<[1], [0], [0], [1], [0, 0, 1, 1], [], []>} : vector<8x128xbf16>, vector<128x384xbf16>, vector<8x384xf32> -> vector<8x384xf32>
    %493 = vector.broadcast %394 : vector<1x384xf32> to vector<8x384xf32>
    %494 = arith.addf %492, %493 : vector<8x384xf32>
    %495 = vector.extract_strided_slice %490 {offsets = [0, 0], sizes = [8, 128], strides = [1, 1]} : vector<8x384xf32> to vector<8x128xf32>
    %496 = vector.extract_strided_slice %494 {offsets = [0, 0], sizes = [8, 128], strides = [1, 1]} : vector<8x384xf32> to vector<8x128xf32>
    %497 = arith.addf %495, %496 : vector<8x128xf32>
    %cst_158 = arith.constant 5.000000e-01 : f32
    %498 = vector.broadcast %cst_158 : f32 to vector<8x128xf32>
    %499 = arith.mulf %498, %497 : vector<8x128xf32>
    %500 = math.tanh %499 : vector<8x128xf32>
    %cst_159 = arith.constant 1.000000e+00 : f32
    %501 = vector.broadcast %cst_159 : f32 to vector<8x128xf32>
    %502 = arith.addf %500, %501 : vector<8x128xf32>
    %cst_160 = arith.constant 5.000000e-01 : f32
    %503 = vector.broadcast %cst_160 : f32 to vector<8x128xf32>
    %504 = arith.mulf %503, %502 : vector<8x128xf32>
    %505 = vector.extract_strided_slice %490 {offsets = [0, 128], sizes = [8, 128], strides = [1, 1]} : vector<8x384xf32> to vector<8x128xf32>
    %506 = vector.extract_strided_slice %494 {offsets = [0, 128], sizes = [8, 128], strides = [1, 1]} : vector<8x384xf32> to vector<8x128xf32>
    %507 = arith.addf %505, %506 : vector<8x128xf32>
    %cst_161 = arith.constant 5.000000e-01 : f32
    %508 = vector.broadcast %cst_161 : f32 to vector<8x128xf32>
    %509 = arith.mulf %508, %507 : vector<8x128xf32>
    %510 = math.tanh %509 : vector<8x128xf32>
    %cst_162 = arith.constant 1.000000e+00 : f32
    %511 = vector.broadcast %cst_162 : f32 to vector<8x128xf32>
    %512 = arith.addf %510, %511 : vector<8x128xf32>
    %cst_163 = arith.constant 5.000000e-01 : f32
    %513 = vector.broadcast %cst_163 : f32 to vector<8x128xf32>
    %514 = arith.mulf %513, %512 : vector<8x128xf32>
    %515 = vector.extract_strided_slice %490 {offsets = [0, 256], sizes = [8, 128], strides = [1, 1]} : vector<8x384xf32> to vector<8x128xf32>
    %516 = vector.extract_strided_slice %494 {offsets = [0, 256], sizes = [8, 128], strides = [1, 1]} : vector<8x384xf32> to vector<8x128xf32>
    %517 = arith.mulf %504, %516 : vector<8x128xf32>
    %518 = arith.addf %515, %517 : vector<8x128xf32>
    %519 = math.tanh %518 : vector<8x128xf32>
    %cst_164 = arith.constant 1.000000e+00 : f32
    %520 = vector.broadcast %cst_164 : f32 to vector<8x128xf32>
    %521 = arith.subf %520, %514 : vector<8x128xf32>
    %522 = arith.mulf %521, %519 : vector<8x128xf32>
    %523 = arith.mulf %514, %483 : vector<8x128xf32>
    %524 = arith.addf %522, %523 : vector<8x128xf32>
    %525 = vector.broadcast %c2_i32_154 : i32 to vector<8x1xi32>
    %526 = arith.cmpi slt, %525, %0 : vector<8x1xi32>
    %527 = vector.shape_cast %526 : vector<8x1xi1> to vector<8x1xi1>
    %528 = vector.broadcast %527 : vector<8x1xi1> to vector<8x128xi1>
    %529 = arith.select %528, %524, %483 : vector<8x128xi1>, vector<8x128xf32>
    %530 = arith.index_cast %c2_i32_154 : i32 to index
    %c0_165 = arith.constant 0 : index
    %c0_166 = arith.constant 0 : index
    %531 = vector.load %arg21[%530, %c0_165, %c0_166] : memref<8x8x128xf32, #tpu.memory_space<vmem>>, vector<1x8x128xf32>
    %532 = vector.shape_cast %531 : vector<1x8x128xf32> to vector<8x128xf32>
    %533 = vector.shape_cast %529 : vector<8x128xf32> to vector<1x8x128xf32>
    tpu.vector_store %arg21[%530, %c0_165, %c0_166], %533 {strides = array<i32>} : memref<8x8x128xf32, #tpu.memory_space<vmem>>, vector<1x8x128xf32>,
    %c3_i32_167 = arith.constant 3 : i32
    %534 = arith.index_cast %c3_i32_167 : i32 to index
    %c0_168 = arith.constant 0 : index
    %c0_169 = arith.constant 0 : index
    %535 = vector.load %arg20[%534, %c0_168, %c0_169] : memref<8x8x384xf32, #tpu.memory_space<vmem>>, vector<1x8x384xf32>
    %536 = vector.shape_cast %535 : vector<1x8x384xf32> to vector<8x384xf32>
    %537 = arith.truncf %529 : vector<8x128xf32> to vector<8x128xbf16>
    %cst_170 = arith.constant dense<0.000000e+00> : vector<8x384xf32>
    %538 = tpu.matmul %537, %393, %cst_170 {dimension_numbers = #tpu.dot_dimension_numbers<[1], [0], [0], [1], [0, 0, 1, 1], [], []>} : vector<8x128xbf16>, vector<128x384xbf16>, vector<8x384xf32> -> vector<8x384xf32>
    %539 = vector.broadcast %394 : vector<1x384xf32> to vector<8x384xf32>
    %540 = arith.addf %538, %539 : vector<8x384xf32>
    %541 = vector.extract_strided_slice %536 {offsets = [0, 0], sizes = [8, 128], strides = [1, 1]} : vector<8x384xf32> to vector<8x128xf32>
    %542 = vector.extract_strided_slice %540 {offsets = [0, 0], sizes = [8, 128], strides = [1, 1]} : vector<8x384xf32> to vector<8x128xf32>
    %543 = arith.addf %541, %542 : vector<8x128xf32>
    %cst_171 = arith.constant 5.000000e-01 : f32
    %544 = vector.broadcast %cst_171 : f32 to vector<8x128xf32>
    %545 = arith.mulf %544, %543 : vector<8x128xf32>
    %546 = math.tanh %545 : vector<8x128xf32>
    %cst_172 = arith.constant 1.000000e+00 : f32
    %547 = vector.broadcast %cst_172 : f32 to vector<8x128xf32>
    %548 = arith.addf %546, %547 : vector<8x128xf32>
    %cst_173 = arith.constant 5.000000e-01 : f32
    %549 = vector.broadcast %cst_173 : f32 to vector<8x128xf32>
    %550 = arith.mulf %549, %548 : vector<8x128xf32>
    %551 = vector.extract_strided_slice %536 {offsets = [0, 128], sizes = [8, 128], strides = [1, 1]} : vector<8x384xf32> to vector<8x128xf32>
    %552 = vector.extract_strided_slice %540 {offsets = [0, 128], sizes = [8, 128], strides = [1, 1]} : vector<8x384xf32> to vector<8x128xf32>
    %553 = arith.addf %551, %552 : vector<8x128xf32>
    %cst_174 = arith.constant 5.000000e-01 : f32
    %554 = vector.broadcast %cst_174 : f32 to vector<8x128xf32>
    %555 = arith.mulf %554, %553 : vector<8x128xf32>
    %556 = math.tanh %555 : vector<8x128xf32>
    %cst_175 = arith.constant 1.000000e+00 : f32
    %557 = vector.broadcast %cst_175 : f32 to vector<8x128xf32>
    %558 = arith.addf %556, %557 : vector<8x128xf32>
    %cst_176 = arith.constant 5.000000e-01 : f32
    %559 = vector.broadcast %cst_176 : f32 to vector<8x128xf32>
    %560 = arith.mulf %559, %558 : vector<8x128xf32>
    %561 = vector.extract_strided_slice %536 {offsets = [0, 256], sizes = [8, 128], strides = [1, 1]} : vector<8x384xf32> to vector<8x128xf32>
    %562 = vector.extract_strided_slice %540 {offsets = [0, 256], sizes = [8, 128], strides = [1, 1]} : vector<8x384xf32> to vector<8x128xf32>
    %563 = arith.mulf %550, %562 : vector<8x128xf32>
    %564 = arith.addf %561, %563 : vector<8x128xf32>
    %565 = math.tanh %564 : vector<8x128xf32>
    %cst_177 = arith.constant 1.000000e+00 : f32
    %566 = vector.broadcast %cst_177 : f32 to vector<8x128xf32>
    %567 = arith.subf %566, %560 : vector<8x128xf32>
    %568 = arith.mulf %567, %565 : vector<8x128xf32>
    %569 = arith.mulf %560, %529 : vector<8x128xf32>
    %570 = arith.addf %568, %569 : vector<8x128xf32>
    %571 = vector.broadcast %c3_i32_167 : i32 to vector<8x1xi32>
    %572 = arith.cmpi slt, %571, %0 : vector<8x1xi32>
    %573 = vector.shape_cast %572 : vector<8x1xi1> to vector<8x1xi1>
    %574 = vector.broadcast %573 : vector<8x1xi1> to vector<8x128xi1>
    %575 = arith.select %574, %570, %529 : vector<8x128xi1>, vector<8x128xf32>
    %576 = arith.index_cast %c3_i32_167 : i32 to index
    %c0_178 = arith.constant 0 : index
    %c0_179 = arith.constant 0 : index
    %577 = vector.load %arg21[%576, %c0_178, %c0_179] : memref<8x8x128xf32, #tpu.memory_space<vmem>>, vector<1x8x128xf32>
    %578 = vector.shape_cast %577 : vector<1x8x128xf32> to vector<8x128xf32>
    %579 = vector.shape_cast %575 : vector<8x128xf32> to vector<1x8x128xf32>
    tpu.vector_store %arg21[%576, %c0_178, %c0_179], %579 {strides = array<i32>} : memref<8x8x128xf32, #tpu.memory_space<vmem>>, vector<1x8x128xf32>,
    %c4_i32_180 = arith.constant 4 : i32
    %580 = arith.index_cast %c4_i32_180 : i32 to index
    %c0_181 = arith.constant 0 : index
    %c0_182 = arith.constant 0 : index
    %581 = vector.load %arg20[%580, %c0_181, %c0_182] : memref<8x8x384xf32, #tpu.memory_space<vmem>>, vector<1x8x384xf32>
    %582 = vector.shape_cast %581 : vector<1x8x384xf32> to vector<8x384xf32>
    %583 = arith.truncf %575 : vector<8x128xf32> to vector<8x128xbf16>
    %cst_183 = arith.constant dense<0.000000e+00> : vector<8x384xf32>
    %584 = tpu.matmul %583, %393, %cst_183 {dimension_numbers = #tpu.dot_dimension_numbers<[1], [0], [0], [1], [0, 0, 1, 1], [], []>} : vector<8x128xbf16>, vector<128x384xbf16>, vector<8x384xf32> -> vector<8x384xf32>
    %585 = vector.broadcast %394 : vector<1x384xf32> to vector<8x384xf32>
    %586 = arith.addf %584, %585 : vector<8x384xf32>
    %587 = vector.extract_strided_slice %582 {offsets = [0, 0], sizes = [8, 128], strides = [1, 1]} : vector<8x384xf32> to vector<8x128xf32>
    %588 = vector.extract_strided_slice %586 {offsets = [0, 0], sizes = [8, 128], strides = [1, 1]} : vector<8x384xf32> to vector<8x128xf32>
    %589 = arith.addf %587, %588 : vector<8x128xf32>
    %cst_184 = arith.constant 5.000000e-01 : f32
    %590 = vector.broadcast %cst_184 : f32 to vector<8x128xf32>
    %591 = arith.mulf %590, %589 : vector<8x128xf32>
    %592 = math.tanh %591 : vector<8x128xf32>
    %cst_185 = arith.constant 1.000000e+00 : f32
    %593 = vector.broadcast %cst_185 : f32 to vector<8x128xf32>
    %594 = arith.addf %592, %593 : vector<8x128xf32>
    %cst_186 = arith.constant 5.000000e-01 : f32
    %595 = vector.broadcast %cst_186 : f32 to vector<8x128xf32>
    %596 = arith.mulf %595, %594 : vector<8x128xf32>
    %597 = vector.extract_strided_slice %582 {offsets = [0, 128], sizes = [8, 128], strides = [1, 1]} : vector<8x384xf32> to vector<8x128xf32>
    %598 = vector.extract_strided_slice %586 {offsets = [0, 128], sizes = [8, 128], strides = [1, 1]} : vector<8x384xf32> to vector<8x128xf32>
    %599 = arith.addf %597, %598 : vector<8x128xf32>
    %cst_187 = arith.constant 5.000000e-01 : f32
    %600 = vector.broadcast %cst_187 : f32 to vector<8x128xf32>
    %601 = arith.mulf %600, %599 : vector<8x128xf32>
    %602 = math.tanh %601 : vector<8x128xf32>
    %cst_188 = arith.constant 1.000000e+00 : f32
    %603 = vector.broadcast %cst_188 : f32 to vector<8x128xf32>
    %604 = arith.addf %602, %603 : vector<8x128xf32>
    %cst_189 = arith.constant 5.000000e-01 : f32
    %605 = vector.broadcast %cst_189 : f32 to vector<8x128xf32>
    %606 = arith.mulf %605, %604 : vector<8x128xf32>
    %607 = vector.extract_strided_slice %582 {offsets = [0, 256], sizes = [8, 128], strides = [1, 1]} : vector<8x384xf32> to vector<8x128xf32>
    %608 = vector.extract_strided_slice %586 {offsets = [0, 256], sizes = [8, 128], strides = [1, 1]} : vector<8x384xf32> to vector<8x128xf32>
    %609 = arith.mulf %596, %608 : vector<8x128xf32>
    %610 = arith.addf %607, %609 : vector<8x128xf32>
    %611 = math.tanh %610 : vector<8x128xf32>
    %cst_190 = arith.constant 1.000000e+00 : f32
    %612 = vector.broadcast %cst_190 : f32 to vector<8x128xf32>
    %613 = arith.subf %612, %606 : vector<8x128xf32>
    %614 = arith.mulf %613, %611 : vector<8x128xf32>
    %615 = arith.mulf %606, %575 : vector<8x128xf32>
    %616 = arith.addf %614, %615 : vector<8x128xf32>
    %617 = vector.broadcast %c4_i32_180 : i32 to vector<8x1xi32>
    %618 = arith.cmpi slt, %617, %0 : vector<8x1xi32>
    %619 = vector.shape_cast %618 : vector<8x1xi1> to vector<8x1xi1>
    %620 = vector.broadcast %619 : vector<8x1xi1> to vector<8x128xi1>
    %621 = arith.select %620, %616, %575 : vector<8x128xi1>, vector<8x128xf32>
    %622 = arith.index_cast %c4_i32_180 : i32 to index
    %c0_191 = arith.constant 0 : index
    %c0_192 = arith.constant 0 : index
    %623 = vector.load %arg21[%622, %c0_191, %c0_192] : memref<8x8x128xf32, #tpu.memory_space<vmem>>, vector<1x8x128xf32>
    %624 = vector.shape_cast %623 : vector<1x8x128xf32> to vector<8x128xf32>
    %625 = vector.shape_cast %621 : vector<8x128xf32> to vector<1x8x128xf32>
    tpu.vector_store %arg21[%622, %c0_191, %c0_192], %625 {strides = array<i32>} : memref<8x8x128xf32, #tpu.memory_space<vmem>>, vector<1x8x128xf32>,
    %c5_i32_193 = arith.constant 5 : i32
    %626 = arith.index_cast %c5_i32_193 : i32 to index
    %c0_194 = arith.constant 0 : index
    %c0_195 = arith.constant 0 : index
    %627 = vector.load %arg20[%626, %c0_194, %c0_195] : memref<8x8x384xf32, #tpu.memory_space<vmem>>, vector<1x8x384xf32>
    %628 = vector.shape_cast %627 : vector<1x8x384xf32> to vector<8x384xf32>
    %629 = arith.truncf %621 : vector<8x128xf32> to vector<8x128xbf16>
    %cst_196 = arith.constant dense<0.000000e+00> : vector<8x384xf32>
    %630 = tpu.matmul %629, %393, %cst_196 {dimension_numbers = #tpu.dot_dimension_numbers<[1], [0], [0], [1], [0, 0, 1, 1], [], []>} : vector<8x128xbf16>, vector<128x384xbf16>, vector<8x384xf32> -> vector<8x384xf32>
    %631 = vector.broadcast %394 : vector<1x384xf32> to vector<8x384xf32>
    %632 = arith.addf %630, %631 : vector<8x384xf32>
    %633 = vector.extract_strided_slice %628 {offsets = [0, 0], sizes = [8, 128], strides = [1, 1]} : vector<8x384xf32> to vector<8x128xf32>
    %634 = vector.extract_strided_slice %632 {offsets = [0, 0], sizes = [8, 128], strides = [1, 1]} : vector<8x384xf32> to vector<8x128xf32>
    %635 = arith.addf %633, %634 : vector<8x128xf32>
    %cst_197 = arith.constant 5.000000e-01 : f32
    %636 = vector.broadcast %cst_197 : f32 to vector<8x128xf32>
    %637 = arith.mulf %636, %635 : vector<8x128xf32>
    %638 = math.tanh %637 : vector<8x128xf32>
    %cst_198 = arith.constant 1.000000e+00 : f32
    %639 = vector.broadcast %cst_198 : f32 to vector<8x128xf32>
    %640 = arith.addf %638, %639 : vector<8x128xf32>
    %cst_199 = arith.constant 5.000000e-01 : f32
    %641 = vector.broadcast %cst_199 : f32 to vector<8x128xf32>
    %642 = arith.mulf %641, %640 : vector<8x128xf32>
    %643 = vector.extract_strided_slice %628 {offsets = [0, 128], sizes = [8, 128], strides = [1, 1]} : vector<8x384xf32> to vector<8x128xf32>
    %644 = vector.extract_strided_slice %632 {offsets = [0, 128], sizes = [8, 128], strides = [1, 1]} : vector<8x384xf32> to vector<8x128xf32>
    %645 = arith.addf %643, %644 : vector<8x128xf32>
    %cst_200 = arith.constant 5.000000e-01 : f32
    %646 = vector.broadcast %cst_200 : f32 to vector<8x128xf32>
    %647 = arith.mulf %646, %645 : vector<8x128xf32>
    %648 = math.tanh %647 : vector<8x128xf32>
    %cst_201 = arith.constant 1.000000e+00 : f32
    %649 = vector.broadcast %cst_201 : f32 to vector<8x128xf32>
    %650 = arith.addf %648, %649 : vector<8x128xf32>
    %cst_202 = arith.constant 5.000000e-01 : f32
    %651 = vector.broadcast %cst_202 : f32 to vector<8x128xf32>
    %652 = arith.mulf %651, %650 : vector<8x128xf32>
    %653 = vector.extract_strided_slice %628 {offsets = [0, 256], sizes = [8, 128], strides = [1, 1]} : vector<8x384xf32> to vector<8x128xf32>
    %654 = vector.extract_strided_slice %632 {offsets = [0, 256], sizes = [8, 128], strides = [1, 1]} : vector<8x384xf32> to vector<8x128xf32>
    %655 = arith.mulf %642, %654 : vector<8x128xf32>
    %656 = arith.addf %653, %655 : vector<8x128xf32>
    %657 = math.tanh %656 : vector<8x128xf32>
    %cst_203 = arith.constant 1.000000e+00 : f32
    %658 = vector.broadcast %cst_203 : f32 to vector<8x128xf32>
    %659 = arith.subf %658, %652 : vector<8x128xf32>
    %660 = arith.mulf %659, %657 : vector<8x128xf32>
    %661 = arith.mulf %652, %621 : vector<8x128xf32>
    %662 = arith.addf %660, %661 : vector<8x128xf32>
    %663 = vector.broadcast %c5_i32_193 : i32 to vector<8x1xi32>
    %664 = arith.cmpi slt, %663, %0 : vector<8x1xi32>
    %665 = vector.shape_cast %664 : vector<8x1xi1> to vector<8x1xi1>
    %666 = vector.broadcast %665 : vector<8x1xi1> to vector<8x128xi1>
    %667 = arith.select %666, %662, %621 : vector<8x128xi1>, vector<8x128xf32>
    %668 = arith.index_cast %c5_i32_193 : i32 to index
    %c0_204 = arith.constant 0 : index
    %c0_205 = arith.constant 0 : index
    %669 = vector.load %arg21[%668, %c0_204, %c0_205] : memref<8x8x128xf32, #tpu.memory_space<vmem>>, vector<1x8x128xf32>
    %670 = vector.shape_cast %669 : vector<1x8x128xf32> to vector<8x128xf32>
    %671 = vector.shape_cast %667 : vector<8x128xf32> to vector<1x8x128xf32>
    tpu.vector_store %arg21[%668, %c0_204, %c0_205], %671 {strides = array<i32>} : memref<8x8x128xf32, #tpu.memory_space<vmem>>, vector<1x8x128xf32>,
    %c6_i32_206 = arith.constant 6 : i32
    %672 = arith.index_cast %c6_i32_206 : i32 to index
    %c0_207 = arith.constant 0 : index
    %c0_208 = arith.constant 0 : index
    %673 = vector.load %arg20[%672, %c0_207, %c0_208] : memref<8x8x384xf32, #tpu.memory_space<vmem>>, vector<1x8x384xf32>
    %674 = vector.shape_cast %673 : vector<1x8x384xf32> to vector<8x384xf32>
    %675 = arith.truncf %667 : vector<8x128xf32> to vector<8x128xbf16>
    %cst_209 = arith.constant dense<0.000000e+00> : vector<8x384xf32>
    %676 = tpu.matmul %675, %393, %cst_209 {dimension_numbers = #tpu.dot_dimension_numbers<[1], [0], [0], [1], [0, 0, 1, 1], [], []>} : vector<8x128xbf16>, vector<128x384xbf16>, vector<8x384xf32> -> vector<8x384xf32>
    %677 = vector.broadcast %394 : vector<1x384xf32> to vector<8x384xf32>
    %678 = arith.addf %676, %677 : vector<8x384xf32>
    %679 = vector.extract_strided_slice %674 {offsets = [0, 0], sizes = [8, 128], strides = [1, 1]} : vector<8x384xf32> to vector<8x128xf32>
    %680 = vector.extract_strided_slice %678 {offsets = [0, 0], sizes = [8, 128], strides = [1, 1]} : vector<8x384xf32> to vector<8x128xf32>
    %681 = arith.addf %679, %680 : vector<8x128xf32>
    %cst_210 = arith.constant 5.000000e-01 : f32
    %682 = vector.broadcast %cst_210 : f32 to vector<8x128xf32>
    %683 = arith.mulf %682, %681 : vector<8x128xf32>
    %684 = math.tanh %683 : vector<8x128xf32>
    %cst_211 = arith.constant 1.000000e+00 : f32
    %685 = vector.broadcast %cst_211 : f32 to vector<8x128xf32>
    %686 = arith.addf %684, %685 : vector<8x128xf32>
    %cst_212 = arith.constant 5.000000e-01 : f32
    %687 = vector.broadcast %cst_212 : f32 to vector<8x128xf32>
    %688 = arith.mulf %687, %686 : vector<8x128xf32>
    %689 = vector.extract_strided_slice %674 {offsets = [0, 128], sizes = [8, 128], strides = [1, 1]} : vector<8x384xf32> to vector<8x128xf32>
    %690 = vector.extract_strided_slice %678 {offsets = [0, 128], sizes = [8, 128], strides = [1, 1]} : vector<8x384xf32> to vector<8x128xf32>
    %691 = arith.addf %689, %690 : vector<8x128xf32>
    %cst_213 = arith.constant 5.000000e-01 : f32
    %692 = vector.broadcast %cst_213 : f32 to vector<8x128xf32>
    %693 = arith.mulf %692, %691 : vector<8x128xf32>
    %694 = math.tanh %693 : vector<8x128xf32>
    %cst_214 = arith.constant 1.000000e+00 : f32
    %695 = vector.broadcast %cst_214 : f32 to vector<8x128xf32>
    %696 = arith.addf %694, %695 : vector<8x128xf32>
    %cst_215 = arith.constant 5.000000e-01 : f32
    %697 = vector.broadcast %cst_215 : f32 to vector<8x128xf32>
    %698 = arith.mulf %697, %696 : vector<8x128xf32>
    %699 = vector.extract_strided_slice %674 {offsets = [0, 256], sizes = [8, 128], strides = [1, 1]} : vector<8x384xf32> to vector<8x128xf32>
    %700 = vector.extract_strided_slice %678 {offsets = [0, 256], sizes = [8, 128], strides = [1, 1]} : vector<8x384xf32> to vector<8x128xf32>
    %701 = arith.mulf %688, %700 : vector<8x128xf32>
    %702 = arith.addf %699, %701 : vector<8x128xf32>
    %703 = math.tanh %702 : vector<8x128xf32>
    %cst_216 = arith.constant 1.000000e+00 : f32
    %704 = vector.broadcast %cst_216 : f32 to vector<8x128xf32>
    %705 = arith.subf %704, %698 : vector<8x128xf32>
    %706 = arith.mulf %705, %703 : vector<8x128xf32>
    %707 = arith.mulf %698, %667 : vector<8x128xf32>
    %708 = arith.addf %706, %707 : vector<8x128xf32>
    %709 = vector.broadcast %c6_i32_206 : i32 to vector<8x1xi32>
    %710 = arith.cmpi slt, %709, %0 : vector<8x1xi32>
    %711 = vector.shape_cast %710 : vector<8x1xi1> to vector<8x1xi1>
    %712 = vector.broadcast %711 : vector<8x1xi1> to vector<8x128xi1>
    %713 = arith.select %712, %708, %667 : vector<8x128xi1>, vector<8x128xf32>
    %714 = arith.index_cast %c6_i32_206 : i32 to index
    %c0_217 = arith.constant 0 : index
    %c0_218 = arith.constant 0 : index
    %715 = vector.load %arg21[%714, %c0_217, %c0_218] : memref<8x8x128xf32, #tpu.memory_space<vmem>>, vector<1x8x128xf32>
    %716 = vector.shape_cast %715 : vector<1x8x128xf32> to vector<8x128xf32>
    %717 = vector.shape_cast %713 : vector<8x128xf32> to vector<1x8x128xf32>
    tpu.vector_store %arg21[%714, %c0_217, %c0_218], %717 {strides = array<i32>} : memref<8x8x128xf32, #tpu.memory_space<vmem>>, vector<1x8x128xf32>,
    %c7_i32_219 = arith.constant 7 : i32
    %718 = arith.index_cast %c7_i32_219 : i32 to index
    %c0_220 = arith.constant 0 : index
    %c0_221 = arith.constant 0 : index
    %719 = vector.load %arg20[%718, %c0_220, %c0_221] : memref<8x8x384xf32, #tpu.memory_space<vmem>>, vector<1x8x384xf32>
    %720 = vector.shape_cast %719 : vector<1x8x384xf32> to vector<8x384xf32>
    %721 = arith.truncf %713 : vector<8x128xf32> to vector<8x128xbf16>
    %cst_222 = arith.constant dense<0.000000e+00> : vector<8x384xf32>
    %722 = tpu.matmul %721, %393, %cst_222 {dimension_numbers = #tpu.dot_dimension_numbers<[1], [0], [0], [1], [0, 0, 1, 1], [], []>} : vector<8x128xbf16>, vector<128x384xbf16>, vector<8x384xf32> -> vector<8x384xf32>
    %723 = vector.broadcast %394 : vector<1x384xf32> to vector<8x384xf32>
    %724 = arith.addf %722, %723 : vector<8x384xf32>
    %725 = vector.extract_strided_slice %720 {offsets = [0, 0], sizes = [8, 128], strides = [1, 1]} : vector<8x384xf32> to vector<8x128xf32>
    %726 = vector.extract_strided_slice %724 {offsets = [0, 0], sizes = [8, 128], strides = [1, 1]} : vector<8x384xf32> to vector<8x128xf32>
    %727 = arith.addf %725, %726 : vector<8x128xf32>
    %cst_223 = arith.constant 5.000000e-01 : f32
    %728 = vector.broadcast %cst_223 : f32 to vector<8x128xf32>
    %729 = arith.mulf %728, %727 : vector<8x128xf32>
    %730 = math.tanh %729 : vector<8x128xf32>
    %cst_224 = arith.constant 1.000000e+00 : f32
    %731 = vector.broadcast %cst_224 : f32 to vector<8x128xf32>
    %732 = arith.addf %730, %731 : vector<8x128xf32>
    %cst_225 = arith.constant 5.000000e-01 : f32
    %733 = vector.broadcast %cst_225 : f32 to vector<8x128xf32>
    %734 = arith.mulf %733, %732 : vector<8x128xf32>
    %735 = vector.extract_strided_slice %720 {offsets = [0, 128], sizes = [8, 128], strides = [1, 1]} : vector<8x384xf32> to vector<8x128xf32>
    %736 = vector.extract_strided_slice %724 {offsets = [0, 128], sizes = [8, 128], strides = [1, 1]} : vector<8x384xf32> to vector<8x128xf32>
    %737 = arith.addf %735, %736 : vector<8x128xf32>
    %cst_226 = arith.constant 5.000000e-01 : f32
    %738 = vector.broadcast %cst_226 : f32 to vector<8x128xf32>
    %739 = arith.mulf %738, %737 : vector<8x128xf32>
    %740 = math.tanh %739 : vector<8x128xf32>
    %cst_227 = arith.constant 1.000000e+00 : f32
    %741 = vector.broadcast %cst_227 : f32 to vector<8x128xf32>
    %742 = arith.addf %740, %741 : vector<8x128xf32>
    %cst_228 = arith.constant 5.000000e-01 : f32
    %743 = vector.broadcast %cst_228 : f32 to vector<8x128xf32>
    %744 = arith.mulf %743, %742 : vector<8x128xf32>
    %745 = vector.extract_strided_slice %720 {offsets = [0, 256], sizes = [8, 128], strides = [1, 1]} : vector<8x384xf32> to vector<8x128xf32>
    %746 = vector.extract_strided_slice %724 {offsets = [0, 256], sizes = [8, 128], strides = [1, 1]} : vector<8x384xf32> to vector<8x128xf32>
    %747 = arith.mulf %734, %746 : vector<8x128xf32>
    %748 = arith.addf %745, %747 : vector<8x128xf32>
    %749 = math.tanh %748 : vector<8x128xf32>
    %cst_229 = arith.constant 1.000000e+00 : f32
    %750 = vector.broadcast %cst_229 : f32 to vector<8x128xf32>
    %751 = arith.subf %750, %744 : vector<8x128xf32>
    %752 = arith.mulf %751, %749 : vector<8x128xf32>
    %753 = arith.mulf %744, %713 : vector<8x128xf32>
    %754 = arith.addf %752, %753 : vector<8x128xf32>
    %755 = vector.broadcast %c7_i32_219 : i32 to vector<8x1xi32>
    %756 = arith.cmpi slt, %755, %0 : vector<8x1xi32>
    %757 = vector.shape_cast %756 : vector<8x1xi1> to vector<8x1xi1>
    %758 = vector.broadcast %757 : vector<8x1xi1> to vector<8x128xi1>
    %759 = arith.select %758, %754, %713 : vector<8x128xi1>, vector<8x128xf32>
    %760 = arith.index_cast %c7_i32_219 : i32 to index
    %c0_230 = arith.constant 0 : index
    %c0_231 = arith.constant 0 : index
    %761 = vector.load %arg21[%760, %c0_230, %c0_231] : memref<8x8x128xf32, #tpu.memory_space<vmem>>, vector<1x8x128xf32>
    %762 = vector.shape_cast %761 : vector<1x8x128xf32> to vector<8x128xf32>
    %763 = vector.shape_cast %759 : vector<8x128xf32> to vector<1x8x128xf32>
    tpu.vector_store %arg21[%760, %c0_230, %c0_231], %763 {strides = array<i32>} : memref<8x8x128xf32, #tpu.memory_space<vmem>>, vector<1x8x128xf32>,
    %c8_i32_232 = arith.constant 8 : i32
    %c0_233 = arith.constant 0 : index
    %c0_234 = arith.constant 0 : index
    %c0_235 = arith.constant 0 : index
    %764 = vector.load %arg21[%c0_233, %c0_234, %c0_235] : memref<8x8x128xf32, #tpu.memory_space<vmem>>, vector<8x8x128xf32>
    %765 = vector.shape_cast %764 : vector<8x8x128xf32> to vector<64x128xf32>
    %766 = arith.truncf %765 : vector<64x128xf32> to vector<64x128xbf16>
    %c0_236 = arith.constant 0 : index
    %c0_237 = arith.constant 0 : index
    %767 = vector.load %arg11[%c0_236, %c0_237] : memref<128x384xbf16, #tpu.memory_space<vmem>>, vector<128x384xbf16>
    %cst_238 = arith.constant dense<0.000000e+00> : vector<64x384xf32>
    %768 = tpu.matmul %766, %767, %cst_238 {dimension_numbers = #tpu.dot_dimension_numbers<[1], [0], [0], [1], [0, 0, 1, 1], [], []>} : vector<64x128xbf16>, vector<128x384xbf16>, vector<64x384xf32> -> vector<64x384xf32>
    %769 = vector.shape_cast %768 : vector<64x384xf32> to vector<8x8x384xf32>
    %c0_239 = arith.constant 0 : index
    %c0_240 = arith.constant 0 : index
    %770 = vector.load %arg12[%c0_239, %c0_240] : memref<1x384xf32, #tpu.memory_space<vmem>>, vector<1x384xf32>
    %771 = vector.shape_cast %770 : vector<1x384xf32> to vector<1x1x384xf32>
    %772 = vector.broadcast %771 : vector<1x1x384xf32> to vector<8x8x384xf32>
    %773 = arith.addf %769, %772 : vector<8x8x384xf32>
    %c0_241 = arith.constant 0 : index
    %c0_242 = arith.constant 0 : index
    %c0_243 = arith.constant 0 : index
    %774 = vector.load %arg20[%c0_241, %c0_242, %c0_243] : memref<8x8x384xf32, #tpu.memory_space<vmem>>, vector<8x8x384xf32>
    tpu.vector_store %arg20[%c0_241, %c0_242, %c0_243], %773 {strides = array<i32>} : memref<8x8x384xf32, #tpu.memory_space<vmem>>, vector<8x8x384xf32>,
    %c0_244 = arith.constant 0 : index
    %c0_245 = arith.constant 0 : index
    %775 = vector.load %arg13[%c0_244, %c0_245] : memref<128x384xbf16, #tpu.memory_space<vmem>>, vector<128x384xbf16>
    %c0_246 = arith.constant 0 : index
    %c0_247 = arith.constant 0 : index
    %776 = vector.load %arg14[%c0_246, %c0_247] : memref<1x384xf32, #tpu.memory_space<vmem>>, vector<1x384xf32>
    %cst_248 = arith.constant 0.000000e+00 : f32
    %777 = vector.broadcast %cst_248 : f32 to vector<8x128xf32>
    %c0_i32_249 = arith.constant 0 : i32
    %778 = arith.index_cast %c0_i32_249 : i32 to index
    %c0_250 = arith.constant 0 : index
    %c0_251 = arith.constant 0 : index
    %779 = vector.load %arg20[%778, %c0_250, %c0_251] : memref<8x8x384xf32, #tpu.memory_space<vmem>>, vector<1x8x384xf32>
    %780 = vector.shape_cast %779 : vector<1x8x384xf32> to vector<8x384xf32>
    %781 = arith.truncf %777 : vector<8x128xf32> to vector<8x128xbf16>
    %cst_252 = arith.constant dense<0.000000e+00> : vector<8x384xf32>
    %782 = tpu.matmul %781, %775, %cst_252 {dimension_numbers = #tpu.dot_dimension_numbers<[1], [0], [0], [1], [0, 0, 1, 1], [], []>} : vector<8x128xbf16>, vector<128x384xbf16>, vector<8x384xf32> -> vector<8x384xf32>
    %783 = vector.broadcast %776 : vector<1x384xf32> to vector<8x384xf32>
    %784 = arith.addf %782, %783 : vector<8x384xf32>
    %785 = vector.extract_strided_slice %780 {offsets = [0, 0], sizes = [8, 128], strides = [1, 1]} : vector<8x384xf32> to vector<8x128xf32>
    %786 = vector.extract_strided_slice %784 {offsets = [0, 0], sizes = [8, 128], strides = [1, 1]} : vector<8x384xf32> to vector<8x128xf32>
    %787 = arith.addf %785, %786 : vector<8x128xf32>
    %cst_253 = arith.constant 5.000000e-01 : f32
    %788 = vector.broadcast %cst_253 : f32 to vector<8x128xf32>
    %789 = arith.mulf %788, %787 : vector<8x128xf32>
    %790 = math.tanh %789 : vector<8x128xf32>
    %cst_254 = arith.constant 1.000000e+00 : f32
    %791 = vector.broadcast %cst_254 : f32 to vector<8x128xf32>
    %792 = arith.addf %790, %791 : vector<8x128xf32>
    %cst_255 = arith.constant 5.000000e-01 : f32
    %793 = vector.broadcast %cst_255 : f32 to vector<8x128xf32>
    %794 = arith.mulf %793, %792 : vector<8x128xf32>
    %795 = vector.extract_strided_slice %780 {offsets = [0, 128], sizes = [8, 128], strides = [1, 1]} : vector<8x384xf32> to vector<8x128xf32>
    %796 = vector.extract_strided_slice %784 {offsets = [0, 128], sizes = [8, 128], strides = [1, 1]} : vector<8x384xf32> to vector<8x128xf32>
    %797 = arith.addf %795, %796 : vector<8x128xf32>
    %cst_256 = arith.constant 5.000000e-01 : f32
    %798 = vector.broadcast %cst_256 : f32 to vector<8x128xf32>
    %799 = arith.mulf %798, %797 : vector<8x128xf32>
    %800 = math.tanh %799 : vector<8x128xf32>
    %cst_257 = arith.constant 1.000000e+00 : f32
    %801 = vector.broadcast %cst_257 : f32 to vector<8x128xf32>
    %802 = arith.addf %800, %801 : vector<8x128xf32>
    %cst_258 = arith.constant 5.000000e-01 : f32
    %803 = vector.broadcast %cst_258 : f32 to vector<8x128xf32>
    %804 = arith.mulf %803, %802 : vector<8x128xf32>
    %805 = vector.extract_strided_slice %780 {offsets = [0, 256], sizes = [8, 128], strides = [1, 1]} : vector<8x384xf32> to vector<8x128xf32>
    %806 = vector.extract_strided_slice %784 {offsets = [0, 256], sizes = [8, 128], strides = [1, 1]} : vector<8x384xf32> to vector<8x128xf32>
    %807 = arith.mulf %794, %806 : vector<8x128xf32>
    %808 = arith.addf %805, %807 : vector<8x128xf32>
    %809 = math.tanh %808 : vector<8x128xf32>
    %cst_259 = arith.constant 1.000000e+00 : f32
    %810 = vector.broadcast %cst_259 : f32 to vector<8x128xf32>
    %811 = arith.subf %810, %804 : vector<8x128xf32>
    %812 = arith.mulf %811, %809 : vector<8x128xf32>
    %813 = arith.mulf %804, %777 : vector<8x128xf32>
    %814 = arith.addf %812, %813 : vector<8x128xf32>
    %815 = vector.broadcast %c0_i32_249 : i32 to vector<8x1xi32>
    %816 = arith.cmpi slt, %815, %0 : vector<8x1xi32>
    %817 = vector.shape_cast %816 : vector<8x1xi1> to vector<8x1xi1>
    %818 = vector.broadcast %817 : vector<8x1xi1> to vector<8x128xi1>
    %819 = arith.select %818, %814, %777 : vector<8x128xi1>, vector<8x128xf32>
    %c1_i32_260 = arith.constant 1 : i32
    %820 = arith.index_cast %c1_i32_260 : i32 to index
    %c0_261 = arith.constant 0 : index
    %c0_262 = arith.constant 0 : index
    %821 = vector.load %arg20[%820, %c0_261, %c0_262] : memref<8x8x384xf32, #tpu.memory_space<vmem>>, vector<1x8x384xf32>
    %822 = vector.shape_cast %821 : vector<1x8x384xf32> to vector<8x384xf32>
    %823 = arith.truncf %819 : vector<8x128xf32> to vector<8x128xbf16>
    %cst_263 = arith.constant dense<0.000000e+00> : vector<8x384xf32>
    %824 = tpu.matmul %823, %775, %cst_263 {dimension_numbers = #tpu.dot_dimension_numbers<[1], [0], [0], [1], [0, 0, 1, 1], [], []>} : vector<8x128xbf16>, vector<128x384xbf16>, vector<8x384xf32> -> vector<8x384xf32>
    %825 = vector.broadcast %776 : vector<1x384xf32> to vector<8x384xf32>
    %826 = arith.addf %824, %825 : vector<8x384xf32>
    %827 = vector.extract_strided_slice %822 {offsets = [0, 0], sizes = [8, 128], strides = [1, 1]} : vector<8x384xf32> to vector<8x128xf32>
    %828 = vector.extract_strided_slice %826 {offsets = [0, 0], sizes = [8, 128], strides = [1, 1]} : vector<8x384xf32> to vector<8x128xf32>
    %829 = arith.addf %827, %828 : vector<8x128xf32>
    %cst_264 = arith.constant 5.000000e-01 : f32
    %830 = vector.broadcast %cst_264 : f32 to vector<8x128xf32>
    %831 = arith.mulf %830, %829 : vector<8x128xf32>
    %832 = math.tanh %831 : vector<8x128xf32>
    %cst_265 = arith.constant 1.000000e+00 : f32
    %833 = vector.broadcast %cst_265 : f32 to vector<8x128xf32>
    %834 = arith.addf %832, %833 : vector<8x128xf32>
    %cst_266 = arith.constant 5.000000e-01 : f32
    %835 = vector.broadcast %cst_266 : f32 to vector<8x128xf32>
    %836 = arith.mulf %835, %834 : vector<8x128xf32>
    %837 = vector.extract_strided_slice %822 {offsets = [0, 128], sizes = [8, 128], strides = [1, 1]} : vector<8x384xf32> to vector<8x128xf32>
    %838 = vector.extract_strided_slice %826 {offsets = [0, 128], sizes = [8, 128], strides = [1, 1]} : vector<8x384xf32> to vector<8x128xf32>
    %839 = arith.addf %837, %838 : vector<8x128xf32>
    %cst_267 = arith.constant 5.000000e-01 : f32
    %840 = vector.broadcast %cst_267 : f32 to vector<8x128xf32>
    %841 = arith.mulf %840, %839 : vector<8x128xf32>
    %842 = math.tanh %841 : vector<8x128xf32>
    %cst_268 = arith.constant 1.000000e+00 : f32
    %843 = vector.broadcast %cst_268 : f32 to vector<8x128xf32>
    %844 = arith.addf %842, %843 : vector<8x128xf32>
    %cst_269 = arith.constant 5.000000e-01 : f32
    %845 = vector.broadcast %cst_269 : f32 to vector<8x128xf32>
    %846 = arith.mulf %845, %844 : vector<8x128xf32>
    %847 = vector.extract_strided_slice %822 {offsets = [0, 256], sizes = [8, 128], strides = [1, 1]} : vector<8x384xf32> to vector<8x128xf32>
    %848 = vector.extract_strided_slice %826 {offsets = [0, 256], sizes = [8, 128], strides = [1, 1]} : vector<8x384xf32> to vector<8x128xf32>
    %849 = arith.mulf %836, %848 : vector<8x128xf32>
    %850 = arith.addf %847, %849 : vector<8x128xf32>
    %851 = math.tanh %850 : vector<8x128xf32>
    %cst_270 = arith.constant 1.000000e+00 : f32
    %852 = vector.broadcast %cst_270 : f32 to vector<8x128xf32>
    %853 = arith.subf %852, %846 : vector<8x128xf32>
    %854 = arith.mulf %853, %851 : vector<8x128xf32>
    %855 = arith.mulf %846, %819 : vector<8x128xf32>
    %856 = arith.addf %854, %855 : vector<8x128xf32>
    %857 = vector.broadcast %c1_i32_260 : i32 to vector<8x1xi32>
    %858 = arith.cmpi slt, %857, %0 : vector<8x1xi32>
    %859 = vector.shape_cast %858 : vector<8x1xi1> to vector<8x1xi1>
    %860 = vector.broadcast %859 : vector<8x1xi1> to vector<8x128xi1>
    %861 = arith.select %860, %856, %819 : vector<8x128xi1>, vector<8x128xf32>
    %c2_i32_271 = arith.constant 2 : i32
    %862 = arith.index_cast %c2_i32_271 : i32 to index
    %c0_272 = arith.constant 0 : index
    %c0_273 = arith.constant 0 : index
    %863 = vector.load %arg20[%862, %c0_272, %c0_273] : memref<8x8x384xf32, #tpu.memory_space<vmem>>, vector<1x8x384xf32>
    %864 = vector.shape_cast %863 : vector<1x8x384xf32> to vector<8x384xf32>
    %865 = arith.truncf %861 : vector<8x128xf32> to vector<8x128xbf16>
    %cst_274 = arith.constant dense<0.000000e+00> : vector<8x384xf32>
    %866 = tpu.matmul %865, %775, %cst_274 {dimension_numbers = #tpu.dot_dimension_numbers<[1], [0], [0], [1], [0, 0, 1, 1], [], []>} : vector<8x128xbf16>, vector<128x384xbf16>, vector<8x384xf32> -> vector<8x384xf32>
    %867 = vector.broadcast %776 : vector<1x384xf32> to vector<8x384xf32>
    %868 = arith.addf %866, %867 : vector<8x384xf32>
    %869 = vector.extract_strided_slice %864 {offsets = [0, 0], sizes = [8, 128], strides = [1, 1]} : vector<8x384xf32> to vector<8x128xf32>
    %870 = vector.extract_strided_slice %868 {offsets = [0, 0], sizes = [8, 128], strides = [1, 1]} : vector<8x384xf32> to vector<8x128xf32>
    %871 = arith.addf %869, %870 : vector<8x128xf32>
    %cst_275 = arith.constant 5.000000e-01 : f32
    %872 = vector.broadcast %cst_275 : f32 to vector<8x128xf32>
    %873 = arith.mulf %872, %871 : vector<8x128xf32>
    %874 = math.tanh %873 : vector<8x128xf32>
    %cst_276 = arith.constant 1.000000e+00 : f32
    %875 = vector.broadcast %cst_276 : f32 to vector<8x128xf32>
    %876 = arith.addf %874, %875 : vector<8x128xf32>
    %cst_277 = arith.constant 5.000000e-01 : f32
    %877 = vector.broadcast %cst_277 : f32 to vector<8x128xf32>
    %878 = arith.mulf %877, %876 : vector<8x128xf32>
    %879 = vector.extract_strided_slice %864 {offsets = [0, 128], sizes = [8, 128], strides = [1, 1]} : vector<8x384xf32> to vector<8x128xf32>
    %880 = vector.extract_strided_slice %868 {offsets = [0, 128], sizes = [8, 128], strides = [1, 1]} : vector<8x384xf32> to vector<8x128xf32>
    %881 = arith.addf %879, %880 : vector<8x128xf32>
    %cst_278 = arith.constant 5.000000e-01 : f32
    %882 = vector.broadcast %cst_278 : f32 to vector<8x128xf32>
    %883 = arith.mulf %882, %881 : vector<8x128xf32>
    %884 = math.tanh %883 : vector<8x128xf32>
    %cst_279 = arith.constant 1.000000e+00 : f32
    %885 = vector.broadcast %cst_279 : f32 to vector<8x128xf32>
    %886 = arith.addf %884, %885 : vector<8x128xf32>
    %cst_280 = arith.constant 5.000000e-01 : f32
    %887 = vector.broadcast %cst_280 : f32 to vector<8x128xf32>
    %888 = arith.mulf %887, %886 : vector<8x128xf32>
    %889 = vector.extract_strided_slice %864 {offsets = [0, 256], sizes = [8, 128], strides = [1, 1]} : vector<8x384xf32> to vector<8x128xf32>
    %890 = vector.extract_strided_slice %868 {offsets = [0, 256], sizes = [8, 128], strides = [1, 1]} : vector<8x384xf32> to vector<8x128xf32>
    %891 = arith.mulf %878, %890 : vector<8x128xf32>
    %892 = arith.addf %889, %891 : vector<8x128xf32>
    %893 = math.tanh %892 : vector<8x128xf32>
    %cst_281 = arith.constant 1.000000e+00 : f32
    %894 = vector.broadcast %cst_281 : f32 to vector<8x128xf32>
    %895 = arith.subf %894, %888 : vector<8x128xf32>
    %896 = arith.mulf %895, %893 : vector<8x128xf32>
    %897 = arith.mulf %888, %861 : vector<8x128xf32>
    %898 = arith.addf %896, %897 : vector<8x128xf32>
    %899 = vector.broadcast %c2_i32_271 : i32 to vector<8x1xi32>
    %900 = arith.cmpi slt, %899, %0 : vector<8x1xi32>
    %901 = vector.shape_cast %900 : vector<8x1xi1> to vector<8x1xi1>
    %902 = vector.broadcast %901 : vector<8x1xi1> to vector<8x128xi1>
    %903 = arith.select %902, %898, %861 : vector<8x128xi1>, vector<8x128xf32>
    %c3_i32_282 = arith.constant 3 : i32
    %904 = arith.index_cast %c3_i32_282 : i32 to index
    %c0_283 = arith.constant 0 : index
    %c0_284 = arith.constant 0 : index
    %905 = vector.load %arg20[%904, %c0_283, %c0_284] : memref<8x8x384xf32, #tpu.memory_space<vmem>>, vector<1x8x384xf32>
    %906 = vector.shape_cast %905 : vector<1x8x384xf32> to vector<8x384xf32>
    %907 = arith.truncf %903 : vector<8x128xf32> to vector<8x128xbf16>
    %cst_285 = arith.constant dense<0.000000e+00> : vector<8x384xf32>
    %908 = tpu.matmul %907, %775, %cst_285 {dimension_numbers = #tpu.dot_dimension_numbers<[1], [0], [0], [1], [0, 0, 1, 1], [], []>} : vector<8x128xbf16>, vector<128x384xbf16>, vector<8x384xf32> -> vector<8x384xf32>
    %909 = vector.broadcast %776 : vector<1x384xf32> to vector<8x384xf32>
    %910 = arith.addf %908, %909 : vector<8x384xf32>
    %911 = vector.extract_strided_slice %906 {offsets = [0, 0], sizes = [8, 128], strides = [1, 1]} : vector<8x384xf32> to vector<8x128xf32>
    %912 = vector.extract_strided_slice %910 {offsets = [0, 0], sizes = [8, 128], strides = [1, 1]} : vector<8x384xf32> to vector<8x128xf32>
    %913 = arith.addf %911, %912 : vector<8x128xf32>
    %cst_286 = arith.constant 5.000000e-01 : f32
    %914 = vector.broadcast %cst_286 : f32 to vector<8x128xf32>
    %915 = arith.mulf %914, %913 : vector<8x128xf32>
    %916 = math.tanh %915 : vector<8x128xf32>
    %cst_287 = arith.constant 1.000000e+00 : f32
    %917 = vector.broadcast %cst_287 : f32 to vector<8x128xf32>
    %918 = arith.addf %916, %917 : vector<8x128xf32>
    %cst_288 = arith.constant 5.000000e-01 : f32
    %919 = vector.broadcast %cst_288 : f32 to vector<8x128xf32>
    %920 = arith.mulf %919, %918 : vector<8x128xf32>
    %921 = vector.extract_strided_slice %906 {offsets = [0, 128], sizes = [8, 128], strides = [1, 1]} : vector<8x384xf32> to vector<8x128xf32>
    %922 = vector.extract_strided_slice %910 {offsets = [0, 128], sizes = [8, 128], strides = [1, 1]} : vector<8x384xf32> to vector<8x128xf32>
    %923 = arith.addf %921, %922 : vector<8x128xf32>
    %cst_289 = arith.constant 5.000000e-01 : f32
    %924 = vector.broadcast %cst_289 : f32 to vector<8x128xf32>
    %925 = arith.mulf %924, %923 : vector<8x128xf32>
    %926 = math.tanh %925 : vector<8x128xf32>
    %cst_290 = arith.constant 1.000000e+00 : f32
    %927 = vector.broadcast %cst_290 : f32 to vector<8x128xf32>
    %928 = arith.addf %926, %927 : vector<8x128xf32>
    %cst_291 = arith.constant 5.000000e-01 : f32
    %929 = vector.broadcast %cst_291 : f32 to vector<8x128xf32>
    %930 = arith.mulf %929, %928 : vector<8x128xf32>
    %931 = vector.extract_strided_slice %906 {offsets = [0, 256], sizes = [8, 128], strides = [1, 1]} : vector<8x384xf32> to vector<8x128xf32>
    %932 = vector.extract_strided_slice %910 {offsets = [0, 256], sizes = [8, 128], strides = [1, 1]} : vector<8x384xf32> to vector<8x128xf32>
    %933 = arith.mulf %920, %932 : vector<8x128xf32>
    %934 = arith.addf %931, %933 : vector<8x128xf32>
    %935 = math.tanh %934 : vector<8x128xf32>
    %cst_292 = arith.constant 1.000000e+00 : f32
    %936 = vector.broadcast %cst_292 : f32 to vector<8x128xf32>
    %937 = arith.subf %936, %930 : vector<8x128xf32>
    %938 = arith.mulf %937, %935 : vector<8x128xf32>
    %939 = arith.mulf %930, %903 : vector<8x128xf32>
    %940 = arith.addf %938, %939 : vector<8x128xf32>
    %941 = vector.broadcast %c3_i32_282 : i32 to vector<8x1xi32>
    %942 = arith.cmpi slt, %941, %0 : vector<8x1xi32>
    %943 = vector.shape_cast %942 : vector<8x1xi1> to vector<8x1xi1>
    %944 = vector.broadcast %943 : vector<8x1xi1> to vector<8x128xi1>
    %945 = arith.select %944, %940, %903 : vector<8x128xi1>, vector<8x128xf32>
    %c4_i32_293 = arith.constant 4 : i32
    %946 = arith.index_cast %c4_i32_293 : i32 to index
    %c0_294 = arith.constant 0 : index
    %c0_295 = arith.constant 0 : index
    %947 = vector.load %arg20[%946, %c0_294, %c0_295] : memref<8x8x384xf32, #tpu.memory_space<vmem>>, vector<1x8x384xf32>
    %948 = vector.shape_cast %947 : vector<1x8x384xf32> to vector<8x384xf32>
    %949 = arith.truncf %945 : vector<8x128xf32> to vector<8x128xbf16>
    %cst_296 = arith.constant dense<0.000000e+00> : vector<8x384xf32>
    %950 = tpu.matmul %949, %775, %cst_296 {dimension_numbers = #tpu.dot_dimension_numbers<[1], [0], [0], [1], [0, 0, 1, 1], [], []>} : vector<8x128xbf16>, vector<128x384xbf16>, vector<8x384xf32> -> vector<8x384xf32>
    %951 = vector.broadcast %776 : vector<1x384xf32> to vector<8x384xf32>
    %952 = arith.addf %950, %951 : vector<8x384xf32>
    %953 = vector.extract_strided_slice %948 {offsets = [0, 0], sizes = [8, 128], strides = [1, 1]} : vector<8x384xf32> to vector<8x128xf32>
    %954 = vector.extract_strided_slice %952 {offsets = [0, 0], sizes = [8, 128], strides = [1, 1]} : vector<8x384xf32> to vector<8x128xf32>
    %955 = arith.addf %953, %954 : vector<8x128xf32>
    %cst_297 = arith.constant 5.000000e-01 : f32
    %956 = vector.broadcast %cst_297 : f32 to vector<8x128xf32>
    %957 = arith.mulf %956, %955 : vector<8x128xf32>
    %958 = math.tanh %957 : vector<8x128xf32>
    %cst_298 = arith.constant 1.000000e+00 : f32
    %959 = vector.broadcast %cst_298 : f32 to vector<8x128xf32>
    %960 = arith.addf %958, %959 : vector<8x128xf32>
    %cst_299 = arith.constant 5.000000e-01 : f32
    %961 = vector.broadcast %cst_299 : f32 to vector<8x128xf32>
    %962 = arith.mulf %961, %960 : vector<8x128xf32>
    %963 = vector.extract_strided_slice %948 {offsets = [0, 128], sizes = [8, 128], strides = [1, 1]} : vector<8x384xf32> to vector<8x128xf32>
    %964 = vector.extract_strided_slice %952 {offsets = [0, 128], sizes = [8, 128], strides = [1, 1]} : vector<8x384xf32> to vector<8x128xf32>
    %965 = arith.addf %963, %964 : vector<8x128xf32>
    %cst_300 = arith.constant 5.000000e-01 : f32
    %966 = vector.broadcast %cst_300 : f32 to vector<8x128xf32>
    %967 = arith.mulf %966, %965 : vector<8x128xf32>
    %968 = math.tanh %967 : vector<8x128xf32>
    %cst_301 = arith.constant 1.000000e+00 : f32
    %969 = vector.broadcast %cst_301 : f32 to vector<8x128xf32>
    %970 = arith.addf %968, %969 : vector<8x128xf32>
    %cst_302 = arith.constant 5.000000e-01 : f32
    %971 = vector.broadcast %cst_302 : f32 to vector<8x128xf32>
    %972 = arith.mulf %971, %970 : vector<8x128xf32>
    %973 = vector.extract_strided_slice %948 {offsets = [0, 256], sizes = [8, 128], strides = [1, 1]} : vector<8x384xf32> to vector<8x128xf32>
    %974 = vector.extract_strided_slice %952 {offsets = [0, 256], sizes = [8, 128], strides = [1, 1]} : vector<8x384xf32> to vector<8x128xf32>
    %975 = arith.mulf %962, %974 : vector<8x128xf32>
    %976 = arith.addf %973, %975 : vector<8x128xf32>
    %977 = math.tanh %976 : vector<8x128xf32>
    %cst_303 = arith.constant 1.000000e+00 : f32
    %978 = vector.broadcast %cst_303 : f32 to vector<8x128xf32>
    %979 = arith.subf %978, %972 : vector<8x128xf32>
    %980 = arith.mulf %979, %977 : vector<8x128xf32>
    %981 = arith.mulf %972, %945 : vector<8x128xf32>
    %982 = arith.addf %980, %981 : vector<8x128xf32>
    %983 = vector.broadcast %c4_i32_293 : i32 to vector<8x1xi32>
    %984 = arith.cmpi slt, %983, %0 : vector<8x1xi32>
    %985 = vector.shape_cast %984 : vector<8x1xi1> to vector<8x1xi1>
    %986 = vector.broadcast %985 : vector<8x1xi1> to vector<8x128xi1>
    %987 = arith.select %986, %982, %945 : vector<8x128xi1>, vector<8x128xf32>
    %c5_i32_304 = arith.constant 5 : i32
    %988 = arith.index_cast %c5_i32_304 : i32 to index
    %c0_305 = arith.constant 0 : index
    %c0_306 = arith.constant 0 : index
    %989 = vector.load %arg20[%988, %c0_305, %c0_306] : memref<8x8x384xf32, #tpu.memory_space<vmem>>, vector<1x8x384xf32>
    %990 = vector.shape_cast %989 : vector<1x8x384xf32> to vector<8x384xf32>
    %991 = arith.truncf %987 : vector<8x128xf32> to vector<8x128xbf16>
    %cst_307 = arith.constant dense<0.000000e+00> : vector<8x384xf32>
    %992 = tpu.matmul %991, %775, %cst_307 {dimension_numbers = #tpu.dot_dimension_numbers<[1], [0], [0], [1], [0, 0, 1, 1], [], []>} : vector<8x128xbf16>, vector<128x384xbf16>, vector<8x384xf32> -> vector<8x384xf32>
    %993 = vector.broadcast %776 : vector<1x384xf32> to vector<8x384xf32>
    %994 = arith.addf %992, %993 : vector<8x384xf32>
    %995 = vector.extract_strided_slice %990 {offsets = [0, 0], sizes = [8, 128], strides = [1, 1]} : vector<8x384xf32> to vector<8x128xf32>
    %996 = vector.extract_strided_slice %994 {offsets = [0, 0], sizes = [8, 128], strides = [1, 1]} : vector<8x384xf32> to vector<8x128xf32>
    %997 = arith.addf %995, %996 : vector<8x128xf32>
    %cst_308 = arith.constant 5.000000e-01 : f32
    %998 = vector.broadcast %cst_308 : f32 to vector<8x128xf32>
    %999 = arith.mulf %998, %997 : vector<8x128xf32>
    %1000 = math.tanh %999 : vector<8x128xf32>
    %cst_309 = arith.constant 1.000000e+00 : f32
    %1001 = vector.broadcast %cst_309 : f32 to vector<8x128xf32>
    %1002 = arith.addf %1000, %1001 : vector<8x128xf32>
    %cst_310 = arith.constant 5.000000e-01 : f32
    %1003 = vector.broadcast %cst_310 : f32 to vector<8x128xf32>
    %1004 = arith.mulf %1003, %1002 : vector<8x128xf32>
    %1005 = vector.extract_strided_slice %990 {offsets = [0, 128], sizes = [8, 128], strides = [1, 1]} : vector<8x384xf32> to vector<8x128xf32>
    %1006 = vector.extract_strided_slice %994 {offsets = [0, 128], sizes = [8, 128], strides = [1, 1]} : vector<8x384xf32> to vector<8x128xf32>
    %1007 = arith.addf %1005, %1006 : vector<8x128xf32>
    %cst_311 = arith.constant 5.000000e-01 : f32
    %1008 = vector.broadcast %cst_311 : f32 to vector<8x128xf32>
    %1009 = arith.mulf %1008, %1007 : vector<8x128xf32>
    %1010 = math.tanh %1009 : vector<8x128xf32>
    %cst_312 = arith.constant 1.000000e+00 : f32
    %1011 = vector.broadcast %cst_312 : f32 to vector<8x128xf32>
    %1012 = arith.addf %1010, %1011 : vector<8x128xf32>
    %cst_313 = arith.constant 5.000000e-01 : f32
    %1013 = vector.broadcast %cst_313 : f32 to vector<8x128xf32>
    %1014 = arith.mulf %1013, %1012 : vector<8x128xf32>
    %1015 = vector.extract_strided_slice %990 {offsets = [0, 256], sizes = [8, 128], strides = [1, 1]} : vector<8x384xf32> to vector<8x128xf32>
    %1016 = vector.extract_strided_slice %994 {offsets = [0, 256], sizes = [8, 128], strides = [1, 1]} : vector<8x384xf32> to vector<8x128xf32>
    %1017 = arith.mulf %1004, %1016 : vector<8x128xf32>
    %1018 = arith.addf %1015, %1017 : vector<8x128xf32>
    %1019 = math.tanh %1018 : vector<8x128xf32>
    %cst_314 = arith.constant 1.000000e+00 : f32
    %1020 = vector.broadcast %cst_314 : f32 to vector<8x128xf32>
    %1021 = arith.subf %1020, %1014 : vector<8x128xf32>
    %1022 = arith.mulf %1021, %1019 : vector<8x128xf32>
    %1023 = arith.mulf %1014, %987 : vector<8x128xf32>
    %1024 = arith.addf %1022, %1023 : vector<8x128xf32>
    %1025 = vector.broadcast %c5_i32_304 : i32 to vector<8x1xi32>
    %1026 = arith.cmpi slt, %1025, %0 : vector<8x1xi32>
    %1027 = vector.shape_cast %1026 : vector<8x1xi1> to vector<8x1xi1>
    %1028 = vector.broadcast %1027 : vector<8x1xi1> to vector<8x128xi1>
    %1029 = arith.select %1028, %1024, %987 : vector<8x128xi1>, vector<8x128xf32>
    %c6_i32_315 = arith.constant 6 : i32
    %1030 = arith.index_cast %c6_i32_315 : i32 to index
    %c0_316 = arith.constant 0 : index
    %c0_317 = arith.constant 0 : index
    %1031 = vector.load %arg20[%1030, %c0_316, %c0_317] : memref<8x8x384xf32, #tpu.memory_space<vmem>>, vector<1x8x384xf32>
    %1032 = vector.shape_cast %1031 : vector<1x8x384xf32> to vector<8x384xf32>
    %1033 = arith.truncf %1029 : vector<8x128xf32> to vector<8x128xbf16>
    %cst_318 = arith.constant dense<0.000000e+00> : vector<8x384xf32>
    %1034 = tpu.matmul %1033, %775, %cst_318 {dimension_numbers = #tpu.dot_dimension_numbers<[1], [0], [0], [1], [0, 0, 1, 1], [], []>} : vector<8x128xbf16>, vector<128x384xbf16>, vector<8x384xf32> -> vector<8x384xf32>
    %1035 = vector.broadcast %776 : vector<1x384xf32> to vector<8x384xf32>
    %1036 = arith.addf %1034, %1035 : vector<8x384xf32>
    %1037 = vector.extract_strided_slice %1032 {offsets = [0, 0], sizes = [8, 128], strides = [1, 1]} : vector<8x384xf32> to vector<8x128xf32>
    %1038 = vector.extract_strided_slice %1036 {offsets = [0, 0], sizes = [8, 128], strides = [1, 1]} : vector<8x384xf32> to vector<8x128xf32>
    %1039 = arith.addf %1037, %1038 : vector<8x128xf32>
    %cst_319 = arith.constant 5.000000e-01 : f32
    %1040 = vector.broadcast %cst_319 : f32 to vector<8x128xf32>
    %1041 = arith.mulf %1040, %1039 : vector<8x128xf32>
    %1042 = math.tanh %1041 : vector<8x128xf32>
    %cst_320 = arith.constant 1.000000e+00 : f32
    %1043 = vector.broadcast %cst_320 : f32 to vector<8x128xf32>
    %1044 = arith.addf %1042, %1043 : vector<8x128xf32>
    %cst_321 = arith.constant 5.000000e-01 : f32
    %1045 = vector.broadcast %cst_321 : f32 to vector<8x128xf32>
    %1046 = arith.mulf %1045, %1044 : vector<8x128xf32>
    %1047 = vector.extract_strided_slice %1032 {offsets = [0, 128], sizes = [8, 128], strides = [1, 1]} : vector<8x384xf32> to vector<8x128xf32>
    %1048 = vector.extract_strided_slice %1036 {offsets = [0, 128], sizes = [8, 128], strides = [1, 1]} : vector<8x384xf32> to vector<8x128xf32>
    %1049 = arith.addf %1047, %1048 : vector<8x128xf32>
    %cst_322 = arith.constant 5.000000e-01 : f32
    %1050 = vector.broadcast %cst_322 : f32 to vector<8x128xf32>
    %1051 = arith.mulf %1050, %1049 : vector<8x128xf32>
    %1052 = math.tanh %1051 : vector<8x128xf32>
    %cst_323 = arith.constant 1.000000e+00 : f32
    %1053 = vector.broadcast %cst_323 : f32 to vector<8x128xf32>
    %1054 = arith.addf %1052, %1053 : vector<8x128xf32>
    %cst_324 = arith.constant 5.000000e-01 : f32
    %1055 = vector.broadcast %cst_324 : f32 to vector<8x128xf32>
    %1056 = arith.mulf %1055, %1054 : vector<8x128xf32>
    %1057 = vector.extract_strided_slice %1032 {offsets = [0, 256], sizes = [8, 128], strides = [1, 1]} : vector<8x384xf32> to vector<8x128xf32>
    %1058 = vector.extract_strided_slice %1036 {offsets = [0, 256], sizes = [8, 128], strides = [1, 1]} : vector<8x384xf32> to vector<8x128xf32>
    %1059 = arith.mulf %1046, %1058 : vector<8x128xf32>
    %1060 = arith.addf %1057, %1059 : vector<8x128xf32>
    %1061 = math.tanh %1060 : vector<8x128xf32>
    %cst_325 = arith.constant 1.000000e+00 : f32
    %1062 = vector.broadcast %cst_325 : f32 to vector<8x128xf32>
    %1063 = arith.subf %1062, %1056 : vector<8x128xf32>
    %1064 = arith.mulf %1063, %1061 : vector<8x128xf32>
    %1065 = arith.mulf %1056, %1029 : vector<8x128xf32>
    %1066 = arith.addf %1064, %1065 : vector<8x128xf32>
    %1067 = vector.broadcast %c6_i32_315 : i32 to vector<8x1xi32>
    %1068 = arith.cmpi slt, %1067, %0 : vector<8x1xi32>
    %1069 = vector.shape_cast %1068 : vector<8x1xi1> to vector<8x1xi1>
    %1070 = vector.broadcast %1069 : vector<8x1xi1> to vector<8x128xi1>
    %1071 = arith.select %1070, %1066, %1029 : vector<8x128xi1>, vector<8x128xf32>
    %c7_i32_326 = arith.constant 7 : i32
    %1072 = arith.index_cast %c7_i32_326 : i32 to index
    %c0_327 = arith.constant 0 : index
    %c0_328 = arith.constant 0 : index
    %1073 = vector.load %arg20[%1072, %c0_327, %c0_328] : memref<8x8x384xf32, #tpu.memory_space<vmem>>, vector<1x8x384xf32>
    %1074 = vector.shape_cast %1073 : vector<1x8x384xf32> to vector<8x384xf32>
    %1075 = arith.truncf %1071 : vector<8x128xf32> to vector<8x128xbf16>
    %cst_329 = arith.constant dense<0.000000e+00> : vector<8x384xf32>
    %1076 = tpu.matmul %1075, %775, %cst_329 {dimension_numbers = #tpu.dot_dimension_numbers<[1], [0], [0], [1], [0, 0, 1, 1], [], []>} : vector<8x128xbf16>, vector<128x384xbf16>, vector<8x384xf32> -> vector<8x384xf32>
    %1077 = vector.broadcast %776 : vector<1x384xf32> to vector<8x384xf32>
    %1078 = arith.addf %1076, %1077 : vector<8x384xf32>
    %1079 = vector.extract_strided_slice %1074 {offsets = [0, 0], sizes = [8, 128], strides = [1, 1]} : vector<8x384xf32> to vector<8x128xf32>
    %1080 = vector.extract_strided_slice %1078 {offsets = [0, 0], sizes = [8, 128], strides = [1, 1]} : vector<8x384xf32> to vector<8x128xf32>
    %1081 = arith.addf %1079, %1080 : vector<8x128xf32>
    %cst_330 = arith.constant 5.000000e-01 : f32
    %1082 = vector.broadcast %cst_330 : f32 to vector<8x128xf32>
    %1083 = arith.mulf %1082, %1081 : vector<8x128xf32>
    %1084 = math.tanh %1083 : vector<8x128xf32>
    %cst_331 = arith.constant 1.000000e+00 : f32
    %1085 = vector.broadcast %cst_331 : f32 to vector<8x128xf32>
    %1086 = arith.addf %1084, %1085 : vector<8x128xf32>
    %cst_332 = arith.constant 5.000000e-01 : f32
    %1087 = vector.broadcast %cst_332 : f32 to vector<8x128xf32>
    %1088 = arith.mulf %1087, %1086 : vector<8x128xf32>
    %1089 = vector.extract_strided_slice %1074 {offsets = [0, 128], sizes = [8, 128], strides = [1, 1]} : vector<8x384xf32> to vector<8x128xf32>
    %1090 = vector.extract_strided_slice %1078 {offsets = [0, 128], sizes = [8, 128], strides = [1, 1]} : vector<8x384xf32> to vector<8x128xf32>
    %1091 = arith.addf %1089, %1090 : vector<8x128xf32>
    %cst_333 = arith.constant 5.000000e-01 : f32
    %1092 = vector.broadcast %cst_333 : f32 to vector<8x128xf32>
    %1093 = arith.mulf %1092, %1091 : vector<8x128xf32>
    %1094 = math.tanh %1093 : vector<8x128xf32>
    %cst_334 = arith.constant 1.000000e+00 : f32
    %1095 = vector.broadcast %cst_334 : f32 to vector<8x128xf32>
    %1096 = arith.addf %1094, %1095 : vector<8x128xf32>
    %cst_335 = arith.constant 5.000000e-01 : f32
    %1097 = vector.broadcast %cst_335 : f32 to vector<8x128xf32>
    %1098 = arith.mulf %1097, %1096 : vector<8x128xf32>
    %1099 = vector.extract_strided_slice %1074 {offsets = [0, 256], sizes = [8, 128], strides = [1, 1]} : vector<8x384xf32> to vector<8x128xf32>
    %1100 = vector.extract_strided_slice %1078 {offsets = [0, 256], sizes = [8, 128], strides = [1, 1]} : vector<8x384xf32> to vector<8x128xf32>
    %1101 = arith.mulf %1088, %1100 : vector<8x128xf32>
    %1102 = arith.addf %1099, %1101 : vector<8x128xf32>
    %1103 = math.tanh %1102 : vector<8x128xf32>
    %cst_336 = arith.constant 1.000000e+00 : f32
    %1104 = vector.broadcast %cst_336 : f32 to vector<8x128xf32>
    %1105 = arith.subf %1104, %1098 : vector<8x128xf32>
    %1106 = arith.mulf %1105, %1103 : vector<8x128xf32>
    %1107 = arith.mulf %1098, %1071 : vector<8x128xf32>
    %1108 = arith.addf %1106, %1107 : vector<8x128xf32>
    %1109 = vector.broadcast %c7_i32_326 : i32 to vector<8x1xi32>
    %1110 = arith.cmpi slt, %1109, %0 : vector<8x1xi32>
    %1111 = vector.shape_cast %1110 : vector<8x1xi1> to vector<8x1xi1>
    %1112 = vector.broadcast %1111 : vector<8x1xi1> to vector<8x128xi1>
    %1113 = arith.select %1112, %1108, %1071 : vector<8x128xi1>, vector<8x128xf32>
    %c8_i32_337 = arith.constant 8 : i32
    %c0_338 = arith.constant 0 : index
    %c0_339 = arith.constant 0 : index
    %1114 = vector.load %arg15[%c0_338, %c0_339] : memref<128x136xf32, #tpu.memory_space<vmem>>, vector<128x136xf32>
    %cst_340 = arith.constant dense<0.000000e+00> : vector<8x136xf32>
    %1115 = tpu.matmul %1113, %1114, %cst_340 {dimension_numbers = #tpu.dot_dimension_numbers<[1], [0], [0], [1], [0, 0, 1, 1], [], []>} : vector<8x128xf32>, vector<128x136xf32>, vector<8x136xf32> -> vector<8x136xf32>
    %c0_341 = arith.constant 0 : index
    %c0_342 = arith.constant 0 : index
    %1116 = vector.load %arg16[%c0_341, %c0_342] : memref<1x136xf32, #tpu.memory_space<vmem>>, vector<1x136xf32>
    %1117 = vector.broadcast %1116 : vector<1x136xf32> to vector<8x136xf32>
    %1118 = arith.addf %1115, %1117 : vector<8x136xf32>
    %1119 = math.tanh %1118 : vector<8x136xf32>
    %c0_343 = arith.constant 0 : index
    %c0_344 = arith.constant 0 : index
    %1120 = vector.load %arg17[%c0_343, %c0_344] : memref<136x128xf32, #tpu.memory_space<vmem>>, vector<136x128xf32>
    %cst_345 = arith.constant dense<0.000000e+00> : vector<8x128xf32>
    %1121 = tpu.matmul %1119, %1120, %cst_345 {dimension_numbers = #tpu.dot_dimension_numbers<[1], [0], [0], [1], [0, 0, 1, 1], [], []>} : vector<8x136xf32>, vector<136x128xf32>, vector<8x128xf32> -> vector<8x128xf32>
    %c0_346 = arith.constant 0 : index
    %c0_347 = arith.constant 0 : index
    %1122 = vector.load %arg18[%c0_346, %c0_347] : memref<1x128xf32, #tpu.memory_space<vmem>>, vector<1x128xf32>
    %1123 = vector.broadcast %1122 : vector<1x128xf32> to vector<8x128xf32>
    %1124 = arith.addf %1121, %1123 : vector<8x128xf32>
    %c0_348 = arith.constant 0 : index
    %c0_349 = arith.constant 0 : index
    %1125 = vector.load %arg19[%c0_348, %c0_349] : memref<8x128xf32, #tpu.memory_space<vmem>>, vector<8x128xf32>
    tpu.vector_store %arg19[%c0_348, %c0_349], %1124 {strides = array<i32>} : memref<8x128xf32, #tpu.memory_space<vmem>>, vector<8x128xf32>,
    return
  }
  func.func @transform_0(%arg0: i32) -> (i32, i32, i32) {
    %c0_i32 = arith.constant 0 : i32
    %c0_i32_0 = arith.constant 0 : i32
    %c0_i32_1 = arith.constant 0 : i32
    return %c0_i32, %arg0, %c0_i32_0 : i32, i32, i32
  }
  func.func @transform_1(%arg0: i32) -> (i32, i32) {
    %c0_i32 = arith.constant 0 : i32
    %c0_i32_0 = arith.constant 0 : i32
    return %arg0, %c0_i32 : i32, i32
  }
  func.func @transform_2(%arg0: i32) -> (i32, i32) {
    %c0_i32 = arith.constant 0 : i32
    %c0_i32_0 = arith.constant 0 : i32
    %c0_i32_1 = arith.constant 0 : i32
    return %c0_i32, %c0_i32_0 : i32, i32
  }
  func.func @transform_3(%arg0: i32) -> (i32, i32) {
    %c0_i32 = arith.constant 0 : i32
    %c0_i32_0 = arith.constant 0 : i32
    %c0_i32_1 = arith.constant 0 : i32
    return %c0_i32, %c0_i32_0 : i32, i32
  }
  func.func @transform_4(%arg0: i32) -> (i32, i32) {
    %c0_i32 = arith.constant 0 : i32
    %c0_i32_0 = arith.constant 0 : i32
    %c0_i32_1 = arith.constant 0 : i32
    return %c0_i32, %c0_i32_0 : i32, i32
  }
  func.func @transform_5(%arg0: i32) -> (i32, i32) {
    %c0_i32 = arith.constant 0 : i32
    %c0_i32_0 = arith.constant 0 : i32
    %c0_i32_1 = arith.constant 0 : i32
    return %c0_i32, %c0_i32_0 : i32, i32
  }
  func.func @transform_6(%arg0: i32) -> (i32, i32) {
    %c0_i32 = arith.constant 0 : i32
    %c0_i32_0 = arith.constant 0 : i32
    %c0_i32_1 = arith.constant 0 : i32
    return %c0_i32, %c0_i32_0 : i32, i32
  }
  func.func @transform_7(%arg0: i32) -> (i32, i32) {
    %c0_i32 = arith.constant 0 : i32
    %c0_i32_0 = arith.constant 0 : i32
    %c0_i32_1 = arith.constant 0 : i32
    return %c0_i32, %c0_i32_0 : i32, i32
  }
  func.func @transform_8(%arg0: i32) -> (i32, i32) {
    %c0_i32 = arith.constant 0 : i32
    %c0_i32_0 = arith.constant 0 : i32
    %c0_i32_1 = arith.constant 0 : i32
    return %c0_i32, %c0_i32_0 : i32, i32
  }
  func.func @transform_9(%arg0: i32) -> (i32, i32) {
    %c0_i32 = arith.constant 0 : i32
    %c0_i32_0 = arith.constant 0 : i32
    %c0_i32_1 = arith.constant 0 : i32
    return %c0_i32, %c0_i32_0 : i32, i32
  }
  func.func @transform_10(%arg0: i32) -> (i32, i32) {
    %c0_i32 = arith.constant 0 : i32
    %c0_i32_0 = arith.constant 0 : i32
    %c0_i32_1 = arith.constant 0 : i32
    return %c0_i32, %c0_i32_0 : i32, i32
  }
  func.func @transform_11(%arg0: i32) -> (i32, i32) {
    %c0_i32 = arith.constant 0 : i32
    %c0_i32_0 = arith.constant 0 : i32
    %c0_i32_1 = arith.constant 0 : i32
    return %c0_i32, %c0_i32_0 : i32, i32
  }
  func.func @transform_12(%arg0: i32) -> (i32, i32) {
    %c0_i32 = arith.constant 0 : i32
    %c0_i32_0 = arith.constant 0 : i32
    %c0_i32_1 = arith.constant 0 : i32
    return %c0_i32, %c0_i32_0 : i32, i32
  }
  func.func @transform_13(%arg0: i32) -> (i32, i32) {
    %c0_i32 = arith.constant 0 : i32
    %c0_i32_0 = arith.constant 0 : i32
    %c0_i32_1 = arith.constant 0 : i32
    return %c0_i32, %c0_i32_0 : i32, i32
  }
  func.func @transform_14(%arg0: i32) -> (i32, i32) {
    %c0_i32 = arith.constant 0 : i32
    %c0_i32_0 = arith.constant 0 : i32
    %c0_i32_1 = arith.constant 0 : i32
    return %c0_i32, %c0_i32_0 : i32, i32
  }
  func.func @transform_15(%arg0: i32) -> (i32, i32) {
    %c0_i32 = arith.constant 0 : i32
    %c0_i32_0 = arith.constant 0 : i32
    %c0_i32_1 = arith.constant 0 : i32
    return %c0_i32, %c0_i32_0 : i32, i32
  }
  func.func @transform_16(%arg0: i32) -> (i32, i32) {
    %c0_i32 = arith.constant 0 : i32
    %c0_i32_0 = arith.constant 0 : i32
    %c0_i32_1 = arith.constant 0 : i32
    return %c0_i32, %c0_i32_0 : i32, i32
  }
  func.func @transform_17(%arg0: i32) -> (i32, i32) {
    %c0_i32 = arith.constant 0 : i32
    %c0_i32_0 = arith.constant 0 : i32
    %c0_i32_1 = arith.constant 0 : i32
    return %c0_i32, %c0_i32_0 : i32, i32
  }
  func.func @transform_18(%arg0: i32) -> (i32, i32) {
    %c0_i32 = arith.constant 0 : i32
    %c0_i32_0 = arith.constant 0 : i32
    return %arg0, %c0_i32 : i32, i32
  }
}

</mosaic_0001>

<llo_original>
// kernel: embed_gru_classifier_forward.1
$region0: #{embed_gru_classifier_forward.1}
  #allocation0 [shape = 'u32[]', space=smem, size = 0x4, offset = 0x4, fixed_abs, tag = 'smem constant byte address 0x4 - core index']
  #allocation1 [shape = 'u32[144,128]{1,0:T(1,128)}', space=vmem, size = 0x12000, scoped, tag = 'internal scratch']
  #allocation2 [shape = 'f32[8,8,384]{2,1,0:T(8,128)}', space=vmem, size = 0x18000, scoped, tag = 'scratch operand']
  #allocation3 [shape = 'f32[8,8,128]{2,1,0:T(8,128)}', space=vmem, size = 0x8000, scoped, tag = 'scratch operand']
  %s0 = inlined_call_operand.vmem [shape: bf16[8,8,136], index: 0, kind: input, shape index: {}]
  %s1 = inlined_call_operand.vmem [shape: s32[8,1], index: 1, kind: input, shape index: {}]
  %s2 = inlined_call_operand.vmem [shape: bf16[136,384], index: 2, kind: input, shape index: {}]
  %s3 = inlined_call_operand.vmem [shape: f32[1,384], index: 3, kind: input, shape index: {}]
  %s4 = inlined_call_operand.vmem [shape: bf16[128,384], index: 4, kind: input, shape index: {}]
  %s5 = inlined_call_operand.vmem [shape: f32[1,384], index: 5, kind: input, shape index: {}]
  %s6 = inlined_call_operand.hbm [shape: bf16[128,384], index: 6, kind: input, shape index: {}]
  %s7 = inlined_call_operand.vmem [shape: f32[1,384], index: 7, kind: input, shape index: {}]
  %s8 = inlined_call_operand.hbm [shape: bf16[128,384], index: 8, kind: input, shape index: {}]
  %s9 = inlined_call_operand.vmem [shape: f32[1,384], index: 9, kind: input, shape index: {}]
  %s10 = inlined_call_operand.hbm [shape: bf16[128,384], index: 10, kind: input, shape index: {}]
  %s11 = inlined_call_operand.vmem [shape: f32[1,384], index: 11, kind: input, shape index: {}]
  %s12 = inlined_call_operand.hbm [shape: bf16[128,384], index: 12, kind: input, shape index: {}]
  %s13 = inlined_call_operand.vmem [shape: f32[1,384], index: 13, kind: input, shape index: {}]
  %s14 = inlined_call_operand.vmem [shape: f32[128,136], index: 14, kind: input, shape index: {}]
  %s15 = inlined_call_operand.hbm [shape: f32[1,136], index: 15, kind: input, shape index: {}]
  %s16 = inlined_call_operand.vmem [shape: f32[136,128], index: 16, kind: input, shape index: {}]
  %s17 = inlined_call_operand.vmem [shape: f32[1,128], index: 17, kind: input, shape index: {}]
  %s18 = inlined_call_operand.vmem [shape: f32[8,128], index: 18, kind: output, shape index: {}]
  %s19 = sld [smem:[#allocation0]]
  $region102: #{embed_gru_classifier_forward.1} parent=0
    _
  %s21 = ssub.s32 1, %s19
  %s22 = scalar_select 0, %s21, %s19
  $region1: #{embed_gru_classifier_forward.1} parent=0
    #allocation4 [shape = 'u8[98304]{0}', space=vmem, size = 0x18000, scoped, tag = 'input window, operand 6, single buffered']
    #allocation5 [shape = 's32[1]{0}', space=sflag, size = 0x4, scoped, tag = 'scoped memory for embed_gru_classifier_forward.1']
    #allocation6 [shape = 'u8[98304]{0}', space=vmem, size = 0x18000, scoped, tag = 'input window, operand 8, single buffered']
    #allocation7 [shape = 's32[1]{0}', space=sflag, size = 0x4, scoped, tag = 'scoped memory for embed_gru_classifier_forward.1']
    #allocation8 [shape = 'u8[98304]{0}', space=vmem, size = 0x18000, scoped, tag = 'input window, operand 10, single buffered']
    #allocation9 [shape = 'u8[98304]{0}', space=vmem, size = 0x18000, scoped, tag = 'input window, operand 12, single buffered']
    #allocation10 [shape = 's32[1]{0}', space=sflag, size = 0x4, scoped, tag = 'scoped memory for embed_gru_classifier_forward.1']
    #allocation11 [shape = 'u8[1024]{0}', space=vmem, size = 0x400, scoped, tag = 'input window, operand 15, single buffered']
    %23 = vsyncpa [#allocation5], 0
    %24 = vsyncpa [#allocation7], 0
    %25 = vsyncpa [#allocation10], 0
    // Predicated region
    $region2: #{embed_gru_classifier_forward.1} parent=1 // pred_check
      _
    $region3: #{embed_gru_classifier_forward.1} parent=1 // pred_check_branch
      %27 = sbr.rel (0) target = $region5
    $region4: #{embed_gru_classifier_forward.1} parent=1 // pred_region
      _
    $region5: #{embed_gru_classifier_forward.1} parent=1 // pred_fallthru
      _
    // Predicated region
    $region6: #{embed_gru_classifier_forward.1} parent=1 // pred_check
      _
    $region7: #{embed_gru_classifier_forward.1} parent=1 // pred_check_branch
      %29 = sbr.rel (0) target = $region9
    $region8: #{embed_gru_classifier_forward.1} parent=1 // pred_region
      _
    $region9: #{embed_gru_classifier_forward.1} parent=1 // pred_fallthru
      _
    // Predicated region
    $region10: #{embed_gru_classifier_forward.1} parent=1 // pred_check
      _
    $region11: #{embed_gru_classifier_forward.1} parent=1 // pred_check_branch
      %31 = sbr.rel (0) target = $region13
    $region12: #{embed_gru_classifier_forward.1} parent=1 // pred_region
      _
    $region13: #{embed_gru_classifier_forward.1} parent=1 // pred_fallthru
      _
    // Predicated region
    $region14: #{embed_gru_classifier_forward.1} parent=1 // pred_check
      _
    $region15: #{embed_gru_classifier_forward.1} parent=1 // pred_check_branch
      %33 = sbr.rel (0) target = $region17
    $region16: #{embed_gru_classifier_forward.1} parent=1 // pred_region
      _
    $region17: #{embed_gru_classifier_forward.1} parent=1 // pred_fallthru
      _
    // Predicated region
    $region18: #{embed_gru_classifier_forward.1} parent=1 // pred_check
      _
    $region19: #{embed_gru_classifier_forward.1} parent=1 // pred_check_branch
      %35 = sbr.rel (0) target = $region21
    $region20: #{embed_gru_classifier_forward.1} parent=1 // pred_region
      _
    $region21: #{embed_gru_classifier_forward.1} parent=1 // pred_fallthru
      _
    // Predicated region
    $region22: #{embed_gru_classifier_forward.1} parent=1 // pred_check
      _
    $region23: #{embed_gru_classifier_forward.1} parent=1 // pred_check_branch
      %37 = sbr.rel (0) target = $region25
    $region24: #{embed_gru_classifier_forward.1} parent=1 // pred_region
      _
    $region25: #{embed_gru_classifier_forward.1} parent=1 // pred_fallthru
      _
    // Predicated region
    $region26: #{embed_gru_classifier_forward.1} parent=1 // pred_check
      _
    $region27: #{embed_gru_classifier_forward.1} parent=1 // pred_check_branch
      %39 = sbr.rel (0) target = $region29
    $region28: #{embed_gru_classifier_forward.1} parent=1 // pred_region
      %s41 = ssub.s32 3072, 3072
      %42 = vsyncadd [#allocation5], %s41
      %s43 = sshll.u32 [#allocation4], 4
      %s44 = int_to_ptr.vmem [resolvable:$true] %s43
      %49 = dma.hbm_to_vmem [thread:$0]  %s6, 3072, %s44, [#allocation5], 192, 192, 12
    $region29: #{embed_gru_classifier_forward.1} parent=1 // pred_fallthru
      _
    // Predicated region
    $region30: #{embed_gru_classifier_forward.1} parent=1 // pred_check
      _
    $region31: #{embed_gru_classifier_forward.1} parent=1 // pred_check_branch
      %51 = sbr.rel (0) target = $region33
    $region32: #{embed_gru_classifier_forward.1} parent=1 // pred_region
      _
    $region33: #{embed_gru_classifier_forward.1} parent=1 // pred_fallthru
      _
    // Predicated region
    $region34: #{embed_gru_classifier_forward.1} parent=1 // pred_check
      _
    $region35: #{embed_gru_classifier_forward.1} parent=1 // pred_check_branch
      %53 = sbr.rel (0) target = $region37
    $region36: #{embed_gru_classifier_forward.1} parent=1 // pred_region
      %s55 = ssub.s32 3072, 3072
      %56 = vsyncadd [#allocation7], %s55
      %s57 = sshll.u32 [#allocation6], 4
      %s58 = int_to_ptr.vmem [resolvable:$true] %s57
      %63 = dma.hbm_to_vmem [thread:$0]  %s8, 3072, %s58, [#allocation7], 192, 192, 12
    $region37: #{embed_gru_classifier_forward.1} parent=1 // pred_fallthru
      _
    // Predicated region
    $region38: #{embed_gru_classifier_forward.1} parent=1 // pred_check
      _
    $region39: #{embed_gru_classifier_forward.1} parent=1 // pred_check_branch
      %65 = sbr.rel (0) target = $region41
    $region40: #{embed_gru_classifier_forward.1} parent=1 // pred_region
      _
    $region41: #{embed_gru_classifier_forward.1} parent=1 // pred_fallthru
      _
    // Predicated region
    $region42: #{embed_gru_classifier_forward.1} parent=1 // pred_check
      _
    $region43: #{embed_gru_classifier_forward.1} parent=1 // pred_check_branch
      %67 = sbr.rel (0) target = $region45
    $region44: #{embed_gru_classifier_forward.1} parent=1 // pred_region
      %s69 = ssub.s32 3072, 3072
      %70 = vsyncadd [#allocation7], %s69
      %s71 = sshll.u32 [#allocation8], 4
      %s72 = int_to_ptr.vmem [resolvable:$true] %s71
      %77 = dma.hbm_to_vmem [thread:$0]  %s10, 3072, %s72, [#allocation7], 192, 192, 12
    $region45: #{embed_gru_classifier_forward.1} parent=1 // pred_fallthru
      _
    // Predicated region
    $region46: #{embed_gru_classifier_forward.1} parent=1 // pred_check
      _
    $region47: #{embed_gru_classifier_forward.1} parent=1 // pred_check_branch
      %79 = sbr.rel (0) target = $region49
    $region48: #{embed_gru_classifier_forward.1} parent=1 // pred_region
      _
    $region49: #{embed_gru_classifier_forward.1} parent=1 // pred_fallthru
      _
    // Predicated region
    $region50: #{embed_gru_classifier_forward.1} parent=1 // pred_check
      _
    $region51: #{embed_gru_classifier_forward.1} parent=1 // pred_check_branch
      %81 = sbr.rel (0) target = $region53
    $region52: #{embed_gru_classifier_forward.1} parent=1 // pred_region
      %s83 = ssub.s32 3072, 3072
      %84 = vsyncadd [#allocation10], %s83
      %s85 = sshll.u32 [#allocation9], 4
      %s86 = int_to_ptr.vmem [resolvable:$true] %s85
      %91 = dma.hbm_to_vmem [thread:$0]  %s12, 3072, %s86, [#allocation10], 192, 192, 12
    $region53: #{embed_gru_classifier_forward.1} parent=1 // pred_fallthru
      _
    // Predicated region
    $region54: #{embed_gru_classifier_forward.1} parent=1 // pred_check
      _
    $region55: #{embed_gru_classifier_forward.1} parent=1 // pred_check_branch
      %93 = sbr.rel (0) target = $region57
    $region56: #{embed_gru_classifier_forward.1} parent=1 // pred_region
      _
    $region57: #{embed_gru_classifier_forward.1} parent=1 // pred_fallthru
      _
    // Predicated region
    $region58: #{embed_gru_classifier_forward.1} parent=1 // pred_check
      _
    $region59: #{embed_gru_classifier_forward.1} parent=1 // pred_check_branch
      %95 = sbr.rel (0) target = $region61
    $region60: #{embed_gru_classifier_forward.1} parent=1 // pred_region
      _
    $region61: #{embed_gru_classifier_forward.1} parent=1 // pred_fallthru
      _
    // Predicated region
    $region62: #{embed_gru_classifier_forward.1} parent=1 // pred_check
      _
    $region63: #{embed_gru_classifier_forward.1} parent=1 // pred_check_branch
      %97 = sbr.rel (0) target = $region65
    $region64: #{embed_gru_classifier_forward.1} parent=1 // pred_region
      %s99 = ssub.s32 32, 32
      %100 = vsyncadd [#allocation10], %s99
      %s102 = sshll.u32 [#allocation11], 4
      %s103 = int_to_ptr.vmem [resolvable:$true] %s102
      %105 = dma.hbm_to_vmem [thread:$0]  %s15, 32, %s103, [#allocation10]
    $region65: #{embed_gru_classifier_forward.1} parent=1 // pred_fallthru
      _
    // Predicated region
    $region66: #{embed_gru_classifier_forward.1} parent=1 // pred_check
      _
    $region67: #{embed_gru_classifier_forward.1} parent=1 // pred_check_branch
      %107 = sbr.rel (0) target = $region69
    $region68: #{embed_gru_classifier_forward.1} parent=1 // pred_region
      _
    $region69: #{embed_gru_classifier_forward.1} parent=1 // pred_fallthru
      _
    // Predicated region
    $region70: #{embed_gru_classifier_forward.1} parent=1 // pred_check
      _
    $region71: #{embed_gru_classifier_forward.1} parent=1 // pred_check_branch
      %109 = sbr.rel (0) target = $region73
    $region72: #{embed_gru_classifier_forward.1} parent=1 // pred_region
      _
    $region73: #{embed_gru_classifier_forward.1} parent=1 // pred_fallthru
      _
    // Predicated region
    $region74: #{embed_gru_classifier_forward.1} parent=1 // pred_check
      _
    $region75: #{embed_gru_classifier_forward.1} parent=1 // pred_check_branch
      %111 = sbr.rel (0) target = $region77
    $region76: #{embed_gru_classifier_forward.1} parent=1 // pred_region
      %112 = dma.done [#allocation5], 3072
    $region77: #{embed_gru_classifier_forward.1} parent=1 // pred_fallthru
      _
    // Predicated region
    $region78: #{embed_gru_classifier_forward.1} parent=1 // pred_check
      _
    $region79: #{embed_gru_classifier_forward.1} parent=1 // pred_check_branch
      %114 = sbr.rel (0) target = $region81
    $region80: #{embed_gru_classifier_forward.1} parent=1 // pred_region
      %115 = dma.done [#allocation7], 3072
    $region81: #{embed_gru_classifier_forward.1} parent=1 // pred_fallthru
      _
    // Predicated region
    $region82: #{embed_gru_classifier_forward.1} parent=1 // pred_check
      _
    $region83: #{embed_gru_classifier_forward.1} parent=1 // pred_check_branch
      %117 = sbr.rel (0) target = $region85
    $region84: #{embed_gru_classifier_forward.1} parent=1 // pred_region
      %118 = dma.done [#allocation7], 3072
    $region85: #{embed_gru_classifier_forward.1} parent=1 // pred_fallthru
      _
    // Predicated region
    $region86: #{embed_gru_classifier_forward.1} parent=1 // pred_check
      _
    $region87: #{embed_gru_classifier_forward.1} parent=1 // pred_check_branch
      %120 = sbr.rel (0) target = $region89
    $region88: #{embed_gru_classifier_forward.1} parent=1 // pred_region
      %121 = dma.done [#allocation10], 3072
    $region89: #{embed_gru_classifier_forward.1} parent=1 // pred_fallthru
      _
    // Predicated region
    $region90: #{embed_gru_classifier_forward.1} parent=1 // pred_check
      _
    $region91: #{embed_gru_classifier_forward.1} parent=1 // pred_check_branch
      %123 = sbr.rel (0) target = $region93
    $region92: #{embed_gru_classifier_forward.1} parent=1 // pred_region
      %124 = dma.done [#allocation10], 32
    $region93: #{embed_gru_classifier_forward.1} parent=1 // pred_fallthru
      _
    %v126 = vld [vmem:[%s1] sm:$0xff]
    %v127 = vld [vmem:[%s0] sm:$0xff]
    %v128 = vld [vmem:[%s0 + $0x8] sm:$0xff]
    %v129 = vld [vmem:[%s0 + $0x10] sm:$0xff]
    %v130 = vld [vmem:[%s0 + $0x18] sm:$0xff]
    %v131 = vld [vmem:[%s0 + $0x20] sm:$0xff]
    %v132 = vld [vmem:[%s0 + $0x28] sm:$0xff]
    %v133 = vld [vmem:[%s0 + $0x30] sm:$0xff]
    %v134 = vld [vmem:[%s0 + $0x38] sm:$0xff]
    %v135 = vld [vmem:[%s2] sm:$0xff]
    %v136 = vld [vmem:[%s2 + $0x8] sm:$0xf]
    %v137 = vld [vmem:[%s2 + $0xc] sm:$0xff]
    %v138 = vld [vmem:[%s2 + $0x14] sm:$0xf]
    %v139 = vld [vmem:[%s2 + $0x18] sm:$0xff]
    %v140 = vld [vmem:[%s2 + $0x20] sm:$0xf]
    %v141 = vld [vmem:[%s2 + $0x24] sm:$0xff]
    %v142 = vld [vmem:[%s2 + $0x2c] sm:$0xf]
    %v143 = vld [vmem:[%s2 + $0x30] sm:$0xff]
    %v144 = vld [vmem:[%s2 + $0x38] sm:$0xf]
    %v145 = vld [vmem:[%s2 + $0x3c] sm:$0xff]
    %v146 = vld [vmem:[%s2 + $0x44] sm:$0xf]
    %v147 = vld [vmem:[%s2 + $0x48] sm:$0xff]
    %v148 = vld [vmem:[%s2 + $0x50] sm:$0xf]
    %v149 = vld [vmem:[%s2 + $0x54] sm:$0xff]
    %v150 = vld [vmem:[%s2 + $0x5c] sm:$0xf]
    %v151 = vld [vmem:[%s2 + $0x60] sm:$0xff]
    %v152 = vld [vmem:[%s2 + $0x68] sm:$0xf]
    %v153 = vld [vmem:[%s2 + $0x6c] sm:$0xff]
    %v154 = vld [vmem:[%s2 + $0x74] sm:$0xf]
    %v155 = vld [vmem:[%s2 + $0x78] sm:$0xff]
    %v156 = vld [vmem:[%s2 + $0x80] sm:$0xf]
    %v157 = vld [vmem:[%s2 + $0x84] sm:$0xff]
    %v158 = vld [vmem:[%s2 + $0x8c] sm:$0xf]
    %v159 = vld [vmem:[%s2 + $0x90] sm:$0xff]
    %v160 = vld [vmem:[%s2 + $0x98] sm:$0xf]
    %v161 = vld [vmem:[%s2 + $0x9c] sm:$0xff]
    %v162 = vld [vmem:[%s2 + $0xa4] sm:$0xf]
    %v163 = vld [vmem:[%s2 + $0xa8] sm:$0xff]
    %v164 = vld [vmem:[%s2 + $0xb0] sm:$0xf]
    %v165 = vld [vmem:[%s2 + $0xb4] sm:$0xff]
    %v166 = vld [vmem:[%s2 + $0xbc] sm:$0xf]
    %v167 = vld [vmem:[%s2 + $0xc0] sm:$0xff]
    %v168 = vld [vmem:[%s2 + $0xc8] sm:$0xf]
    %v177 = vunpack.c.l.b16 %v127
    %v178 = vunpack.c.h.b16 %v127
    %v179 = vunpack.c.l.b16 %v128
    %v180 = vunpack.c.h.b16 %v128
    %v181 = vunpack.c.l.b16 %v129
    %v182 = vunpack.c.h.b16 %v129
    %v183 = vunpack.c.l.b16 %v130
    %v184 = vunpack.c.h.b16 %v130
    %v185 = vunpack.c.l.b16 %v131
    %v186 = vunpack.c.h.b16 %v131
    %v187 = vunpack.c.l.b16 %v132
    %v188 = vunpack.c.h.b16 %v132
    %v189 = vunpack.c.l.b16 %v133
    %v190 = vunpack.c.h.b16 %v133
    %v191 = vunpack.c.l.b16 %v134
    %v192 = vunpack.c.h.b16 %v134
    %v193 = vpack.c.b16 %v179, %v177
    %v194 = vpack.c.b16 %v180, %v178
    %v195 = vpack.c.b16 %v183, %v181
    %v196 = vpack.c.b16 %v184, %v182
    %v197 = vpack.c.b16 %v187, %v185
    %v198 = vpack.c.b16 %v188, %v186
    %v199 = vpack.c.b16 %v191, %v189
    %v200 = vpack.c.b16 %v192, %v190
    %v239 = vunpack.c.l.b16 %v135
    %v240 = vunpack.c.h.b16 %v135
    %v241 = vunpack.c.l.b16 %v136
    %v242 = vunpack.c.l.b16 %v137
    %v243 = vunpack.c.h.b16 %v137
    %v244 = vunpack.c.l.b16 %v138
    %v245 = vunpack.c.l.b16 %v139
    %v246 = vunpack.c.h.b16 %v139
    %v247 = vunpack.c.l.b16 %v140
    %v248 = vunpack.c.l.b16 %v141
    %v249 = vunpack.c.h.b16 %v141
    %v250 = vunpack.c.l.b16 %v142
    %v251 = vunpack.c.l.b16 %v143
    %v252 = vunpack.c.h.b16 %v143
    %v253 = vunpack.c.l.b16 %v144
    %v254 = vunpack.c.l.b16 %v145
    %v255 = vunpack.c.h.b16 %v145
    %v256 = vunpack.c.l.b16 %v146
    %v257 = vunpack.c.l.b16 %v147
    %v258 = vunpack.c.h.b16 %v147
    %v259 = vunpack.c.l.b16 %v148
    %v260 = vunpack.c.l.b16 %v149
    %v261 = vunpack.c.h.b16 %v149
    %v262 = vunpack.c.l.b16 %v150
    %v263 = vunpack.c.l.b16 %v151
    %v264 = vunpack.c.h.b16 %v151
    %v265 = vunpack.c.l.b16 %v152
    %v266 = vunpack.c.l.b16 %v153
    %v267 = vunpack.c.h.b16 %v153
    %v268 = vunpack.c.l.b16 %v154
    %v269 = vunpack.c.l.b16 %v155
    %v270 = vunpack.c.h.b16 %v155
    %v271 = vunpack.c.l.b16 %v156
    %v272 = vunpack.c.l.b16 %v157
    %v273 = vunpack.c.h.b16 %v157
    %v274 = vunpack.c.l.b16 %v158
    %v275 = vunpack.c.l.b16 %v159
    %v276 = vunpack.c.h.b16 %v159
    %v277 = vunpack.c.l.b16 %v160
    %v278 = vunpack.c.l.b16 %v161
    %v279 = vunpack.c.h.b16 %v161
    %v280 = vunpack.c.l.b16 %v162
    %v281 = vunpack.c.l.b16 %v163
    %v282 = vunpack.c.h.b16 %v163
    %v283 = vunpack.c.l.b16 %v164
    %v284 = vunpack.c.l.b16 %v165
    %v285 = vunpack.c.h.b16 %v165
    %v286 = vunpack.c.l.b16 %v166
    %v287 = vunpack.c.l.b16 %v167
    %v288 = vunpack.c.h.b16 %v167
    %v289 = vunpack.c.l.b16 %v168
    %v290 = vpack.c.b16 %v242, %v239
    %v291 = vpack.c.b16 %v243, %v240
    %v292 = vpack.c.b16 %v244, %v241
    %v293 = vpack.c.b16 %v248, %v245
    %v294 = vpack.c.b16 %v249, %v246
    %v295 = vpack.c.b16 %v250, %v247
    %v296 = vpack.c.b16 %v254, %v251
    %v297 = vpack.c.b16 %v255, %v252
    %v298 = vpack.c.b16 %v256, %v253
    %v299 = vpack.c.b16 %v260, %v257
    %v300 = vpack.c.b16 %v261, %v258
    %v301 = vpack.c.b16 %v262, %v259
    %v302 = vpack.c.b16 %v266, %v263
    %v303 = vpack.c.b16 %v267, %v264
    %v304 = vpack.c.b16 %v268, %v265
    %v305 = vpack.c.b16 %v272, %v269
    %v306 = vpack.c.b16 %v273, %v270
    %v307 = vpack.c.b16 %v274, %v271
    %v308 = vpack.c.b16 %v278, %v275
    %v309 = vpack.c.b16 %v279, %v276
    %v310 = vpack.c.b16 %v280, %v277
    %v311 = vpack.c.b16 %v284, %v281
    %v312 = vpack.c.b16 %v285, %v282
    %v313 = vpack.c.b16 %v286, %v283
    %v314 = vpack.c.b16 %v287, %v287
    %v315 = vpack.c.b16 %v288, %v288
    %v316 = vpack.c.b16 %v289, %v289
    %vm341 = vcmask 64512
    %v343 = vsel %vm341, %v194, 0
    %v346 = vsel %vm341, %v196, 0
    %v349 = vsel %vm341, %v198, 0
    %v352 = vsel %vm341, %v200, 0
    %vm354 = vcmask 1043456
    %v356 = vsel %vm354, %v314, 0
    %v359 = vsel %vm354, %v315, 0
    %v362 = vsel %vm354, %v316, 0
    %364 = vmatprep.subr.bf16.mxu0 %v291
    %365 = vmatpush1.bf16.msra.mxu0 %v290
    %366 = vmatprep.subr.bf16.mxu0 %v294
    %367 = vmatpush1.bf16.msra.mxu0 %v293
    %368 = vmatprep.subr.bf16.mxu0 %v297
    %369 = vmatpush1.bf16.msra.mxu0 %v296
    %370 = vmatprep.subr.bf16.mxu0 %v300
    %371 = vmatpush1.bf16.msra.mxu0 %v299
    %372 = vmatprep.subr.bf16.mxu0 %v303
    %373 = vmatpush1.bf16.msra.mxu0 %v302
    %374 = vmatprep.subr.bf16.mxu0 %v306
    %375 = vmatpush1.bf16.msra.mxu0 %v305
    %376 = vmatprep.subr.bf16.mxu0 %v309
    %377 = vmatpush1.bf16.msra.mxu0 %v308
    %378 = vmatprep.subr.bf16.mxu0 %v312
    %379 = vmatpush1.bf16.msra.mxu0 %v311
    %380 = vmatprep.subr.bf16.mxu0 %v359
    %381 = vmatpush1.bf16.msra.mxu0 %v356
    %382 = vmatprep.subr.bf16.mxu0 0
    %383 = vmatpush1.bf16.msra.mxu0 0
    %384 = vmatprep.subr.bf16.mxu0 0
    %385 = vmatpush1.bf16.msra.mxu0 0
    %386 = vmatprep.subr.bf16.mxu0 0
    %387 = vmatpush1.bf16.msra.mxu0 0
    %388 = vmatprep.subr.bf16.mxu0 0
    %389 = vmatpush1.bf16.msra.mxu0 0
    %390 = vmatprep.subr.bf16.mxu0 0
    %391 = vmatpush1.bf16.msra.mxu0 0
    %392 = vmatprep.subr.bf16.mxu0 0
    %393 = vmatpush1.bf16.msra.mxu0 0
    %394 = vmatprep.subr.bf16.mxu0 0
    %395 = vmatpush1.bf16.msra.mxu0 0
    %396 = vmatprep.mubr.bf16.mxu0 %v343
    %397 = vmatmul.mubr.bf16.gmra.mrb[0].mxu0 %v193
    %v398 = vpop.f32.mrb[0].mxu0
    %v399 = vadd.f32 0.0, %v398
    %v400 = vpop.f32.mrb[0].mxu0
    %v401 = vadd.f32 0.0, %v400
    %v402 = vpop.f32.mrb[0].mxu0
    %v403 = vadd.f32 0.0, %v402
    %v404 = vpop.f32.mrb[0].mxu0
    %v405 = vadd.f32 0.0, %v404
    %406 = vmatprep.mubr.bf16.mxu0 %v346
    %407 = vmatmul.mubr.bf16.gmra.mrb[0].mxu0 %v195
    %v408 = vpop.f32.mrb[0].mxu0
    %v409 = vadd.f32 0.0, %v408
    %v410 = vpop.f32.mrb[0].mxu0
    %v411 = vadd.f32 0.0, %v410
    %v412 = vpop.f32.mrb[0].mxu0
    %v413 = vadd.f32 0.0, %v412
    %v414 = vpop.f32.mrb[0].mxu0
    %v415 = vadd.f32 0.0, %v414
    %416 = vmatprep.mubr.bf16.mxu0 %v349
    %417 = vmatmul.mubr.bf16.gmra.mrb[0].mxu0 %v197
    %v418 = vpop.f32.mrb[0].mxu0
    %v419 = vadd.f32 0.0, %v418
    %v420 = vpop.f32.mrb[0].mxu0
    %v421 = vadd.f32 0.0, %v420
    %v422 = vpop.f32.mrb[0].mxu0
    %v423 = vadd.f32 0.0, %v422
    %v424 = vpop.f32.mrb[0].mxu0
    %v425 = vadd.f32 0.0, %v424
    %426 = vmatprep.mubr.bf16.mxu0 %v352
    %427 = vmatmul.mubr.bf16.gmra.mrb[0].mxu0 %v199
    %v428 = vpop.f32.mrb[0].mxu0
    %v429 = vadd.f32 0.0, %v428
    %v430 = vpop.f32.mrb[0].mxu0
    %v431 = vadd.f32 0.0, %v430
    %v432 = vpop.f32.mrb[0].mxu0
    %v433 = vadd.f32 0.0, %v432
    %v434 = vpop.f32.mrb[0].mxu0
    %v435 = vadd.f32 0.0, %v434
    %436 = vdwg.mxu0
    %437 = vmatprep.subr.bf16.mxu0 0
    %438 = vmatpush1.bf16.msra.mxu0 %v292
    %439 = vmatprep.subr.bf16.mxu0 0
    %440 = vmatpush1.bf16.msra.mxu0 %v295
    %441 = vmatprep.subr.bf16.mxu0 0
    %442 = vmatpush1.bf16.msra.mxu0 %v298
    %443 = vmatprep.subr.bf16.mxu0 0
    %444 = vmatpush1.bf16.msra.mxu0 %v301
    %445 = vmatprep.subr.bf16.mxu0 0
    %446 = vmatpush1.bf16.msra.mxu0 %v304
    %447 = vmatprep.subr.bf16.mxu0 0
    %448 = vmatpush1.bf16.msra.mxu0 %v307
    %449 = vmatprep.subr.bf16.mxu0 0
    %450 = vmatpush1.bf16.msra.mxu0 %v310
    %451 = vmatprep.subr.bf16.mxu0 0
    %452 = vmatpush1.bf16.msra.mxu0 %v313
    %453 = vmatprep.subr.bf16.mxu0 0
    %454 = vmatpush1.bf16.msra.mxu0 %v362
    %455 = vmatprep.subr.bf16.mxu0 0
    %456 = vmatpush1.bf16.msra.mxu0 0
    %457 = vmatprep.subr.bf16.mxu0 0
    %458 = vmatpush1.bf16.msra.mxu0 0
    %459 = vmatprep.subr.bf16.mxu0 0
    %460 = vmatpush1.bf16.msra.mxu0 0
    %461 = vmatprep.subr.bf16.mxu0 0
    %462 = vmatpush1.bf16.msra.mxu0 0
    %463 = vmatprep.subr.bf16.mxu0 0
    %464 = vmatpush1.bf16.msra.mxu0 0
    %465 = vmatprep.subr.bf16.mxu0 0
    %466 = vmatpush1.bf16.msra.mxu0 0
    %467 = vmatprep.subr.bf16.mxu0 0
    %468 = vmatpush1.bf16.msra.mxu0 0
    %469 = vmatprep.mubr.bf16.mxu0 %v343
    %470 = vmatmul.mubr.bf16.gmra.mrb[0].mxu0 %v193
    %v471 = vpop.f32.mrb[0].mxu0
    %v472 = vadd.f32 0.0, %v471
    %v473 = vpop.f32.mrb[0].mxu0
    %v474 = vpop.f32.mrb[0].mxu0
    %v475 = vadd.f32 0.0, %v474
    %v476 = vpop.f32.mrb[0].mxu0
    %477 = vmatprep.mubr.bf16.mxu0 %v346
    %478 = vmatmul.mubr.bf16.gmra.mrb[0].mxu0 %v195
    %v479 = vpop.f32.mrb[0].mxu0
    %v480 = vadd.f32 0.0, %v479
    %v481 = vpop.f32.mrb[0].mxu0
    %v482 = vpop.f32.mrb[0].mxu0
    %v483 = vadd.f32 0.0, %v482
    %v484 = vpop.f32.mrb[0].mxu0
    %485 = vmatprep.mubr.bf16.mxu0 %v349
    %486 = vmatmul.mubr.bf16.gmra.mrb[0].mxu0 %v197
    %v487 = vpop.f32.mrb[0].mxu0
    %v488 = vadd.f32 0.0, %v487
    %v489 = vpop.f32.mrb[0].mxu0
    %v490 = vpop.f32.mrb[0].mxu0
    %v491 = vadd.f32 0.0, %v490
    %v492 = vpop.f32.mrb[0].mxu0
    %493 = vmatprep.mubr.bf16.mxu0 %v352
    %494 = vmatmul.mubr.bf16.gmra.mrb[0].mxu0 %v199
    %v495 = vpop.f32.mrb[0].mxu0
    %v496 = vadd.f32 0.0, %v495
    %v497 = vpop.f32.mrb[0].mxu0
    %v498 = vpop.f32.mrb[0].mxu0
    %v499 = vadd.f32 0.0, %v498
    %v500 = vpop.f32.mrb[0].mxu0
    %501 = vdwg.mxu0
    %v502 = vld [vmem:[%s3] sm:$0x7]
    %v504 = vlaneseq
    %v505 = vshrl.u32 %v504, 7
    %v506 = vsub.s32 0, %v505
    %v507 = vrot.slane %v502, %v506
    %v508 = vlaneseq
    %v509 = vshrl.u32 %v508, 7
    %v510 = vsub.s32 1, %v509
    %v511 = vrot.slane %v502, %v510
    %v512 = vlaneseq
    %v513 = vshrl.u32 %v512, 7
    %v514 = vsub.s32 2, %v513
    %v515 = vrot.slane %v502, %v514
    %v519 = vadd.f32 %v399, %v507
    %v520 = vadd.f32 %v401, %v511
    %v521 = vadd.f32 %v472, %v515
    %v522 = vadd.f32 %v403, %v507
    %v523 = vadd.f32 %v405, %v511
    %v524 = vadd.f32 %v475, %v515
    %v525 = vadd.f32 %v409, %v507
    %v526 = vadd.f32 %v411, %v511
    %v527 = vadd.f32 %v480, %v515
    %v528 = vadd.f32 %v413, %v507
    %v529 = vadd.f32 %v415, %v511
    %v530 = vadd.f32 %v483, %v515
    %v531 = vadd.f32 %v419, %v507
    %v532 = vadd.f32 %v421, %v511
    %v533 = vadd.f32 %v488, %v515
    %v534 = vadd.f32 %v423, %v507
    %v535 = vadd.f32 %v425, %v511
    %v536 = vadd.f32 %v491, %v515
    %v537 = vadd.f32 %v429, %v507
    %v538 = vadd.f32 %v431, %v511
    %v539 = vadd.f32 %v496, %v515
    %v540 = vadd.f32 %v433, %v507
    %v541 = vadd.f32 %v435, %v511
    %v542 = vadd.f32 %v499, %v515
    %543 = vst [vmem:[#allocation2] sm:$0xff] %v519
    %544 = vst [vmem:[#allocation2 + $0x8] sm:$0xff] %v520
    %545 = vst [vmem:[#allocation2 + $0x10] sm:$0xff] %v521
    %546 = vst [vmem:[#allocation2 + $0x18] sm:$0xff] %v522
    %547 = vst [vmem:[#allocation2 + $0x20] sm:$0xff] %v523
    %548 = vst [vmem:[#allocation2 + $0x28] sm:$0xff] %v524
    %549 = vst [vmem:[#allocation2 + $0x30] sm:$0xff] %v525
    %550 = vst [vmem:[#allocation2 + $0x38] sm:$0xff] %v526
    %551 = vst [vmem:[#allocation2 + $0x40] sm:$0xff] %v527
    %552 = vst [vmem:[#allocation2 + $0x48] sm:$0xff] %v528
    %553 = vst [vmem:[#allocation2 + $0x50] sm:$0xff] %v529
    %554 = vst [vmem:[#allocation2 + $0x58] sm:$0xff] %v530
    %555 = vst [vmem:[#allocation2 + $0x60] sm:$0xff] %v531
    %556 = vst [vmem:[#allocation2 + $0x68] sm:$0xff] %v532
    %557 = vst [vmem:[#allocation2 + $0x70] sm:$0xff] %v533
    %558 = vst [vmem:[#allocation2 + $0x78] sm:$0xff] %v534
    %559 = vst [vmem:[#allocation2 + $0x80] sm:$0xff] %v535
    %560 = vst [vmem:[#allocation2 + $0x88] sm:$0xff] %v536
    %561 = vst [vmem:[#allocation2 + $0x90] sm:$0xff] %v537
    %562 = vst [vmem:[#allocation2 + $0x98] sm:$0xff] %v538
    %563 = vst [vmem:[#allocation2 + $0xa0] sm:$0xff] %v539
    %564 = vst [vmem:[#allocation2 + $0xa8] sm:$0xff] %v540
    %565 = vst [vmem:[#allocation2 + $0xb0] sm:$0xff] %v541
    %566 = vst [vmem:[#allocation2 + $0xb8] sm:$0xff] %v542
    %v567 = vld [vmem:[%s4] sm:$0xff]
    %v568 = vld [vmem:[%s4 + $0x8] sm:$0xf]
    %v569 = vld [vmem:[%s4 + $0xc] sm:$0xff]
    %v570 = vld [vmem:[%s4 + $0x14] sm:$0xf]
    %v571 = vld [vmem:[%s4 + $0x18] sm:$0xff]
    %v572 = vld [vmem:[%s4 + $0x20] sm:$0xf]
    %v573 = vld [vmem:[%s4 + $0x24] sm:$0xff]
    %v574 = vld [vmem:[%s4 + $0x2c] sm:$0xf]
    %v575 = vld [vmem:[%s4 + $0x30] sm:$0xff]
    %v576 = vld [vmem:[%s4 + $0x38] sm:$0xf]
    %v577 = vld [vmem:[%s4 + $0x3c] sm:$0xff]
    %v578 = vld [vmem:[%s4 + $0x44] sm:$0xf]
    %v579 = vld [vmem:[%s4 + $0x48] sm:$0xff]
    %v580 = vld [vmem:[%s4 + $0x50] sm:$0xf]
    %v581 = vld [vmem:[%s4 + $0x54] sm:$0xff]
    %v582 = vld [vmem:[%s4 + $0x5c] sm:$0xf]
    %v583 = vld [vmem:[%s4 + $0x60] sm:$0xff]
    %v584 = vld [vmem:[%s4 + $0x68] sm:$0xf]
    %v585 = vld [vmem:[%s4 + $0x6c] sm:$0xff]
    %v586 = vld [vmem:[%s4 + $0x74] sm:$0xf]
    %v587 = vld [vmem:[%s4 + $0x78] sm:$0xff]
    %v588 = vld [vmem:[%s4 + $0x80] sm:$0xf]
    %v589 = vld [vmem:[%s4 + $0x84] sm:$0xff]
    %v590 = vld [vmem:[%s4 + $0x8c] sm:$0xf]
    %v591 = vld [vmem:[%s4 + $0x90] sm:$0xff]
    %v592 = vld [vmem:[%s4 + $0x98] sm:$0xf]
    %v593 = vld [vmem:[%s4 + $0x9c] sm:$0xff]
    %v594 = vld [vmem:[%s4 + $0xa4] sm:$0xf]
    %v595 = vld [vmem:[%s4 + $0xa8] sm:$0xff]
    %v596 = vld [vmem:[%s4 + $0xb0] sm:$0xf]
    %v597 = vld [vmem:[%s4 + $0xb4] sm:$0xff]
    %v598 = vld [vmem:[%s4 + $0xbc] sm:$0xf]
    %v599 = vld [vmem:[%s5] sm:$0x7]
    %v600 = vld [vmem:[#allocation2] sm:$0xff]
    %v601 = vld [vmem:[#allocation2 + $0x8] sm:$0xff]
    %v602 = vld [vmem:[#allocation2 + $0x10] sm:$0xff]
    %v604 = vlaneseq
    %v605 = vshrl.u32 %v604, 7
    %v606 = vsub.s32 0, %v605
    %v607 = vrot.slane %v599, %v606
    %v608 = vlaneseq
    %v609 = vshrl.u32 %v608, 7
    %v610 = vsub.s32 1, %v609
    %v611 = vrot.slane %v599, %v610
    %v612 = vlaneseq
    %v613 = vshrl.u32 %v612, 7
    %v614 = vsub.s32 2, %v613
    %v615 = vrot.slane %v599, %v614
    %v651 = vunpack.c.l.b16 %v567
    %v652 = vunpack.c.h.b16 %v567
    %v653 = vunpack.c.l.b16 %v568
    %v654 = vunpack.c.l.b16 %v569
    %v655 = vunpack.c.h.b16 %v569
    %v656 = vunpack.c.l.b16 %v570
    %v657 = vunpack.c.l.b16 %v571
    %v658 = vunpack.c.h.b16 %v571
    %v659 = vunpack.c.l.b16 %v572
    %v660 = vunpack.c.l.b16 %v573
    %v661 = vunpack.c.h.b16 %v573
    %v662 = vunpack.c.l.b16 %v574
    %v663 = vunpack.c.l.b16 %v575
    %v664 = vunpack.c.h.b16 %v575
    %v665 = vunpack.c.l.b16 %v576
    %v666 = vunpack.c.l.b16 %v577
    %v667 = vunpack.c.h.b16 %v577
    %v668 = vunpack.c.l.b16 %v578
    %v669 = vunpack.c.l.b16 %v579
    %v670 = vunpack.c.h.b16 %v579
    %v671 = vunpack.c.l.b16 %v580
    %v672 = vunpack.c.l.b16 %v581
    %v673 = vunpack.c.h.b16 %v581
    %v674 = vunpack.c.l.b16 %v582
    %v675 = vunpack.c.l.b16 %v583
    %v676 = vunpack.c.h.b16 %v583
    %v677 = vunpack.c.l.b16 %v584
    %v678 = vunpack.c.l.b16 %v585
    %v679 = vunpack.c.h.b16 %v585
    %v680 = vunpack.c.l.b16 %v586
    %v681 = vunpack.c.l.b16 %v587
    %v682 = vunpack.c.h.b16 %v587
    %v683 = vunpack.c.l.b16 %v588
    %v684 = vunpack.c.l.b16 %v589
    %v685 = vunpack.c.h.b16 %v589
    %v686 = vunpack.c.l.b16 %v590
    %v687 = vunpack.c.l.b16 %v591
    %v688 = vunpack.c.h.b16 %v591
    %v689 = vunpack.c.l.b16 %v592
    %v690 = vunpack.c.l.b16 %v593
    %v691 = vunpack.c.h.b16 %v593
    %v692 = vunpack.c.l.b16 %v594
    %v693 = vunpack.c.l.b16 %v595
    %v694 = vunpack.c.h.b16 %v595
    %v695 = vunpack.c.l.b16 %v596
    %v696 = vunpack.c.l.b16 %v597
    %v697 = vunpack.c.h.b16 %v597
    %v698 = vunpack.c.l.b16 %v598
    %v699 = vpack.c.b16 %v654, %v651
    %v700 = vpack.c.b16 %v655, %v652
    %v701 = vpack.c.b16 %v656, %v653
    %v702 = vpack.c.b16 %v660, %v657
    %v703 = vpack.c.b16 %v661, %v658
    %v704 = vpack.c.b16 %v662, %v659
    %v705 = vpack.c.b16 %v666, %v663
    %v706 = vpack.c.b16 %v667, %v664
    %v707 = vpack.c.b16 %v668, %v665
    %v708 = vpack.c.b16 %v672, %v669
    %v709 = vpack.c.b16 %v673, %v670
    %v710 = vpack.c.b16 %v674, %v671
    %v711 = vpack.c.b16 %v678, %v675
    %v712 = vpack.c.b16 %v679, %v676
    %v713 = vpack.c.b16 %v680, %v677
    %v714 = vpack.c.b16 %v684, %v681
    %v715 = vpack.c.b16 %v685, %v682
    %v716 = vpack.c.b16 %v686, %v683
    %v717 = vpack.c.b16 %v690, %v687
    %v718 = vpack.c.b16 %v691, %v688
    %v719 = vpack.c.b16 %v692, %v689
    %v720 = vpack.c.b16 %v696, %v693
    %v721 = vpack.c.b16 %v697, %v694
    %v722 = vpack.c.b16 %v698, %v695
    %747 = vmatprep.subr.bf16.mxu0 %v700
    %748 = vmatpush1.bf16.msra.mxu0 %v699
    %749 = vmatprep.subr.bf16.mxu0 %v703
    %750 = vmatpush1.bf16.msra.mxu0 %v702
    %751 = vmatprep.subr.bf16.mxu0 %v706
    %752 = vmatpush1.bf16.msra.mxu0 %v705
    %753 = vmatprep.subr.bf16.mxu0 %v709
    %754 = vmatpush1.bf16.msra.mxu0 %v708
    %755 = vmatprep.subr.bf16.mxu0 %v712
    %756 = vmatpush1.bf16.msra.mxu0 %v711
    %757 = vmatprep.subr.bf16.mxu0 %v715
    %758 = vmatpush1.bf16.msra.mxu0 %v714
    %759 = vmatprep.subr.bf16.mxu0 %v718
    %760 = vmatpush1.bf16.msra.mxu0 %v717
    %761 = vmatprep.subr.bf16.mxu0 %v721
    %762 = vmatpush1.bf16.msra.mxu0 %v720
    %763 = vmatprep.subr.bf16.mxu0 0
    %764 = vmatpush1.bf16.msra.mxu0 0
    %765 = vmatprep.subr.bf16.mxu0 0
    %766 = vmatpush1.bf16.msra.mxu0 0
    %767 = vmatprep.subr.bf16.mxu0 0
    %768 = vmatpush1.bf16.msra.mxu0 0
    %769 = vmatprep.subr.bf16.mxu0 0
    %770 = vmatpush1.bf16.msra.mxu0 0
    %771 = vmatprep.subr.bf16.mxu0 0
    %772 = vmatpush1.bf16.msra.mxu0 0
    %773 = vmatprep.subr.bf16.mxu0 0
    %774 = vmatpush1.bf16.msra.mxu0 0
    %775 = vmatprep.subr.bf16.mxu0 0
    %776 = vmatpush1.bf16.msra.mxu0 0
    %777 = vmatprep.subr.bf16.mxu0 0
    %778 = vmatpush1.bf16.msra.mxu0 0
    %779 = vmatprep.mubr.bf16.mxu0 0
    %780 = vmatmul.mubr.bf16.gmra.mrb[0].mxu0 0
    %v781 = vpop.f32.mrb[0].mxu0
    %v782 = vadd.f32 %v607, %v781
    %v783 = vpop.f32.mrb[0].mxu0
    %v784 = vadd.f32 %v611, %v783
    %v785 = vpop.f32.mrb[0].mxu0
    %v786 = vpop.f32.mrb[0].mxu0
    %787 = vdwg.mxu0
    %788 = vmatprep.subr.bf16.mxu0 0
    %789 = vmatpush1.bf16.msra.mxu0 %v701
    %790 = vmatprep.subr.bf16.mxu0 0
    %791 = vmatpush1.bf16.msra.mxu0 %v704
    %792 = vmatprep.subr.bf16.mxu0 0
    %793 = vmatpush1.bf16.msra.mxu0 %v707
    %794 = vmatprep.subr.bf16.mxu0 0
    %795 = vmatpush1.bf16.msra.mxu0 %v710
    %796 = vmatprep.subr.bf16.mxu0 0
    %797 = vmatpush1.bf16.msra.mxu0 %v713
    %798 = vmatprep.subr.bf16.mxu0 0
    %799 = vmatpush1.bf16.msra.mxu0 %v716
    %800 = vmatprep.subr.bf16.mxu0 0
    %801 = vmatpush1.bf16.msra.mxu0 %v719
    %802 = vmatprep.subr.bf16.mxu0 0
    %803 = vmatpush1.bf16.msra.mxu0 %v722
    %804 = vmatprep.subr.bf16.mxu0 0
    %805 = vmatpush1.bf16.msra.mxu0 0
    %806 = vmatprep.subr.bf16.mxu0 0
    %807 = vmatpush1.bf16.msra.mxu0 0
    %808 = vmatprep.subr.bf16.mxu0 0
    %809 = vmatpush1.bf16.msra.mxu0 0
    %810 = vmatprep.subr.bf16.mxu0 0
    %811 = vmatpush1.bf16.msra.mxu0 0
    %812 = vmatprep.subr.bf16.mxu0 0
    %813 = vmatpush1.bf16.msra.mxu0 0
    %814 = vmatprep.subr.bf16.mxu0 0
    %815 = vmatpush1.bf16.msra.mxu0 0
    %816 = vmatprep.subr.bf16.mxu0 0
    %817 = vmatpush1.bf16.msra.mxu0 0
    %818 = vmatprep.subr.bf16.mxu0 0
    %819 = vmatpush1.bf16.msra.mxu0 0
    %820 = vmatprep.mubr.bf16.mxu0 0
    %821 = vmatmul.mubr.bf16.gmra.mrb[0].mxu0 0
    %v822 = vpop.f32.mrb[0].mxu0
    %v823 = vadd.f32 %v615, %v822
    %v824 = vpop.f32.mrb[0].mxu0
    %v825 = vpop.f32.mrb[0].mxu0
    %v826 = vpop.f32.mrb[0].mxu0
    %827 = vdwg.mxu0
    %v828 = vadd.f32 %v600, %v782
    %v829 = vmul.f32 %v828, 0.5
    %v830 = vtanh.pop %v829
    %v831 = vadd.f32 %v830, 1.0
    %v832 = vmul.f32 %v831, 0.5
    %v833 = vadd.f32 %v601, %v784
    %v834 = vmul.f32 %v833, 0.5
    %v835 = vtanh.pop %v834
    %v836 = vadd.f32 %v835, 1.0
    %v837 = vmul.f32 %v836, 0.5
    %v838 = vmul.f32 %v832, %v823
    %v839 = vadd.f32 %v602, %v838
    %v840 = vtanh.pop %v839
    %v841 = vsub.f32 1.0, %v837
    %v842 = vmul.f32 %v841, %v840
    %v843 = vmul.f32 %v837, 0.0
    %v844 = vadd.f32 %v842, %v843
    %vm845 = vcmp.gt.s32.totalorder %v126, 0
    %v846 = vsel %vm845, 1, 0
    %847 = vset.pattern.permute.xlu0 0
    %848 = vperm.xlu0 %847, %v846
    %v849 = vpop.permute.xlu0 %848
    %vm850 = vcmp.eq.s32.totalorder %v849, 1
    %v851 = vsel %vm850, %v844, 0.0
    %852 = vst [vmem:[#allocation3] sm:$0xff] %v851
    %s853 = scalar_lea.vmem [#allocation2], 24
    %v854 = vld [vmem:[%s853] sm:$0xff]
    %v855 = vld [vmem:[%s853 + $0x8] sm:$0xff]
    %v856 = vld [vmem:[%s853 + $0x10] sm:$0xff]
    %v857 = vpack.c.bf16 %v851, %v851
    %858 = vmatprep.subr.bf16.mxu0 %v700
    %859 = vmatpush1.bf16.msra.mxu0 %v699
    %860 = vmatprep.subr.bf16.mxu0 %v703
    %861 = vmatpush1.bf16.msra.mxu0 %v702
    %862 = vmatprep.subr.bf16.mxu0 %v706
    %863 = vmatpush1.bf16.msra.mxu0 %v705
    %864 = vmatprep.subr.bf16.mxu0 %v709
    %865 = vmatpush1.bf16.msra.mxu0 %v708
    %866 = vmatprep.subr.bf16.mxu0 %v712
    %867 = vmatpush1.bf16.msra.mxu0 %v711
    %868 = vmatprep.subr.bf16.mxu0 %v715
    %869 = vmatpush1.bf16.msra.mxu0 %v714
    %870 = vmatprep.subr.bf16.mxu0 %v718
    %871 = vmatpush1.bf16.msra.mxu0 %v717
    %872 = vmatprep.subr.bf16.mxu0 %v721
    %873 = vmatpush1.bf16.msra.mxu0 %v720
    %874 = vmatprep.subr.bf16.mxu0 0
    %875 = vmatpush1.bf16.msra.mxu0 0
    %876 = vmatprep.subr.bf16.mxu0 0
    %877 = vmatpush1.bf16.msra.mxu0 0
    %878 = vmatprep.subr.bf16.mxu0 0
    %879 = vmatpush1.bf16.msra.mxu0 0
    %880 = vmatprep.subr.bf16.mxu0 0
    %881 = vmatpush1.bf16.msra.mxu0 0
    %882 = vmatprep.subr.bf16.mxu0 0
    %883 = vmatpush1.bf16.msra.mxu0 0
    %884 = vmatprep.subr.bf16.mxu0 0
    %885 = vmatpush1.bf16.msra.mxu0 0
    %886 = vmatprep.subr.bf16.mxu0 0
    %887 = vmatpush1.bf16.msra.mxu0 0
    %888 = vmatprep.subr.bf16.mxu0 0
    %889 = vmatpush1.bf16.msra.mxu0 0
    %890 = vmatprep.mubr.bf16.mxu0 0
    %891 = vmatmul.mubr.bf16.gmra.mrb[0].mxu0 %v857
    %v892 = vpop.f32.mrb[0].mxu0
    %v893 = vadd.f32 %v607, %v892
    %v894 = vpop.f32.mrb[0].mxu0
    %v895 = vadd.f32 %v611, %v894
    %v896 = vpop.f32.mrb[0].mxu0
    %v897 = vpop.f32.mrb[0].mxu0
    %898 = vdwg.mxu0
    %899 = vmatprep.subr.bf16.mxu0 0
    %900 = vmatpush1.bf16.msra.mxu0 %v701
    %901 = vmatprep.subr.bf16.mxu0 0
    %902 = vmatpush1.bf16.msra.mxu0 %v704
    %903 = vmatprep.subr.bf16.mxu0 0
    %904 = vmatpush1.bf16.msra.mxu0 %v707
    %905 = vmatprep.subr.bf16.mxu0 0
    %906 = vmatpush1.bf16.msra.mxu0 %v710
    %907 = vmatprep.subr.bf16.mxu0 0
    %908 = vmatpush1.bf16.msra.mxu0 %v713
    %909 = vmatprep.subr.bf16.mxu0 0
    %910 = vmatpush1.bf16.msra.mxu0 %v716
    %911 = vmatprep.subr.bf16.mxu0 0
    %912 = vmatpush1.bf16.msra.mxu0 %v719
    %913 = vmatprep.subr.bf16.mxu0 0
    %914 = vmatpush1.bf16.msra.mxu0 %v722
    %915 = vmatprep.subr.bf16.mxu0 0
    %916 = vmatpush1.bf16.msra.mxu0 0
    %917 = vmatprep.subr.bf16.mxu0 0
    %918 = vmatpush1.bf16.msra.mxu0 0
    %919 = vmatprep.subr.bf16.mxu0 0
    %920 = vmatpush1.bf16.msra.mxu0 0
    %921 = vmatprep.subr.bf16.mxu0 0
    %922 = vmatpush1.bf16.msra.mxu0 0
    %923 = vmatprep.subr.bf16.mxu0 0
    %924 = vmatpush1.bf16.msra.mxu0 0
    %925 = vmatprep.subr.bf16.mxu0 0
    %926 = vmatpush1.bf16.msra.mxu0 0
    %927 = vmatprep.subr.bf16.mxu0 0
    %928 = vmatpush1.bf16.msra.mxu0 0
    %929 = vmatprep.subr.bf16.mxu0 0
    %930 = vmatpush1.bf16.msra.mxu0 0
    %931 = vmatprep.mubr.bf16.mxu0 0
    %932 = vmatmul.mubr.bf16.gmra.mrb[0].mxu0 %v857
    %v933 = vpop.f32.mrb[0].mxu0
    %v934 = vadd.f32 %v615, %v933
    %v935 = vpop.f32.mrb[0].mxu0
    %v936 = vpop.f32.mrb[0].mxu0
    %v937 = vpop.f32.mrb[0].mxu0
    %938 = vdwg.mxu0
    %v939 = vadd.f32 %v854, %v893
    %v940 = vmul.f32 %v939, 0.5
    %v941 = vtanh.pop %v940
    %v942 = vadd.f32 %v941, 1.0
    %v943 = vmul.f32 %v942, 0.5
    %v944 = vadd.f32 %v855, %v895
    %v945 = vmul.f32 %v944, 0.5
    %v946 = vtanh.pop %v945
    %v947 = vadd.f32 %v946, 1.0
    %v948 = vmul.f32 %v947, 0.5
    %v949 = vmul.f32 %v943, %v934
    %v950 = vadd.f32 %v856, %v949
    %v951 = vtanh.pop %v950
    %v952 = vsub.f32 1.0, %v948
    %v953 = vmul.f32 %v952, %v951
    %v954 = vmul.f32 %v948, %v851
    %v955 = vadd.f32 %v953, %v954
    %vm956 = vcmp.gt.s32.totalorder %v126, 1
    %v957 = vsel %vm956, 1, 0
    %958 = vset.pattern.permute.xlu0 0
    %959 = vperm.xlu0 %958, %v957
    %v960 = vpop.permute.xlu0 %959
    %vm961 = vcmp.eq.s32.totalorder %v960, 1
    %v962 = vsel %vm961, %v955, %v851
    %s963 = scalar_lea.vmem [#allocation3], 8
    %964 = vst [vmem:[%s963] sm:$0xff] %v962
    %s965 = scalar_lea.vmem [#allocation2], 48
    %v966 = vld [vmem:[%s965] sm:$0xff]
    %v967 = vld [vmem:[%s965 + $0x8] sm:$0xff]
    %v968 = vld [vmem:[%s965 + $0x10] sm:$0xff]
    %v969 = vpack.c.bf16 %v962, %v962
    %970 = vmatprep.subr.bf16.mxu0 %v700
    %971 = vmatpush1.bf16.msra.mxu0 %v699
    %972 = vmatprep.subr.bf16.mxu0 %v703
    %973 = vmatpush1.bf16.msra.mxu0 %v702
    %974 = vmatprep.subr.bf16.mxu0 %v706
    %975 = vmatpush1.bf16.msra.mxu0 %v705
    %976 = vmatprep.subr.bf16.mxu0 %v709
    %977 = vmatpush1.bf16.msra.mxu0 %v708
    %978 = vmatprep.subr.bf16.mxu0 %v712
    %979 = vmatpush1.bf16.msra.mxu0 %v711
    %980 = vmatprep.subr.bf16.mxu0 %v715
    %981 = vmatpush1.bf16.msra.mxu0 %v714
    %982 = vmatprep.subr.bf16.mxu0 %v718
    %983 = vmatpush1.bf16.msra.mxu0 %v717
    %984 = vmatprep.subr.bf16.mxu0 %v721
    %985 = vmatpush1.bf16.msra.mxu0 %v720
    %986 = vmatprep.subr.bf16.mxu0 0
    %987 = vmatpush1.bf16.msra.mxu0 0
    %988 = vmatprep.subr.bf16.mxu0 0
    %989 = vmatpush1.bf16.msra.mxu0 0
    %990 = vmatprep.subr.bf16.mxu0 0
    %991 = vmatpush1.bf16.msra.mxu0 0
    %992 = vmatprep.subr.bf16.mxu0 0
    %993 = vmatpush1.bf16.msra.mxu0 0
    %994 = vmatprep.subr.bf16.mxu0 0
    %995 = vmatpush1.bf16.msra.mxu0 0
    %996 = vmatprep.subr.bf16.mxu0 0
    %997 = vmatpush1.bf16.msra.mxu0 0
    %998 = vmatprep.subr.bf16.mxu0 0
    %999 = vmatpush1.bf16.msra.mxu0 0
    %1000 = vmatprep.subr.bf16.mxu0 0
    %1001 = vmatpush1.bf16.msra.mxu0 0
    %1002 = vmatprep.mubr.bf16.mxu0 0
    %1003 = vmatmul.mubr.bf16.gmra.mrb[0].mxu0 %v969
    %v1004 = vpop.f32.mrb[0].mxu0
    %v1005 = vadd.f32 %v607, %v1004
    %v1006 = vpop.f32.mrb[0].mxu0
    %v1007 = vadd.f32 %v611, %v1006
    %v1008 = vpop.f32.mrb[0].mxu0
    %v1009 = vpop.f32.mrb[0].mxu0
    %1010 = vdwg.mxu0
    %1011 = vmatprep.subr.bf16.mxu0 0
    %1012 = vmatpush1.bf16.msra.mxu0 %v701
    %1013 = vmatprep.subr.bf16.mxu0 0
    %1014 = vmatpush1.bf16.msra.mxu0 %v704
    %1015 = vmatprep.subr.bf16.mxu0 0
    %1016 = vmatpush1.bf16.msra.mxu0 %v707
    %1017 = vmatprep.subr.bf16.mxu0 0
    %1018 = vmatpush1.bf16.msra.mxu0 %v710
    %1019 = vmatprep.subr.bf16.mxu0 0
    %1020 = vmatpush1.bf16.msra.mxu0 %v713
    %1021 = vmatprep.subr.bf16.mxu0 0
    %1022 = vmatpush1.bf16.msra.mxu0 %v716
    %1023 = vmatprep.subr.bf16.mxu0 0
    %1024 = vmatpush1.bf16.msra.mxu0 %v719
    %1025 = vmatprep.subr.bf16.mxu0 0
    %1026 = vmatpush1.bf16.msra.mxu0 %v722
    %1027 = vmatprep.subr.bf16.mxu0 0
    %1028 = vmatpush1.bf16.msra.mxu0 0
    %1029 = vmatprep.subr.bf16.mxu0 0
    %1030 = vmatpush1.bf16.msra.mxu0 0
    %1031 = vmatprep.subr.bf16.mxu0 0
    %1032 = vmatpush1.bf16.msra.mxu0 0
    %1033 = vmatprep.subr.bf16.mxu0 0
    %1034 = vmatpush1.bf16.msra.mxu0 0
    %1035 = vmatprep.subr.bf16.mxu0 0
    %1036 = vmatpush1.bf16.msra.mxu0 0
    %1037 = vmatprep.subr.bf16.mxu0 0
    %1038 = vmatpush1.bf16.msra.mxu0 0
    %1039 = vmatprep.subr.bf16.mxu0 0
    %1040 = vmatpush1.bf16.msra.mxu0 0
    %1041 = vmatprep.subr.bf16.mxu0 0
    %1042 = vmatpush1.bf16.msra.mxu0 0
    %1043 = vmatprep.mubr.bf16.mxu0 0
    %1044 = vmatmul.mubr.bf16.gmra.mrb[0].mxu0 %v969
    %v1045 = vpop.f32.mrb[0].mxu0
    %v1046 = vadd.f32 %v615, %v1045
    %v1047 = vpop.f32.mrb[0].mxu0
    %v1048 = vpop.f32.mrb[0].mxu0
    %v1049 = vpop.f32.mrb[0].mxu0
    %1050 = vdwg.mxu0
    %v1051 = vadd.f32 %v966, %v1005
    %v1052 = vmul.f32 %v1051, 0.5
    %v1053 = vtanh.pop %v1052
    %v1054 = vadd.f32 %v1053, 1.0
    %v1055 = vmul.f32 %v1054, 0.5
    %v1056 = vadd.f32 %v967, %v1007
    %v1057 = vmul.f32 %v1056, 0.5
    %v1058 = vtanh.pop %v1057
    %v1059 = vadd.f32 %v1058, 1.0
    %v1060 = vmul.f32 %v1059, 0.5
    %v1061 = vmul.f32 %v1055, %v1046
    %v1062 = vadd.f32 %v968, %v1061
    %v1063 = vtanh.pop %v1062
    %v1064 = vsub.f32 1.0, %v1060
    %v1065 = vmul.f32 %v1064, %v1063
    %v1066 = vmul.f32 %v1060, %v962
    %v1067 = vadd.f32 %v1065, %v1066
    %vm1068 = vcmp.gt.s32.totalorder %v126, 2
    %v1069 = vsel %vm1068, 1, 0
    %1070 = vset.pattern.permute.xlu0 0
    %1071 = vperm.xlu0 %1070, %v1069
    %v1072 = vpop.permute.xlu0 %1071
    %vm1073 = vcmp.eq.s32.totalorder %v1072, 1
    %v1074 = vsel %vm1073, %v1067, %v962
    %s1075 = scalar_lea.vmem [#allocation3], 16
    %1076 = vst [vmem:[%s1075] sm:$0xff] %v1074
    %s1077 = scalar_lea.vmem [#allocation2], 72
    %v1078 = vld [vmem:[%s1077] sm:$0xff]
    %v1079 = vld [vmem:[%s1077 + $0x8] sm:$0xff]
    %v1080 = vld [vmem:[%s1077 + $0x10] sm:$0xff]
    %v1081 = vpack.c.bf16 %v1074, %v1074
    %1082 = vmatprep.subr.bf16.mxu0 %v700
    %1083 = vmatpush1.bf16.msra.mxu0 %v699
    %1084 = vmatprep.subr.bf16.mxu0 %v703
    %1085 = vmatpush1.bf16.msra.mxu0 %v702
    %1086 = vmatprep.subr.bf16.mxu0 %v706
    %1087 = vmatpush1.bf16.msra.mxu0 %v705
    %1088 = vmatprep.subr.bf16.mxu0 %v709
    %1089 = vmatpush1.bf16.msra.mxu0 %v708
    %1090 = vmatprep.subr.bf16.mxu0 %v712
    %1091 = vmatpush1.bf16.msra.mxu0 %v711
    %1092 = vmatprep.subr.bf16.mxu0 %v715
    %1093 = vmatpush1.bf16.msra.mxu0 %v714
    %1094 = vmatprep.subr.bf16.mxu0 %v718
    %1095 = vmatpush1.bf16.msra.mxu0 %v717
    %1096 = vmatprep.subr.bf16.mxu0 %v721
    %1097 = vmatpush1.bf16.msra.mxu0 %v720
    %1098 = vmatprep.subr.bf16.mxu0 0
    %1099 = vmatpush1.bf16.msra.mxu0 0
    %1100 = vmatprep.subr.bf16.mxu0 0
    %1101 = vmatpush1.bf16.msra.mxu0 0
    %1102 = vmatprep.subr.bf16.mxu0 0
    %1103 = vmatpush1.bf16.msra.mxu0 0
    %1104 = vmatprep.subr.bf16.mxu0 0
    %1105 = vmatpush1.bf16.msra.mxu0 0
    %1106 = vmatprep.subr.bf16.mxu0 0
    %1107 = vmatpush1.bf16.msra.mxu0 0
    %1108 = vmatprep.subr.bf16.mxu0 0
    %1109 = vmatpush1.bf16.msra.mxu0 0
    %1110 = vmatprep.subr.bf16.mxu0 0
    %1111 = vmatpush1.bf16.msra.mxu0 0
    %1112 = vmatprep.subr.bf16.mxu0 0
    %1113 = vmatpush1.bf16.msra.mxu0 0
    %1114 = vmatprep.mubr.bf16.mxu0 0
    %1115 = vmatmul.mubr.bf16.gmra.mrb[0].mxu0 %v1081
    %v1116 = vpop.f32.mrb[0].mxu0
    %v1117 = vadd.f32 %v607, %v1116
    %v1118 = vpop.f32.mrb[0].mxu0
    %v1119 = vadd.f32 %v611, %v1118
    %v1120 = vpop.f32.mrb[0].mxu0
    %v1121 = vpop.f32.mrb[0].mxu0
    %1122 = vdwg.mxu0
    %1123 = vmatprep.subr.bf16.mxu0 0
    %1124 = vmatpush1.bf16.msra.mxu0 %v701
    %1125 = vmatprep.subr.bf16.mxu0 0
    %1126 = vmatpush1.bf16.msra.mxu0 %v704
    %1127 = vmatprep.subr.bf16.mxu0 0
    %1128 = vmatpush1.bf16.msra.mxu0 %v707
    %1129 = vmatprep.subr.bf16.mxu0 0
    %1130 = vmatpush1.bf16.msra.mxu0 %v710
    %1131 = vmatprep.subr.bf16.mxu0 0
    %1132 = vmatpush1.bf16.msra.mxu0 %v713
    %1133 = vmatprep.subr.bf16.mxu0 0
    %1134 = vmatpush1.bf16.msra.mxu0 %v716
    %1135 = vmatprep.subr.bf16.mxu0 0
    %1136 = vmatpush1.bf16.msra.mxu0 %v719
    %1137 = vmatprep.subr.bf16.mxu0 0
    %1138 = vmatpush1.bf16.msra.mxu0 %v722
    %1139 = vmatprep.subr.bf16.mxu0 0
    %1140 = vmatpush1.bf16.msra.mxu0 0
    %1141 = vmatprep.subr.bf16.mxu0 0
    %1142 = vmatpush1.bf16.msra.mxu0 0
    %1143 = vmatprep.subr.bf16.mxu0 0
    %1144 = vmatpush1.bf16.msra.mxu0 0
    %1145 = vmatprep.subr.bf16.mxu0 0
    %1146 = vmatpush1.bf16.msra.mxu0 0
    %1147 = vmatprep.subr.bf16.mxu0 0
    %1148 = vmatpush1.bf16.msra.mxu0 0
    %1149 = vmatprep.subr.bf16.mxu0 0
    %1150 = vmatpush1.bf16.msra.mxu0 0
    %1151 = vmatprep.subr.bf16.mxu0 0
    %1152 = vmatpush1.bf16.msra.mxu0 0
    %1153 = vmatprep.subr.bf16.mxu0 0
    %1154 = vmatpush1.bf16.msra.mxu0 0
    %1155 = vmatprep.mubr.bf16.mxu0 0
    %1156 = vmatmul.mubr.bf16.gmra.mrb[0].mxu0 %v1081
    %v1157 = vpop.f32.mrb[0].mxu0
    %v1158 = vadd.f32 %v615, %v1157
    %v1159 = vpop.f32.mrb[0].mxu0
    %v1160 = vpop.f32.mrb[0].mxu0
    %v1161 = vpop.f32.mrb[0].mxu0
    %1162 = vdwg.mxu0
    %v1163 = vadd.f32 %v1078, %v1117
    %v1164 = vmul.f32 %v1163, 0.5
    %v1165 = vtanh.pop %v1164
    %v1166 = vadd.f32 %v1165, 1.0
    %v1167 = vmul.f32 %v1166, 0.5
    %v1168 = vadd.f32 %v1079, %v1119
    %v1169 = vmul.f32 %v1168, 0.5
    %v1170 = vtanh.pop %v1169
    %v1171 = vadd.f32 %v1170, 1.0
    %v1172 = vmul.f32 %v1171, 0.5
    %v1173 = vmul.f32 %v1167, %v1158
    %v1174 = vadd.f32 %v1080, %v1173
    %v1175 = vtanh.pop %v1174
    %v1176 = vsub.f32 1.0, %v1172
    %v1177 = vmul.f32 %v1176, %v1175
    %v1178 = vmul.f32 %v1172, %v1074
    %v1179 = vadd.f32 %v1177, %v1178
    %vm1180 = vcmp.gt.s32.totalorder %v126, 3
    %v1181 = vsel %vm1180, 1, 0
    %1182 = vset.pattern.permute.xlu0 0
    %1183 = vperm.xlu0 %1182, %v1181
    %v1184 = vpop.permute.xlu0 %1183
    %vm1185 = vcmp.eq.s32.totalorder %v1184, 1
    %v1186 = vsel %vm1185, %v1179, %v1074
    %s1187 = scalar_lea.vmem [#allocation3], 24
    %1188 = vst [vmem:[%s1187] sm:$0xff] %v1186
    %s1189 = scalar_lea.vmem [#allocation2], 96
    %v1190 = vld [vmem:[%s1189] sm:$0xff]
    %v1191 = vld [vmem:[%s1189 + $0x8] sm:$0xff]
    %v1192 = vld [vmem:[%s1189 + $0x10] sm:$0xff]
    %v1193 = vpack.c.bf16 %v1186, %v1186
    %1194 = vmatprep.subr.bf16.mxu0 %v700
    %1195 = vmatpush1.bf16.msra.mxu0 %v699
    %1196 = vmatprep.subr.bf16.mxu0 %v703
    %1197 = vmatpush1.bf16.msra.mxu0 %v702
    %1198 = vmatprep.subr.bf16.mxu0 %v706
    %1199 = vmatpush1.bf16.msra.mxu0 %v705
    %1200 = vmatprep.subr.bf16.mxu0 %v709
    %1201 = vmatpush1.bf16.msra.mxu0 %v708
    %1202 = vmatprep.subr.bf16.mxu0 %v712
    %1203 = vmatpush1.bf16.msra.mxu0 %v711
    %1204 = vmatprep.subr.bf16.mxu0 %v715
    %1205 = vmatpush1.bf16.msra.mxu0 %v714
    %1206 = vmatprep.subr.bf16.mxu0 %v718
    %1207 = vmatpush1.bf16.msra.mxu0 %v717
    %1208 = vmatprep.subr.bf16.mxu0 %v721
    %1209 = vmatpush1.bf16.msra.mxu0 %v720
    %1210 = vmatprep.subr.bf16.mxu0 0
    %1211 = vmatpush1.bf16.msra.mxu0 0
    %1212 = vmatprep.subr.bf16.mxu0 0
    %1213 = vmatpush1.bf16.msra.mxu0 0
    %1214 = vmatprep.subr.bf16.mxu0 0
    %1215 = vmatpush1.bf16.msra.mxu0 0
    %1216 = vmatprep.subr.bf16.mxu0 0
    %1217 = vmatpush1.bf16.msra.mxu0 0
    %1218 = vmatprep.subr.bf16.mxu0 0
    %1219 = vmatpush1.bf16.msra.mxu0 0
    %1220 = vmatprep.subr.bf16.mxu0 0
    %1221 = vmatpush1.bf16.msra.mxu0 0
    %1222 = vmatprep.subr.bf16.mxu0 0
    %1223 = vmatpush1.bf16.msra.mxu0 0
    %1224 = vmatprep.subr.bf16.mxu0 0
    %1225 = vmatpush1.bf16.msra.mxu0 0
    %1226 = vmatprep.mubr.bf16.mxu0 0
    %1227 = vmatmul.mubr.bf16.gmra.mrb[0].mxu0 %v1193
    %v1228 = vpop.f32.mrb[0].mxu0
    %v1229 = vadd.f32 %v607, %v1228
    %v1230 = vpop.f32.mrb[0].mxu0
    %v1231 = vadd.f32 %v611, %v1230
    %v1232 = vpop.f32.mrb[0].mxu0
    %v1233 = vpop.f32.mrb[0].mxu0
    %1234 = vdwg.mxu0
    %1235 = vmatprep.subr.bf16.mxu0 0
    %1236 = vmatpush1.bf16.msra.mxu0 %v701
    %1237 = vmatprep.subr.bf16.mxu0 0
    %1238 = vmatpush1.bf16.msra.mxu0 %v704
    %1239 = vmatprep.subr.bf16.mxu0 0
    %1240 = vmatpush1.bf16.msra.mxu0 %v707
    %1241 = vmatprep.subr.bf16.mxu0 0
    %1242 = vmatpush1.bf16.msra.mxu0 %v710
    %1243 = vmatprep.subr.bf16.mxu0 0
    %1244 = vmatpush1.bf16.msra.mxu0 %v713
    %1245 = vmatprep.subr.bf16.mxu0 0
    %1246 = vmatpush1.bf16.msra.mxu0 %v716
    %1247 = vmatprep.subr.bf16.mxu0 0
    %1248 = vmatpush1.bf16.msra.mxu0 %v719
    %1249 = vmatprep.subr.bf16.mxu0 0
    %1250 = vmatpush1.bf16.msra.mxu0 %v722
    %1251 = vmatprep.subr.bf16.mxu0 0
    %1252 = vmatpush1.bf16.msra.mxu0 0
    %1253 = vmatprep.subr.bf16.mxu0 0
    %1254 = vmatpush1.bf16.msra.mxu0 0
    %1255 = vmatprep.subr.bf16.mxu0 0
    %1256 = vmatpush1.bf16.msra.mxu0 0
    %1257 = vmatprep.subr.bf16.mxu0 0
    %1258 = vmatpush1.bf16.msra.mxu0 0
    %1259 = vmatprep.subr.bf16.mxu0 0
    %1260 = vmatpush1.bf16.msra.mxu0 0
    %1261 = vmatprep.subr.bf16.mxu0 0
    %1262 = vmatpush1.bf16.msra.mxu0 0
    %1263 = vmatprep.subr.bf16.mxu0 0
    %1264 = vmatpush1.bf16.msra.mxu0 0
    %1265 = vmatprep.subr.bf16.mxu0 0
    %1266 = vmatpush1.bf16.msra.mxu0 0
    %1267 = vmatprep.mubr.bf16.mxu0 0
    %1268 = vmatmul.mubr.bf16.gmra.mrb[0].mxu0 %v1193
    %v1269 = vpop.f32.mrb[0].mxu0
    %v1270 = vadd.f32 %v615, %v1269
    %v1271 = vpop.f32.mrb[0].mxu0
    %v1272 = vpop.f32.mrb[0].mxu0
    %v1273 = vpop.f32.mrb[0].mxu0
    %1274 = vdwg.mxu0
    %v1275 = vadd.f32 %v1190, %v1229
    %v1276 = vmul.f32 %v1275, 0.5
    %v1277 = vtanh.pop %v1276
    %v1278 = vadd.f32 %v1277, 1.0
    %v1279 = vmul.f32 %v1278, 0.5
    %v1280 = vadd.f32 %v1191, %v1231
    %v1281 = vmul.f32 %v1280, 0.5
    %v1282 = vtanh.pop %v1281
    %v1283 = vadd.f32 %v1282, 1.0
    %v1284 = vmul.f32 %v1283, 0.5
    %v1285 = vmul.f32 %v1279, %v1270
    %v1286 = vadd.f32 %v1192, %v1285
    %v1287 = vtanh.pop %v1286
    %v1288 = vsub.f32 1.0, %v1284
    %v1289 = vmul.f32 %v1288, %v1287
    %v1290 = vmul.f32 %v1284, %v1186
    %v1291 = vadd.f32 %v1289, %v1290
    %vm1292 = vcmp.gt.s32.totalorder %v126, 4
    %v1293 = vsel %vm1292, 1, 0
    %1294 = vset.pattern.permute.xlu0 0
    %1295 = vperm.xlu0 %1294, %v1293
    %v1296 = vpop.permute.xlu0 %1295
    %vm1297 = vcmp.eq.s32.totalorder %v1296, 1
    %v1298 = vsel %vm1297, %v1291, %v1186
    %s1299 = scalar_lea.vmem [#allocation3], 32
    %1300 = vst [vmem:[%s1299] sm:$0xff] %v1298
    %s1301 = scalar_lea.vmem [#allocation2], 120
    %v1302 = vld [vmem:[%s1301] sm:$0xff]
    %v1303 = vld [vmem:[%s1301 + $0x8] sm:$0xff]
    %v1304 = vld [vmem:[%s1301 + $0x10] sm:$0xff]
    %v1305 = vpack.c.bf16 %v1298, %v1298
    %1306 = vmatprep.subr.bf16.mxu0 %v700
    %1307 = vmatpush1.bf16.msra.mxu0 %v699
    %1308 = vmatprep.subr.bf16.mxu0 %v703
    %1309 = vmatpush1.bf16.msra.mxu0 %v702
    %1310 = vmatprep.subr.bf16.mxu0 %v706
    %1311 = vmatpush1.bf16.msra.mxu0 %v705
    %1312 = vmatprep.subr.bf16.mxu0 %v709
    %1313 = vmatpush1.bf16.msra.mxu0 %v708
    %1314 = vmatprep.subr.bf16.mxu0 %v712
    %1315 = vmatpush1.bf16.msra.mxu0 %v711
    %1316 = vmatprep.subr.bf16.mxu0 %v715
    %1317 = vmatpush1.bf16.msra.mxu0 %v714
    %1318 = vmatprep.subr.bf16.mxu0 %v718
    %1319 = vmatpush1.bf16.msra.mxu0 %v717
    %1320 = vmatprep.subr.bf16.mxu0 %v721
    %1321 = vmatpush1.bf16.msra.mxu0 %v720
    %1322 = vmatprep.subr.bf16.mxu0 0
    %1323 = vmatpush1.bf16.msra.mxu0 0
    %1324 = vmatprep.subr.bf16.mxu0 0
    %1325 = vmatpush1.bf16.msra.mxu0 0
    %1326 = vmatprep.subr.bf16.mxu0 0
    %1327 = vmatpush1.bf16.msra.mxu0 0
    %1328 = vmatprep.subr.bf16.mxu0 0
    %1329 = vmatpush1.bf16.msra.mxu0 0
    %1330 = vmatprep.subr.bf16.mxu0 0
    %1331 = vmatpush1.bf16.msra.mxu0 0
    %1332 = vmatprep.subr.bf16.mxu0 0
    %1333 = vmatpush1.bf16.msra.mxu0 0
    %1334 = vmatprep.subr.bf16.mxu0 0
    %1335 = vmatpush1.bf16.msra.mxu0 0
    %1336 = vmatprep.subr.bf16.mxu0 0
    %1337 = vmatpush1.bf16.msra.mxu0 0
    %1338 = vmatprep.mubr.bf16.mxu0 0
    %1339 = vmatmul.mubr.bf16.gmra.mrb[0].mxu0 %v1305
    %v1340 = vpop.f32.mrb[0].mxu0
    %v1341 = vadd.f32 %v607, %v1340
    %v1342 = vpop.f32.mrb[0].mxu0
    %v1343 = vadd.f32 %v611, %v1342
    %v1344 = vpop.f32.mrb[0].mxu0
    %v1345 = vpop.f32.mrb[0].mxu0
    %1346 = vdwg.mxu0
    %1347 = vmatprep.subr.bf16.mxu0 0
    %1348 = vmatpush1.bf16.msra.mxu0 %v701
    %1349 = vmatprep.subr.bf16.mxu0 0
    %1350 = vmatpush1.bf16.msra.mxu0 %v704
    %1351 = vmatprep.subr.bf16.mxu0 0
    %1352 = vmatpush1.bf16.msra.mxu0 %v707
    %1353 = vmatprep.subr.bf16.mxu0 0
    %1354 = vmatpush1.bf16.msra.mxu0 %v710
    %1355 = vmatprep.subr.bf16.mxu0 0
    %1356 = vmatpush1.bf16.msra.mxu0 %v713
    %1357 = vmatprep.subr.bf16.mxu0 0
    %1358 = vmatpush1.bf16.msra.mxu0 %v716
    %1359 = vmatprep.subr.bf16.mxu0 0
    %1360 = vmatpush1.bf16.msra.mxu0 %v719
    %1361 = vmatprep.subr.bf16.mxu0 0
    %1362 = vmatpush1.bf16.msra.mxu0 %v722
    %1363 = vmatprep.subr.bf16.mxu0 0
    %1364 = vmatpush1.bf16.msra.mxu0 0
    %1365 = vmatprep.subr.bf16.mxu0 0
    %1366 = vmatpush1.bf16.msra.mxu0 0
    %1367 = vmatprep.subr.bf16.mxu0 0
    %1368 = vmatpush1.bf16.msra.mxu0 0
    %1369 = vmatprep.subr.bf16.mxu0 0
    %1370 = vmatpush1.bf16.msra.mxu0 0
    %1371 = vmatprep.subr.bf16.mxu0 0
    %1372 = vmatpush1.bf16.msra.mxu0 0
    %1373 = vmatprep.subr.bf16.mxu0 0
    %1374 = vmatpush1.bf16.msra.mxu0 0
    %1375 = vmatprep.subr.bf16.mxu0 0
    %1376 = vmatpush1.bf16.msra.mxu0 0
    %1377 = vmatprep.subr.bf16.mxu0 0
    %1378 = vmatpush1.bf16.msra.mxu0 0
    %1379 = vmatprep.mubr.bf16.mxu0 0
    %1380 = vmatmul.mubr.bf16.gmra.mrb[0].mxu0 %v1305
    %v1381 = vpop.f32.mrb[0].mxu0
    %v1382 = vadd.f32 %v615, %v1381
    %v1383 = vpop.f32.mrb[0].mxu0
    %v1384 = vpop.f32.mrb[0].mxu0
    %v1385 = vpop.f32.mrb[0].mxu0
    %1386 = vdwg.mxu0
    %v1387 = vadd.f32 %v1302, %v1341
    %v1388 = vmul.f32 %v1387, 0.5
    %v1389 = vtanh.pop %v1388
    %v1390 = vadd.f32 %v1389, 1.0
    %v1391 = vmul.f32 %v1390, 0.5
    %v1392 = vadd.f32 %v1303, %v1343
    %v1393 = vmul.f32 %v1392, 0.5
    %v1394 = vtanh.pop %v1393
    %v1395 = vadd.f32 %v1394, 1.0
    %v1396 = vmul.f32 %v1395, 0.5
    %v1397 = vmul.f32 %v1391, %v1382
    %v1398 = vadd.f32 %v1304, %v1397
    %v1399 = vtanh.pop %v1398
    %v1400 = vsub.f32 1.0, %v1396
    %v1401 = vmul.f32 %v1400, %v1399
    %v1402 = vmul.f32 %v1396, %v1298
    %v1403 = vadd.f32 %v1401, %v1402
    %vm1404 = vcmp.gt.s32.totalorder %v126, 5
    %v1405 = vsel %vm1404, 1, 0
    %1406 = vset.pattern.permute.xlu0 0
    %1407 = vperm.xlu0 %1406, %v1405
    %v1408 = vpop.permute.xlu0 %1407
    %vm1409 = vcmp.eq.s32.totalorder %v1408, 1
    %v1410 = vsel %vm1409, %v1403, %v1298
    %s1411 = scalar_lea.vmem [#allocation3], 40
    %1412 = vst [vmem:[%s1411] sm:$0xff] %v1410
    %s1413 = scalar_lea.vmem [#allocation2], 144
    %v1414 = vld [vmem:[%s1413] sm:$0xff]
    %v1415 = vld [vmem:[%s1413 + $0x8] sm:$0xff]
    %v1416 = vld [vmem:[%s1413 + $0x10] sm:$0xff]
    %v1417 = vpack.c.bf16 %v1410, %v1410
    %1418 = vmatprep.subr.bf16.mxu0 %v700
    %1419 = vmatpush1.bf16.msra.mxu0 %v699
    %1420 = vmatprep.subr.bf16.mxu0 %v703
    %1421 = vmatpush1.bf16.msra.mxu0 %v702
    %1422 = vmatprep.subr.bf16.mxu0 %v706
    %1423 = vmatpush1.bf16.msra.mxu0 %v705
    %1424 = vmatprep.subr.bf16.mxu0 %v709
    %1425 = vmatpush1.bf16.msra.mxu0 %v708
    %1426 = vmatprep.subr.bf16.mxu0 %v712
    %1427 = vmatpush1.bf16.msra.mxu0 %v711
    %1428 = vmatprep.subr.bf16.mxu0 %v715
    %1429 = vmatpush1.bf16.msra.mxu0 %v714
    %1430 = vmatprep.subr.bf16.mxu0 %v718
    %1431 = vmatpush1.bf16.msra.mxu0 %v717
    %1432 = vmatprep.subr.bf16.mxu0 %v721
    %1433 = vmatpush1.bf16.msra.mxu0 %v720
    %1434 = vmatprep.subr.bf16.mxu0 0
    %1435 = vmatpush1.bf16.msra.mxu0 0
    %1436 = vmatprep.subr.bf16.mxu0 0
    %1437 = vmatpush1.bf16.msra.mxu0 0
    %1438 = vmatprep.subr.bf16.mxu0 0
    %1439 = vmatpush1.bf16.msra.mxu0 0
    %1440 = vmatprep.subr.bf16.mxu0 0
    %1441 = vmatpush1.bf16.msra.mxu0 0
    %1442 = vmatprep.subr.bf16.mxu0 0
    %1443 = vmatpush1.bf16.msra.mxu0 0
    %1444 = vmatprep.subr.bf16.mxu0 0
    %1445 = vmatpush1.bf16.msra.mxu0 0
    %1446 = vmatprep.subr.bf16.mxu0 0
    %1447 = vmatpush1.bf16.msra.mxu0 0
    %1448 = vmatprep.subr.bf16.mxu0 0
    %1449 = vmatpush1.bf16.msra.mxu0 0
    %1450 = vmatprep.mubr.bf16.mxu0 0
    %1451 = vmatmul.mubr.bf16.gmra.mrb[0].mxu0 %v1417
    %v1452 = vpop.f32.mrb[0].mxu0
    %v1453 = vadd.f32 %v607, %v1452
    %v1454 = vpop.f32.mrb[0].mxu0
    %v1455 = vadd.f32 %v611, %v1454
    %v1456 = vpop.f32.mrb[0].mxu0
    %v1457 = vpop.f32.mrb[0].mxu0
    %1458 = vdwg.mxu0
    %1459 = vmatprep.subr.bf16.mxu0 0
    %1460 = vmatpush1.bf16.msra.mxu0 %v701
    %1461 = vmatprep.subr.bf16.mxu0 0
    %1462 = vmatpush1.bf16.msra.mxu0 %v704
    %1463 = vmatprep.subr.bf16.mxu0 0
    %1464 = vmatpush1.bf16.msra.mxu0 %v707
    %1465 = vmatprep.subr.bf16.mxu0 0
    %1466 = vmatpush1.bf16.msra.mxu0 %v710
    %1467 = vmatprep.subr.bf16.mxu0 0
    %1468 = vmatpush1.bf16.msra.mxu0 %v713
    %1469 = vmatprep.subr.bf16.mxu0 0
    %1470 = vmatpush1.bf16.msra.mxu0 %v716
    %1471 = vmatprep.subr.bf16.mxu0 0
    %1472 = vmatpush1.bf16.msra.mxu0 %v719
    %1473 = vmatprep.subr.bf16.mxu0 0
    %1474 = vmatpush1.bf16.msra.mxu0 %v722
    %1475 = vmatprep.subr.bf16.mxu0 0
    %1476 = vmatpush1.bf16.msra.mxu0 0
    %1477 = vmatprep.subr.bf16.mxu0 0
    %1478 = vmatpush1.bf16.msra.mxu0 0
    %1479 = vmatprep.subr.bf16.mxu0 0
    %1480 = vmatpush1.bf16.msra.mxu0 0
    %1481 = vmatprep.subr.bf16.mxu0 0
    %1482 = vmatpush1.bf16.msra.mxu0 0
    %1483 = vmatprep.subr.bf16.mxu0 0
    %1484 = vmatpush1.bf16.msra.mxu0 0
    %1485 = vmatprep.subr.bf16.mxu0 0
    %1486 = vmatpush1.bf16.msra.mxu0 0
    %1487 = vmatprep.subr.bf16.mxu0 0
    %1488 = vmatpush1.bf16.msra.mxu0 0
    %1489 = vmatprep.subr.bf16.mxu0 0
    %1490 = vmatpush1.bf16.msra.mxu0 0
    %1491 = vmatprep.mubr.bf16.mxu0 0
    %1492 = vmatmul.mubr.bf16.gmra.mrb[0].mxu0 %v1417
    %v1493 = vpop.f32.mrb[0].mxu0
    %v1494 = vadd.f32 %v615, %v1493
    %v1495 = vpop.f32.mrb[0].mxu0
    %v1496 = vpop.f32.mrb[0].mxu0
    %v1497 = vpop.f32.mrb[0].mxu0
    %1498 = vdwg.mxu0
    %v1499 = vadd.f32 %v1414, %v1453
    %v1500 = vmul.f32 %v1499, 0.5
    %v1501 = vtanh.pop %v1500
    %v1502 = vadd.f32 %v1501, 1.0
    %v1503 = vmul.f32 %v1502, 0.5
    %v1504 = vadd.f32 %v1415, %v1455
    %v1505 = vmul.f32 %v1504, 0.5
    %v1506 = vtanh.pop %v1505
    %v1507 = vadd.f32 %v1506, 1.0
    %v1508 = vmul.f32 %v1507, 0.5
    %v1509 = vmul.f32 %v1503, %v1494
    %v1510 = vadd.f32 %v1416, %v1509
    %v1511 = vtanh.pop %v1510
    %v1512 = vsub.f32 1.0, %v1508
    %v1513 = vmul.f32 %v1512, %v1511
    %v1514 = vmul.f32 %v1508, %v1410
    %v1515 = vadd.f32 %v1513, %v1514
    %vm1516 = vcmp.gt.s32.totalorder %v126, 6
    %v1517 = vsel %vm1516, 1, 0
    %1518 = vset.pattern.permute.xlu0 0
    %1519 = vperm.xlu0 %1518, %v1517
    %v1520 = vpop.permute.xlu0 %1519
    %vm1521 = vcmp.eq.s32.totalorder %v1520, 1
    %v1522 = vsel %vm1521, %v1515, %v1410
    %s1523 = scalar_lea.vmem [#allocation3], 48
    %1524 = vst [vmem:[%s1523] sm:$0xff] %v1522
    %s1525 = scalar_lea.vmem [#allocation2], 168
    %v1526 = vld [vmem:[%s1525] sm:$0xff]
    %v1527 = vld [vmem:[%s1525 + $0x8] sm:$0xff]
    %v1528 = vld [vmem:[%s1525 + $0x10] sm:$0xff]
    %v1529 = vpack.c.bf16 %v1522, %v1522
    %1530 = vmatprep.subr.bf16.mxu0 %v700
    %1531 = vmatpush1.bf16.msra.mxu0 %v699
    %1532 = vmatprep.subr.bf16.mxu0 %v703
    %1533 = vmatpush1.bf16.msra.mxu0 %v702
    %1534 = vmatprep.subr.bf16.mxu0 %v706
    %1535 = vmatpush1.bf16.msra.mxu0 %v705
    %1536 = vmatprep.subr.bf16.mxu0 %v709
    %1537 = vmatpush1.bf16.msra.mxu0 %v708
    %1538 = vmatprep.subr.bf16.mxu0 %v712
    %1539 = vmatpush1.bf16.msra.mxu0 %v711
    %1540 = vmatprep.subr.bf16.mxu0 %v715
    %1541 = vmatpush1.bf16.msra.mxu0 %v714
    %1542 = vmatprep.subr.bf16.mxu0 %v718
    %1543 = vmatpush1.bf16.msra.mxu0 %v717
    %1544 = vmatprep.subr.bf16.mxu0 %v721
    %1545 = vmatpush1.bf16.msra.mxu0 %v720
    %1546 = vmatprep.subr.bf16.mxu0 0
    %1547 = vmatpush1.bf16.msra.mxu0 0
    %1548 = vmatprep.subr.bf16.mxu0 0
    %1549 = vmatpush1.bf16.msra.mxu0 0
    %1550 = vmatprep.subr.bf16.mxu0 0
    %1551 = vmatpush1.bf16.msra.mxu0 0
    %1552 = vmatprep.subr.bf16.mxu0 0
    %1553 = vmatpush1.bf16.msra.mxu0 0
    %1554 = vmatprep.subr.bf16.mxu0 0
    %1555 = vmatpush1.bf16.msra.mxu0 0
    %1556 = vmatprep.subr.bf16.mxu0 0
    %1557 = vmatpush1.bf16.msra.mxu0 0
    %1558 = vmatprep.subr.bf16.mxu0 0
    %1559 = vmatpush1.bf16.msra.mxu0 0
    %1560 = vmatprep.subr.bf16.mxu0 0
    %1561 = vmatpush1.bf16.msra.mxu0 0
    %1562 = vmatprep.mubr.bf16.mxu0 0
    %1563 = vmatmul.mubr.bf16.gmra.mrb[0].mxu0 %v1529
    %v1564 = vpop.f32.mrb[0].mxu0
    %v1565 = vadd.f32 %v607, %v1564
    %v1566 = vpop.f32.mrb[0].mxu0
    %v1567 = vadd.f32 %v611, %v1566
    %v1568 = vpop.f32.mrb[0].mxu0
    %v1569 = vpop.f32.mrb[0].mxu0
    %1570 = vdwg.mxu0
    %1571 = vmatprep.subr.bf16.mxu0 0
    %1572 = vmatpush1.bf16.msra.mxu0 %v701
    %1573 = vmatprep.subr.bf16.mxu0 0
    %1574 = vmatpush1.bf16.msra.mxu0 %v704
    %1575 = vmatprep.subr.bf16.mxu0 0
    %1576 = vmatpush1.bf16.msra.mxu0 %v707
    %1577 = vmatprep.subr.bf16.mxu0 0
    %1578 = vmatpush1.bf16.msra.mxu0 %v710
    %1579 = vmatprep.subr.bf16.mxu0 0
    %1580 = vmatpush1.bf16.msra.mxu0 %v713
    %1581 = vmatprep.subr.bf16.mxu0 0
    %1582 = vmatpush1.bf16.msra.mxu0 %v716
    %1583 = vmatprep.subr.bf16.mxu0 0
    %1584 = vmatpush1.bf16.msra.mxu0 %v719
    %1585 = vmatprep.subr.bf16.mxu0 0
    %1586 = vmatpush1.bf16.msra.mxu0 %v722
    %1587 = vmatprep.subr.bf16.mxu0 0
    %1588 = vmatpush1.bf16.msra.mxu0 0
    %1589 = vmatprep.subr.bf16.mxu0 0
    %1590 = vmatpush1.bf16.msra.mxu0 0
    %1591 = vmatprep.subr.bf16.mxu0 0
    %1592 = vmatpush1.bf16.msra.mxu0 0
    %1593 = vmatprep.subr.bf16.mxu0 0
    %1594 = vmatpush1.bf16.msra.mxu0 0
    %1595 = vmatprep.subr.bf16.mxu0 0
    %1596 = vmatpush1.bf16.msra.mxu0 0
    %1597 = vmatprep.subr.bf16.mxu0 0
    %1598 = vmatpush1.bf16.msra.mxu0 0
    %1599 = vmatprep.subr.bf16.mxu0 0
    %1600 = vmatpush1.bf16.msra.mxu0 0
    %1601 = vmatprep.subr.bf16.mxu0 0
    %1602 = vmatpush1.bf16.msra.mxu0 0
    %1603 = vmatprep.mubr.bf16.mxu0 0
    %1604 = vmatmul.mubr.bf16.gmra.mrb[0].mxu0 %v1529
    %v1605 = vpop.f32.mrb[0].mxu0
    %v1606 = vadd.f32 %v615, %v1605
    %v1607 = vpop.f32.mrb[0].mxu0
    %v1608 = vpop.f32.mrb[0].mxu0
    %v1609 = vpop.f32.mrb[0].mxu0
    %1610 = vdwg.mxu0
    %v1611 = vadd.f32 %v1526, %v1565
    %v1612 = vmul.f32 %v1611, 0.5
    %v1613 = vtanh.pop %v1612
    %v1614 = vadd.f32 %v1613, 1.0
    %v1615 = vmul.f32 %v1614, 0.5
    %v1616 = vadd.f32 %v1527, %v1567
    %v1617 = vmul.f32 %v1616, 0.5
    %v1618 = vtanh.pop %v1617
    %v1619 = vadd.f32 %v1618, 1.0
    %v1620 = vmul.f32 %v1619, 0.5
    %v1621 = vmul.f32 %v1615, %v1606
    %v1622 = vadd.f32 %v1528, %v1621
    %v1623 = vtanh.pop %v1622
    %v1624 = vsub.f32 1.0, %v1620
    %v1625 = vmul.f32 %v1624, %v1623
    %v1626 = vmul.f32 %v1620, %v1522
    %v1627 = vadd.f32 %v1625, %v1626
    %vm1628 = vcmp.gt.s32.totalorder %v126, 7
    %v1629 = vsel %vm1628, 1, 0
    %1630 = vset.pattern.permute.xlu0 0
    %1631 = vperm.xlu0 %1630, %v1629
    %v1632 = vpop.permute.xlu0 %1631
    %vm1633 = vcmp.eq.s32.totalorder %v1632, 1
    %v1634 = vsel %vm1633, %v1627, %v1522
    %s1635 = scalar_lea.vmem [#allocation3], 56
    %1636 = vst [vmem:[%s1635] sm:$0xff] %v1634
    %v1637 = vld [vmem:[#allocation3] sm:$0xff]
    %v1638 = vld [vmem:[#allocation3 + $0x8] sm:$0xff]
    %v1639 = vld [vmem:[#allocation3 + $0x10] sm:$0xff]
    %v1640 = vld [vmem:[#allocation3 + $0x18] sm:$0xff]
    %v1641 = vld [vmem:[#allocation3 + $0x20] sm:$0xff]
    %v1642 = vld [vmem:[#allocation3 + $0x28] sm:$0xff]
    %v1643 = vld [vmem:[#allocation3 + $0x30] sm:$0xff]
    %v1644 = vld [vmem:[#allocation3 + $0x38] sm:$0xff]
    %v1645 = vpack.c.bf16 %v1638, %v1637
    %v1646 = vpack.c.bf16 %v1640, %v1639
    %v1647 = vpack.c.bf16 %v1642, %v1641
    %v1648 = vpack.c.bf16 %v1644, %v1643
    %v1649 = vld [vmem:[#allocation4] sm:$0xff]
    %v1650 = vld [vmem:[#allocation4 + $0x8] sm:$0xf]
    %v1651 = vld [vmem:[#allocation4 + $0xc] sm:$0xff]
    %v1652 = vld [vmem:[#allocation4 + $0x14] sm:$0xf]
    %v1653 = vld [vmem:[#allocation4 + $0x18] sm:$0xff]
    %v1654 = vld [vmem:[#allocation4 + $0x20] sm:$0xf]
    %v1655 = vld [vmem:[#allocation4 + $0x24] sm:$0xff]
    %v1656 = vld [vmem:[#allocation4 + $0x2c] sm:$0xf]
    %v1657 = vld [vmem:[#allocation4 + $0x30] sm:$0xff]
    %v1658 = vld [vmem:[#allocation4 + $0x38] sm:$0xf]
    %v1659 = vld [vmem:[#allocation4 + $0x3c] sm:$0xff]
    %v1660 = vld [vmem:[#allocation4 + $0x44] sm:$0xf]
    %v1661 = vld [vmem:[#allocation4 + $0x48] sm:$0xff]
    %v1662 = vld [vmem:[#allocation4 + $0x50] sm:$0xf]
    %v1663 = vld [vmem:[#allocation4 + $0x54] sm:$0xff]
    %v1664 = vld [vmem:[#allocation4 + $0x5c] sm:$0xf]
    %v1665 = vld [vmem:[#allocation4 + $0x60] sm:$0xff]
    %v1666 = vld [vmem:[#allocation4 + $0x68] sm:$0xf]
    %v1667 = vld [vmem:[#allocation4 + $0x6c] sm:$0xff]
    %v1668 = vld [vmem:[#allocation4 + $0x74] sm:$0xf]
    %v1669 = vld [vmem:[#allocation4 + $0x78] sm:$0xff]
    %v1670 = vld [vmem:[#allocation4 + $0x80] sm:$0xf]
    %v1671 = vld [vmem:[#allocation4 + $0x84] sm:$0xff]
    %v1672 = vld [vmem:[#allocation4 + $0x8c] sm:$0xf]
    %v1673 = vld [vmem:[#allocation4 + $0x90] sm:$0xff]
    %v1674 = vld [vmem:[#allocation4 + $0x98] sm:$0xf]
    %v1675 = vld [vmem:[#allocation4 + $0x9c] sm:$0xff]
    %v1676 = vld [vmem:[#allocation4 + $0xa4] sm:$0xf]
    %v1677 = vld [vmem:[#allocation4 + $0xa8] sm:$0xff]
    %v1678 = vld [vmem:[#allocation4 + $0xb0] sm:$0xf]
    %v1679 = vld [vmem:[#allocation4 + $0xb4] sm:$0xff]
    %v1680 = vld [vmem:[#allocation4 + $0xbc] sm:$0xf]
    %v1713 = vunpack.c.l.b16 %v1649
    %v1714 = vunpack.c.h.b16 %v1649
    %v1715 = vunpack.c.l.b16 %v1650
    %v1716 = vunpack.c.l.b16 %v1651
    %v1717 = vunpack.c.h.b16 %v1651
    %v1718 = vunpack.c.l.b16 %v1652
    %v1719 = vunpack.c.l.b16 %v1653
    %v1720 = vunpack.c.h.b16 %v1653
    %v1721 = vunpack.c.l.b16 %v1654
    %v1722 = vunpack.c.l.b16 %v1655
    %v1723 = vunpack.c.h.b16 %v1655
    %v1724 = vunpack.c.l.b16 %v1656
    %v1725 = vunpack.c.l.b16 %v1657
    %v1726 = vunpack.c.h.b16 %v1657
    %v1727 = vunpack.c.l.b16 %v1658
    %v1728 = vunpack.c.l.b16 %v1659
    %v1729 = vunpack.c.h.b16 %v1659
    %v1730 = vunpack.c.l.b16 %v1660
    %v1731 = vunpack.c.l.b16 %v1661
    %v1732 = vunpack.c.h.b16 %v1661
    %v1733 = vunpack.c.l.b16 %v1662
    %v1734 = vunpack.c.l.b16 %v1663
    %v1735 = vunpack.c.h.b16 %v1663
    %v1736 = vunpack.c.l.b16 %v1664
    %v1737 = vunpack.c.l.b16 %v1665
    %v1738 = vunpack.c.h.b16 %v1665
    %v1739 = vunpack.c.l.b16 %v1666
    %v1740 = vunpack.c.l.b16 %v1667
    %v1741 = vunpack.c.h.b16 %v1667
    %v1742 = vunpack.c.l.b16 %v1668
    %v1743 = vunpack.c.l.b16 %v1669
    %v1744 = vunpack.c.h.b16 %v1669
    %v1745 = vunpack.c.l.b16 %v1670
    %v1746 = vunpack.c.l.b16 %v1671
    %v1747 = vunpack.c.h.b16 %v1671
    %v1748 = vunpack.c.l.b16 %v1672
    %v1749 = vunpack.c.l.b16 %v1673
    %v1750 = vunpack.c.h.b16 %v1673
    %v1751 = vunpack.c.l.b16 %v1674
    %v1752 = vunpack.c.l.b16 %v1675
    %v1753 = vunpack.c.h.b16 %v1675
    %v1754 = vunpack.c.l.b16 %v1676
    %v1755 = vunpack.c.l.b16 %v1677
    %v1756 = vunpack.c.h.b16 %v1677
    %v1757 = vunpack.c.l.b16 %v1678
    %v1758 = vunpack.c.l.b16 %v1679
    %v1759 = vunpack.c.h.b16 %v1679
    %v1760 = vunpack.c.l.b16 %v1680
    %v1761 = vpack.c.b16 %v1716, %v1713
    %v1762 = vpack.c.b16 %v1717, %v1714
    %v1763 = vpack.c.b16 %v1718, %v1715
    %v1764 = vpack.c.b16 %v1722, %v1719
    %v1765 = vpack.c.b16 %v1723, %v1720
    %v1766 = vpack.c.b16 %v1724, %v1721
    %v1767 = vpack.c.b16 %v1728, %v1725
    %v1768 = vpack.c.b16 %v1729, %v1726
    %v1769 = vpack.c.b16 %v1730, %v1727
    %v1770 = vpack.c.b16 %v1734, %v1731
    %v1771 = vpack.c.b16 %v1735, %v1732
    %v1772 = vpack.c.b16 %v1736, %v1733
    %v1773 = vpack.c.b16 %v1740, %v1737
    %v1774 = vpack.c.b16 %v1741, %v1738
    %v1775 = vpack.c.b16 %v1742, %v1739
    %v1776 = vpack.c.b16 %v1746, %v1743
    %v1777 = vpack.c.b16 %v1747, %v1744
    %v1778 = vpack.c.b16 %v1748, %v1745
    %v1779 = vpack.c.b16 %v1752, %v1749
    %v1780 = vpack.c.b16 %v1753, %v1750
    %v1781 = vpack.c.b16 %v1754, %v1751
    %v1782 = vpack.c.b16 %v1758, %v1755
    %v1783 = vpack.c.b16 %v1759, %v1756
    %v1784 = vpack.c.b16 %v1760, %v1757
    %1809 = vmatprep.subr.bf16.mxu0 %v1762
    %1810 = vmatpush1.bf16.msra.mxu0 %v1761
    %1811 = vmatprep.subr.bf16.mxu0 %v1765
    %1812 = vmatpush1.bf16.msra.mxu0 %v1764
    %1813 = vmatprep.subr.bf16.mxu0 %v1768
    %1814 = vmatpush1.bf16.msra.mxu0 %v1767
    %1815 = vmatprep.subr.bf16.mxu0 %v1771
    %1816 = vmatpush1.bf16.msra.mxu0 %v1770
    %1817 = vmatprep.subr.bf16.mxu0 %v1774
    %1818 = vmatpush1.bf16.msra.mxu0 %v1773
    %1819 = vmatprep.subr.bf16.mxu0 %v1777
    %1820 = vmatpush1.bf16.msra.mxu0 %v1776
    %1821 = vmatprep.subr.bf16.mxu0 %v1780
    %1822 = vmatpush1.bf16.msra.mxu0 %v1779
    %1823 = vmatprep.subr.bf16.mxu0 %v1783
    %1824 = vmatpush1.bf16.msra.mxu0 %v1782
    %1825 = vmatprep.subr.bf16.mxu0 0
    %1826 = vmatpush1.bf16.msra.mxu0 0
    %1827 = vmatprep.subr.bf16.mxu0 0
    %1828 = vmatpush1.bf16.msra.mxu0 0
    %1829 = vmatprep.subr.bf16.mxu0 0
    %1830 = vmatpush1.bf16.msra.mxu0 0
    %1831 = vmatprep.subr.bf16.mxu0 0
    %1832 = vmatpush1.bf16.msra.mxu0 0
    %1833 = vmatprep.subr.bf16.mxu0 0
    %1834 = vmatpush1.bf16.msra.mxu0 0
    %1835 = vmatprep.subr.bf16.mxu0 0
    %1836 = vmatpush1.bf16.msra.mxu0 0
    %1837 = vmatprep.subr.bf16.mxu0 0
    %1838 = vmatpush1.bf16.msra.mxu0 0
    %1839 = vmatprep.subr.bf16.mxu0 0
    %1840 = vmatpush1.bf16.msra.mxu0 0
    %1841 = vmatprep.mubr.bf16.mxu0 0
    %1842 = vmatmul.mubr.bf16.gmra.mrb[0].mxu0 %v1645
    %v1843 = vpop.f32.mrb[0].mxu0
    %v1844 = vadd.f32 0.0, %v1843
    %v1845 = vpop.f32.mrb[0].mxu0
    %v1846 = vadd.f32 0.0, %v1845
    %v1847 = vpop.f32.mrb[0].mxu0
    %v1848 = vadd.f32 0.0, %v1847
    %v1849 = vpop.f32.mrb[0].mxu0
    %v1850 = vadd.f32 0.0, %v1849
    %1851 = vmatprep.mubr.bf16.mxu0 0
    %1852 = vmatmul.mubr.bf16.gmra.mrb[0].mxu0 %v1646
    %v1853 = vpop.f32.mrb[0].mxu0
    %v1854 = vadd.f32 0.0, %v1853
    %v1855 = vpop.f32.mrb[0].mxu0
    %v1856 = vadd.f32 0.0, %v1855
    %v1857 = vpop.f32.mrb[0].mxu0
    %v1858 = vadd.f32 0.0, %v1857
    %v1859 = vpop.f32.mrb[0].mxu0
    %v1860 = vadd.f32 0.0, %v1859
    %1861 = vmatprep.mubr.bf16.mxu0 0
    %1862 = vmatmul.mubr.bf16.gmra.mrb[0].mxu0 %v1647
    %v1863 = vpop.f32.mrb[0].mxu0
    %v1864 = vadd.f32 0.0, %v1863
    %v1865 = vpop.f32.mrb[0].mxu0
    %v1866 = vadd.f32 0.0, %v1865
    %v1867 = vpop.f32.mrb[0].mxu0
    %v1868 = vadd.f32 0.0, %v1867
    %v1869 = vpop.f32.mrb[0].mxu0
    %v1870 = vadd.f32 0.0, %v1869
    %1871 = vmatprep.mubr.bf16.mxu0 0
    %1872 = vmatmul.mubr.bf16.gmra.mrb[0].mxu0 %v1648
    %v1873 = vpop.f32.mrb[0].mxu0
    %v1874 = vadd.f32 0.0, %v1873
    %v1875 = vpop.f32.mrb[0].mxu0
    %v1876 = vadd.f32 0.0, %v1875
    %v1877 = vpop.f32.mrb[0].mxu0
    %v1878 = vadd.f32 0.0, %v1877
    %v1879 = vpop.f32.mrb[0].mxu0
    %v1880 = vadd.f32 0.0, %v1879
    %1881 = vdwg.mxu0
    %1882 = vmatprep.subr.bf16.mxu0 0
    %1883 = vmatpush1.bf16.msra.mxu0 %v1763
    %1884 = vmatprep.subr.bf16.mxu0 0
    %1885 = vmatpush1.bf16.msra.mxu0 %v1766
    %1886 = vmatprep.subr.bf16.mxu0 0
    %1887 = vmatpush1.bf16.msra.mxu0 %v1769
    %1888 = vmatprep.subr.bf16.mxu0 0
    %1889 = vmatpush1.bf16.msra.mxu0 %v1772
    %1890 = vmatprep.subr.bf16.mxu0 0
    %1891 = vmatpush1.bf16.msra.mxu0 %v1775
    %1892 = vmatprep.subr.bf16.mxu0 0
    %1893 = vmatpush1.bf16.msra.mxu0 %v1778
    %1894 = vmatprep.subr.bf16.mxu0 0
    %1895 = vmatpush1.bf16.msra.mxu0 %v1781
    %1896 = vmatprep.subr.bf16.mxu0 0
    %1897 = vmatpush1.bf16.msra.mxu0 %v1784
    %1898 = vmatprep.subr.bf16.mxu0 0
    %1899 = vmatpush1.bf16.msra.mxu0 0
    %1900 = vmatprep.subr.bf16.mxu0 0
    %1901 = vmatpush1.bf16.msra.mxu0 0
    %1902 = vmatprep.subr.bf16.mxu0 0
    %1903 = vmatpush1.bf16.msra.mxu0 0
    %1904 = vmatprep.subr.bf16.mxu0 0
    %1905 = vmatpush1.bf16.msra.mxu0 0
    %1906 = vmatprep.subr.bf16.mxu0 0
    %1907 = vmatpush1.bf16.msra.mxu0 0
    %1908 = vmatprep.subr.bf16.mxu0 0
    %1909 = vmatpush1.bf16.msra.mxu0 0
    %1910 = vmatprep.subr.bf16.mxu0 0
    %1911 = vmatpush1.bf16.msra.mxu0 0
    %1912 = vmatprep.subr.bf16.mxu0 0
    %1913 = vmatpush1.bf16.msra.mxu0 0
    %1914 = vmatprep.mubr.bf16.mxu0 0
    %1915 = vmatmul.mubr.bf16.gmra.mrb[0].mxu0 %v1645
    %v1916 = vpop.f32.mrb[0].mxu0
    %v1917 = vadd.f32 0.0, %v1916
    %v1918 = vpop.f32.mrb[0].mxu0
    %v1919 = vpop.f32.mrb[0].mxu0
    %v1920 = vadd.f32 0.0, %v1919
    %v1921 = vpop.f32.mrb[0].mxu0
    %1922 = vmatprep.mubr.bf16.mxu0 0
    %1923 = vmatmul.mubr.bf16.gmra.mrb[0].mxu0 %v1646
    %v1924 = vpop.f32.mrb[0].mxu0
    %v1925 = vadd.f32 0.0, %v1924
    %v1926 = vpop.f32.mrb[0].mxu0
    %v1927 = vpop.f32.mrb[0].mxu0
    %v1928 = vadd.f32 0.0, %v1927
    %v1929 = vpop.f32.mrb[0].mxu0
    %1930 = vmatprep.mubr.bf16.mxu0 0
    %1931 = vmatmul.mubr.bf16.gmra.mrb[0].mxu0 %v1647
    %v1932 = vpop.f32.mrb[0].mxu0
    %v1933 = vadd.f32 0.0, %v1932
    %v1934 = vpop.f32.mrb[0].mxu0
    %v1935 = vpop.f32.mrb[0].mxu0
    %v1936 = vadd.f32 0.0, %v1935
    %v1937 = vpop.f32.mrb[0].mxu0
    %1938 = vmatprep.mubr.bf16.mxu0 0
    %1939 = vmatmul.mubr.bf16.gmra.mrb[0].mxu0 %v1648
    %v1940 = vpop.f32.mrb[0].mxu0
    %v1941 = vadd.f32 0.0, %v1940
    %v1942 = vpop.f32.mrb[0].mxu0
    %v1943 = vpop.f32.mrb[0].mxu0
    %v1944 = vadd.f32 0.0, %v1943
    %v1945 = vpop.f32.mrb[0].mxu0
    %1946 = vdwg.mxu0
    %v1947 = vld [vmem:[%s7] sm:$0x7]
    %v1949 = vlaneseq
    %v1950 = vshrl.u32 %v1949, 7
    %v1951 = vsub.s32 0, %v1950
    %v1952 = vrot.slane %v1947, %v1951
    %v1953 = vlaneseq
    %v1954 = vshrl.u32 %v1953, 7
    %v1955 = vsub.s32 1, %v1954
    %v1956 = vrot.slane %v1947, %v1955
    %v1957 = vlaneseq
    %v1958 = vshrl.u32 %v1957, 7
    %v1959 = vsub.s32 2, %v1958
    %v1960 = vrot.slane %v1947, %v1959
    %v1964 = vadd.f32 %v1844, %v1952
    %v1965 = vadd.f32 %v1846, %v1956
    %v1966 = vadd.f32 %v1917, %v1960
    %v1967 = vadd.f32 %v1848, %v1952
    %v1968 = vadd.f32 %v1850, %v1956
    %v1969 = vadd.f32 %v1920, %v1960
    %v1970 = vadd.f32 %v1854, %v1952
    %v1971 = vadd.f32 %v1856, %v1956
    %v1972 = vadd.f32 %v1925, %v1960
    %v1973 = vadd.f32 %v1858, %v1952
    %v1974 = vadd.f32 %v1860, %v1956
    %v1975 = vadd.f32 %v1928, %v1960
    %v1976 = vadd.f32 %v1864, %v1952
    %v1977 = vadd.f32 %v1866, %v1956
    %v1978 = vadd.f32 %v1933, %v1960
    %v1979 = vadd.f32 %v1868, %v1952
    %v1980 = vadd.f32 %v1870, %v1956
    %v1981 = vadd.f32 %v1936, %v1960
    %v1982 = vadd.f32 %v1874, %v1952
    %v1983 = vadd.f32 %v1876, %v1956
    %v1984 = vadd.f32 %v1941, %v1960
    %v1985 = vadd.f32 %v1878, %v1952
    %v1986 = vadd.f32 %v1880, %v1956
    %v1987 = vadd.f32 %v1944, %v1960
    %1988 = vst [vmem:[#allocation2] sm:$0xff] %v1964
    %1989 = vst [vmem:[#allocation2 + $0x8] sm:$0xff] %v1965
    %1990 = vst [vmem:[#allocation2 + $0x10] sm:$0xff] %v1966
    %1991 = vst [vmem:[#allocation2 + $0x18] sm:$0xff] %v1967
    %1992 = vst [vmem:[#allocation2 + $0x20] sm:$0xff] %v1968
    %1993 = vst [vmem:[#allocation2 + $0x28] sm:$0xff] %v1969
    %1994 = vst [vmem:[#allocation2 + $0x30] sm:$0xff] %v1970
    %1995 = vst [vmem:[#allocation2 + $0x38] sm:$0xff] %v1971
    %1996 = vst [vmem:[#allocation2 + $0x40] sm:$0xff] %v1972
    %1997 = vst [vmem:[#allocation2 + $0x48] sm:$0xff] %v1973
    %1998 = vst [vmem:[#allocation2 + $0x50] sm:$0xff] %v1974
    %1999 = vst [vmem:[#allocation2 + $0x58] sm:$0xff] %v1975
    %2000 = vst [vmem:[#allocation2 + $0x60] sm:$0xff] %v1976
    %2001 = vst [vmem:[#allocation2 + $0x68] sm:$0xff] %v1977
    %2002 = vst [vmem:[#allocation2 + $0x70] sm:$0xff] %v1978
    %2003 = vst [vmem:[#allocation2 + $0x78] sm:$0xff] %v1979
    %2004 = vst [vmem:[#allocation2 + $0x80] sm:$0xff] %v1980
    %2005 = vst [vmem:[#allocation2 + $0x88] sm:$0xff] %v1981
    %2006 = vst [vmem:[#allocation2 + $0x90] sm:$0xff] %v1982
    %2007 = vst [vmem:[#allocation2 + $0x98] sm:$0xff] %v1983
    %2008 = vst [vmem:[#allocation2 + $0xa0] sm:$0xff] %v1984
    %2009 = vst [vmem:[#allocation2 + $0xa8] sm:$0xff] %v1985
    %2010 = vst [vmem:[#allocation2 + $0xb0] sm:$0xff] %v1986
    %2011 = vst [vmem:[#allocation2 + $0xb8] sm:$0xff] %v1987
    %v2012 = vld [vmem:[#allocation6] sm:$0xff]
    %v2013 = vld [vmem:[#allocation6 + $0x8] sm:$0xf]
    %v2014 = vld [vmem:[#allocation6 + $0xc] sm:$0xff]
    %v2015 = vld [vmem:[#allocation6 + $0x14] sm:$0xf]
    %v2016 = vld [vmem:[#allocation6 + $0x18] sm:$0xff]
    %v2017 = vld [vmem:[#allocation6 + $0x20] sm:$0xf]
    %v2018 = vld [vmem:[#allocation6 + $0x24] sm:$0xff]
    %v2019 = vld [vmem:[#allocation6 + $0x2c] sm:$0xf]
    %v2020 = vld [vmem:[#allocation6 + $0x30] sm:$0xff]
    %v2021 = vld [vmem:[#allocation6 + $0x38] sm:$0xf]
    %v2022 = vld [vmem:[#allocation6 + $0x3c] sm:$0xff]
    %v2023 = vld [vmem:[#allocation6 + $0x44] sm:$0xf]
    %v2024 = vld [vmem:[#allocation6 + $0x48] sm:$0xff]
    %v2025 = vld [vmem:[#allocation6 + $0x50] sm:$0xf]
    %v2026 = vld [vmem:[#allocation6 + $0x54] sm:$0xff]
    %v2027 = vld [vmem:[#allocation6 + $0x5c] sm:$0xf]
    %v2028 = vld [vmem:[#allocation6 + $0x60] sm:$0xff]
    %v2029 = vld [vmem:[#allocation6 + $0x68] sm:$0xf]
    %v2030 = vld [vmem:[#allocation6 + $0x6c] sm:$0xff]
    %v2031 = vld [vmem:[#allocation6 + $0x74] sm:$0xf]
    %v2032 = vld [vmem:[#allocation6 + $0x78] sm:$0xff]
    %v2033 = vld [vmem:[#allocation6 + $0x80] sm:$0xf]
    %v2034 = vld [vmem:[#allocation6 + $0x84] sm:$0xff]
    %v2035 = vld [vmem:[#allocation6 + $0x8c] sm:$0xf]
    %v2036 = vld [vmem:[#allocation6 + $0x90] sm:$0xff]
    %v2037 = vld [vmem:[#allocation6 + $0x98] sm:$0xf]
    %v2038 = vld [vmem:[#allocation6 + $0x9c] sm:$0xff]
    %v2039 = vld [vmem:[#allocation6 + $0xa4] sm:$0xf]
    %v2040 = vld [vmem:[#allocation6 + $0xa8] sm:$0xff]
    %v2041 = vld [vmem:[#allocation6 + $0xb0] sm:$0xf]
    %v2042 = vld [vmem:[#allocation6 + $0xb4] sm:$0xff]
    %v2043 = vld [vmem:[#allocation6 + $0xbc] sm:$0xf]
    %v2044 = vld [vmem:[%s9] sm:$0x7]
    %v2045 = vld [vmem:[#allocation2] sm:$0xff]
    %v2046 = vld [vmem:[#allocation2 + $0x8] sm:$0xff]
    %v2047 = vld [vmem:[#allocation2 + $0x10] sm:$0xff]
    %v2049 = vlaneseq
    %v2050 = vshrl.u32 %v2049, 7
    %v2051 = vsub.s32 0, %v2050
    %v2052 = vrot.slane %v2044, %v2051
    %v2053 = vlaneseq
    %v2054 = vshrl.u32 %v2053, 7
    %v2055 = vsub.s32 1, %v2054
    %v2056 = vrot.slane %v2044, %v2055
    %v2057 = vlaneseq
    %v2058 = vshrl.u32 %v2057, 7
    %v2059 = vsub.s32 2, %v2058
    %v2060 = vrot.slane %v2044, %v2059
    %v2096 = vunpack.c.l.b16 %v2012
    %v2097 = vunpack.c.h.b16 %v2012
    %v2098 = vunpack.c.l.b16 %v2013
    %v2099 = vunpack.c.l.b16 %v2014
    %v2100 = vunpack.c.h.b16 %v2014
    %v2101 = vunpack.c.l.b16 %v2015
    %v2102 = vunpack.c.l.b16 %v2016
    %v2103 = vunpack.c.h.b16 %v2016
    %v2104 = vunpack.c.l.b16 %v2017
    %v2105 = vunpack.c.l.b16 %v2018
    %v2106 = vunpack.c.h.b16 %v2018
    %v2107 = vunpack.c.l.b16 %v2019
    %v2108 = vunpack.c.l.b16 %v2020
    %v2109 = vunpack.c.h.b16 %v2020
    %v2110 = vunpack.c.l.b16 %v2021
    %v2111 = vunpack.c.l.b16 %v2022
    %v2112 = vunpack.c.h.b16 %v2022
    %v2113 = vunpack.c.l.b16 %v2023
    %v2114 = vunpack.c.l.b16 %v2024
    %v2115 = vunpack.c.h.b16 %v2024
    %v2116 = vunpack.c.l.b16 %v2025
    %v2117 = vunpack.c.l.b16 %v2026
    %v2118 = vunpack.c.h.b16 %v2026
    %v2119 = vunpack.c.l.b16 %v2027
    %v2120 = vunpack.c.l.b16 %v2028
    %v2121 = vunpack.c.h.b16 %v2028
    %v2122 = vunpack.c.l.b16 %v2029
    %v2123 = vunpack.c.l.b16 %v2030
    %v2124 = vunpack.c.h.b16 %v2030
    %v2125 = vunpack.c.l.b16 %v2031
    %v2126 = vunpack.c.l.b16 %v2032
    %v2127 = vunpack.c.h.b16 %v2032
    %v2128 = vunpack.c.l.b16 %v2033
    %v2129 = vunpack.c.l.b16 %v2034
    %v2130 = vunpack.c.h.b16 %v2034
    %v2131 = vunpack.c.l.b16 %v2035
    %v2132 = vunpack.c.l.b16 %v2036
    %v2133 = vunpack.c.h.b16 %v2036
    %v2134 = vunpack.c.l.b16 %v2037
    %v2135 = vunpack.c.l.b16 %v2038
    %v2136 = vunpack.c.h.b16 %v2038
    %v2137 = vunpack.c.l.b16 %v2039
    %v2138 = vunpack.c.l.b16 %v2040
    %v2139 = vunpack.c.h.b16 %v2040
    %v2140 = vunpack.c.l.b16 %v2041
    %v2141 = vunpack.c.l.b16 %v2042
    %v2142 = vunpack.c.h.b16 %v2042
    %v2143 = vunpack.c.l.b16 %v2043
    %v2144 = vpack.c.b16 %v2099, %v2096
    %v2145 = vpack.c.b16 %v2100, %v2097
    %v2146 = vpack.c.b16 %v2101, %v2098
    %v2147 = vpack.c.b16 %v2105, %v2102
    %v2148 = vpack.c.b16 %v2106, %v2103
    %v2149 = vpack.c.b16 %v2107, %v2104
    %v2150 = vpack.c.b16 %v2111, %v2108
    %v2151 = vpack.c.b16 %v2112, %v2109
    %v2152 = vpack.c.b16 %v2113, %v2110
    %v2153 = vpack.c.b16 %v2117, %v2114
    %v2154 = vpack.c.b16 %v2118, %v2115
    %v2155 = vpack.c.b16 %v2119, %v2116
    %v2156 = vpack.c.b16 %v2123, %v2120
    %v2157 = vpack.c.b16 %v2124, %v2121
    %v2158 = vpack.c.b16 %v2125, %v2122
    %v2159 = vpack.c.b16 %v2129, %v2126
    %v2160 = vpack.c.b16 %v2130, %v2127
    %v2161 = vpack.c.b16 %v2131, %v2128
    %v2162 = vpack.c.b16 %v2135, %v2132
    %v2163 = vpack.c.b16 %v2136, %v2133
    %v2164 = vpack.c.b16 %v2137, %v2134
    %v2165 = vpack.c.b16 %v2141, %v2138
    %v2166 = vpack.c.b16 %v2142, %v2139
    %v2167 = vpack.c.b16 %v2143, %v2140
    %2192 = vmatprep.subr.bf16.mxu0 %v2145
    %2193 = vmatpush1.bf16.msra.mxu0 %v2144
    %2194 = vmatprep.subr.bf16.mxu0 %v2148
    %2195 = vmatpush1.bf16.msra.mxu0 %v2147
    %2196 = vmatprep.subr.bf16.mxu0 %v2151
    %2197 = vmatpush1.bf16.msra.mxu0 %v2150
    %2198 = vmatprep.subr.bf16.mxu0 %v2154
    %2199 = vmatpush1.bf16.msra.mxu0 %v2153
    %2200 = vmatprep.subr.bf16.mxu0 %v2157
    %2201 = vmatpush1.bf16.msra.mxu0 %v2156
    %2202 = vmatprep.subr.bf16.mxu0 %v2160
    %2203 = vmatpush1.bf16.msra.mxu0 %v2159
    %2204 = vmatprep.subr.bf16.mxu0 %v2163
    %2205 = vmatpush1.bf16.msra.mxu0 %v2162
    %2206 = vmatprep.subr.bf16.mxu0 %v2166
    %2207 = vmatpush1.bf16.msra.mxu0 %v2165
    %2208 = vmatprep.subr.bf16.mxu0 0
    %2209 = vmatpush1.bf16.msra.mxu0 0
    %2210 = vmatprep.subr.bf16.mxu0 0
    %2211 = vmatpush1.bf16.msra.mxu0 0
    %2212 = vmatprep.subr.bf16.mxu0 0
    %2213 = vmatpush1.bf16.msra.mxu0 0
    %2214 = vmatprep.subr.bf16.mxu0 0
    %2215 = vmatpush1.bf16.msra.mxu0 0
    %2216 = vmatprep.subr.bf16.mxu0 0
    %2217 = vmatpush1.bf16.msra.mxu0 0
    %2218 = vmatprep.subr.bf16.mxu0 0
    %2219 = vmatpush1.bf16.msra.mxu0 0
    %2220 = vmatprep.subr.bf16.mxu0 0
    %2221 = vmatpush1.bf16.msra.mxu0 0
    %2222 = vmatprep.subr.bf16.mxu0 0
    %2223 = vmatpush1.bf16.msra.mxu0 0
    %2224 = vmatprep.mubr.bf16.mxu0 0
    %2225 = vmatmul.mubr.bf16.gmra.mrb[0].mxu0 0
    %v2226 = vpop.f32.mrb[0].mxu0
    %v2227 = vadd.f32 %v2052, %v2226
    %v2228 = vpop.f32.mrb[0].mxu0
    %v2229 = vadd.f32 %v2056, %v2228
    %v2230 = vpop.f32.mrb[0].mxu0
    %v2231 = vpop.f32.mrb[0].mxu0
    %2232 = vdwg.mxu0
    %2233 = vmatprep.subr.bf16.mxu0 0
    %2234 = vmatpush1.bf16.msra.mxu0 %v2146
    %2235 = vmatprep.subr.bf16.mxu0 0
    %2236 = vmatpush1.bf16.msra.mxu0 %v2149
    %2237 = vmatprep.subr.bf16.mxu0 0
    %2238 = vmatpush1.bf16.msra.mxu0 %v2152
    %2239 = vmatprep.subr.bf16.mxu0 0
    %2240 = vmatpush1.bf16.msra.mxu0 %v2155
    %2241 = vmatprep.subr.bf16.mxu0 0
    %2242 = vmatpush1.bf16.msra.mxu0 %v2158
    %2243 = vmatprep.subr.bf16.mxu0 0
    %2244 = vmatpush1.bf16.msra.mxu0 %v2161
    %2245 = vmatprep.subr.bf16.mxu0 0
    %2246 = vmatpush1.bf16.msra.mxu0 %v2164
    %2247 = vmatprep.subr.bf16.mxu0 0
    %2248 = vmatpush1.bf16.msra.mxu0 %v2167
    %2249 = vmatprep.subr.bf16.mxu0 0
    %2250 = vmatpush1.bf16.msra.mxu0 0
    %2251 = vmatprep.subr.bf16.mxu0 0
    %2252 = vmatpush1.bf16.msra.mxu0 0
    %2253 = vmatprep.subr.bf16.mxu0 0
    %2254 = vmatpush1.bf16.msra.mxu0 0
    %2255 = vmatprep.subr.bf16.mxu0 0
    %2256 = vmatpush1.bf16.msra.mxu0 0
    %2257 = vmatprep.subr.bf16.mxu0 0
    %2258 = vmatpush1.bf16.msra.mxu0 0
    %2259 = vmatprep.subr.bf16.mxu0 0
    %2260 = vmatpush1.bf16.msra.mxu0 0
    %2261 = vmatprep.subr.bf16.mxu0 0
    %2262 = vmatpush1.bf16.msra.mxu0 0
    %2263 = vmatprep.subr.bf16.mxu0 0
    %2264 = vmatpush1.bf16.msra.mxu0 0
    %2265 = vmatprep.mubr.bf16.mxu0 0
    %2266 = vmatmul.mubr.bf16.gmra.mrb[0].mxu0 0
    %v2267 = vpop.f32.mrb[0].mxu0
    %v2268 = vadd.f32 %v2060, %v2267
    %v2269 = vpop.f32.mrb[0].mxu0
    %v2270 = vpop.f32.mrb[0].mxu0
    %v2271 = vpop.f32.mrb[0].mxu0
    %2272 = vdwg.mxu0
    %v2273 = vadd.f32 %v2045, %v2227
    %v2274 = vmul.f32 %v2273, 0.5
    %v2275 = vtanh.pop %v2274
    %v2276 = vadd.f32 %v2275, 1.0
    %v2277 = vmul.f32 %v2276, 0.5
    %v2278 = vadd.f32 %v2046, %v2229
    %v2279 = vmul.f32 %v2278, 0.5
    %v2280 = vtanh.pop %v2279
    %v2281 = vadd.f32 %v2280, 1.0
    %v2282 = vmul.f32 %v2281, 0.5
    %v2283 = vmul.f32 %v2277, %v2268
    %v2284 = vadd.f32 %v2047, %v2283
    %v2285 = vtanh.pop %v2284
    %v2286 = vsub.f32 1.0, %v2282
    %v2287 = vmul.f32 %v2286, %v2285
    %v2288 = vmul.f32 %v2282, 0.0
    %v2289 = vadd.f32 %v2287, %v2288
    %v2290 = vsel %vm850, %v2289, 0.0
    %2291 = vst [vmem:[#allocation3] sm:$0xff] %v2290
    %v2292 = vld [vmem:[%s853] sm:$0xff]
    %v2293 = vld [vmem:[%s853 + $0x8] sm:$0xff]
    %v2294 = vld [vmem:[%s853 + $0x10] sm:$0xff]
    %v2295 = vpack.c.bf16 %v2290, %v2290
    %2296 = vmatprep.subr.bf16.mxu0 %v2145
    %2297 = vmatpush1.bf16.msra.mxu0 %v2144
    %2298 = vmatprep.subr.bf16.mxu0 %v2148
    %2299 = vmatpush1.bf16.msra.mxu0 %v2147
    %2300 = vmatprep.subr.bf16.mxu0 %v2151
    %2301 = vmatpush1.bf16.msra.mxu0 %v2150
    %2302 = vmatprep.subr.bf16.mxu0 %v2154
    %2303 = vmatpush1.bf16.msra.mxu0 %v2153
    %2304 = vmatprep.subr.bf16.mxu0 %v2157
    %2305 = vmatpush1.bf16.msra.mxu0 %v2156
    %2306 = vmatprep.subr.bf16.mxu0 %v2160
    %2307 = vmatpush1.bf16.msra.mxu0 %v2159
    %2308 = vmatprep.subr.bf16.mxu0 %v2163
    %2309 = vmatpush1.bf16.msra.mxu0 %v2162
    %2310 = vmatprep.subr.bf16.mxu0 %v2166
    %2311 = vmatpush1.bf16.msra.mxu0 %v2165
    %2312 = vmatprep.subr.bf16.mxu0 0
    %2313 = vmatpush1.bf16.msra.mxu0 0
    %2314 = vmatprep.subr.bf16.mxu0 0
    %2315 = vmatpush1.bf16.msra.mxu0 0
    %2316 = vmatprep.subr.bf16.mxu0 0
    %2317 = vmatpush1.bf16.msra.mxu0 0
    %2318 = vmatprep.subr.bf16.mxu0 0
    %2319 = vmatpush1.bf16.msra.mxu0 0
    %2320 = vmatprep.subr.bf16.mxu0 0
    %2321 = vmatpush1.bf16.msra.mxu0 0
    %2322 = vmatprep.subr.bf16.mxu0 0
    %2323 = vmatpush1.bf16.msra.mxu0 0
    %2324 = vmatprep.subr.bf16.mxu0 0
    %2325 = vmatpush1.bf16.msra.mxu0 0
    %2326 = vmatprep.subr.bf16.mxu0 0
    %2327 = vmatpush1.bf16.msra.mxu0 0
    %2328 = vmatprep.mubr.bf16.mxu0 0
    %2329 = vmatmul.mubr.bf16.gmra.mrb[0].mxu0 %v2295
    %v2330 = vpop.f32.mrb[0].mxu0
    %v2331 = vadd.f32 %v2052, %v2330
    %v2332 = vpop.f32.mrb[0].mxu0
    %v2333 = vadd.f32 %v2056, %v2332
    %v2334 = vpop.f32.mrb[0].mxu0
    %v2335 = vpop.f32.mrb[0].mxu0
    %2336 = vdwg.mxu0
    %2337 = vmatprep.subr.bf16.mxu0 0
    %2338 = vmatpush1.bf16.msra.mxu0 %v2146
    %2339 = vmatprep.subr.bf16.mxu0 0
    %2340 = vmatpush1.bf16.msra.mxu0 %v2149
    %2341 = vmatprep.subr.bf16.mxu0 0
    %2342 = vmatpush1.bf16.msra.mxu0 %v2152
    %2343 = vmatprep.subr.bf16.mxu0 0
    %2344 = vmatpush1.bf16.msra.mxu0 %v2155
    %2345 = vmatprep.subr.bf16.mxu0 0
    %2346 = vmatpush1.bf16.msra.mxu0 %v2158
    %2347 = vmatprep.subr.bf16.mxu0 0
    %2348 = vmatpush1.bf16.msra.mxu0 %v2161
    %2349 = vmatprep.subr.bf16.mxu0 0
    %2350 = vmatpush1.bf16.msra.mxu0 %v2164
    %2351 = vmatprep.subr.bf16.mxu0 0
    %2352 = vmatpush1.bf16.msra.mxu0 %v2167
    %2353 = vmatprep.subr.bf16.mxu0 0
    %2354 = vmatpush1.bf16.msra.mxu0 0
    %2355 = vmatprep.subr.bf16.mxu0 0
    %2356 = vmatpush1.bf16.msra.mxu0 0
    %2357 = vmatprep.subr.bf16.mxu0 0
    %2358 = vmatpush1.bf16.msra.mxu0 0
    %2359 = vmatprep.subr.bf16.mxu0 0
    %2360 = vmatpush1.bf16.msra.mxu0 0
    %2361 = vmatprep.subr.bf16.mxu0 0
    %2362 = vmatpush1.bf16.msra.mxu0 0
    %2363 = vmatprep.subr.bf16.mxu0 0
    %2364 = vmatpush1.bf16.msra.mxu0 0
    %2365 = vmatprep.subr.bf16.mxu0 0
    %2366 = vmatpush1.bf16.msra.mxu0 0
    %2367 = vmatprep.subr.bf16.mxu0 0
    %2368 = vmatpush1.bf16.msra.mxu0 0
    %2369 = vmatprep.mubr.bf16.mxu0 0
    %2370 = vmatmul.mubr.bf16.gmra.mrb[0].mxu0 %v2295
    %v2371 = vpop.f32.mrb[0].mxu0
    %v2372 = vadd.f32 %v2060, %v2371
    %v2373 = vpop.f32.mrb[0].mxu0
    %v2374 = vpop.f32.mrb[0].mxu0
    %v2375 = vpop.f32.mrb[0].mxu0
    %2376 = vdwg.mxu0
    %v2377 = vadd.f32 %v2292, %v2331
    %v2378 = vmul.f32 %v2377, 0.5
    %v2379 = vtanh.pop %v2378
    %v2380 = vadd.f32 %v2379, 1.0
    %v2381 = vmul.f32 %v2380, 0.5
    %v2382 = vadd.f32 %v2293, %v2333
    %v2383 = vmul.f32 %v2382, 0.5
    %v2384 = vtanh.pop %v2383
    %v2385 = vadd.f32 %v2384, 1.0
    %v2386 = vmul.f32 %v2385, 0.5
    %v2387 = vmul.f32 %v2381, %v2372
    %v2388 = vadd.f32 %v2294, %v2387
    %v2389 = vtanh.pop %v2388
    %v2390 = vsub.f32 1.0, %v2386
    %v2391 = vmul.f32 %v2390, %v2389
    %v2392 = vmul.f32 %v2386, %v2290
    %v2393 = vadd.f32 %v2391, %v2392
    %v2394 = vsel %vm961, %v2393, %v2290
    %2395 = vst [vmem:[%s963] sm:$0xff] %v2394
    %v2396 = vld [vmem:[%s965] sm:$0xff]
    %v2397 = vld [vmem:[%s965 + $0x8] sm:$0xff]
    %v2398 = vld [vmem:[%s965 + $0x10] sm:$0xff]
    %v2399 = vpack.c.bf16 %v2394, %v2394
    %2400 = vmatprep.subr.bf16.mxu0 %v2145
    %2401 = vmatpush1.bf16.msra.mxu0 %v2144
    %2402 = vmatprep.subr.bf16.mxu0 %v2148
    %2403 = vmatpush1.bf16.msra.mxu0 %v2147
    %2404 = vmatprep.subr.bf16.mxu0 %v2151
    %2405 = vmatpush1.bf16.msra.mxu0 %v2150
    %2406 = vmatprep.subr.bf16.mxu0 %v2154
    %2407 = vmatpush1.bf16.msra.mxu0 %v2153
    %2408 = vmatprep.subr.bf16.mxu0 %v2157
    %2409 = vmatpush1.bf16.msra.mxu0 %v2156
    %2410 = vmatprep.subr.bf16.mxu0 %v2160
    %2411 = vmatpush1.bf16.msra.mxu0 %v2159
    %2412 = vmatprep.subr.bf16.mxu0 %v2163
    %2413 = vmatpush1.bf16.msra.mxu0 %v2162
    %2414 = vmatprep.subr.bf16.mxu0 %v2166
    %2415 = vmatpush1.bf16.msra.mxu0 %v2165
    %2416 = vmatprep.subr.bf16.mxu0 0
    %2417 = vmatpush1.bf16.msra.mxu0 0
    %2418 = vmatprep.subr.bf16.mxu0 0
    %2419 = vmatpush1.bf16.msra.mxu0 0
    %2420 = vmatprep.subr.bf16.mxu0 0
    %2421 = vmatpush1.bf16.msra.mxu0 0
    %2422 = vmatprep.subr.bf16.mxu0 0
    %2423 = vmatpush1.bf16.msra.mxu0 0
    %2424 = vmatprep.subr.bf16.mxu0 0
    %2425 = vmatpush1.bf16.msra.mxu0 0
    %2426 = vmatprep.subr.bf16.mxu0 0
    %2427 = vmatpush1.bf16.msra.mxu0 0
    %2428 = vmatprep.subr.bf16.mxu0 0
    %2429 = vmatpush1.bf16.msra.mxu0 0
    %2430 = vmatprep.subr.bf16.mxu0 0
    %2431 = vmatpush1.bf16.msra.mxu0 0
    %2432 = vmatprep.mubr.bf16.mxu0 0
    %2433 = vmatmul.mubr.bf16.gmra.mrb[0].mxu0 %v2399
    %v2434 = vpop.f32.mrb[0].mxu0
    %v2435 = vadd.f32 %v2052, %v2434
    %v2436 = vpop.f32.mrb[0].mxu0
    %v2437 = vadd.f32 %v2056, %v2436
    %v2438 = vpop.f32.mrb[0].mxu0
    %v2439 = vpop.f32.mrb[0].mxu0
    %2440 = vdwg.mxu0
    %2441 = vmatprep.subr.bf16.mxu0 0
    %2442 = vmatpush1.bf16.msra.mxu0 %v2146
    %2443 = vmatprep.subr.bf16.mxu0 0
    %2444 = vmatpush1.bf16.msra.mxu0 %v2149
    %2445 = vmatprep.subr.bf16.mxu0 0
    %2446 = vmatpush1.bf16.msra.mxu0 %v2152
    %2447 = vmatprep.subr.bf16.mxu0 0
    %2448 = vmatpush1.bf16.msra.mxu0 %v2155
    %2449 = vmatprep.subr.bf16.mxu0 0
    %2450 = vmatpush1.bf16.msra.mxu0 %v2158
    %2451 = vmatprep.subr.bf16.mxu0 0
    %2452 = vmatpush1.bf16.msra.mxu0 %v2161
    %2453 = vmatprep.subr.bf16.mxu0 0
    %2454 = vmatpush1.bf16.msra.mxu0 %v2164
    %2455 = vmatprep.subr.bf16.mxu0 0
    %2456 = vmatpush1.bf16.msra.mxu0 %v2167
    %2457 = vmatprep.subr.bf16.mxu0 0
    %2458 = vmatpush1.bf16.msra.mxu0 0
    %2459 = vmatprep.subr.bf16.mxu0 0
    %2460 = vmatpush1.bf16.msra.mxu0 0
    %2461 = vmatprep.subr.bf16.mxu0 0
    %2462 = vmatpush1.bf16.msra.mxu0 0
    %2463 = vmatprep.subr.bf16.mxu0 0
    %2464 = vmatpush1.bf16.msra.mxu0 0
    %2465 = vmatprep.subr.bf16.mxu0 0
    %2466 = vmatpush1.bf16.msra.mxu0 0
    %2467 = vmatprep.subr.bf16.mxu0 0
    %2468 = vmatpush1.bf16.msra.mxu0 0
    %2469 = vmatprep.subr.bf16.mxu0 0
    %2470 = vmatpush1.bf16.msra.mxu0 0
    %2471 = vmatprep.subr.bf16.mxu0 0
    %2472 = vmatpush1.bf16.msra.mxu0 0
    %2473 = vmatprep.mubr.bf16.mxu0 0
    %2474 = vmatmul.mubr.bf16.gmra.mrb[0].mxu0 %v2399
    %v2475 = vpop.f32.mrb[0].mxu0
    %v2476 = vadd.f32 %v2060, %v2475
    %v2477 = vpop.f32.mrb[0].mxu0
    %v2478 = vpop.f32.mrb[0].mxu0
    %v2479 = vpop.f32.mrb[0].mxu0
    %2480 = vdwg.mxu0
    %v2481 = vadd.f32 %v2396, %v2435
    %v2482 = vmul.f32 %v2481, 0.5
    %v2483 = vtanh.pop %v2482
    %v2484 = vadd.f32 %v2483, 1.0
    %v2485 = vmul.f32 %v2484, 0.5
    %v2486 = vadd.f32 %v2397, %v2437
    %v2487 = vmul.f32 %v2486, 0.5
    %v2488 = vtanh.pop %v2487
    %v2489 = vadd.f32 %v2488, 1.0
    %v2490 = vmul.f32 %v2489, 0.5
    %v2491 = vmul.f32 %v2485, %v2476
    %v2492 = vadd.f32 %v2398, %v2491
    %v2493 = vtanh.pop %v2492
    %v2494 = vsub.f32 1.0, %v2490
    %v2495 = vmul.f32 %v2494, %v2493
    %v2496 = vmul.f32 %v2490, %v2394
    %v2497 = vadd.f32 %v2495, %v2496
    %v2498 = vsel %vm1073, %v2497, %v2394
    %2499 = vst [vmem:[%s1075] sm:$0xff] %v2498
    %v2500 = vld [vmem:[%s1077] sm:$0xff]
    %v2501 = vld [vmem:[%s1077 + $0x8] sm:$0xff]
    %v2502 = vld [vmem:[%s1077 + $0x10] sm:$0xff]
    %v2503 = vpack.c.bf16 %v2498, %v2498
    %2504 = vmatprep.subr.bf16.mxu0 %v2145
    %2505 = vmatpush1.bf16.msra.mxu0 %v2144
    %2506 = vmatprep.subr.bf16.mxu0 %v2148
    %2507 = vmatpush1.bf16.msra.mxu0 %v2147
    %2508 = vmatprep.subr.bf16.mxu0 %v2151
    %2509 = vmatpush1.bf16.msra.mxu0 %v2150
    %2510 = vmatprep.subr.bf16.mxu0 %v2154
    %2511 = vmatpush1.bf16.msra.mxu0 %v2153
    %2512 = vmatprep.subr.bf16.mxu0 %v2157
    %2513 = vmatpush1.bf16.msra.mxu0 %v2156
    %2514 = vmatprep.subr.bf16.mxu0 %v2160
    %2515 = vmatpush1.bf16.msra.mxu0 %v2159
    %2516 = vmatprep.subr.bf16.mxu0 %v2163
    %2517 = vmatpush1.bf16.msra.mxu0 %v2162
    %2518 = vmatprep.subr.bf16.mxu0 %v2166
    %2519 = vmatpush1.bf16.msra.mxu0 %v2165
    %2520 = vmatprep.subr.bf16.mxu0 0
    %2521 = vmatpush1.bf16.msra.mxu0 0
    %2522 = vmatprep.subr.bf16.mxu0 0
    %2523 = vmatpush1.bf16.msra.mxu0 0
    %2524 = vmatprep.subr.bf16.mxu0 0
    %2525 = vmatpush1.bf16.msra.mxu0 0
    %2526 = vmatprep.subr.bf16.mxu0 0
    %2527 = vmatpush1.bf16.msra.mxu0 0
    %2528 = vmatprep.subr.bf16.mxu0 0
    %2529 = vmatpush1.bf16.msra.mxu0 0
    %2530 = vmatprep.subr.bf16.mxu0 0
    %2531 = vmatpush1.bf16.msra.mxu0 0
    %2532 = vmatprep.subr.bf16.mxu0 0
    %2533 = vmatpush1.bf16.msra.mxu0 0
    %2534 = vmatprep.subr.bf16.mxu0 0
    %2535 = vmatpush1.bf16.msra.mxu0 0
    %2536 = vmatprep.mubr.bf16.mxu0 0
    %2537 = vmatmul.mubr.bf16.gmra.mrb[0].mxu0 %v2503
    %v2538 = vpop.f32.mrb[0].mxu0
    %v2539 = vadd.f32 %v2052, %v2538
    %v2540 = vpop.f32.mrb[0].mxu0
    %v2541 = vadd.f32 %v2056, %v2540
    %v2542 = vpop.f32.mrb[0].mxu0
    %v2543 = vpop.f32.mrb[0].mxu0
    %2544 = vdwg.mxu0
    %2545 = vmatprep.subr.bf16.mxu0 0
    %2546 = vmatpush1.bf16.msra.mxu0 %v2146
    %2547 = vmatprep.subr.bf16.mxu0 0
    %2548 = vmatpush1.bf16.msra.mxu0 %v2149
    %2549 = vmatprep.subr.bf16.mxu0 0
    %2550 = vmatpush1.bf16.msra.mxu0 %v2152
    %2551 = vmatprep.subr.bf16.mxu0 0
    %2552 = vmatpush1.bf16.msra.mxu0 %v2155
    %2553 = vmatprep.subr.bf16.mxu0 0
    %2554 = vmatpush1.bf16.msra.mxu0 %v2158
    %2555 = vmatprep.subr.bf16.mxu0 0
    %2556 = vmatpush1.bf16.msra.mxu0 %v2161
    %2557 = vmatprep.subr.bf16.mxu0 0
    %2558 = vmatpush1.bf16.msra.mxu0 %v2164
    %2559 = vmatprep.subr.bf16.mxu0 0
    %2560 = vmatpush1.bf16.msra.mxu0 %v2167
    %2561 = vmatprep.subr.bf16.mxu0 0
    %2562 = vmatpush1.bf16.msra.mxu0 0
    %2563 = vmatprep.subr.bf16.mxu0 0
    %2564 = vmatpush1.bf16.msra.mxu0 0
    %2565 = vmatprep.subr.bf16.mxu0 0
    %2566 = vmatpush1.bf16.msra.mxu0 0
    %2567 = vmatprep.subr.bf16.mxu0 0
    %2568 = vmatpush1.bf16.msra.mxu0 0
    %2569 = vmatprep.subr.bf16.mxu0 0
    %2570 = vmatpush1.bf16.msra.mxu0 0
    %2571 = vmatprep.subr.bf16.mxu0 0
    %2572 = vmatpush1.bf16.msra.mxu0 0
    %2573 = vmatprep.subr.bf16.mxu0 0
    %2574 = vmatpush1.bf16.msra.mxu0 0
    %2575 = vmatprep.subr.bf16.mxu0 0
    %2576 = vmatpush1.bf16.msra.mxu0 0
    %2577 = vmatprep.mubr.bf16.mxu0 0
    %2578 = vmatmul.mubr.bf16.gmra.mrb[0].mxu0 %v2503
    %v2579 = vpop.f32.mrb[0].mxu0
    %v2580 = vadd.f32 %v2060, %v2579
    %v2581 = vpop.f32.mrb[0].mxu0
    %v2582 = vpop.f32.mrb[0].mxu0
    %v2583 = vpop.f32.mrb[0].mxu0
    %2584 = vdwg.mxu0
    %v2585 = vadd.f32 %v2500, %v2539
    %v2586 = vmul.f32 %v2585, 0.5
    %v2587 = vtanh.pop %v2586
    %v2588 = vadd.f32 %v2587, 1.0
    %v2589 = vmul.f32 %v2588, 0.5
    %v2590 = vadd.f32 %v2501, %v2541
    %v2591 = vmul.f32 %v2590, 0.5
    %v2592 = vtanh.pop %v2591
    %v2593 = vadd.f32 %v2592, 1.0
    %v2594 = vmul.f32 %v2593, 0.5
    %v2595 = vmul.f32 %v2589, %v2580
    %v2596 = vadd.f32 %v2502, %v2595
    %v2597 = vtanh.pop %v2596
    %v2598 = vsub.f32 1.0, %v2594
    %v2599 = vmul.f32 %v2598, %v2597
    %v2600 = vmul.f32 %v2594, %v2498
    %v2601 = vadd.f32 %v2599, %v2600
    %v2602 = vsel %vm1185, %v2601, %v2498
    %2603 = vst [vmem:[%s1187] sm:$0xff] %v2602
    %v2604 = vld [vmem:[%s1189] sm:$0xff]
    %v2605 = vld [vmem:[%s1189 + $0x8] sm:$0xff]
    %v2606 = vld [vmem:[%s1189 + $0x10] sm:$0xff]
    %v2607 = vpack.c.bf16 %v2602, %v2602
    %2608 = vmatprep.subr.bf16.mxu0 %v2145
    %2609 = vmatpush1.bf16.msra.mxu0 %v2144
    %2610 = vmatprep.subr.bf16.mxu0 %v2148
    %2611 = vmatpush1.bf16.msra.mxu0 %v2147
    %2612 = vmatprep.subr.bf16.mxu0 %v2151
    %2613 = vmatpush1.bf16.msra.mxu0 %v2150
    %2614 = vmatprep.subr.bf16.mxu0 %v2154
    %2615 = vmatpush1.bf16.msra.mxu0 %v2153
    %2616 = vmatprep.subr.bf16.mxu0 %v2157
    %2617 = vmatpush1.bf16.msra.mxu0 %v2156
    %2618 = vmatprep.subr.bf16.mxu0 %v2160
    %2619 = vmatpush1.bf16.msra.mxu0 %v2159
    %2620 = vmatprep.subr.bf16.mxu0 %v2163
    %2621 = vmatpush1.bf16.msra.mxu0 %v2162
    %2622 = vmatprep.subr.bf16.mxu0 %v2166
    %2623 = vmatpush1.bf16.msra.mxu0 %v2165
    %2624 = vmatprep.subr.bf16.mxu0 0
    %2625 = vmatpush1.bf16.msra.mxu0 0
    %2626 = vmatprep.subr.bf16.mxu0 0
    %2627 = vmatpush1.bf16.msra.mxu0 0
    %2628 = vmatprep.subr.bf16.mxu0 0
    %2629 = vmatpush1.bf16.msra.mxu0 0
    %2630 = vmatprep.subr.bf16.mxu0 0
    %2631 = vmatpush1.bf16.msra.mxu0 0
    %2632 = vmatprep.subr.bf16.mxu0 0
    %2633 = vmatpush1.bf16.msra.mxu0 0
    %2634 = vmatprep.subr.bf16.mxu0 0
    %2635 = vmatpush1.bf16.msra.mxu0 0
    %2636 = vmatprep.subr.bf16.mxu0 0
    %2637 = vmatpush1.bf16.msra.mxu0 0
    %2638 = vmatprep.subr.bf16.mxu0 0
    %2639 = vmatpush1.bf16.msra.mxu0 0
    %2640 = vmatprep.mubr.bf16.mxu0 0
    %2641 = vmatmul.mubr.bf16.gmra.mrb[0].mxu0 %v2607
    %v2642 = vpop.f32.mrb[0].mxu0
    %v2643 = vadd.f32 %v2052, %v2642
    %v2644 = vpop.f32.mrb[0].mxu0
    %v2645 = vadd.f32 %v2056, %v2644
    %v2646 = vpop.f32.mrb[0].mxu0
    %v2647 = vpop.f32.mrb[0].mxu0
    %2648 = vdwg.mxu0
    %2649 = vmatprep.subr.bf16.mxu0 0
    %2650 = vmatpush1.bf16.msra.mxu0 %v2146
    %2651 = vmatprep.subr.bf16.mxu0 0
    %2652 = vmatpush1.bf16.msra.mxu0 %v2149
    %2653 = vmatprep.subr.bf16.mxu0 0
    %2654 = vmatpush1.bf16.msra.mxu0 %v2152
    %2655 = vmatprep.subr.bf16.mxu0 0
    %2656 = vmatpush1.bf16.msra.mxu0 %v2155
    %2657 = vmatprep.subr.bf16.mxu0 0
    %2658 = vmatpush1.bf16.msra.mxu0 %v2158
    %2659 = vmatprep.subr.bf16.mxu0 0
    %2660 = vmatpush1.bf16.msra.mxu0 %v2161
    %2661 = vmatprep.subr.bf16.mxu0 0
    %2662 = vmatpush1.bf16.msra.mxu0 %v2164
    %2663 = vmatprep.subr.bf16.mxu0 0
    %2664 = vmatpush1.bf16.msra.mxu0 %v2167
    %2665 = vmatprep.subr.bf16.mxu0 0
    %2666 = vmatpush1.bf16.msra.mxu0 0
    %2667 = vmatprep.subr.bf16.mxu0 0
    %2668 = vmatpush1.bf16.msra.mxu0 0
    %2669 = vmatprep.subr.bf16.mxu0 0
    %2670 = vmatpush1.bf16.msra.mxu0 0
    %2671 = vmatprep.subr.bf16.mxu0 0
    %2672 = vmatpush1.bf16.msra.mxu0 0
    %2673 = vmatprep.subr.bf16.mxu0 0
    %2674 = vmatpush1.bf16.msra.mxu0 0
    %2675 = vmatprep.subr.bf16.mxu0 0
    %2676 = vmatpush1.bf16.msra.mxu0 0
    %2677 = vmatprep.subr.bf16.mxu0 0
    %2678 = vmatpush1.bf16.msra.mxu0 0
    %2679 = vmatprep.subr.bf16.mxu0 0
    %2680 = vmatpush1.bf16.msra.mxu0 0
    %2681 = vmatprep.mubr.bf16.mxu0 0
    %2682 = vmatmul.mubr.bf16.gmra.mrb[0].mxu0 %v2607
    %v2683 = vpop.f32.mrb[0].mxu0
    %v2684 = vadd.f32 %v2060, %v2683
    %v2685 = vpop.f32.mrb[0].mxu0
    %v2686 = vpop.f32.mrb[0].mxu0
    %v2687 = vpop.f32.mrb[0].mxu0
    %2688 = vdwg.mxu0
    %v2689 = vadd.f32 %v2604, %v2643
    %v2690 = vmul.f32 %v2689, 0.5
    %v2691 = vtanh.pop %v2690
    %v2692 = vadd.f32 %v2691, 1.0
    %v2693 = vmul.f32 %v2692, 0.5
    %v2694 = vadd.f32 %v2605, %v2645
    %v2695 = vmul.f32 %v2694, 0.5
    %v2696 = vtanh.pop %v2695
    %v2697 = vadd.f32 %v2696, 1.0
    %v2698 = vmul.f32 %v2697, 0.5
    %v2699 = vmul.f32 %v2693, %v2684
    %v2700 = vadd.f32 %v2606, %v2699
    %v2701 = vtanh.pop %v2700
    %v2702 = vsub.f32 1.0, %v2698
    %v2703 = vmul.f32 %v2702, %v2701
    %v2704 = vmul.f32 %v2698, %v2602
    %v2705 = vadd.f32 %v2703, %v2704
    %v2706 = vsel %vm1297, %v2705, %v2602
    %2707 = vst [vmem:[%s1299] sm:$0xff] %v2706
    %v2708 = vld [vmem:[%s1301] sm:$0xff]
    %v2709 = vld [vmem:[%s1301 + $0x8] sm:$0xff]
    %v2710 = vld [vmem:[%s1301 + $0x10] sm:$0xff]
    %v2711 = vpack.c.bf16 %v2706, %v2706
    %2712 = vmatprep.subr.bf16.mxu0 %v2145
    %2713 = vmatpush1.bf16.msra.mxu0 %v2144
    %2714 = vmatprep.subr.bf16.mxu0 %v2148
    %2715 = vmatpush1.bf16.msra.mxu0 %v2147
    %2716 = vmatprep.subr.bf16.mxu0 %v2151
    %2717 = vmatpush1.bf16.msra.mxu0 %v2150
    %2718 = vmatprep.subr.bf16.mxu0 %v2154
    %2719 = vmatpush1.bf16.msra.mxu0 %v2153
    %2720 = vmatprep.subr.bf16.mxu0 %v2157
    %2721 = vmatpush1.bf16.msra.mxu0 %v2156
    %2722 = vmatprep.subr.bf16.mxu0 %v2160
    %2723 = vmatpush1.bf16.msra.mxu0 %v2159
    %2724 = vmatprep.subr.bf16.mxu0 %v2163
    %2725 = vmatpush1.bf16.msra.mxu0 %v2162
    %2726 = vmatprep.subr.bf16.mxu0 %v2166
    %2727 = vmatpush1.bf16.msra.mxu0 %v2165
    %2728 = vmatprep.subr.bf16.mxu0 0
    %2729 = vmatpush1.bf16.msra.mxu0 0
    %2730 = vmatprep.subr.bf16.mxu0 0
    %2731 = vmatpush1.bf16.msra.mxu0 0
    %2732 = vmatprep.subr.bf16.mxu0 0
    %2733 = vmatpush1.bf16.msra.mxu0 0
    %2734 = vmatprep.subr.bf16.mxu0 0
    %2735 = vmatpush1.bf16.msra.mxu0 0
    %2736 = vmatprep.subr.bf16.mxu0 0
    %2737 = vmatpush1.bf16.msra.mxu0 0
    %2738 = vmatprep.subr.bf16.mxu0 0
    %2739 = vmatpush1.bf16.msra.mxu0 0
    %2740 = vmatprep.subr.bf16.mxu0 0
    %2741 = vmatpush1.bf16.msra.mxu0 0
    %2742 = vmatprep.subr.bf16.mxu0 0
    %2743 = vmatpush1.bf16.msra.mxu0 0
    %2744 = vmatprep.mubr.bf16.mxu0 0
    %2745 = vmatmul.mubr.bf16.gmra.mrb[0].mxu0 %v2711
    %v2746 = vpop.f32.mrb[0].mxu0
    %v2747 = vadd.f32 %v2052, %v2746
    %v2748 = vpop.f32.mrb[0].mxu0
    %v2749 = vadd.f32 %v2056, %v2748
    %v2750 = vpop.f32.mrb[0].mxu0
    %v2751 = vpop.f32.mrb[0].mxu0
    %2752 = vdwg.mxu0
    %2753 = vmatprep.subr.bf16.mxu0 0
    %2754 = vmatpush1.bf16.msra.mxu0 %v2146
    %2755 = vmatprep.subr.bf16.mxu0 0
    %2756 = vmatpush1.bf16.msra.mxu0 %v2149
    %2757 = vmatprep.subr.bf16.mxu0 0
    %2758 = vmatpush1.bf16.msra.mxu0 %v2152
    %2759 = vmatprep.subr.bf16.mxu0 0
    %2760 = vmatpush1.bf16.msra.mxu0 %v2155
    %2761 = vmatprep.subr.bf16.mxu0 0
    %2762 = vmatpush1.bf16.msra.mxu0 %v2158
    %2763 = vmatprep.subr.bf16.mxu0 0
    %2764 = vmatpush1.bf16.msra.mxu0 %v2161
    %2765 = vmatprep.subr.bf16.mxu0 0
    %2766 = vmatpush1.bf16.msra.mxu0 %v2164
    %2767 = vmatprep.subr.bf16.mxu0 0
    %2768 = vmatpush1.bf16.msra.mxu0 %v2167
    %2769 = vmatprep.subr.bf16.mxu0 0
    %2770 = vmatpush1.bf16.msra.mxu0 0
    %2771 = vmatprep.subr.bf16.mxu0 0
    %2772 = vmatpush1.bf16.msra.mxu0 0
    %2773 = vmatprep.subr.bf16.mxu0 0
    %2774 = vmatpush1.bf16.msra.mxu0 0
    %2775 = vmatprep.subr.bf16.mxu0 0
    %2776 = vmatpush1.bf16.msra.mxu0 0
    %2777 = vmatprep.subr.bf16.mxu0 0
    %2778 = vmatpush1.bf16.msra.mxu0 0
    %2779 = vmatprep.subr.bf16.mxu0 0
    %2780 = vmatpush1.bf16.msra.mxu0 0
    %2781 = vmatprep.subr.bf16.mxu0 0
    %2782 = vmatpush1.bf16.msra.mxu0 0
    %2783 = vmatprep.subr.bf16.mxu0 0
    %2784 = vmatpush1.bf16.msra.mxu0 0
    %2785 = vmatprep.mubr.bf16.mxu0 0
    %2786 = vmatmul.mubr.bf16.gmra.mrb[0].mxu0 %v2711
    %v2787 = vpop.f32.mrb[0].mxu0
    %v2788 = vadd.f32 %v2060, %v2787
    %v2789 = vpop.f32.mrb[0].mxu0
    %v2790 = vpop.f32.mrb[0].mxu0
    %v2791 = vpop.f32.mrb[0].mxu0
    %2792 = vdwg.mxu0
    %v2793 = vadd.f32 %v2708, %v2747
    %v2794 = vmul.f32 %v2793, 0.5
    %v2795 = vtanh.pop %v2794
    %v2796 = vadd.f32 %v2795, 1.0
    %v2797 = vmul.f32 %v2796, 0.5
    %v2798 = vadd.f32 %v2709, %v2749
    %v2799 = vmul.f32 %v2798, 0.5
    %v2800 = vtanh.pop %v2799
    %v2801 = vadd.f32 %v2800, 1.0
    %v2802 = vmul.f32 %v2801, 0.5
    %v2803 = vmul.f32 %v2797, %v2788
    %v2804 = vadd.f32 %v2710, %v2803
    %v2805 = vtanh.pop %v2804
    %v2806 = vsub.f32 1.0, %v2802
    %v2807 = vmul.f32 %v2806, %v2805
    %v2808 = vmul.f32 %v2802, %v2706
    %v2809 = vadd.f32 %v2807, %v2808
    %v2810 = vsel %vm1409, %v2809, %v2706
    %2811 = vst [vmem:[%s1411] sm:$0xff] %v2810
    %v2812 = vld [vmem:[%s1413] sm:$0xff]
    %v2813 = vld [vmem:[%s1413 + $0x8] sm:$0xff]
    %v2814 = vld [vmem:[%s1413 + $0x10] sm:$0xff]
    %v2815 = vpack.c.bf16 %v2810, %v2810
    %2816 = vmatprep.subr.bf16.mxu0 %v2145
    %2817 = vmatpush1.bf16.msra.mxu0 %v2144
    %2818 = vmatprep.subr.bf16.mxu0 %v2148
    %2819 = vmatpush1.bf16.msra.mxu0 %v2147
    %2820 = vmatprep.subr.bf16.mxu0 %v2151
    %2821 = vmatpush1.bf16.msra.mxu0 %v2150
    %2822 = vmatprep.subr.bf16.mxu0 %v2154
    %2823 = vmatpush1.bf16.msra.mxu0 %v2153
    %2824 = vmatprep.subr.bf16.mxu0 %v2157
    %2825 = vmatpush1.bf16.msra.mxu0 %v2156
    %2826 = vmatprep.subr.bf16.mxu0 %v2160
    %2827 = vmatpush1.bf16.msra.mxu0 %v2159
    %2828 = vmatprep.subr.bf16.mxu0 %v2163
    %2829 = vmatpush1.bf16.msra.mxu0 %v2162
    %2830 = vmatprep.subr.bf16.mxu0 %v2166
    %2831 = vmatpush1.bf16.msra.mxu0 %v2165
    %2832 = vmatprep.subr.bf16.mxu0 0
    %2833 = vmatpush1.bf16.msra.mxu0 0
    %2834 = vmatprep.subr.bf16.mxu0 0
    %2835 = vmatpush1.bf16.msra.mxu0 0
    %2836 = vmatprep.subr.bf16.mxu0 0
    %2837 = vmatpush1.bf16.msra.mxu0 0
    %2838 = vmatprep.subr.bf16.mxu0 0
    %2839 = vmatpush1.bf16.msra.mxu0 0
    %2840 = vmatprep.subr.bf16.mxu0 0
    %2841 = vmatpush1.bf16.msra.mxu0 0
    %2842 = vmatprep.subr.bf16.mxu0 0
    %2843 = vmatpush1.bf16.msra.mxu0 0
    %2844 = vmatprep.subr.bf16.mxu0 0
    %2845 = vmatpush1.bf16.msra.mxu0 0
    %2846 = vmatprep.subr.bf16.mxu0 0
    %2847 = vmatpush1.bf16.msra.mxu0 0
    %2848 = vmatprep.mubr.bf16.mxu0 0
    %2849 = vmatmul.mubr.bf16.gmra.mrb[0].mxu0 %v2815
    %v2850 = vpop.f32.mrb[0].mxu0
    %v2851 = vadd.f32 %v2052, %v2850
    %v2852 = vpop.f32.mrb[0].mxu0
    %v2853 = vadd.f32 %v2056, %v2852
    %v2854 = vpop.f32.mrb[0].mxu0
    %v2855 = vpop.f32.mrb[0].mxu0
    %2856 = vdwg.mxu0
    %2857 = vmatprep.subr.bf16.mxu0 0
    %2858 = vmatpush1.bf16.msra.mxu0 %v2146
    %2859 = vmatprep.subr.bf16.mxu0 0
    %2860 = vmatpush1.bf16.msra.mxu0 %v2149
    %2861 = vmatprep.subr.bf16.mxu0 0
    %2862 = vmatpush1.bf16.msra.mxu0 %v2152
    %2863 = vmatprep.subr.bf16.mxu0 0
    %2864 = vmatpush1.bf16.msra.mxu0 %v2155
    %2865 = vmatprep.subr.bf16.mxu0 0
    %2866 = vmatpush1.bf16.msra.mxu0 %v2158
    %2867 = vmatprep.subr.bf16.mxu0 0
    %2868 = vmatpush1.bf16.msra.mxu0 %v2161
    %2869 = vmatprep.subr.bf16.mxu0 0
    %2870 = vmatpush1.bf16.msra.mxu0 %v2164
    %2871 = vmatprep.subr.bf16.mxu0 0
    %2872 = vmatpush1.bf16.msra.mxu0 %v2167
    %2873 = vmatprep.subr.bf16.mxu0 0
    %2874 = vmatpush1.bf16.msra.mxu0 0
    %2875 = vmatprep.subr.bf16.mxu0 0
    %2876 = vmatpush1.bf16.msra.mxu0 0
    %2877 = vmatprep.subr.bf16.mxu0 0
    %2878 = vmatpush1.bf16.msra.mxu0 0
    %2879 = vmatprep.subr.bf16.mxu0 0
    %2880 = vmatpush1.bf16.msra.mxu0 0
    %2881 = vmatprep.subr.bf16.mxu0 0
    %2882 = vmatpush1.bf16.msra.mxu0 0
    %2883 = vmatprep.subr.bf16.mxu0 0
    %2884 = vmatpush1.bf16.msra.mxu0 0
    %2885 = vmatprep.subr.bf16.mxu0 0
    %2886 = vmatpush1.bf16.msra.mxu0 0
    %2887 = vmatprep.subr.bf16.mxu0 0
    %2888 = vmatpush1.bf16.msra.mxu0 0
    %2889 = vmatprep.mubr.bf16.mxu0 0
    %2890 = vmatmul.mubr.bf16.gmra.mrb[0].mxu0 %v2815
    %v2891 = vpop.f32.mrb[0].mxu0
    %v2892 = vadd.f32 %v2060, %v2891
    %v2893 = vpop.f32.mrb[0].mxu0
    %v2894 = vpop.f32.mrb[0].mxu0
    %v2895 = vpop.f32.mrb[0].mxu0
    %2896 = vdwg.mxu0
    %v2897 = vadd.f32 %v2812, %v2851
    %v2898 = vmul.f32 %v2897, 0.5
    %v2899 = vtanh.pop %v2898
    %v2900 = vadd.f32 %v2899, 1.0
    %v2901 = vmul.f32 %v2900, 0.5
    %v2902 = vadd.f32 %v2813, %v2853
    %v2903 = vmul.f32 %v2902, 0.5
    %v2904 = vtanh.pop %v2903
    %v2905 = vadd.f32 %v2904, 1.0
    %v2906 = vmul.f32 %v2905, 0.5
    %v2907 = vmul.f32 %v2901, %v2892
    %v2908 = vadd.f32 %v2814, %v2907
    %v2909 = vtanh.pop %v2908
    %v2910 = vsub.f32 1.0, %v2906
    %v2911 = vmul.f32 %v2910, %v2909
    %v2912 = vmul.f32 %v2906, %v2810
    %v2913 = vadd.f32 %v2911, %v2912
    %v2914 = vsel %vm1521, %v2913, %v2810
    %2915 = vst [vmem:[%s1523] sm:$0xff] %v2914
    %v2916 = vld [vmem:[%s1525] sm:$0xff]
    %v2917 = vld [vmem:[%s1525 + $0x8] sm:$0xff]
    %v2918 = vld [vmem:[%s1525 + $0x10] sm:$0xff]
    %v2919 = vpack.c.bf16 %v2914, %v2914
    %2920 = vmatprep.subr.bf16.mxu0 %v2145
    %2921 = vmatpush1.bf16.msra.mxu0 %v2144
    %2922 = vmatprep.subr.bf16.mxu0 %v2148
    %2923 = vmatpush1.bf16.msra.mxu0 %v2147
    %2924 = vmatprep.subr.bf16.mxu0 %v2151
    %2925 = vmatpush1.bf16.msra.mxu0 %v2150
    %2926 = vmatprep.subr.bf16.mxu0 %v2154
    %2927 = vmatpush1.bf16.msra.mxu0 %v2153
    %2928 = vmatprep.subr.bf16.mxu0 %v2157
    %2929 = vmatpush1.bf16.msra.mxu0 %v2156
    %2930 = vmatprep.subr.bf16.mxu0 %v2160
    %2931 = vmatpush1.bf16.msra.mxu0 %v2159
    %2932 = vmatprep.subr.bf16.mxu0 %v2163
    %2933 = vmatpush1.bf16.msra.mxu0 %v2162
    %2934 = vmatprep.subr.bf16.mxu0 %v2166
    %2935 = vmatpush1.bf16.msra.mxu0 %v2165
    %2936 = vmatprep.subr.bf16.mxu0 0
    %2937 = vmatpush1.bf16.msra.mxu0 0
    %2938 = vmatprep.subr.bf16.mxu0 0
    %2939 = vmatpush1.bf16.msra.mxu0 0
    %2940 = vmatprep.subr.bf16.mxu0 0
    %2941 = vmatpush1.bf16.msra.mxu0 0
    %2942 = vmatprep.subr.bf16.mxu0 0
    %2943 = vmatpush1.bf16.msra.mxu0 0
    %2944 = vmatprep.subr.bf16.mxu0 0
    %2945 = vmatpush1.bf16.msra.mxu0 0
    %2946 = vmatprep.subr.bf16.mxu0 0
    %2947 = vmatpush1.bf16.msra.mxu0 0
    %2948 = vmatprep.subr.bf16.mxu0 0
    %2949 = vmatpush1.bf16.msra.mxu0 0
    %2950 = vmatprep.subr.bf16.mxu0 0
    %2951 = vmatpush1.bf16.msra.mxu0 0
    %2952 = vmatprep.mubr.bf16.mxu0 0
    %2953 = vmatmul.mubr.bf16.gmra.mrb[0].mxu0 %v2919
    %v2954 = vpop.f32.mrb[0].mxu0
    %v2955 = vadd.f32 %v2052, %v2954
    %v2956 = vpop.f32.mrb[0].mxu0
    %v2957 = vadd.f32 %v2056, %v2956
    %v2958 = vpop.f32.mrb[0].mxu0
    %v2959 = vpop.f32.mrb[0].mxu0
    %2960 = vdwg.mxu0
    %2961 = vmatprep.subr.bf16.mxu0 0
    %2962 = vmatpush1.bf16.msra.mxu0 %v2146
    %2963 = vmatprep.subr.bf16.mxu0 0
    %2964 = vmatpush1.bf16.msra.mxu0 %v2149
    %2965 = vmatprep.subr.bf16.mxu0 0
    %2966 = vmatpush1.bf16.msra.mxu0 %v2152
    %2967 = vmatprep.subr.bf16.mxu0 0
    %2968 = vmatpush1.bf16.msra.mxu0 %v2155
    %2969 = vmatprep.subr.bf16.mxu0 0
    %2970 = vmatpush1.bf16.msra.mxu0 %v2158
    %2971 = vmatprep.subr.bf16.mxu0 0
    %2972 = vmatpush1.bf16.msra.mxu0 %v2161
    %2973 = vmatprep.subr.bf16.mxu0 0
    %2974 = vmatpush1.bf16.msra.mxu0 %v2164
    %2975 = vmatprep.subr.bf16.mxu0 0
    %2976 = vmatpush1.bf16.msra.mxu0 %v2167
    %2977 = vmatprep.subr.bf16.mxu0 0
    %2978 = vmatpush1.bf16.msra.mxu0 0
    %2979 = vmatprep.subr.bf16.mxu0 0
    %2980 = vmatpush1.bf16.msra.mxu0 0
    %2981 = vmatprep.subr.bf16.mxu0 0
    %2982 = vmatpush1.bf16.msra.mxu0 0
    %2983 = vmatprep.subr.bf16.mxu0 0
    %2984 = vmatpush1.bf16.msra.mxu0 0
    %2985 = vmatprep.subr.bf16.mxu0 0
    %2986 = vmatpush1.bf16.msra.mxu0 0
    %2987 = vmatprep.subr.bf16.mxu0 0
    %2988 = vmatpush1.bf16.msra.mxu0 0
    %2989 = vmatprep.subr.bf16.mxu0 0
    %2990 = vmatpush1.bf16.msra.mxu0 0
    %2991 = vmatprep.subr.bf16.mxu0 0
    %2992 = vmatpush1.bf16.msra.mxu0 0
    %2993 = vmatprep.mubr.bf16.mxu0 0
    %2994 = vmatmul.mubr.bf16.gmra.mrb[0].mxu0 %v2919
    %v2995 = vpop.f32.mrb[0].mxu0
    %v2996 = vadd.f32 %v2060, %v2995
    %v2997 = vpop.f32.mrb[0].mxu0
    %v2998 = vpop.f32.mrb[0].mxu0
    %v2999 = vpop.f32.mrb[0].mxu0
    %3000 = vdwg.mxu0
    %v3001 = vadd.f32 %v2916, %v2955
    %v3002 = vmul.f32 %v3001, 0.5
    %v3003 = vtanh.pop %v3002
    %v3004 = vadd.f32 %v3003, 1.0
    %v3005 = vmul.f32 %v3004, 0.5
    %v3006 = vadd.f32 %v2917, %v2957
    %v3007 = vmul.f32 %v3006, 0.5
    %v3008 = vtanh.pop %v3007
    %v3009 = vadd.f32 %v3008, 1.0
    %v3010 = vmul.f32 %v3009, 0.5
    %v3011 = vmul.f32 %v3005, %v2996
    %v3012 = vadd.f32 %v2918, %v3011
    %v3013 = vtanh.pop %v3012
    %v3014 = vsub.f32 1.0, %v3010
    %v3015 = vmul.f32 %v3014, %v3013
    %v3016 = vmul.f32 %v3010, %v2914
    %v3017 = vadd.f32 %v3015, %v3016
    %v3018 = vsel %vm1633, %v3017, %v2914
    %3019 = vst [vmem:[%s1635] sm:$0xff] %v3018
    %v3020 = vld [vmem:[#allocation3] sm:$0xff]
    %v3021 = vld [vmem:[#allocation3 + $0x8] sm:$0xff]
    %v3022 = vld [vmem:[#allocation3 + $0x10] sm:$0xff]
    %v3023 = vld [vmem:[#allocation3 + $0x18] sm:$0xff]
    %v3024 = vld [vmem:[#allocation3 + $0x20] sm:$0xff]
    %v3025 = vld [vmem:[#allocation3 + $0x28] sm:$0xff]
    %v3026 = vld [vmem:[#allocation3 + $0x30] sm:$0xff]
    %v3027 = vld [vmem:[#allocation3 + $0x38] sm:$0xff]
    %v3028 = vpack.c.bf16 %v3021, %v3020
    %v3029 = vpack.c.bf16 %v3023, %v3022
    %v3030 = vpack.c.bf16 %v3025, %v3024
    %v3031 = vpack.c.bf16 %v3027, %v3026
    %v3032 = vld [vmem:[#allocation8] sm:$0xff]
    %v3033 = vld [vmem:[#allocation8 + $0x8] sm:$0xf]
    %v3034 = vld [vmem:[#allocation8 + $0xc] sm:$0xff]
    %v3035 = vld [vmem:[#allocation8 + $0x14] sm:$0xf]
    %v3036 = vld [vmem:[#allocation8 + $0x18] sm:$0xff]
    %v3037 = vld [vmem:[#allocation8 + $0x20] sm:$0xf]
    %v3038 = vld [vmem:[#allocation8 + $0x24] sm:$0xff]
    %v3039 = vld [vmem:[#allocation8 + $0x2c] sm:$0xf]
    %v3040 = vld [vmem:[#allocation8 + $0x30] sm:$0xff]
    %v3041 = vld [vmem:[#allocation8 + $0x38] sm:$0xf]
    %v3042 = vld [vmem:[#allocation8 + $0x3c] sm:$0xff]
    %v3043 = vld [vmem:[#allocation8 + $0x44] sm:$0xf]
    %v3044 = vld [vmem:[#allocation8 + $0x48] sm:$0xff]
    %v3045 = vld [vmem:[#allocation8 + $0x50] sm:$0xf]
    %v3046 = vld [vmem:[#allocation8 + $0x54] sm:$0xff]
    %v3047 = vld [vmem:[#allocation8 + $0x5c] sm:$0xf]
    %v3048 = vld [vmem:[#allocation8 + $0x60] sm:$0xff]
    %v3049 = vld [vmem:[#allocation8 + $0x68] sm:$0xf]
    %v3050 = vld [vmem:[#allocation8 + $0x6c] sm:$0xff]
    %v3051 = vld [vmem:[#allocation8 + $0x74] sm:$0xf]
    %v3052 = vld [vmem:[#allocation8 + $0x78] sm:$0xff]
    %v3053 = vld [vmem:[#allocation8 + $0x80] sm:$0xf]
    %v3054 = vld [vmem:[#allocation8 + $0x84] sm:$0xff]
    %v3055 = vld [vmem:[#allocation8 + $0x8c] sm:$0xf]
    %v3056 = vld [vmem:[#allocation8 + $0x90] sm:$0xff]
    %v3057 = vld [vmem:[#allocation8 + $0x98] sm:$0xf]
    %v3058 = vld [vmem:[#allocation8 + $0x9c] sm:$0xff]
    %v3059 = vld [vmem:[#allocation8 + $0xa4] sm:$0xf]
    %v3060 = vld [vmem:[#allocation8 + $0xa8] sm:$0xff]
    %v3061 = vld [vmem:[#allocation8 + $0xb0] sm:$0xf]
    %v3062 = vld [vmem:[#allocation8 + $0xb4] sm:$0xff]
    %v3063 = vld [vmem:[#allocation8 + $0xbc] sm:$0xf]
    %v3096 = vunpack.c.l.b16 %v3032
    %v3097 = vunpack.c.h.b16 %v3032
    %v3098 = vunpack.c.l.b16 %v3033
    %v3099 = vunpack.c.l.b16 %v3034
    %v3100 = vunpack.c.h.b16 %v3034
    %v3101 = vunpack.c.l.b16 %v3035
    %v3102 = vunpack.c.l.b16 %v3036
    %v3103 = vunpack.c.h.b16 %v3036
    %v3104 = vunpack.c.l.b16 %v3037
    %v3105 = vunpack.c.l.b16 %v3038
    %v3106 = vunpack.c.h.b16 %v3038
    %v3107 = vunpack.c.l.b16 %v3039
    %v3108 = vunpack.c.l.b16 %v3040
    %v3109 = vunpack.c.h.b16 %v3040
    %v3110 = vunpack.c.l.b16 %v3041
    %v3111 = vunpack.c.l.b16 %v3042
    %v3112 = vunpack.c.h.b16 %v3042
    %v3113 = vunpack.c.l.b16 %v3043
    %v3114 = vunpack.c.l.b16 %v3044
    %v3115 = vunpack.c.h.b16 %v3044
    %v3116 = vunpack.c.l.b16 %v3045
    %v3117 = vunpack.c.l.b16 %v3046
    %v3118 = vunpack.c.h.b16 %v3046
    %v3119 = vunpack.c.l.b16 %v3047
    %v3120 = vunpack.c.l.b16 %v3048
    %v3121 = vunpack.c.h.b16 %v3048
    %v3122 = vunpack.c.l.b16 %v3049
    %v3123 = vunpack.c.l.b16 %v3050
    %v3124 = vunpack.c.h.b16 %v3050
    %v3125 = vunpack.c.l.b16 %v3051
    %v3126 = vunpack.c.l.b16 %v3052
    %v3127 = vunpack.c.h.b16 %v3052
    %v3128 = vunpack.c.l.b16 %v3053
    %v3129 = vunpack.c.l.b16 %v3054
    %v3130 = vunpack.c.h.b16 %v3054
    %v3131 = vunpack.c.l.b16 %v3055
    %v3132 = vunpack.c.l.b16 %v3056
    %v3133 = vunpack.c.h.b16 %v3056
    %v3134 = vunpack.c.l.b16 %v3057
    %v3135 = vunpack.c.l.b16 %v3058
    %v3136 = vunpack.c.h.b16 %v3058
    %v3137 = vunpack.c.l.b16 %v3059
    %v3138 = vunpack.c.l.b16 %v3060
    %v3139 = vunpack.c.h.b16 %v3060
    %v3140 = vunpack.c.l.b16 %v3061
    %v3141 = vunpack.c.l.b16 %v3062
    %v3142 = vunpack.c.h.b16 %v3062
    %v3143 = vunpack.c.l.b16 %v3063
    %v3144 = vpack.c.b16 %v3099, %v3096
    %v3145 = vpack.c.b16 %v3100, %v3097
    %v3146 = vpack.c.b16 %v3101, %v3098
    %v3147 = vpack.c.b16 %v3105, %v3102
    %v3148 = vpack.c.b16 %v3106, %v3103
    %v3149 = vpack.c.b16 %v3107, %v3104
    %v3150 = vpack.c.b16 %v3111, %v3108
    %v3151 = vpack.c.b16 %v3112, %v3109
    %v3152 = vpack.c.b16 %v3113, %v3110
    %v3153 = vpack.c.b16 %v3117, %v3114
    %v3154 = vpack.c.b16 %v3118, %v3115
    %v3155 = vpack.c.b16 %v3119, %v3116
    %v3156 = vpack.c.b16 %v3123, %v3120
    %v3157 = vpack.c.b16 %v3124, %v3121
    %v3158 = vpack.c.b16 %v3125, %v3122
    %v3159 = vpack.c.b16 %v3129, %v3126
    %v3160 = vpack.c.b16 %v3130, %v3127
    %v3161 = vpack.c.b16 %v3131, %v3128
    %v3162 = vpack.c.b16 %v3135, %v3132
    %v3163 = vpack.c.b16 %v3136, %v3133
    %v3164 = vpack.c.b16 %v3137, %v3134
    %v3165 = vpack.c.b16 %v3141, %v3138
    %v3166 = vpack.c.b16 %v3142, %v3139
    %v3167 = vpack.c.b16 %v3143, %v3140
    %3192 = vmatprep.subr.bf16.mxu0 %v3145
    %3193 = vmatpush1.bf16.msra.mxu0 %v3144
    %3194 = vmatprep.subr.bf16.mxu0 %v3148
    %3195 = vmatpush1.bf16.msra.mxu0 %v3147
    %3196 = vmatprep.subr.bf16.mxu0 %v3151
    %3197 = vmatpush1.bf16.msra.mxu0 %v3150
    %3198 = vmatprep.subr.bf16.mxu0 %v3154
    %3199 = vmatpush1.bf16.msra.mxu0 %v3153
    %3200 = vmatprep.subr.bf16.mxu0 %v3157
    %3201 = vmatpush1.bf16.msra.mxu0 %v3156
    %3202 = vmatprep.subr.bf16.mxu0 %v3160
    %3203 = vmatpush1.bf16.msra.mxu0 %v3159
    %3204 = vmatprep.subr.bf16.mxu0 %v3163
    %3205 = vmatpush1.bf16.msra.mxu0 %v3162
    %3206 = vmatprep.subr.bf16.mxu0 %v3166
    %3207 = vmatpush1.bf16.msra.mxu0 %v3165
    %3208 = vmatprep.subr.bf16.mxu0 0
    %3209 = vmatpush1.bf16.msra.mxu0 0
    %3210 = vmatprep.subr.bf16.mxu0 0
    %3211 = vmatpush1.bf16.msra.mxu0 0
    %3212 = vmatprep.subr.bf16.mxu0 0
    %3213 = vmatpush1.bf16.msra.mxu0 0
    %3214 = vmatprep.subr.bf16.mxu0 0
    %3215 = vmatpush1.bf16.msra.mxu0 0
    %3216 = vmatprep.subr.bf16.mxu0 0
    %3217 = vmatpush1.bf16.msra.mxu0 0
    %3218 = vmatprep.subr.bf16.mxu0 0
    %3219 = vmatpush1.bf16.msra.mxu0 0
    %3220 = vmatprep.subr.bf16.mxu0 0
    %3221 = vmatpush1.bf16.msra.mxu0 0
    %3222 = vmatprep.subr.bf16.mxu0 0
    %3223 = vmatpush1.bf16.msra.mxu0 0
    %3224 = vmatprep.mubr.bf16.mxu0 0
    %3225 = vmatmul.mubr.bf16.gmra.mrb[0].mxu0 %v3028
    %v3226 = vpop.f32.mrb[0].mxu0
    %v3227 = vadd.f32 0.0, %v3226
    %v3228 = vpop.f32.mrb[0].mxu0
    %v3229 = vadd.f32 0.0, %v3228
    %v3230 = vpop.f32.mrb[0].mxu0
    %v3231 = vadd.f32 0.0, %v3230
    %v3232 = vpop.f32.mrb[0].mxu0
    %v3233 = vadd.f32 0.0, %v3232
    %3234 = vmatprep.mubr.bf16.mxu0 0
    %3235 = vmatmul.mubr.bf16.gmra.mrb[0].mxu0 %v3029
    %v3236 = vpop.f32.mrb[0].mxu0
    %v3237 = vadd.f32 0.0, %v3236
    %v3238 = vpop.f32.mrb[0].mxu0
    %v3239 = vadd.f32 0.0, %v3238
    %v3240 = vpop.f32.mrb[0].mxu0
    %v3241 = vadd.f32 0.0, %v3240
    %v3242 = vpop.f32.mrb[0].mxu0
    %v3243 = vadd.f32 0.0, %v3242
    %3244 = vmatprep.mubr.bf16.mxu0 0
    %3245 = vmatmul.mubr.bf16.gmra.mrb[0].mxu0 %v3030
    %v3246 = vpop.f32.mrb[0].mxu0
    %v3247 = vadd.f32 0.0, %v3246
    %v3248 = vpop.f32.mrb[0].mxu0
    %v3249 = vadd.f32 0.0, %v3248
    %v3250 = vpop.f32.mrb[0].mxu0
    %v3251 = vadd.f32 0.0, %v3250
    %v3252 = vpop.f32.mrb[0].mxu0
    %v3253 = vadd.f32 0.0, %v3252
    %3254 = vmatprep.mubr.bf16.mxu0 0
    %3255 = vmatmul.mubr.bf16.gmra.mrb[0].mxu0 %v3031
    %v3256 = vpop.f32.mrb[0].mxu0
    %v3257 = vadd.f32 0.0, %v3256
    %v3258 = vpop.f32.mrb[0].mxu0
    %v3259 = vadd.f32 0.0, %v3258
    %v3260 = vpop.f32.mrb[0].mxu0
    %v3261 = vadd.f32 0.0, %v3260
    %v3262 = vpop.f32.mrb[0].mxu0
    %v3263 = vadd.f32 0.0, %v3262
    %3264 = vdwg.mxu0
    %3265 = vmatprep.subr.bf16.mxu0 0
    %3266 = vmatpush1.bf16.msra.mxu0 %v3146
    %3267 = vmatprep.subr.bf16.mxu0 0
    %3268 = vmatpush1.bf16.msra.mxu0 %v3149
    %3269 = vmatprep.subr.bf16.mxu0 0
    %3270 = vmatpush1.bf16.msra.mxu0 %v3152
    %3271 = vmatprep.subr.bf16.mxu0 0
    %3272 = vmatpush1.bf16.msra.mxu0 %v3155
    %3273 = vmatprep.subr.bf16.mxu0 0
    %3274 = vmatpush1.bf16.msra.mxu0 %v3158
    %3275 = vmatprep.subr.bf16.mxu0 0
    %3276 = vmatpush1.bf16.msra.mxu0 %v3161
    %3277 = vmatprep.subr.bf16.mxu0 0
    %3278 = vmatpush1.bf16.msra.mxu0 %v3164
    %3279 = vmatprep.subr.bf16.mxu0 0
    %3280 = vmatpush1.bf16.msra.mxu0 %v3167
    %3281 = vmatprep.subr.bf16.mxu0 0
    %3282 = vmatpush1.bf16.msra.mxu0 0
    %3283 = vmatprep.subr.bf16.mxu0 0
    %3284 = vmatpush1.bf16.msra.mxu0 0
    %3285 = vmatprep.subr.bf16.mxu0 0
    %3286 = vmatpush1.bf16.msra.mxu0 0
    %3287 = vmatprep.subr.bf16.mxu0 0
    %3288 = vmatpush1.bf16.msra.mxu0 0
    %3289 = vmatprep.subr.bf16.mxu0 0
    %3290 = vmatpush1.bf16.msra.mxu0 0
    %3291 = vmatprep.subr.bf16.mxu0 0
    %3292 = vmatpush1.bf16.msra.mxu0 0
    %3293 = vmatprep.subr.bf16.mxu0 0
    %3294 = vmatpush1.bf16.msra.mxu0 0
    %3295 = vmatprep.subr.bf16.mxu0 0
    %3296 = vmatpush1.bf16.msra.mxu0 0
    %3297 = vmatprep.mubr.bf16.mxu0 0
    %3298 = vmatmul.mubr.bf16.gmra.mrb[0].mxu0 %v3028
    %v3299 = vpop.f32.mrb[0].mxu0
    %v3300 = vadd.f32 0.0, %v3299
    %v3301 = vpop.f32.mrb[0].mxu0
    %v3302 = vpop.f32.mrb[0].mxu0
    %v3303 = vadd.f32 0.0, %v3302
    %v3304 = vpop.f32.mrb[0].mxu0
    %3305 = vmatprep.mubr.bf16.mxu0 0
    %3306 = vmatmul.mubr.bf16.gmra.mrb[0].mxu0 %v3029
    %v3307 = vpop.f32.mrb[0].mxu0
    %v3308 = vadd.f32 0.0, %v3307
    %v3309 = vpop.f32.mrb[0].mxu0
    %v3310 = vpop.f32.mrb[0].mxu0
    %v3311 = vadd.f32 0.0, %v3310
    %v3312 = vpop.f32.mrb[0].mxu0
    %3313 = vmatprep.mubr.bf16.mxu0 0
    %3314 = vmatmul.mubr.bf16.gmra.mrb[0].mxu0 %v3030
    %v3315 = vpop.f32.mrb[0].mxu0
    %v3316 = vadd.f32 0.0, %v3315
    %v3317 = vpop.f32.mrb[0].mxu0
    %v3318 = vpop.f32.mrb[0].mxu0
    %v3319 = vadd.f32 0.0, %v3318
    %v3320 = vpop.f32.mrb[0].mxu0
    %3321 = vmatprep.mubr.bf16.mxu0 0
    %3322 = vmatmul.mubr.bf16.gmra.mrb[0].mxu0 %v3031
    %v3323 = vpop.f32.mrb[0].mxu0
    %v3324 = vadd.f32 0.0, %v3323
    %v3325 = vpop.f32.mrb[0].mxu0
    %v3326 = vpop.f32.mrb[0].mxu0
    %v3327 = vadd.f32 0.0, %v3326
    %v3328 = vpop.f32.mrb[0].mxu0
    %3329 = vdwg.mxu0
    %v3330 = vld [vmem:[%s11] sm:$0x7]
    %v3332 = vlaneseq
    %v3333 = vshrl.u32 %v3332, 7
    %v3334 = vsub.s32 0, %v3333
    %v3335 = vrot.slane %v3330, %v3334
    %v3336 = vlaneseq
    %v3337 = vshrl.u32 %v3336, 7
    %v3338 = vsub.s32 1, %v3337
    %v3339 = vrot.slane %v3330, %v3338
    %v3340 = vlaneseq
    %v3341 = vshrl.u32 %v3340, 7
    %v3342 = vsub.s32 2, %v3341
    %v3343 = vrot.slane %v3330, %v3342
    %v3347 = vadd.f32 %v3227, %v3335
    %v3348 = vadd.f32 %v3229, %v3339
    %v3349 = vadd.f32 %v3300, %v3343
    %v3350 = vadd.f32 %v3231, %v3335
    %v3351 = vadd.f32 %v3233, %v3339
    %v3352 = vadd.f32 %v3303, %v3343
    %v3353 = vadd.f32 %v3237, %v3335
    %v3354 = vadd.f32 %v3239, %v3339
    %v3355 = vadd.f32 %v3308, %v3343
    %v3356 = vadd.f32 %v3241, %v3335
    %v3357 = vadd.f32 %v3243, %v3339
    %v3358 = vadd.f32 %v3311, %v3343
    %v3359 = vadd.f32 %v3247, %v3335
    %v3360 = vadd.f32 %v3249, %v3339
    %v3361 = vadd.f32 %v3316, %v3343
    %v3362 = vadd.f32 %v3251, %v3335
    %v3363 = vadd.f32 %v3253, %v3339
    %v3364 = vadd.f32 %v3319, %v3343
    %v3365 = vadd.f32 %v3257, %v3335
    %v3366 = vadd.f32 %v3259, %v3339
    %v3367 = vadd.f32 %v3324, %v3343
    %v3368 = vadd.f32 %v3261, %v3335
    %v3369 = vadd.f32 %v3263, %v3339
    %v3370 = vadd.f32 %v3327, %v3343
    %3371 = vst [vmem:[#allocation2] sm:$0xff] %v3347
    %3372 = vst [vmem:[#allocation2 + $0x8] sm:$0xff] %v3348
    %3373 = vst [vmem:[#allocation2 + $0x10] sm:$0xff] %v3349
    %3374 = vst [vmem:[#allocation2 + $0x18] sm:$0xff] %v3350
    %3375 = vst [vmem:[#allocation2 + $0x20] sm:$0xff] %v3351
    %3376 = vst [vmem:[#allocation2 + $0x28] sm:$0xff] %v3352
    %3377 = vst [vmem:[#allocation2 + $0x30] sm:$0xff] %v3353
    %3378 = vst [vmem:[#allocation2 + $0x38] sm:$0xff] %v3354
    %3379 = vst [vmem:[#allocation2 + $0x40] sm:$0xff] %v3355
    %3380 = vst [vmem:[#allocation2 + $0x48] sm:$0xff] %v3356
    %3381 = vst [vmem:[#allocation2 + $0x50] sm:$0xff] %v3357
    %3382 = vst [vmem:[#allocation2 + $0x58] sm:$0xff] %v3358
    %3383 = vst [vmem:[#allocation2 + $0x60] sm:$0xff] %v3359
    %3384 = vst [vmem:[#allocation2 + $0x68] sm:$0xff] %v3360
    %3385 = vst [vmem:[#allocation2 + $0x70] sm:$0xff] %v3361
    %3386 = vst [vmem:[#allocation2 + $0x78] sm:$0xff] %v3362
    %3387 = vst [vmem:[#allocation2 + $0x80] sm:$0xff] %v3363
    %3388 = vst [vmem:[#allocation2 + $0x88] sm:$0xff] %v3364
    %3389 = vst [vmem:[#allocation2 + $0x90] sm:$0xff] %v3365
    %3390 = vst [vmem:[#allocation2 + $0x98] sm:$0xff] %v3366
    %3391 = vst [vmem:[#allocation2 + $0xa0] sm:$0xff] %v3367
    %3392 = vst [vmem:[#allocation2 + $0xa8] sm:$0xff] %v3368
    %3393 = vst [vmem:[#allocation2 + $0xb0] sm:$0xff] %v3369
    %3394 = vst [vmem:[#allocation2 + $0xb8] sm:$0xff] %v3370
    %v3395 = vld [vmem:[#allocation9] sm:$0xff]
    %v3396 = vld [vmem:[#allocation9 + $0x8] sm:$0xf]
    %v3397 = vld [vmem:[#allocation9 + $0xc] sm:$0xff]
    %v3398 = vld [vmem:[#allocation9 + $0x14] sm:$0xf]
    %v3399 = vld [vmem:[#allocation9 + $0x18] sm:$0xff]
    %v3400 = vld [vmem:[#allocation9 + $0x20] sm:$0xf]
    %v3401 = vld [vmem:[#allocation9 + $0x24] sm:$0xff]
    %v3402 = vld [vmem:[#allocation9 + $0x2c] sm:$0xf]
    %v3403 = vld [vmem:[#allocation9 + $0x30] sm:$0xff]
    %v3404 = vld [vmem:[#allocation9 + $0x38] sm:$0xf]
    %v3405 = vld [vmem:[#allocation9 + $0x3c] sm:$0xff]
    %v3406 = vld [vmem:[#allocation9 + $0x44] sm:$0xf]
    %v3407 = vld [vmem:[#allocation9 + $0x48] sm:$0xff]
    %v3408 = vld [vmem:[#allocation9 + $0x50] sm:$0xf]
    %v3409 = vld [vmem:[#allocation9 + $0x54] sm:$0xff]
    %v3410 = vld [vmem:[#allocation9 + $0x5c] sm:$0xf]
    %v3411 = vld [vmem:[#allocation9 + $0x60] sm:$0xff]
    %v3412 = vld [vmem:[#allocation9 + $0x68] sm:$0xf]
    %v3413 = vld [vmem:[#allocation9 + $0x6c] sm:$0xff]
    %v3414 = vld [vmem:[#allocation9 + $0x74] sm:$0xf]
    %v3415 = vld [vmem:[#allocation9 + $0x78] sm:$0xff]
    %v3416 = vld [vmem:[#allocation9 + $0x80] sm:$0xf]
    %v3417 = vld [vmem:[#allocation9 + $0x84] sm:$0xff]
    %v3418 = vld [vmem:[#allocation9 + $0x8c] sm:$0xf]
    %v3419 = vld [vmem:[#allocation9 + $0x90] sm:$0xff]
    %v3420 = vld [vmem:[#allocation9 + $0x98] sm:$0xf]
    %v3421 = vld [vmem:[#allocation9 + $0x9c] sm:$0xff]
    %v3422 = vld [vmem:[#allocation9 + $0xa4] sm:$0xf]
    %v3423 = vld [vmem:[#allocation9 + $0xa8] sm:$0xff]
    %v3424 = vld [vmem:[#allocation9 + $0xb0] sm:$0xf]
    %v3425 = vld [vmem:[#allocation9 + $0xb4] sm:$0xff]
    %v3426 = vld [vmem:[#allocation9 + $0xbc] sm:$0xf]
    %v3427 = vld [vmem:[%s13] sm:$0x7]
    %v3428 = vld [vmem:[#allocation2] sm:$0xff]
    %v3429 = vld [vmem:[#allocation2 + $0x8] sm:$0xff]
    %v3430 = vld [vmem:[#allocation2 + $0x10] sm:$0xff]
    %v3432 = vlaneseq
    %v3433 = vshrl.u32 %v3432, 7
    %v3434 = vsub.s32 0, %v3433
    %v3435 = vrot.slane %v3427, %v3434
    %v3436 = vlaneseq
    %v3437 = vshrl.u32 %v3436, 7
    %v3438 = vsub.s32 1, %v3437
    %v3439 = vrot.slane %v3427, %v3438
    %v3440 = vlaneseq
    %v3441 = vshrl.u32 %v3440, 7
    %v3442 = vsub.s32 2, %v3441
    %v3443 = vrot.slane %v3427, %v3442
    %v3479 = vunpack.c.l.b16 %v3395
    %v3480 = vunpack.c.h.b16 %v3395
    %v3481 = vunpack.c.l.b16 %v3396
    %v3482 = vunpack.c.l.b16 %v3397
    %v3483 = vunpack.c.h.b16 %v3397
    %v3484 = vunpack.c.l.b16 %v3398
    %v3485 = vunpack.c.l.b16 %v3399
    %v3486 = vunpack.c.h.b16 %v3399
    %v3487 = vunpack.c.l.b16 %v3400
    %v3488 = vunpack.c.l.b16 %v3401
    %v3489 = vunpack.c.h.b16 %v3401
    %v3490 = vunpack.c.l.b16 %v3402
    %v3491 = vunpack.c.l.b16 %v3403
    %v3492 = vunpack.c.h.b16 %v3403
    %v3493 = vunpack.c.l.b16 %v3404
    %v3494 = vunpack.c.l.b16 %v3405
    %v3495 = vunpack.c.h.b16 %v3405
    %v3496 = vunpack.c.l.b16 %v3406
    %v3497 = vunpack.c.l.b16 %v3407
    %v3498 = vunpack.c.h.b16 %v3407
    %v3499 = vunpack.c.l.b16 %v3408
    %v3500 = vunpack.c.l.b16 %v3409
    %v3501 = vunpack.c.h.b16 %v3409
    %v3502 = vunpack.c.l.b16 %v3410
    %v3503 = vunpack.c.l.b16 %v3411
    %v3504 = vunpack.c.h.b16 %v3411
    %v3505 = vunpack.c.l.b16 %v3412
    %v3506 = vunpack.c.l.b16 %v3413
    %v3507 = vunpack.c.h.b16 %v3413
    %v3508 = vunpack.c.l.b16 %v3414
    %v3509 = vunpack.c.l.b16 %v3415
    %v3510 = vunpack.c.h.b16 %v3415
    %v3511 = vunpack.c.l.b16 %v3416
    %v3512 = vunpack.c.l.b16 %v3417
    %v3513 = vunpack.c.h.b16 %v3417
    %v3514 = vunpack.c.l.b16 %v3418
    %v3515 = vunpack.c.l.b16 %v3419
    %v3516 = vunpack.c.h.b16 %v3419
    %v3517 = vunpack.c.l.b16 %v3420
    %v3518 = vunpack.c.l.b16 %v3421
    %v3519 = vunpack.c.h.b16 %v3421
    %v3520 = vunpack.c.l.b16 %v3422
    %v3521 = vunpack.c.l.b16 %v3423
    %v3522 = vunpack.c.h.b16 %v3423
    %v3523 = vunpack.c.l.b16 %v3424
    %v3524 = vunpack.c.l.b16 %v3425
    %v3525 = vunpack.c.h.b16 %v3425
    %v3526 = vunpack.c.l.b16 %v3426
    %v3527 = vpack.c.b16 %v3482, %v3479
    %v3528 = vpack.c.b16 %v3483, %v3480
    %v3529 = vpack.c.b16 %v3484, %v3481
    %v3530 = vpack.c.b16 %v3488, %v3485
    %v3531 = vpack.c.b16 %v3489, %v3486
    %v3532 = vpack.c.b16 %v3490, %v3487
    %v3533 = vpack.c.b16 %v3494, %v3491
    %v3534 = vpack.c.b16 %v3495, %v3492
    %v3535 = vpack.c.b16 %v3496, %v3493
    %v3536 = vpack.c.b16 %v3500, %v3497
    %v3537 = vpack.c.b16 %v3501, %v3498
    %v3538 = vpack.c.b16 %v3502, %v3499
    %v3539 = vpack.c.b16 %v3506, %v3503
    %v3540 = vpack.c.b16 %v3507, %v3504
    %v3541 = vpack.c.b16 %v3508, %v3505
    %v3542 = vpack.c.b16 %v3512, %v3509
    %v3543 = vpack.c.b16 %v3513, %v3510
    %v3544 = vpack.c.b16 %v3514, %v3511
    %v3545 = vpack.c.b16 %v3518, %v3515
    %v3546 = vpack.c.b16 %v3519, %v3516
    %v3547 = vpack.c.b16 %v3520, %v3517
    %v3548 = vpack.c.b16 %v3524, %v3521
    %v3549 = vpack.c.b16 %v3525, %v3522
    %v3550 = vpack.c.b16 %v3526, %v3523
    %3575 = vmatprep.subr.bf16.mxu0 %v3528
    %3576 = vmatpush1.bf16.msra.mxu0 %v3527
    %3577 = vmatprep.subr.bf16.mxu0 %v3531
    %3578 = vmatpush1.bf16.msra.mxu0 %v3530
    %3579 = vmatprep.subr.bf16.mxu0 %v3534
    %3580 = vmatpush1.bf16.msra.mxu0 %v3533
    %3581 = vmatprep.subr.bf16.mxu0 %v3537
    %3582 = vmatpush1.bf16.msra.mxu0 %v3536
    %3583 = vmatprep.subr.bf16.mxu0 %v3540
    %3584 = vmatpush1.bf16.msra.mxu0 %v3539
    %3585 = vmatprep.subr.bf16.mxu0 %v3543
    %3586 = vmatpush1.bf16.msra.mxu0 %v3542
    %3587 = vmatprep.subr.bf16.mxu0 %v3546
    %3588 = vmatpush1.bf16.msra.mxu0 %v3545
    %3589 = vmatprep.subr.bf16.mxu0 %v3549
    %3590 = vmatpush1.bf16.msra.mxu0 %v3548
    %3591 = vmatprep.subr.bf16.mxu0 0
    %3592 = vmatpush1.bf16.msra.mxu0 0
    %3593 = vmatprep.subr.bf16.mxu0 0
    %3594 = vmatpush1.bf16.msra.mxu0 0
    %3595 = vmatprep.subr.bf16.mxu0 0
    %3596 = vmatpush1.bf16.msra.mxu0 0
    %3597 = vmatprep.subr.bf16.mxu0 0
    %3598 = vmatpush1.bf16.msra.mxu0 0
    %3599 = vmatprep.subr.bf16.mxu0 0
    %3600 = vmatpush1.bf16.msra.mxu0 0
    %3601 = vmatprep.subr.bf16.mxu0 0
    %3602 = vmatpush1.bf16.msra.mxu0 0
    %3603 = vmatprep.subr.bf16.mxu0 0
    %3604 = vmatpush1.bf16.msra.mxu0 0
    %3605 = vmatprep.subr.bf16.mxu0 0
    %3606 = vmatpush1.bf16.msra.mxu0 0
    %3607 = vmatprep.mubr.bf16.mxu0 0
    %3608 = vmatmul.mubr.bf16.gmra.mrb[0].mxu0 0
    %v3609 = vpop.f32.mrb[0].mxu0
    %v3610 = vadd.f32 %v3435, %v3609
    %v3611 = vpop.f32.mrb[0].mxu0
    %v3612 = vadd.f32 %v3439, %v3611
    %v3613 = vpop.f32.mrb[0].mxu0
    %v3614 = vpop.f32.mrb[0].mxu0
    %3615 = vdwg.mxu0
    %3616 = vmatprep.subr.bf16.mxu0 0
    %3617 = vmatpush1.bf16.msra.mxu0 %v3529
    %3618 = vmatprep.subr.bf16.mxu0 0
    %3619 = vmatpush1.bf16.msra.mxu0 %v3532
    %3620 = vmatprep.subr.bf16.mxu0 0
    %3621 = vmatpush1.bf16.msra.mxu0 %v3535
    %3622 = vmatprep.subr.bf16.mxu0 0
    %3623 = vmatpush1.bf16.msra.mxu0 %v3538
    %3624 = vmatprep.subr.bf16.mxu0 0
    %3625 = vmatpush1.bf16.msra.mxu0 %v3541
    %3626 = vmatprep.subr.bf16.mxu0 0
    %3627 = vmatpush1.bf16.msra.mxu0 %v3544
    %3628 = vmatprep.subr.bf16.mxu0 0
    %3629 = vmatpush1.bf16.msra.mxu0 %v3547
    %3630 = vmatprep.subr.bf16.mxu0 0
    %3631 = vmatpush1.bf16.msra.mxu0 %v3550
    %3632 = vmatprep.subr.bf16.mxu0 0
    %3633 = vmatpush1.bf16.msra.mxu0 0
    %3634 = vmatprep.subr.bf16.mxu0 0
    %3635 = vmatpush1.bf16.msra.mxu0 0
    %3636 = vmatprep.subr.bf16.mxu0 0
    %3637 = vmatpush1.bf16.msra.mxu0 0
    %3638 = vmatprep.subr.bf16.mxu0 0
    %3639 = vmatpush1.bf16.msra.mxu0 0
    %3640 = vmatprep.subr.bf16.mxu0 0
    %3641 = vmatpush1.bf16.msra.mxu0 0
    %3642 = vmatprep.subr.bf16.mxu0 0
    %3643 = vmatpush1.bf16.msra.mxu0 0
    %3644 = vmatprep.subr.bf16.mxu0 0
    %3645 = vmatpush1.bf16.msra.mxu0 0
    %3646 = vmatprep.subr.bf16.mxu0 0
    %3647 = vmatpush1.bf16.msra.mxu0 0
    %3648 = vmatprep.mubr.bf16.mxu0 0
    %3649 = vmatmul.mubr.bf16.gmra.mrb[0].mxu0 0
    %v3650 = vpop.f32.mrb[0].mxu0
    %v3651 = vadd.f32 %v3443, %v3650
    %v3652 = vpop.f32.mrb[0].mxu0
    %v3653 = vpop.f32.mrb[0].mxu0
    %v3654 = vpop.f32.mrb[0].mxu0
    %3655 = vdwg.mxu0
    %v3656 = vadd.f32 %v3428, %v3610
    %v3657 = vmul.f32 %v3656, 0.5
    %v3658 = vtanh.pop %v3657
    %v3659 = vadd.f32 %v3658, 1.0
    %v3660 = vmul.f32 %v3659, 0.5
    %v3661 = vadd.f32 %v3429, %v3612
    %v3662 = vmul.f32 %v3661, 0.5
    %v3663 = vtanh.pop %v3662
    %v3664 = vadd.f32 %v3663, 1.0
    %v3665 = vmul.f32 %v3664, 0.5
    %v3666 = vmul.f32 %v3660, %v3651
    %v3667 = vadd.f32 %v3430, %v3666
    %v3668 = vtanh.pop %v3667
    %v3669 = vsub.f32 1.0, %v3665
    %v3670 = vmul.f32 %v3669, %v3668
    %v3671 = vmul.f32 %v3665, 0.0
    %v3672 = vadd.f32 %v3670, %v3671
    %v3673 = vsel %vm850, %v3672, 0.0
    %v3674 = vld [vmem:[%s853] sm:$0xff]
    %v3675 = vld [vmem:[%s853 + $0x8] sm:$0xff]
    %v3676 = vld [vmem:[%s853 + $0x10] sm:$0xff]
    %v3677 = vpack.c.bf16 %v3673, %v3673
    %3678 = vmatprep.subr.bf16.mxu0 %v3528
    %3679 = vmatpush1.bf16.msra.mxu0 %v3527
    %3680 = vmatprep.subr.bf16.mxu0 %v3531
    %3681 = vmatpush1.bf16.msra.mxu0 %v3530
    %3682 = vmatprep.subr.bf16.mxu0 %v3534
    %3683 = vmatpush1.bf16.msra.mxu0 %v3533
    %3684 = vmatprep.subr.bf16.mxu0 %v3537
    %3685 = vmatpush1.bf16.msra.mxu0 %v3536
    %3686 = vmatprep.subr.bf16.mxu0 %v3540
    %3687 = vmatpush1.bf16.msra.mxu0 %v3539
    %3688 = vmatprep.subr.bf16.mxu0 %v3543
    %3689 = vmatpush1.bf16.msra.mxu0 %v3542
    %3690 = vmatprep.subr.bf16.mxu0 %v3546
    %3691 = vmatpush1.bf16.msra.mxu0 %v3545
    %3692 = vmatprep.subr.bf16.mxu0 %v3549
    %3693 = vmatpush1.bf16.msra.mxu0 %v3548
    %3694 = vmatprep.subr.bf16.mxu0 0
    %3695 = vmatpush1.bf16.msra.mxu0 0
    %3696 = vmatprep.subr.bf16.mxu0 0
    %3697 = vmatpush1.bf16.msra.mxu0 0
    %3698 = vmatprep.subr.bf16.mxu0 0
    %3699 = vmatpush1.bf16.msra.mxu0 0
    %3700 = vmatprep.subr.bf16.mxu0 0
    %3701 = vmatpush1.bf16.msra.mxu0 0
    %3702 = vmatprep.subr.bf16.mxu0 0
    %3703 = vmatpush1.bf16.msra.mxu0 0
    %3704 = vmatprep.subr.bf16.mxu0 0
    %3705 = vmatpush1.bf16.msra.mxu0 0
    %3706 = vmatprep.subr.bf16.mxu0 0
    %3707 = vmatpush1.bf16.msra.mxu0 0
    %3708 = vmatprep.subr.bf16.mxu0 0
    %3709 = vmatpush1.bf16.msra.mxu0 0
    %3710 = vmatprep.mubr.bf16.mxu0 0
    %3711 = vmatmul.mubr.bf16.gmra.mrb[0].mxu0 %v3677
    %v3712 = vpop.f32.mrb[0].mxu0
    %v3713 = vadd.f32 %v3435, %v3712
    %v3714 = vpop.f32.mrb[0].mxu0
    %v3715 = vadd.f32 %v3439, %v3714
    %v3716 = vpop.f32.mrb[0].mxu0
    %v3717 = vpop.f32.mrb[0].mxu0
    %3718 = vdwg.mxu0
    %3719 = vmatprep.subr.bf16.mxu0 0
    %3720 = vmatpush1.bf16.msra.mxu0 %v3529
    %3721 = vmatprep.subr.bf16.mxu0 0
    %3722 = vmatpush1.bf16.msra.mxu0 %v3532
    %3723 = vmatprep.subr.bf16.mxu0 0
    %3724 = vmatpush1.bf16.msra.mxu0 %v3535
    %3725 = vmatprep.subr.bf16.mxu0 0
    %3726 = vmatpush1.bf16.msra.mxu0 %v3538
    %3727 = vmatprep.subr.bf16.mxu0 0
    %3728 = vmatpush1.bf16.msra.mxu0 %v3541
    %3729 = vmatprep.subr.bf16.mxu0 0
    %3730 = vmatpush1.bf16.msra.mxu0 %v3544
    %3731 = vmatprep.subr.bf16.mxu0 0
    %3732 = vmatpush1.bf16.msra.mxu0 %v3547
    %3733 = vmatprep.subr.bf16.mxu0 0
    %3734 = vmatpush1.bf16.msra.mxu0 %v3550
    %3735 = vmatprep.subr.bf16.mxu0 0
    %3736 = vmatpush1.bf16.msra.mxu0 0
    %3737 = vmatprep.subr.bf16.mxu0 0
    %3738 = vmatpush1.bf16.msra.mxu0 0
    %3739 = vmatprep.subr.bf16.mxu0 0
    %3740 = vmatpush1.bf16.msra.mxu0 0
    %3741 = vmatprep.subr.bf16.mxu0 0
    %3742 = vmatpush1.bf16.msra.mxu0 0
    %3743 = vmatprep.subr.bf16.mxu0 0
    %3744 = vmatpush1.bf16.msra.mxu0 0
    %3745 = vmatprep.subr.bf16.mxu0 0
    %3746 = vmatpush1.bf16.msra.mxu0 0
    %3747 = vmatprep.subr.bf16.mxu0 0
    %3748 = vmatpush1.bf16.msra.mxu0 0
    %3749 = vmatprep.subr.bf16.mxu0 0
    %3750 = vmatpush1.bf16.msra.mxu0 0
    %3751 = vmatprep.mubr.bf16.mxu0 0
    %3752 = vmatmul.mubr.bf16.gmra.mrb[0].mxu0 %v3677
    %v3753 = vpop.f32.mrb[0].mxu0
    %v3754 = vadd.f32 %v3443, %v3753
    %v3755 = vpop.f32.mrb[0].mxu0
    %v3756 = vpop.f32.mrb[0].mxu0
    %v3757 = vpop.f32.mrb[0].mxu0
    %3758 = vdwg.mxu0
    %v3759 = vadd.f32 %v3674, %v3713
    %v3760 = vmul.f32 %v3759, 0.5
    %v3761 = vtanh.pop %v3760
    %v3762 = vadd.f32 %v3761, 1.0
    %v3763 = vmul.f32 %v3762, 0.5
    %v3764 = vadd.f32 %v3675, %v3715
    %v3765 = vmul.f32 %v3764, 0.5
    %v3766 = vtanh.pop %v3765
    %v3767 = vadd.f32 %v3766, 1.0
    %v3768 = vmul.f32 %v3767, 0.5
    %v3769 = vmul.f32 %v3763, %v3754
    %v3770 = vadd.f32 %v3676, %v3769
    %v3771 = vtanh.pop %v3770
    %v3772 = vsub.f32 1.0, %v3768
    %v3773 = vmul.f32 %v3772, %v3771
    %v3774 = vmul.f32 %v3768, %v3673
    %v3775 = vadd.f32 %v3773, %v3774
    %v3776 = vsel %vm961, %v3775, %v3673
    %v3777 = vld [vmem:[%s965] sm:$0xff]
    %v3778 = vld [vmem:[%s965 + $0x8] sm:$0xff]
    %v3779 = vld [vmem:[%s965 + $0x10] sm:$0xff]
    %v3780 = vpack.c.bf16 %v3776, %v3776
    %3781 = vmatprep.subr.bf16.mxu0 %v3528
    %3782 = vmatpush1.bf16.msra.mxu0 %v3527
    %3783 = vmatprep.subr.bf16.mxu0 %v3531
    %3784 = vmatpush1.bf16.msra.mxu0 %v3530
    %3785 = vmatprep.subr.bf16.mxu0 %v3534
    %3786 = vmatpush1.bf16.msra.mxu0 %v3533
    %3787 = vmatprep.subr.bf16.mxu0 %v3537
    %3788 = vmatpush1.bf16.msra.mxu0 %v3536
    %3789 = vmatprep.subr.bf16.mxu0 %v3540
    %3790 = vmatpush1.bf16.msra.mxu0 %v3539
    %3791 = vmatprep.subr.bf16.mxu0 %v3543
    %3792 = vmatpush1.bf16.msra.mxu0 %v3542
    %3793 = vmatprep.subr.bf16.mxu0 %v3546
    %3794 = vmatpush1.bf16.msra.mxu0 %v3545
    %3795 = vmatprep.subr.bf16.mxu0 %v3549
    %3796 = vmatpush1.bf16.msra.mxu0 %v3548
    %3797 = vmatprep.subr.bf16.mxu0 0
    %3798 = vmatpush1.bf16.msra.mxu0 0
    %3799 = vmatprep.subr.bf16.mxu0 0
    %3800 = vmatpush1.bf16.msra.mxu0 0
    %3801 = vmatprep.subr.bf16.mxu0 0
    %3802 = vmatpush1.bf16.msra.mxu0 0
    %3803 = vmatprep.subr.bf16.mxu0 0
    %3804 = vmatpush1.bf16.msra.mxu0 0
    %3805 = vmatprep.subr.bf16.mxu0 0
    %3806 = vmatpush1.bf16.msra.mxu0 0
    %3807 = vmatprep.subr.bf16.mxu0 0
    %3808 = vmatpush1.bf16.msra.mxu0 0
    %3809 = vmatprep.subr.bf16.mxu0 0
    %3810 = vmatpush1.bf16.msra.mxu0 0
    %3811 = vmatprep.subr.bf16.mxu0 0
    %3812 = vmatpush1.bf16.msra.mxu0 0
    %3813 = vmatprep.mubr.bf16.mxu0 0
    %3814 = vmatmul.mubr.bf16.gmra.mrb[0].mxu0 %v3780
    %v3815 = vpop.f32.mrb[0].mxu0
    %v3816 = vadd.f32 %v3435, %v3815
    %v3817 = vpop.f32.mrb[0].mxu0
    %v3818 = vadd.f32 %v3439, %v3817
    %v3819 = vpop.f32.mrb[0].mxu0
    %v3820 = vpop.f32.mrb[0].mxu0
    %3821 = vdwg.mxu0
    %3822 = vmatprep.subr.bf16.mxu0 0
    %3823 = vmatpush1.bf16.msra.mxu0 %v3529
    %3824 = vmatprep.subr.bf16.mxu0 0
    %3825 = vmatpush1.bf16.msra.mxu0 %v3532
    %3826 = vmatprep.subr.bf16.mxu0 0
    %3827 = vmatpush1.bf16.msra.mxu0 %v3535
    %3828 = vmatprep.subr.bf16.mxu0 0
    %3829 = vmatpush1.bf16.msra.mxu0 %v3538
    %3830 = vmatprep.subr.bf16.mxu0 0
    %3831 = vmatpush1.bf16.msra.mxu0 %v3541
    %3832 = vmatprep.subr.bf16.mxu0 0
    %3833 = vmatpush1.bf16.msra.mxu0 %v3544
    %3834 = vmatprep.subr.bf16.mxu0 0
    %3835 = vmatpush1.bf16.msra.mxu0 %v3547
    %3836 = vmatprep.subr.bf16.mxu0 0
    %3837 = vmatpush1.bf16.msra.mxu0 %v3550
    %3838 = vmatprep.subr.bf16.mxu0 0
    %3839 = vmatpush1.bf16.msra.mxu0 0
    %3840 = vmatprep.subr.bf16.mxu0 0
    %3841 = vmatpush1.bf16.msra.mxu0 0
    %3842 = vmatprep.subr.bf16.mxu0 0
    %3843 = vmatpush1.bf16.msra.mxu0 0
    %3844 = vmatprep.subr.bf16.mxu0 0
    %3845 = vmatpush1.bf16.msra.mxu0 0
    %3846 = vmatprep.subr.bf16.mxu0 0
    %3847 = vmatpush1.bf16.msra.mxu0 0
    %3848 = vmatprep.subr.bf16.mxu0 0
    %3849 = vmatpush1.bf16.msra.mxu0 0
    %3850 = vmatprep.subr.bf16.mxu0 0
    %3851 = vmatpush1.bf16.msra.mxu0 0
    %3852 = vmatprep.subr.bf16.mxu0 0
    %3853 = vmatpush1.bf16.msra.mxu0 0
    %3854 = vmatprep.mubr.bf16.mxu0 0
    %3855 = vmatmul.mubr.bf16.gmra.mrb[0].mxu0 %v3780
    %v3856 = vpop.f32.mrb[0].mxu0
    %v3857 = vadd.f32 %v3443, %v3856
    %v3858 = vpop.f32.mrb[0].mxu0
    %v3859 = vpop.f32.mrb[0].mxu0
    %v3860 = vpop.f32.mrb[0].mxu0
    %3861 = vdwg.mxu0
    %v3862 = vadd.f32 %v3777, %v3816
    %v3863 = vmul.f32 %v3862, 0.5
    %v3864 = vtanh.pop %v3863
    %v3865 = vadd.f32 %v3864, 1.0
    %v3866 = vmul.f32 %v3865, 0.5
    %v3867 = vadd.f32 %v3778, %v3818
    %v3868 = vmul.f32 %v3867, 0.5
    %v3869 = vtanh.pop %v3868
    %v3870 = vadd.f32 %v3869, 1.0
    %v3871 = vmul.f32 %v3870, 0.5
    %v3872 = vmul.f32 %v3866, %v3857
    %v3873 = vadd.f32 %v3779, %v3872
    %v3874 = vtanh.pop %v3873
    %v3875 = vsub.f32 1.0, %v3871
    %v3876 = vmul.f32 %v3875, %v3874
    %v3877 = vmul.f32 %v3871, %v3776
    %v3878 = vadd.f32 %v3876, %v3877
    %v3879 = vsel %vm1073, %v3878, %v3776
    %v3880 = vld [vmem:[%s1077] sm:$0xff]
    %v3881 = vld [vmem:[%s1077 + $0x8] sm:$0xff]
    %v3882 = vld [vmem:[%s1077 + $0x10] sm:$0xff]
    %v3883 = vpack.c.bf16 %v3879, %v3879
    %3884 = vmatprep.subr.bf16.mxu0 %v3528
    %3885 = vmatpush1.bf16.msra.mxu0 %v3527
    %3886 = vmatprep.subr.bf16.mxu0 %v3531
    %3887 = vmatpush1.bf16.msra.mxu0 %v3530
    %3888 = vmatprep.subr.bf16.mxu0 %v3534
    %3889 = vmatpush1.bf16.msra.mxu0 %v3533
    %3890 = vmatprep.subr.bf16.mxu0 %v3537
    %3891 = vmatpush1.bf16.msra.mxu0 %v3536
    %3892 = vmatprep.subr.bf16.mxu0 %v3540
    %3893 = vmatpush1.bf16.msra.mxu0 %v3539
    %3894 = vmatprep.subr.bf16.mxu0 %v3543
    %3895 = vmatpush1.bf16.msra.mxu0 %v3542
    %3896 = vmatprep.subr.bf16.mxu0 %v3546
    %3897 = vmatpush1.bf16.msra.mxu0 %v3545
    %3898 = vmatprep.subr.bf16.mxu0 %v3549
    %3899 = vmatpush1.bf16.msra.mxu0 %v3548
    %3900 = vmatprep.subr.bf16.mxu0 0
    %3901 = vmatpush1.bf16.msra.mxu0 0
    %3902 = vmatprep.subr.bf16.mxu0 0
    %3903 = vmatpush1.bf16.msra.mxu0 0
    %3904 = vmatprep.subr.bf16.mxu0 0
    %3905 = vmatpush1.bf16.msra.mxu0 0
    %3906 = vmatprep.subr.bf16.mxu0 0
    %3907 = vmatpush1.bf16.msra.mxu0 0
    %3908 = vmatprep.subr.bf16.mxu0 0
    %3909 = vmatpush1.bf16.msra.mxu0 0
    %3910 = vmatprep.subr.bf16.mxu0 0
    %3911 = vmatpush1.bf16.msra.mxu0 0
    %3912 = vmatprep.subr.bf16.mxu0 0
    %3913 = vmatpush1.bf16.msra.mxu0 0
    %3914 = vmatprep.subr.bf16.mxu0 0
    %3915 = vmatpush1.bf16.msra.mxu0 0
    %3916 = vmatprep.mubr.bf16.mxu0 0
    %3917 = vmatmul.mubr.bf16.gmra.mrb[0].mxu0 %v3883
    %v3918 = vpop.f32.mrb[0].mxu0
    %v3919 = vadd.f32 %v3435, %v3918
    %v3920 = vpop.f32.mrb[0].mxu0
    %v3921 = vadd.f32 %v3439, %v3920
    %v3922 = vpop.f32.mrb[0].mxu0
    %v3923 = vpop.f32.mrb[0].mxu0
    %3924 = vdwg.mxu0
    %3925 = vmatprep.subr.bf16.mxu0 0
    %3926 = vmatpush1.bf16.msra.mxu0 %v3529
    %3927 = vmatprep.subr.bf16.mxu0 0
    %3928 = vmatpush1.bf16.msra.mxu0 %v3532
    %3929 = vmatprep.subr.bf16.mxu0 0
    %3930 = vmatpush1.bf16.msra.mxu0 %v3535
    %3931 = vmatprep.subr.bf16.mxu0 0
    %3932 = vmatpush1.bf16.msra.mxu0 %v3538
    %3933 = vmatprep.subr.bf16.mxu0 0
    %3934 = vmatpush1.bf16.msra.mxu0 %v3541
    %3935 = vmatprep.subr.bf16.mxu0 0
    %3936 = vmatpush1.bf16.msra.mxu0 %v3544
    %3937 = vmatprep.subr.bf16.mxu0 0
    %3938 = vmatpush1.bf16.msra.mxu0 %v3547
    %3939 = vmatprep.subr.bf16.mxu0 0
    %3940 = vmatpush1.bf16.msra.mxu0 %v3550
    %3941 = vmatprep.subr.bf16.mxu0 0
    %3942 = vmatpush1.bf16.msra.mxu0 0
    %3943 = vmatprep.subr.bf16.mxu0 0
    %3944 = vmatpush1.bf16.msra.mxu0 0
    %3945 = vmatprep.subr.bf16.mxu0 0
    %3946 = vmatpush1.bf16.msra.mxu0 0
    %3947 = vmatprep.subr.bf16.mxu0 0
    %3948 = vmatpush1.bf16.msra.mxu0 0
    %3949 = vmatprep.subr.bf16.mxu0 0
    %3950 = vmatpush1.bf16.msra.mxu0 0
    %3951 = vmatprep.subr.bf16.mxu0 0
    %3952 = vmatpush1.bf16.msra.mxu0 0
    %3953 = vmatprep.subr.bf16.mxu0 0
    %3954 = vmatpush1.bf16.msra.mxu0 0
    %3955 = vmatprep.subr.bf16.mxu0 0
    %3956 = vmatpush1.bf16.msra.mxu0 0
    %3957 = vmatprep.mubr.bf16.mxu0 0
    %3958 = vmatmul.mubr.bf16.gmra.mrb[0].mxu0 %v3883
    %v3959 = vpop.f32.mrb[0].mxu0
    %v3960 = vadd.f32 %v3443, %v3959
    %v3961 = vpop.f32.mrb[0].mxu0
    %v3962 = vpop.f32.mrb[0].mxu0
    %v3963 = vpop.f32.mrb[0].mxu0
    %3964 = vdwg.mxu0
    %v3965 = vadd.f32 %v3880, %v3919
    %v3966 = vmul.f32 %v3965, 0.5
    %v3967 = vtanh.pop %v3966
    %v3968 = vadd.f32 %v3967, 1.0
    %v3969 = vmul.f32 %v3968, 0.5
    %v3970 = vadd.f32 %v3881, %v3921
    %v3971 = vmul.f32 %v3970, 0.5
    %v3972 = vtanh.pop %v3971
    %v3973 = vadd.f32 %v3972, 1.0
    %v3974 = vmul.f32 %v3973, 0.5
    %v3975 = vmul.f32 %v3969, %v3960
    %v3976 = vadd.f32 %v3882, %v3975
    %v3977 = vtanh.pop %v3976
    %v3978 = vsub.f32 1.0, %v3974
    %v3979 = vmul.f32 %v3978, %v3977
    %v3980 = vmul.f32 %v3974, %v3879
    %v3981 = vadd.f32 %v3979, %v3980
    %v3982 = vsel %vm1185, %v3981, %v3879
    %v3983 = vld [vmem:[%s1189] sm:$0xff]
    %v3984 = vld [vmem:[%s1189 + $0x8] sm:$0xff]
    %v3985 = vld [vmem:[%s1189 + $0x10] sm:$0xff]
    %v3986 = vpack.c.bf16 %v3982, %v3982
    %3987 = vmatprep.subr.bf16.mxu0 %v3528
    %3988 = vmatpush1.bf16.msra.mxu0 %v3527
    %3989 = vmatprep.subr.bf16.mxu0 %v3531
    %3990 = vmatpush1.bf16.msra.mxu0 %v3530
    %3991 = vmatprep.subr.bf16.mxu0 %v3534
    %3992 = vmatpush1.bf16.msra.mxu0 %v3533
    %3993 = vmatprep.subr.bf16.mxu0 %v3537
    %3994 = vmatpush1.bf16.msra.mxu0 %v3536
    %3995 = vmatprep.subr.bf16.mxu0 %v3540
    %3996 = vmatpush1.bf16.msra.mxu0 %v3539
    %3997 = vmatprep.subr.bf16.mxu0 %v3543
    %3998 = vmatpush1.bf16.msra.mxu0 %v3542
    %3999 = vmatprep.subr.bf16.mxu0 %v3546
    %4000 = vmatpush1.bf16.msra.mxu0 %v3545
    %4001 = vmatprep.subr.bf16.mxu0 %v3549
    %4002 = vmatpush1.bf16.msra.mxu0 %v3548
    %4003 = vmatprep.subr.bf16.mxu0 0
    %4004 = vmatpush1.bf16.msra.mxu0 0
    %4005 = vmatprep.subr.bf16.mxu0 0
    %4006 = vmatpush1.bf16.msra.mxu0 0
    %4007 = vmatprep.subr.bf16.mxu0 0
    %4008 = vmatpush1.bf16.msra.mxu0 0
    %4009 = vmatprep.subr.bf16.mxu0 0
    %4010 = vmatpush1.bf16.msra.mxu0 0
    %4011 = vmatprep.subr.bf16.mxu0 0
    %4012 = vmatpush1.bf16.msra.mxu0 0
    %4013 = vmatprep.subr.bf16.mxu0 0
    %4014 = vmatpush1.bf16.msra.mxu0 0
    %4015 = vmatprep.subr.bf16.mxu0 0
    %4016 = vmatpush1.bf16.msra.mxu0 0
    %4017 = vmatprep.subr.bf16.mxu0 0
    %4018 = vmatpush1.bf16.msra.mxu0 0
    %4019 = vmatprep.mubr.bf16.mxu0 0
    %4020 = vmatmul.mubr.bf16.gmra.mrb[0].mxu0 %v3986
    %v4021 = vpop.f32.mrb[0].mxu0
    %v4022 = vadd.f32 %v3435, %v4021
    %v4023 = vpop.f32.mrb[0].mxu0
    %v4024 = vadd.f32 %v3439, %v4023
    %v4025 = vpop.f32.mrb[0].mxu0
    %v4026 = vpop.f32.mrb[0].mxu0
    %4027 = vdwg.mxu0
    %4028 = vmatprep.subr.bf16.mxu0 0
    %4029 = vmatpush1.bf16.msra.mxu0 %v3529
    %4030 = vmatprep.subr.bf16.mxu0 0
    %4031 = vmatpush1.bf16.msra.mxu0 %v3532
    %4032 = vmatprep.subr.bf16.mxu0 0
    %4033 = vmatpush1.bf16.msra.mxu0 %v3535
    %4034 = vmatprep.subr.bf16.mxu0 0
    %4035 = vmatpush1.bf16.msra.mxu0 %v3538
    %4036 = vmatprep.subr.bf16.mxu0 0
    %4037 = vmatpush1.bf16.msra.mxu0 %v3541
    %4038 = vmatprep.subr.bf16.mxu0 0
    %4039 = vmatpush1.bf16.msra.mxu0 %v3544
    %4040 = vmatprep.subr.bf16.mxu0 0
    %4041 = vmatpush1.bf16.msra.mxu0 %v3547
    %4042 = vmatprep.subr.bf16.mxu0 0
    %4043 = vmatpush1.bf16.msra.mxu0 %v3550
    %4044 = vmatprep.subr.bf16.mxu0 0
    %4045 = vmatpush1.bf16.msra.mxu0 0
    %4046 = vmatprep.subr.bf16.mxu0 0
    %4047 = vmatpush1.bf16.msra.mxu0 0
    %4048 = vmatprep.subr.bf16.mxu0 0
    %4049 = vmatpush1.bf16.msra.mxu0 0
    %4050 = vmatprep.subr.bf16.mxu0 0
    %4051 = vmatpush1.bf16.msra.mxu0 0
    %4052 = vmatprep.subr.bf16.mxu0 0
    %4053 = vmatpush1.bf16.msra.mxu0 0
    %4054 = vmatprep.subr.bf16.mxu0 0
    %4055 = vmatpush1.bf16.msra.mxu0 0
    %4056 = vmatprep.subr.bf16.mxu0 0
    %4057 = vmatpush1.bf16.msra.mxu0 0
    %4058 = vmatprep.subr.bf16.mxu0 0
    %4059 = vmatpush1.bf16.msra.mxu0 0
    %4060 = vmatprep.mubr.bf16.mxu0 0
    %4061 = vmatmul.mubr.bf16.gmra.mrb[0].mxu0 %v3986
    %v4062 = vpop.f32.mrb[0].mxu0
    %v4063 = vadd.f32 %v3443, %v4062
    %v4064 = vpop.f32.mrb[0].mxu0
    %v4065 = vpop.f32.mrb[0].mxu0
    %v4066 = vpop.f32.mrb[0].mxu0
    %4067 = vdwg.mxu0
    %v4068 = vadd.f32 %v3983, %v4022
    %v4069 = vmul.f32 %v4068, 0.5
    %v4070 = vtanh.pop %v4069
    %v4071 = vadd.f32 %v4070, 1.0
    %v4072 = vmul.f32 %v4071, 0.5
    %v4073 = vadd.f32 %v3984, %v4024
    %v4074 = vmul.f32 %v4073, 0.5
    %v4075 = vtanh.pop %v4074
    %v4076 = vadd.f32 %v4075, 1.0
    %v4077 = vmul.f32 %v4076, 0.5
    %v4078 = vmul.f32 %v4072, %v4063
    %v4079 = vadd.f32 %v3985, %v4078
    %v4080 = vtanh.pop %v4079
    %v4081 = vsub.f32 1.0, %v4077
    %v4082 = vmul.f32 %v4081, %v4080
    %v4083 = vmul.f32 %v4077, %v3982
    %v4084 = vadd.f32 %v4082, %v4083
    %v4085 = vsel %vm1297, %v4084, %v3982
    %v4086 = vld [vmem:[%s1301] sm:$0xff]
    %v4087 = vld [vmem:[%s1301 + $0x8] sm:$0xff]
    %v4088 = vld [vmem:[%s1301 + $0x10] sm:$0xff]
    %v4089 = vpack.c.bf16 %v4085, %v4085
    %4090 = vmatprep.subr.bf16.mxu0 %v3528
    %4091 = vmatpush1.bf16.msra.mxu0 %v3527
    %4092 = vmatprep.subr.bf16.mxu0 %v3531
    %4093 = vmatpush1.bf16.msra.mxu0 %v3530
    %4094 = vmatprep.subr.bf16.mxu0 %v3534
    %4095 = vmatpush1.bf16.msra.mxu0 %v3533
    %4096 = vmatprep.subr.bf16.mxu0 %v3537
    %4097 = vmatpush1.bf16.msra.mxu0 %v3536
    %4098 = vmatprep.subr.bf16.mxu0 %v3540
    %4099 = vmatpush1.bf16.msra.mxu0 %v3539
    %4100 = vmatprep.subr.bf16.mxu0 %v3543
    %4101 = vmatpush1.bf16.msra.mxu0 %v3542
    %4102 = vmatprep.subr.bf16.mxu0 %v3546
    %4103 = vmatpush1.bf16.msra.mxu0 %v3545
    %4104 = vmatprep.subr.bf16.mxu0 %v3549
    %4105 = vmatpush1.bf16.msra.mxu0 %v3548
    %4106 = vmatprep.subr.bf16.mxu0 0
    %4107 = vmatpush1.bf16.msra.mxu0 0
    %4108 = vmatprep.subr.bf16.mxu0 0
    %4109 = vmatpush1.bf16.msra.mxu0 0
    %4110 = vmatprep.subr.bf16.mxu0 0
    %4111 = vmatpush1.bf16.msra.mxu0 0
    %4112 = vmatprep.subr.bf16.mxu0 0
    %4113 = vmatpush1.bf16.msra.mxu0 0
    %4114 = vmatprep.subr.bf16.mxu0 0
    %4115 = vmatpush1.bf16.msra.mxu0 0
    %4116 = vmatprep.subr.bf16.mxu0 0
    %4117 = vmatpush1.bf16.msra.mxu0 0
    %4118 = vmatprep.subr.bf16.mxu0 0
    %4119 = vmatpush1.bf16.msra.mxu0 0
    %4120 = vmatprep.subr.bf16.mxu0 0
    %4121 = vmatpush1.bf16.msra.mxu0 0
    %4122 = vmatprep.mubr.bf16.mxu0 0
    %4123 = vmatmul.mubr.bf16.gmra.mrb[0].mxu0 %v4089
    %v4124 = vpop.f32.mrb[0].mxu0
    %v4125 = vadd.f32 %v3435, %v4124
    %v4126 = vpop.f32.mrb[0].mxu0
    %v4127 = vadd.f32 %v3439, %v4126
    %v4128 = vpop.f32.mrb[0].mxu0
    %v4129 = vpop.f32.mrb[0].mxu0
    %4130 = vdwg.mxu0
    %4131 = vmatprep.subr.bf16.mxu0 0
    %4132 = vmatpush1.bf16.msra.mxu0 %v3529
    %4133 = vmatprep.subr.bf16.mxu0 0
    %4134 = vmatpush1.bf16.msra.mxu0 %v3532
    %4135 = vmatprep.subr.bf16.mxu0 0
    %4136 = vmatpush1.bf16.msra.mxu0 %v3535
    %4137 = vmatprep.subr.bf16.mxu0 0
    %4138 = vmatpush1.bf16.msra.mxu0 %v3538
    %4139 = vmatprep.subr.bf16.mxu0 0
    %4140 = vmatpush1.bf16.msra.mxu0 %v3541
    %4141 = vmatprep.subr.bf16.mxu0 0
    %4142 = vmatpush1.bf16.msra.mxu0 %v3544
    %4143 = vmatprep.subr.bf16.mxu0 0
    %4144 = vmatpush1.bf16.msra.mxu0 %v3547
    %4145 = vmatprep.subr.bf16.mxu0 0
    %4146 = vmatpush1.bf16.msra.mxu0 %v3550
    %4147 = vmatprep.subr.bf16.mxu0 0
    %4148 = vmatpush1.bf16.msra.mxu0 0
    %4149 = vmatprep.subr.bf16.mxu0 0
    %4150 = vmatpush1.bf16.msra.mxu0 0
    %4151 = vmatprep.subr.bf16.mxu0 0
    %4152 = vmatpush1.bf16.msra.mxu0 0
    %4153 = vmatprep.subr.bf16.mxu0 0
    %4154 = vmatpush1.bf16.msra.mxu0 0
    %4155 = vmatprep.subr.bf16.mxu0 0
    %4156 = vmatpush1.bf16.msra.mxu0 0
    %4157 = vmatprep.subr.bf16.mxu0 0
    %4158 = vmatpush1.bf16.msra.mxu0 0
    %4159 = vmatprep.subr.bf16.mxu0 0
    %4160 = vmatpush1.bf16.msra.mxu0 0
    %4161 = vmatprep.subr.bf16.mxu0 0
    %4162 = vmatpush1.bf16.msra.mxu0 0
    %4163 = vmatprep.mubr.bf16.mxu0 0
    %4164 = vmatmul.mubr.bf16.gmra.mrb[0].mxu0 %v4089
    %v4165 = vpop.f32.mrb[0].mxu0
    %v4166 = vadd.f32 %v3443, %v4165
    %v4167 = vpop.f32.mrb[0].mxu0
    %v4168 = vpop.f32.mrb[0].mxu0
    %v4169 = vpop.f32.mrb[0].mxu0
    %4170 = vdwg.mxu0
    %v4171 = vadd.f32 %v4086, %v4125
    %v4172 = vmul.f32 %v4171, 0.5
    %v4173 = vtanh.pop %v4172
    %v4174 = vadd.f32 %v4173, 1.0
    %v4175 = vmul.f32 %v4174, 0.5
    %v4176 = vadd.f32 %v4087, %v4127
    %v4177 = vmul.f32 %v4176, 0.5
    %v4178 = vtanh.pop %v4177
    %v4179 = vadd.f32 %v4178, 1.0
    %v4180 = vmul.f32 %v4179, 0.5
    %v4181 = vmul.f32 %v4175, %v4166
    %v4182 = vadd.f32 %v4088, %v4181
    %v4183 = vtanh.pop %v4182
    %v4184 = vsub.f32 1.0, %v4180
    %v4185 = vmul.f32 %v4184, %v4183
    %v4186 = vmul.f32 %v4180, %v4085
    %v4187 = vadd.f32 %v4185, %v4186
    %v4188 = vsel %vm1409, %v4187, %v4085
    %v4189 = vld [vmem:[%s1413] sm:$0xff]
    %v4190 = vld [vmem:[%s1413 + $0x8] sm:$0xff]
    %v4191 = vld [vmem:[%s1413 + $0x10] sm:$0xff]
    %v4192 = vpack.c.bf16 %v4188, %v4188
    %4193 = vmatprep.subr.bf16.mxu0 %v3528
    %4194 = vmatpush1.bf16.msra.mxu0 %v3527
    %4195 = vmatprep.subr.bf16.mxu0 %v3531
    %4196 = vmatpush1.bf16.msra.mxu0 %v3530
    %4197 = vmatprep.subr.bf16.mxu0 %v3534
    %4198 = vmatpush1.bf16.msra.mxu0 %v3533
    %4199 = vmatprep.subr.bf16.mxu0 %v3537
    %4200 = vmatpush1.bf16.msra.mxu0 %v3536
    %4201 = vmatprep.subr.bf16.mxu0 %v3540
    %4202 = vmatpush1.bf16.msra.mxu0 %v3539
    %4203 = vmatprep.subr.bf16.mxu0 %v3543
    %4204 = vmatpush1.bf16.msra.mxu0 %v3542
    %4205 = vmatprep.subr.bf16.mxu0 %v3546
    %4206 = vmatpush1.bf16.msra.mxu0 %v3545
    %4207 = vmatprep.subr.bf16.mxu0 %v3549
    %4208 = vmatpush1.bf16.msra.mxu0 %v3548
    %4209 = vmatprep.subr.bf16.mxu0 0
    %4210 = vmatpush1.bf16.msra.mxu0 0
    %4211 = vmatprep.subr.bf16.mxu0 0
    %4212 = vmatpush1.bf16.msra.mxu0 0
    %4213 = vmatprep.subr.bf16.mxu0 0
    %4214 = vmatpush1.bf16.msra.mxu0 0
    %4215 = vmatprep.subr.bf16.mxu0 0
    %4216 = vmatpush1.bf16.msra.mxu0 0
    %4217 = vmatprep.subr.bf16.mxu0 0
    %4218 = vmatpush1.bf16.msra.mxu0 0
    %4219 = vmatprep.subr.bf16.mxu0 0
    %4220 = vmatpush1.bf16.msra.mxu0 0
    %4221 = vmatprep.subr.bf16.mxu0 0
    %4222 = vmatpush1.bf16.msra.mxu0 0
    %4223 = vmatprep.subr.bf16.mxu0 0
    %4224 = vmatpush1.bf16.msra.mxu0 0
    %4225 = vmatprep.mubr.bf16.mxu0 0
    %4226 = vmatmul.mubr.bf16.gmra.mrb[0].mxu0 %v4192
    %v4227 = vpop.f32.mrb[0].mxu0
    %v4228 = vadd.f32 %v3435, %v4227
    %v4229 = vpop.f32.mrb[0].mxu0
    %v4230 = vadd.f32 %v3439, %v4229
    %v4231 = vpop.f32.mrb[0].mxu0
    %v4232 = vpop.f32.mrb[0].mxu0
    %4233 = vdwg.mxu0
    %4234 = vmatprep.subr.bf16.mxu0 0
    %4235 = vmatpush1.bf16.msra.mxu0 %v3529
    %4236 = vmatprep.subr.bf16.mxu0 0
    %4237 = vmatpush1.bf16.msra.mxu0 %v3532
    %4238 = vmatprep.subr.bf16.mxu0 0
    %4239 = vmatpush1.bf16.msra.mxu0 %v3535
    %4240 = vmatprep.subr.bf16.mxu0 0
    %4241 = vmatpush1.bf16.msra.mxu0 %v3538
    %4242 = vmatprep.subr.bf16.mxu0 0
    %4243 = vmatpush1.bf16.msra.mxu0 %v3541
    %4244 = vmatprep.subr.bf16.mxu0 0
    %4245 = vmatpush1.bf16.msra.mxu0 %v3544
    %4246 = vmatprep.subr.bf16.mxu0 0
    %4247 = vmatpush1.bf16.msra.mxu0 %v3547
    %4248 = vmatprep.subr.bf16.mxu0 0
    %4249 = vmatpush1.bf16.msra.mxu0 %v3550
    %4250 = vmatprep.subr.bf16.mxu0 0
    %4251 = vmatpush1.bf16.msra.mxu0 0
    %4252 = vmatprep.subr.bf16.mxu0 0
    %4253 = vmatpush1.bf16.msra.mxu0 0
    %4254 = vmatprep.subr.bf16.mxu0 0
    %4255 = vmatpush1.bf16.msra.mxu0 0
    %4256 = vmatprep.subr.bf16.mxu0 0
    %4257 = vmatpush1.bf16.msra.mxu0 0
    %4258 = vmatprep.subr.bf16.mxu0 0
    %4259 = vmatpush1.bf16.msra.mxu0 0
    %4260 = vmatprep.subr.bf16.mxu0 0
    %4261 = vmatpush1.bf16.msra.mxu0 0
    %4262 = vmatprep.subr.bf16.mxu0 0
    %4263 = vmatpush1.bf16.msra.mxu0 0
    %4264 = vmatprep.subr.bf16.mxu0 0
    %4265 = vmatpush1.bf16.msra.mxu0 0
    %4266 = vmatprep.mubr.bf16.mxu0 0
    %4267 = vmatmul.mubr.bf16.gmra.mrb[0].mxu0 %v4192
    %v4268 = vpop.f32.mrb[0].mxu0
    %v4269 = vadd.f32 %v3443, %v4268
    %v4270 = vpop.f32.mrb[0].mxu0
    %v4271 = vpop.f32.mrb[0].mxu0
    %v4272 = vpop.f32.mrb[0].mxu0
    %4273 = vdwg.mxu0
    %v4274 = vadd.f32 %v4189, %v4228
    %v4275 = vmul.f32 %v4274, 0.5
    %v4276 = vtanh.pop %v4275
    %v4277 = vadd.f32 %v4276, 1.0
    %v4278 = vmul.f32 %v4277, 0.5
    %v4279 = vadd.f32 %v4190, %v4230
    %v4280 = vmul.f32 %v4279, 0.5
    %v4281 = vtanh.pop %v4280
    %v4282 = vadd.f32 %v4281, 1.0
    %v4283 = vmul.f32 %v4282, 0.5
    %v4284 = vmul.f32 %v4278, %v4269
    %v4285 = vadd.f32 %v4191, %v4284
    %v4286 = vtanh.pop %v4285
    %v4287 = vsub.f32 1.0, %v4283
    %v4288 = vmul.f32 %v4287, %v4286
    %v4289 = vmul.f32 %v4283, %v4188
    %v4290 = vadd.f32 %v4288, %v4289
    %v4291 = vsel %vm1521, %v4290, %v4188
    %v4292 = vld [vmem:[%s1525] sm:$0xff]
    %v4293 = vld [vmem:[%s1525 + $0x8] sm:$0xff]
    %v4294 = vld [vmem:[%s1525 + $0x10] sm:$0xff]
    %v4295 = vpack.c.bf16 %v4291, %v4291
    %4296 = vmatprep.subr.bf16.mxu0 %v3528
    %4297 = vmatpush1.bf16.msra.mxu0 %v3527
    %4298 = vmatprep.subr.bf16.mxu0 %v3531
    %4299 = vmatpush1.bf16.msra.mxu0 %v3530
    %4300 = vmatprep.subr.bf16.mxu0 %v3534
    %4301 = vmatpush1.bf16.msra.mxu0 %v3533
    %4302 = vmatprep.subr.bf16.mxu0 %v3537
    %4303 = vmatpush1.bf16.msra.mxu0 %v3536
    %4304 = vmatprep.subr.bf16.mxu0 %v3540
    %4305 = vmatpush1.bf16.msra.mxu0 %v3539
    %4306 = vmatprep.subr.bf16.mxu0 %v3543
    %4307 = vmatpush1.bf16.msra.mxu0 %v3542
    %4308 = vmatprep.subr.bf16.mxu0 %v3546
    %4309 = vmatpush1.bf16.msra.mxu0 %v3545
    %4310 = vmatprep.subr.bf16.mxu0 %v3549
    %4311 = vmatpush1.bf16.msra.mxu0 %v3548
    %4312 = vmatprep.subr.bf16.mxu0 0
    %4313 = vmatpush1.bf16.msra.mxu0 0
    %4314 = vmatprep.subr.bf16.mxu0 0
    %4315 = vmatpush1.bf16.msra.mxu0 0
    %4316 = vmatprep.subr.bf16.mxu0 0
    %4317 = vmatpush1.bf16.msra.mxu0 0
    %4318 = vmatprep.subr.bf16.mxu0 0
    %4319 = vmatpush1.bf16.msra.mxu0 0
    %4320 = vmatprep.subr.bf16.mxu0 0
    %4321 = vmatpush1.bf16.msra.mxu0 0
    %4322 = vmatprep.subr.bf16.mxu0 0
    %4323 = vmatpush1.bf16.msra.mxu0 0
    %4324 = vmatprep.subr.bf16.mxu0 0
    %4325 = vmatpush1.bf16.msra.mxu0 0
    %4326 = vmatprep.subr.bf16.mxu0 0
    %4327 = vmatpush1.bf16.msra.mxu0 0
    %4328 = vmatprep.mubr.bf16.mxu0 0
    %4329 = vmatmul.mubr.bf16.gmra.mrb[0].mxu0 %v4295
    %v4330 = vpop.f32.mrb[0].mxu0
    %v4331 = vadd.f32 %v3435, %v4330
    %v4332 = vpop.f32.mrb[0].mxu0
    %v4333 = vadd.f32 %v3439, %v4332
    %v4334 = vpop.f32.mrb[0].mxu0
    %v4335 = vpop.f32.mrb[0].mxu0
    %4336 = vdwg.mxu0
    %4337 = vmatprep.subr.bf16.mxu0 0
    %4338 = vmatpush1.bf16.msra.mxu0 %v3529
    %4339 = vmatprep.subr.bf16.mxu0 0
    %4340 = vmatpush1.bf16.msra.mxu0 %v3532
    %4341 = vmatprep.subr.bf16.mxu0 0
    %4342 = vmatpush1.bf16.msra.mxu0 %v3535
    %4343 = vmatprep.subr.bf16.mxu0 0
    %4344 = vmatpush1.bf16.msra.mxu0 %v3538
    %4345 = vmatprep.subr.bf16.mxu0 0
    %4346 = vmatpush1.bf16.msra.mxu0 %v3541
    %4347 = vmatprep.subr.bf16.mxu0 0
    %4348 = vmatpush1.bf16.msra.mxu0 %v3544
    %4349 = vmatprep.subr.bf16.mxu0 0
    %4350 = vmatpush1.bf16.msra.mxu0 %v3547
    %4351 = vmatprep.subr.bf16.mxu0 0
    %4352 = vmatpush1.bf16.msra.mxu0 %v3550
    %4353 = vmatprep.subr.bf16.mxu0 0
    %4354 = vmatpush1.bf16.msra.mxu0 0
    %4355 = vmatprep.subr.bf16.mxu0 0
    %4356 = vmatpush1.bf16.msra.mxu0 0
    %4357 = vmatprep.subr.bf16.mxu0 0
    %4358 = vmatpush1.bf16.msra.mxu0 0
    %4359 = vmatprep.subr.bf16.mxu0 0
    %4360 = vmatpush1.bf16.msra.mxu0 0
    %4361 = vmatprep.subr.bf16.mxu0 0
    %4362 = vmatpush1.bf16.msra.mxu0 0
    %4363 = vmatprep.subr.bf16.mxu0 0
    %4364 = vmatpush1.bf16.msra.mxu0 0
    %4365 = vmatprep.subr.bf16.mxu0 0
    %4366 = vmatpush1.bf16.msra.mxu0 0
    %4367 = vmatprep.subr.bf16.mxu0 0
    %4368 = vmatpush1.bf16.msra.mxu0 0
    %4369 = vmatprep.mubr.bf16.mxu0 0
    %4370 = vmatmul.mubr.bf16.gmra.mrb[0].mxu0 %v4295
    %v4371 = vpop.f32.mrb[0].mxu0
    %v4372 = vadd.f32 %v3443, %v4371
    %v4373 = vpop.f32.mrb[0].mxu0
    %v4374 = vpop.f32.mrb[0].mxu0
    %v4375 = vpop.f32.mrb[0].mxu0
    %4376 = vdwg.mxu0
    %v4377 = vadd.f32 %v4292, %v4331
    %v4378 = vmul.f32 %v4377, 0.5
    %v4379 = vtanh.pop %v4378
    %v4380 = vadd.f32 %v4379, 1.0
    %v4381 = vmul.f32 %v4380, 0.5
    %v4382 = vadd.f32 %v4293, %v4333
    %v4383 = vmul.f32 %v4382, 0.5
    %v4384 = vtanh.pop %v4383
    %v4385 = vadd.f32 %v4384, 1.0
    %v4386 = vmul.f32 %v4385, 0.5
    %v4387 = vmul.f32 %v4381, %v4372
    %v4388 = vadd.f32 %v4294, %v4387
    %v4389 = vtanh.pop %v4388
    %v4390 = vsub.f32 1.0, %v4386
    %v4391 = vmul.f32 %v4390, %v4389
    %v4392 = vmul.f32 %v4386, %v4291
    %v4393 = vadd.f32 %v4391, %v4392
    %v4394 = vsel %vm1633, %v4393, %v4291
    %v4395 = vld [vmem:[%s14] sm:$0xff]
    %v4396 = vld [vmem:[%s14 + $0x8] sm:$0xff]
    %v4397 = vld [vmem:[%s14 + $0x10] sm:$0xff]
    %v4398 = vld [vmem:[%s14 + $0x18] sm:$0xff]
    %v4399 = vld [vmem:[%s14 + $0x20] sm:$0xff]
    %v4400 = vld [vmem:[%s14 + $0x28] sm:$0xff]
    %v4401 = vld [vmem:[%s14 + $0x30] sm:$0xff]
    %v4402 = vld [vmem:[%s14 + $0x38] sm:$0xff]
    %v4403 = vld [vmem:[%s14 + $0x40] sm:$0xff]
    %v4404 = vld [vmem:[%s14 + $0x48] sm:$0xff]
    %v4405 = vld [vmem:[%s14 + $0x50] sm:$0xff]
    %v4406 = vld [vmem:[%s14 + $0x58] sm:$0xff]
    %v4407 = vld [vmem:[%s14 + $0x60] sm:$0xff]
    %v4408 = vld [vmem:[%s14 + $0x68] sm:$0xff]
    %v4409 = vld [vmem:[%s14 + $0x70] sm:$0xff]
    %v4410 = vld [vmem:[%s14 + $0x78] sm:$0xff]
    %v4411 = vld [vmem:[%s14 + $0x80] sm:$0xff]
    %v4412 = vld [vmem:[%s14 + $0x88] sm:$0xff]
    %v4413 = vld [vmem:[%s14 + $0x90] sm:$0xff]
    %v4414 = vld [vmem:[%s14 + $0x98] sm:$0xff]
    %v4415 = vld [vmem:[%s14 + $0xa0] sm:$0xff]
    %v4416 = vld [vmem:[%s14 + $0xa8] sm:$0xff]
    %v4417 = vld [vmem:[%s14 + $0xb0] sm:$0xff]
    %v4418 = vld [vmem:[%s14 + $0xb8] sm:$0xff]
    %v4419 = vld [vmem:[%s14 + $0xc0] sm:$0xff]
    %v4420 = vld [vmem:[%s14 + $0xc8] sm:$0xff]
    %v4421 = vld [vmem:[%s14 + $0xd0] sm:$0xff]
    %v4422 = vld [vmem:[%s14 + $0xd8] sm:$0xff]
    %v4423 = vld [vmem:[%s14 + $0xe0] sm:$0xff]
    %v4424 = vld [vmem:[%s14 + $0xe8] sm:$0xff]
    %v4425 = vld [vmem:[%s14 + $0xf0] sm:$0xff]
    %v4426 = vld [vmem:[%s14 + $0xf8] sm:$0xff]
    %v4427 = vld [vmem:[#allocation11] sm:$0x3]
    %v4429 = vlaneseq
    %v4430 = vshrl.u32 %v4429, 7
    %v4431 = vsub.s32 0, %v4430
    %v4432 = vrot.slane %v4427, %v4431
    %v4433 = vlaneseq
    %v4434 = vshrl.u32 %v4433, 7
    %v4435 = vsub.s32 1, %v4434
    %v4436 = vrot.slane %v4427, %v4435
    %4439 = vmatprep.subr.mxu0 %v4396
    %4440 = vmatpush1.msra.mxu0 %v4395
    %4441 = vmatprep.subr.mxu0 %v4398
    %4442 = vmatpush1.msra.mxu0 %v4397
    %4443 = vmatprep.subr.mxu0 %v4400
    %4444 = vmatpush1.msra.mxu0 %v4399
    %4445 = vmatprep.subr.mxu0 %v4402
    %4446 = vmatpush1.msra.mxu0 %v4401
    %4447 = vmatprep.subr.mxu0 %v4404
    %4448 = vmatpush1.msra.mxu0 %v4403
    %4449 = vmatprep.subr.mxu0 %v4406
    %4450 = vmatpush1.msra.mxu0 %v4405
    %4451 = vmatprep.subr.mxu0 %v4408
    %4452 = vmatpush1.msra.mxu0 %v4407
    %4453 = vmatprep.subr.mxu0 %v4410
    %4454 = vmatpush1.msra.mxu0 %v4409
    %4455 = vmatprep.subr.mxu0 %v4412
    %4456 = vmatpush1.msra.mxu0 %v4411
    %4457 = vmatprep.subr.mxu0 %v4414
    %4458 = vmatpush1.msra.mxu0 %v4413
    %4459 = vmatprep.subr.mxu0 %v4416
    %4460 = vmatpush1.msra.mxu0 %v4415
    %4461 = vmatprep.subr.mxu0 %v4418
    %4462 = vmatpush1.msra.mxu0 %v4417
    %4463 = vmatprep.subr.mxu0 %v4420
    %4464 = vmatpush1.msra.mxu0 %v4419
    %4465 = vmatprep.subr.mxu0 %v4422
    %4466 = vmatpush1.msra.mxu0 %v4421
    %4467 = vmatprep.subr.mxu0 %v4424
    %4468 = vmatpush1.msra.mxu0 %v4423
    %4469 = vmatprep.subr.mxu0 %v4426
    %4470 = vmatpush1.msra.mxu0 %v4425
    %4471 = vmatprep.subr.mxu0 0.0
    %4472 = vmatpush1.msra.mxu0 0.0
    %4473 = vmatprep.subr.mxu0 0.0
    %4474 = vmatpush1.msra.mxu0 0.0
    %4475 = vmatprep.subr.mxu0 0.0
    %4476 = vmatpush1.msra.mxu0 0.0
    %4477 = vmatprep.subr.mxu0 0.0
    %4478 = vmatpush1.msra.mxu0 0.0
    %4479 = vmatprep.subr.mxu0 0.0
    %4480 = vmatpush1.msra.mxu0 0.0
    %4481 = vmatprep.subr.mxu0 0.0
    %4482 = vmatpush1.msra.mxu0 0.0
    %4483 = vmatprep.subr.mxu0 0.0
    %4484 = vmatpush1.msra.mxu0 0.0
    %4485 = vmatprep.subr.mxu0 0.0
    %4486 = vmatpush1.msra.mxu0 0.0
    %4487 = vmatprep.subr.mxu0 0.0
    %4488 = vmatpush1.msra.mxu0 0.0
    %4489 = vmatprep.subr.mxu0 0.0
    %4490 = vmatpush1.msra.mxu0 0.0
    %4491 = vmatprep.subr.mxu0 0.0
    %4492 = vmatpush1.msra.mxu0 0.0
    %4493 = vmatprep.subr.mxu0 0.0
    %4494 = vmatpush1.msra.mxu0 0.0
    %4495 = vmatprep.subr.mxu0 0.0
    %4496 = vmatpush1.msra.mxu0 0.0
    %4497 = vmatprep.subr.mxu0 0.0
    %4498 = vmatpush1.msra.mxu0 0.0
    %4499 = vmatprep.subr.mxu0 0.0
    %4500 = vmatpush1.msra.mxu0 0.0
    %4501 = vmatprep.subr.mxu0 0.0
    %4502 = vmatpush1.msra.mxu0 0.0
    %4503 = vmatprep.mubr.f32.mxu0 0.0
    %4504 = vmatmul.mubr.f32.gmra.mrb[0].mxu0 %v4394
    %v4505 = vpop.f32.mrb[0].mxu0
    %v4506 = vadd.f32 %v4432, %v4505
    %v4507 = vpop.f32.mrb[0].mxu0
    %v4508 = vadd.f32 %v4436, %v4507
    %4509 = vdwg.mxu0
    %v4510 = vtanh.pop %v4506
    %v4511 = vtanh.pop %v4508
    %v4512 = vld [vmem:[%s16] sm:$0xff]
    %v4513 = vld [vmem:[%s16 + $0x8] sm:$0xff]
    %v4514 = vld [vmem:[%s16 + $0x10] sm:$0xff]
    %v4515 = vld [vmem:[%s16 + $0x18] sm:$0xff]
    %v4516 = vld [vmem:[%s16 + $0x20] sm:$0xff]
    %v4517 = vld [vmem:[%s16 + $0x28] sm:$0xff]
    %v4518 = vld [vmem:[%s16 + $0x30] sm:$0xff]
    %v4519 = vld [vmem:[%s16 + $0x38] sm:$0xff]
    %v4520 = vld [vmem:[%s16 + $0x40] sm:$0xff]
    %v4521 = vld [vmem:[%s16 + $0x48] sm:$0xff]
    %v4522 = vld [vmem:[%s16 + $0x50] sm:$0xff]
    %v4523 = vld [vmem:[%s16 + $0x58] sm:$0xff]
    %v4524 = vld [vmem:[%s16 + $0x60] sm:$0xff]
    %v4525 = vld [vmem:[%s16 + $0x68] sm:$0xff]
    %v4526 = vld [vmem:[%s16 + $0x70] sm:$0xff]
    %v4527 = vld [vmem:[%s16 + $0x78] sm:$0xff]
    %v4528 = vld [vmem:[%s16 + $0x80] sm:$0xff]
    %v4529 = vld [vmem:[%s17] sm:$0x1]
    %v4531 = vlaneseq
    %v4532 = vshrl.u32 %v4531, 7
    %v4533 = vsub.s32 0, %v4532
    %v4534 = vrot.slane %v4529, %v4533
    %v4537 = vsel %vm341, %v4511, 0
    %4539 = vmatprep.subr.mxu0 0.0
    %4540 = vmatpush1.msra.mxu0 %v4512
    %4541 = vmatprep.subr.mxu0 0.0
    %4542 = vmatpush1.msra.mxu0 %v4513
    %4543 = vmatprep.subr.mxu0 0.0
    %4544 = vmatpush1.msra.mxu0 %v4514
    %4545 = vmatprep.subr.mxu0 0.0
    %4546 = vmatpush1.msra.mxu0 %v4515
    %4547 = vmatprep.subr.mxu0 0.0
    %4548 = vmatpush1.msra.mxu0 %v4516
    %4549 = vmatprep.subr.mxu0 0.0
    %4550 = vmatpush1.msra.mxu0 %v4517
    %4551 = vmatprep.subr.mxu0 0.0
    %4552 = vmatpush1.msra.mxu0 %v4518
    %4553 = vmatprep.subr.mxu0 0.0
    %4554 = vmatpush1.msra.mxu0 %v4519
    %4555 = vmatprep.subr.mxu0 0.0
    %4556 = vmatpush1.msra.mxu0 %v4520
    %4557 = vmatprep.subr.mxu0 0.0
    %4558 = vmatpush1.msra.mxu0 %v4521
    %4559 = vmatprep.subr.mxu0 0.0
    %4560 = vmatpush1.msra.mxu0 %v4522
    %4561 = vmatprep.subr.mxu0 0.0
    %4562 = vmatpush1.msra.mxu0 %v4523
    %4563 = vmatprep.subr.mxu0 0.0
    %4564 = vmatpush1.msra.mxu0 %v4524
    %4565 = vmatprep.subr.mxu0 0.0
    %4566 = vmatpush1.msra.mxu0 %v4525
    %4567 = vmatprep.subr.mxu0 0.0
    %4568 = vmatpush1.msra.mxu0 %v4526
    %4569 = vmatprep.subr.mxu0 0.0
    %4570 = vmatpush1.msra.mxu0 %v4527
    %4571 = vmatprep.subr.mxu0 0.0
    %4572 = vmatpush1.msra.mxu0 %v4528
    %4573 = vmatprep.subr.mxu0 0.0
    %4574 = vmatpush1.msra.mxu0 0.0
    %4575 = vmatprep.subr.mxu0 0.0
    %4576 = vmatpush1.msra.mxu0 0.0
    %4577 = vmatprep.subr.mxu0 0.0
    %4578 = vmatpush1.msra.mxu0 0.0
    %4579 = vmatprep.subr.mxu0 0.0
    %4580 = vmatpush1.msra.mxu0 0.0
    %4581 = vmatprep.subr.mxu0 0.0
    %4582 = vmatpush1.msra.mxu0 0.0
    %4583 = vmatprep.subr.mxu0 0.0
    %4584 = vmatpush1.msra.mxu0 0.0
    %4585 = vmatprep.subr.mxu0 0.0
    %4586 = vmatpush1.msra.mxu0 0.0
    %4587 = vmatprep.subr.mxu0 0.0
    %4588 = vmatpush1.msra.mxu0 0.0
    %4589 = vmatprep.subr.mxu0 0.0
    %4590 = vmatpush1.msra.mxu0 0.0
    %4591 = vmatprep.subr.mxu0 0.0
    %4592 = vmatpush1.msra.mxu0 0.0
    %4593 = vmatprep.subr.mxu0 0.0
    %4594 = vmatpush1.msra.mxu0 0.0
    %4595 = vmatprep.subr.mxu0 0.0
    %4596 = vmatpush1.msra.mxu0 0.0
    %4597 = vmatprep.subr.mxu0 0.0
    %4598 = vmatpush1.msra.mxu0 0.0
    %4599 = vmatprep.subr.mxu0 0.0
    %4600 = vmatpush1.msra.mxu0 0.0
    %4601 = vmatprep.subr.mxu0 0.0
    %4602 = vmatpush1.msra.mxu0 0.0
    %4603 = vmatprep.mubr.f32.mxu0 %v4537
    %4604 = vmatmul.mubr.f32.gmra.mrb[0].mxu0 %v4510
    %v4605 = vpop.f32.mrb[0].mxu0
    %v4606 = vadd.f32 %v4534, %v4605
    %v4607 = vpop.f32.mrb[0].mxu0
    %4608 = vdwg.mxu0
    %4609 = vst [vmem:[%s18] sm:$0xff] %v4606
    // Predicated region
    $region94: #{embed_gru_classifier_forward.1} parent=1 // pred_check
      _
    $region95: #{embed_gru_classifier_forward.1} parent=1 // pred_check_branch
      %4611 = sbr.rel (0) target = $region97
    $region96: #{embed_gru_classifier_forward.1} parent=1 // pred_region
      _
    $region97: #{embed_gru_classifier_forward.1} parent=1 // pred_fallthru
      _
    // Predicated region
    $region98: #{embed_gru_classifier_forward.1} parent=1 // pred_check
      _
    $region99: #{embed_gru_classifier_forward.1} parent=1 // pred_check_branch
      %4613 = sbr.rel (0) target = $region101
    $region100: #{embed_gru_classifier_forward.1} parent=1 // pred_region
      _
    $region101: #{embed_gru_classifier_forward.1} parent=1 // pred_fallthru
      _
    %4614 = vsyncpa [#allocation5], 1
    %4615 = vsyncpa [#allocation7], 1
    %4616 = vsyncpa [#allocation10], 1

</llo_original>
